<compile_context>
chip_gen: v5e
topology: v5e:2x2
jax: 0.10.0
libtpu: 0.0.40
codegen_flags: <defaults>
</compile_context>

<pallas_src>
import math
import functools

import jax
import jax.numpy as jnp
from jax import lax
from jax.experimental import pallas as pl
from jax.experimental.pallas import tpu as pltpu


# ------------------------------ fused kernel --------------------------------

def _transformer_kernel(*refs, S_src, S_tgt, E, H, L):
    """Full encoder/decoder forward for ONE batch element (grid axis = batch)."""
    Dh = E // H
    f32 = jnp.float32

    (src_ref, tgt_ref, ln_red,
     enc_wqkv, enc_bqkv, enc_wo, enc_bo, enc_ln1_g, enc_ln1_b,
     enc_w1, enc_b1, enc_w2, enc_b2, enc_ln2_g, enc_ln2_b,
     enc_norm_g, enc_norm_b,
     dec_sa_wqkv, dec_sa_bqkv, dec_sa_wo, dec_sa_bo, dec_ln1_g, dec_ln1_b,
     dec_ca_wq, dec_ca_bq, dec_ca_wkv, dec_ca_bkv, dec_ca_wo, dec_ca_bo,
     dec_ln2_g, dec_ln2_b,
     dec_w1, dec_b1, dec_w2, dec_b2, dec_ln3_g, dec_ln3_b,
     dec_norm_g, dec_norm_b,
     fc_w, fc_b,
     out_ref) = refs

    def dot(a, b):
        return jnp.dot(a, b, preferred_element_type=f32)

    # (2E, 2) constant: column 0 averages x, column 1 averages x*x.
    R = ln_red[...]

    def layer_norm(x, g, b):
        # Both row moments in ONE MXU matmul (no serialized XLU reduces).
        moments = dot(jnp.concatenate([x, x * x], axis=-1), R)   # (S, 2)
        mu = moments[:, 0:1]
        var = moments[:, 1:2] - mu * mu
        return (x - mu) * lax.rsqrt(var + 1e-5) * g + b

    def softmax_last(s):
        m = jnp.max(s, axis=-1, keepdims=True)
        p = jnp.exp(s - m)
        # approx reciprocal: ~1e-4 relative divergence from exact softmax.
        return p * pl.reciprocal(jnp.sum(p, axis=-1, keepdims=True), approx=True)

    def attention(q, k, v, Sq, Sk):
        # q: (Sq, E), already pre-scaled by 1/sqrt(Dh) via the packed Wq/bq.
        # Head-major packed columns -> reshape is a straight split of lanes.
        qh = q.reshape(Sq, H, Dh).swapaxes(0, 1)                 # (H, Sq, Dh)
        kh = k.reshape(Sk, H, Dh).swapaxes(0, 1)                 # (H, Sk, Dh)
        vh = v.reshape(Sk, H, Dh).swapaxes(0, 1)                 # (H, Sk, Dh)
        s = jnp.einsum('hqd,hkd->hqk', qh, kh,
                       preferred_element_type=f32)               # (H, Sq, Sk)
        o = jnp.einsum('hqk,hkd->hqd', softmax_last(s), vh,
                       preferred_element_type=f32)               # (H, Sq, Dh)
        return o.swapaxes(0, 1).reshape(Sq, E)                   # (Sq, E)

    def self_mha(x, wqkv, bqkv, wo, bo, S):
        qkv = dot(x, wqkv) + bqkv                                # fused QKV matmul
        o = attention(qkv[:, :E], qkv[:, E:2 * E], qkv[:, 2 * E:], S, S)
        return dot(o, wo) + bo

    def cross_mha(x, mem, wq, bq, wkv, bkv, wo, bo, Sq, Sk):
        q = dot(x, wq) + bq
        kv = dot(mem, wkv) + bkv                                 # fused KV matmul
        o = attention(q, kv[:, :E], kv[:, E:], Sq, Sk)
        return dot(o, wo) + bo

    def ffn(x, w1, b1, w2, b2):
        h = jnp.maximum(dot(x, w1) + b1, 0.0)
        return dot(h, w2) + b2

    # ------------------------------ encoder --------------------------------
    x = src_ref[0]                                               # (S_src, E)
    for l in range(L):
        a = self_mha(x, enc_wqkv[l], enc_bqkv[l], enc_wo[l], enc_bo[l], S_src)
        x = layer_norm(x + a, enc_ln1_g[l], enc_ln1_b[l])
        f = ffn(x, enc_w1[l], enc_b1[l], enc_w2[l], enc_b2[l])
        x = layer_norm(x + f, enc_ln2_g[l], enc_ln2_b[l])
    mem = layer_norm(x, enc_norm_g[...], enc_norm_b[...])

    # ------------------------------ decoder --------------------------------
    # TODO(synk): src_mask / tgt_mask support (forward is called with None).
    y = tgt_ref[0]                                               # (S_tgt, E)
    for l in range(L):
        a = self_mha(y, dec_sa_wqkv[l], dec_sa_bqkv[l],
                     dec_sa_wo[l], dec_sa_bo[l], S_tgt)
        y = layer_norm(y + a, dec_ln1_g[l], dec_ln1_b[l])
        c = cross_mha(y, mem, dec_ca_wq[l], dec_ca_bq[l],
                      dec_ca_wkv[l], dec_ca_bkv[l],
                      dec_ca_wo[l], dec_ca_bo[l], S_tgt, S_src)
        y = layer_norm(y + c, dec_ln2_g[l], dec_ln2_b[l])
        f = ffn(y, dec_w1[l], dec_b1[l], dec_w2[l], dec_b2[l])
        y = layer_norm(y + f, dec_ln3_g[l], dec_ln3_b[l])
    y = layer_norm(y, dec_norm_g[...], dec_norm_b[...])

    # Lane-dense (vocab padded to a multiple of 128) output projection.
    out_ref[0] = dot(y, fc_w[...]) + fc_b[...]


# ------------------------------ wrapper --------------------------------------

def transformer_forward(src, tgt, packed, *, num_heads, num_layers, vocab, v_pad):
    """src: (B, S_src, E), tgt: (B, S_tgt, E) -> (B, S_tgt, vocab)."""
    B, S_src, E = src.shape
    _, S_tgt, _ = tgt.shape
    kernel = functools.partial(
        _transformer_kernel,
        S_src=S_src, S_tgt=S_tgt, E=E, H=num_heads, L=num_layers)

    def const_spec(shape):
        # Weights: full-array block, same block for every grid step.
        return pl.BlockSpec(shape, lambda b: (0,) * len(shape))

    in_specs = [
        pl.BlockSpec((1, S_src, E), lambda b: (b, 0, 0)),        # src (per batch)
        pl.BlockSpec((1, S_tgt, E), lambda b: (b, 0, 0)),        # tgt (per batch)
    ] + [const_spec(p.shape) for p in packed]
    out_specs = pl.BlockSpec((1, S_tgt, v_pad), lambda b: (b, 0, 0))

    # Right-sized VMEM budget: resident params (double-buffered by the runtime)
    # + double-buffered per-batch activation blocks + scratch headroom.
    param_bytes = sum(int(p.size) * p.dtype.itemsize for p in packed)
    block_bytes = 4 * (S_src * E + S_tgt * E + S_tgt * v_pad)
    vmem_limit = int(2 * (param_bytes + 2 * block_bytes) + (4 << 20))

    logits = pl.pallas_call(
        kernel,
        grid=(B,),
        in_specs=in_specs,
        out_specs=out_specs,
        out_shape=jax.ShapeDtypeStruct((B, S_tgt, v_pad), jnp.float32),
        compiler_params=pltpu.CompilerParams(
            dimension_semantics=("parallel",),
            vmem_limit_bytes=vmem_limit),
    )(src, tgt, *packed)
    return logits[..., :vocab]


# ------------------------------ param packing --------------------------------

def pack_params(params, num_heads):
    """Fold 1/sqrt(Dh) into Wq/bq, fuse QKV / KV weights (head-major columns),
    stack per-layer params along a leading layer axis, reshape biases to (1, N),
    build the LayerNorm moment-reduction matrix, and pad the vocab projection
    to a lane-dense multiple of 128."""
    enc = params["encoder_layers"]
    dec = params["decoder_layers"]
    E = enc[0]["self_attn"]["wq"].shape[0]
    scale = 1.0 / math.sqrt(E // num_heads)

    def row(v):
        return v[None, :]

    def qkv_w(p):
        return jnp.concatenate([p["wq"] * scale, p["wk"], p["wv"]], axis=1)

    def qkv_b(p):
        return row(jnp.concatenate([p["bq"] * scale, p["bk"], p["bv"]]))

    def kv_w(p):
        return jnp.concatenate([p["wk"], p["wv"]], axis=1)

    def kv_b(p):
        return row(jnp.concatenate([p["bk"], p["bv"]]))

    # (2E, 2) reduction matrix: col 0 -> mean(x), col 1 -> mean(x*x).
    ln_red = jnp.zeros((2 * E, 2), jnp.float32)
    ln_red = ln_red.at[:E, 0].set(1.0 / E).at[E:, 1].set(1.0 / E)

    packed = [
        ln_red,
        # ---- encoder layers (stacked over L) ----
        jnp.stack([qkv_w(p["self_attn"]) for p in enc]),
        jnp.stack([qkv_b(p["self_attn"]) for p in enc]),
        jnp.stack([p["self_attn"]["wo"] for p in enc]),
        jnp.stack([row(p["self_attn"]["bo"]) for p in enc]),
        jnp.stack([row(p["ln1_g"]) for p in enc]),
        jnp.stack([row(p["ln1_b"]) for p in enc]),
        jnp.stack([p["w1"] for p in enc]),
        jnp.stack([row(p["b1"]) for p in enc]),
        jnp.stack([p["w2"] for p in enc]),
        jnp.stack([row(p["b2"]) for p in enc]),
        jnp.stack([row(p["ln2_g"]) for p in enc]),
        jnp.stack([row(p["ln2_b"]) for p in enc]),
        row(params["enc_norm_g"]),
        row(params["enc_norm_b"]),
        # ---- decoder layers (stacked over L) ----
        jnp.stack([qkv_w(p["self_attn"]) for p in dec]),
        jnp.stack([qkv_b(p["self_attn"]) for p in dec]),
        jnp.stack([p["self_attn"]["wo"] for p in dec]),
        jnp.stack([row(p["self_attn"]["bo"]) for p in dec]),
        jnp.stack([row(p["ln1_g"]) for p in dec]),
        jnp.stack([row(p["ln1_b"]) for p in dec]),
        jnp.stack([p["cross_attn"]["wq"] * scale for p in dec]),
        jnp.stack([row(p["cross_attn"]["bq"] * scale) for p in dec]),
        jnp.stack([kv_w(p["cross_attn"]) for p in dec]),
        jnp.stack([kv_b(p["cross_attn"]) for p in dec]),
        jnp.stack([p["cross_attn"]["wo"] for p in dec]),
        jnp.stack([row(p["cross_attn"]["bo"]) for p in dec]),
        jnp.stack([row(p["ln2_g"]) for p in dec]),
        jnp.stack([row(p["ln2_b"]) for p in dec]),
        jnp.stack([p["w1"] for p in dec]),
        jnp.stack([row(p["b1"]) for p in dec]),
        jnp.stack([p["w2"] for p in dec]),
        jnp.stack([row(p["b2"]) for p in dec]),
        jnp.stack([row(p["ln3_g"]) for p in dec]),
        jnp.stack([row(p["ln3_b"]) for p in dec]),
        row(params["dec_norm_g"]),
        row(params["dec_norm_b"]),
    ]
    # ---- lane-dense padded vocab projection ----
    E_, V = params["fc_w"].shape
    V_pad = ((V + 127) // 128) * 128
    fc_w = jnp.zeros((E_, V_pad), jnp.float32).at[:, :V].set(params["fc_w"])
    fc_b = jnp.zeros((1, V_pad), jnp.float32).at[:, :V].set(params["fc_b"][None, :])
    packed += [fc_w, fc_b]
    return tuple(packed), V, V_pad


# ------------------------------ parameter init -------------------------------

def _init_mha(key, E):
    ks = jax.random.split(key, 4)
    s = 1.0 / math.sqrt(E)
    return {
        "wq": jax.random.uniform(ks[0], (E, E), jnp.float32, -s, s),
        "bq": jnp.zeros((E,), jnp.float32),
        "wk": jax.random.uniform(ks[1], (E, E), jnp.float32, -s, s),
        "bk": jnp.zeros((E,), jnp.float32),
        "wv": jax.random.uniform(ks[2], (E, E), jnp.float32, -s, s),
        "bv": jnp.zeros((E,), jnp.float32),
        "wo": jax.random.uniform(ks[3], (E, E), jnp.float32, -s, s),
        "bo": jnp.zeros((E,), jnp.float32),
    }


def _init_ffn(key, E, FF):
    k1, k2 = jax.random.split(key)
    s1, s2 = 1.0 / math.sqrt(E), 1.0 / math.sqrt(FF)
    return {
        "w1": jax.random.uniform(k1, (E, FF), jnp.float32, -s1, s1),
        "b1": jnp.zeros((FF,), jnp.float32),
        "w2": jax.random.uniform(k2, (FF, E), jnp.float32, -s2, s2),
        "b2": jnp.zeros((E,), jnp.float32),
    }


def init_params(key, vocab_size, E, FF, num_layers):
    enc_layers, dec_layers = [], []
    keys = jax.random.split(key, 2 * num_layers + 2)
    for i in range(num_layers):
        ka, kf = jax.random.split(keys[i])
        p = {"self_attn": _init_mha(ka, E)}
        p.update(_init_ffn(kf, E, FF))
        p.update({"ln1_g": jnp.ones((E,), jnp.float32),
                  "ln1_b": jnp.zeros((E,), jnp.float32),
                  "ln2_g": jnp.ones((E,), jnp.float32),
                  "ln2_b": jnp.zeros((E,), jnp.float32)})
        enc_layers.append(p)
    for i in range(num_layers):
        ka, kc, kf = jax.random.split(keys[num_layers + i], 3)
        p = {"self_attn": _init_mha(ka, E), "cross_attn": _init_mha(kc, E)}
        p.update(_init_ffn(kf, E, FF))
        p.update({"ln1_g": jnp.ones((E,), jnp.float32),
                  "ln1_b": jnp.zeros((E,), jnp.float32),
                  "ln2_g": jnp.ones((E,), jnp.float32),
                  "ln2_b": jnp.zeros((E,), jnp.float32),
                  "ln3_g": jnp.ones((E,), jnp.float32),
                  "ln3_b": jnp.zeros((E,), jnp.float32)})
        dec_layers.append(p)
    sf = 1.0 / math.sqrt(E)
    return {
        "encoder_layers": enc_layers,
        "decoder_layers": dec_layers,
        "enc_norm_g": jnp.ones((E,), jnp.float32),
        "enc_norm_b": jnp.zeros((E,), jnp.float32),
        "dec_norm_g": jnp.ones((E,), jnp.float32),
        "dec_norm_b": jnp.zeros((E,), jnp.float32),
        "fc_w": jax.random.uniform(keys[-1], (E, vocab_size),
                                   jnp.float32, -sf, sf),
        "fc_b": jnp.zeros((vocab_size,), jnp.float32),
    }


# --------------------------------- main ---------------------------------------

if __name__ == "__main__":
    # Small config: vocab=50, embed=32, heads=4, layers=2, ff_hidden=64.
    VOCAB, E, H, L, FF = 50, 32, 4, 2, 64
    B, S_SRC, S_TGT = 2, 8, 8

    root = jax.random.PRNGKey(0)
    k_p, k_src, k_tgt = jax.random.split(root, 3)
    params = init_params(k_p, VOCAB, E, FF, L)
    packed, vocab, v_pad = pack_params(params, num_heads=H)
    src = jax.random.normal(k_src, (B, S_SRC, E), jnp.float32)
    tgt = jax.random.normal(k_tgt, (B, S_TGT, E), jnp.float32)

    fwd = jax.jit(functools.partial(transformer_forward, num_heads=H,
                                    num_layers=L, vocab=vocab, v_pad=v_pad))
    out = fwd(src, tgt, packed)
    out = jax.block_until_ready(out)
    assert out.shape == (B, S_TGT, VOCAB), out.shape
    assert bool(jnp.all(jnp.isfinite(out)))
    print("KERNEL_OK")
</pallas_src>

<mosaic_0001>
module attributes {stable_mosaic.version = 11 : i64} {
  func.func @_transformer_kernel(%arg0: i32, %arg1: memref<1x8x32xf32, #tpu.memory_space<vmem>>, %arg2: memref<1x8x32xf32, #tpu.memory_space<vmem>>, %arg3: memref<64x2xf32, #tpu.memory_space<vmem>>, %arg4: memref<2x32x96xf32, #tpu.memory_space<vmem>>, %arg5: memref<2x1x96xf32, #tpu.memory_space<vmem>>, %arg6: memref<2x32x32xf32, #tpu.memory_space<vmem>>, %arg7: memref<2x1x32xf32, #tpu.memory_space<vmem>>, %arg8: memref<2x1x32xf32, #tpu.memory_space<vmem>>, %arg9: memref<2x1x32xf32, #tpu.memory_space<vmem>>, %arg10: memref<2x32x64xf32, #tpu.memory_space<vmem>>, %arg11: memref<2x1x64xf32, #tpu.memory_space<vmem>>, %arg12: memref<2x64x32xf32, #tpu.memory_space<vmem>>, %arg13: memref<2x1x32xf32, #tpu.memory_space<vmem>>, %arg14: memref<2x1x32xf32, #tpu.memory_space<vmem>>, %arg15: memref<2x1x32xf32, #tpu.memory_space<vmem>>, %arg16: memref<1x32xf32, #tpu.memory_space<vmem>>, %arg17: memref<1x32xf32, #tpu.memory_space<vmem>>, %arg18: memref<2x32x96xf32, #tpu.memory_space<vmem>>, %arg19: memref<2x1x96xf32, #tpu.memory_space<vmem>>, %arg20: memref<2x32x32xf32, #tpu.memory_space<vmem>>, %arg21: memref<2x1x32xf32, #tpu.memory_space<vmem>>, %arg22: memref<2x1x32xf32, #tpu.memory_space<vmem>>, %arg23: memref<2x1x32xf32, #tpu.memory_space<vmem>>, %arg24: memref<2x32x32xf32, #tpu.memory_space<vmem>>, %arg25: memref<2x1x32xf32, #tpu.memory_space<vmem>>, %arg26: memref<2x32x64xf32, #tpu.memory_space<vmem>>, %arg27: memref<2x1x64xf32, #tpu.memory_space<vmem>>, %arg28: memref<2x32x32xf32, #tpu.memory_space<vmem>>, %arg29: memref<2x1x32xf32, #tpu.memory_space<vmem>>, %arg30: memref<2x1x32xf32, #tpu.memory_space<vmem>>, %arg31: memref<2x1x32xf32, #tpu.memory_space<vmem>>, %arg32: memref<2x32x64xf32, #tpu.memory_space<vmem>>, %arg33: memref<2x1x64xf32, #tpu.memory_space<vmem>>, %arg34: memref<2x64x32xf32, #tpu.memory_space<vmem>>, %arg35: memref<2x1x32xf32, #tpu.memory_space<vmem>>, %arg36: memref<2x1x32xf32, #tpu.memory_space<vmem>>, %arg37: memref<2x1x32xf32, #tpu.memory_space<vmem>>, %arg38: memref<1x32xf32, #tpu.memory_space<vmem>>, %arg39: memref<1x32xf32, #tpu.memory_space<vmem>>, %arg40: memref<32x128xf32, #tpu.memory_space<vmem>>, %arg41: memref<1x128xf32, #tpu.memory_space<vmem>>, %arg42: memref<1x8x128xf32, #tpu.memory_space<vmem>>) attributes {dimension_semantics = [#tpu.dimension_semantics<parallel>], iteration_bounds = array<i64: 2>, scalar_prefetch = 0 : i64, scratch_operands = 0 : i64, tpu.core_type = #tpu.core_type<tc>, window_params = [{transform_indices = @transform_0, window_bounds = array<i64: 1, 8, 32>}, {transform_indices = @transform_1, window_bounds = array<i64: 1, 8, 32>}, {pipeline_mode = #tpu.pipeline_mode<synchronous>, transform_indices = @transform_2, window_bounds = array<i64: 64, 2>}, {pipeline_mode = #tpu.pipeline_mode<synchronous>, transform_indices = @transform_3, window_bounds = array<i64: 2, 32, 96>}, {pipeline_mode = #tpu.pipeline_mode<synchronous>, transform_indices = @transform_4, window_bounds = array<i64: 2, 1, 96>}, {pipeline_mode = #tpu.pipeline_mode<synchronous>, transform_indices = @transform_5, window_bounds = array<i64: 2, 32, 32>}, {pipeline_mode = #tpu.pipeline_mode<synchronous>, transform_indices = @transform_6, window_bounds = array<i64: 2, 1, 32>}, {pipeline_mode = #tpu.pipeline_mode<synchronous>, transform_indices = @transform_7, window_bounds = array<i64: 2, 1, 32>}, {pipeline_mode = #tpu.pipeline_mode<synchronous>, transform_indices = @transform_8, window_bounds = array<i64: 2, 1, 32>}, {pipeline_mode = #tpu.pipeline_mode<synchronous>, transform_indices = @transform_9, window_bounds = array<i64: 2, 32, 64>}, {pipeline_mode = #tpu.pipeline_mode<synchronous>, transform_indices = @transform_10, window_bounds = array<i64: 2, 1, 64>}, {pipeline_mode = #tpu.pipeline_mode<synchronous>, transform_indices = @transform_11, window_bounds = array<i64: 2, 64, 32>}, {pipeline_mode = #tpu.pipeline_mode<synchronous>, transform_indices = @transform_12, window_bounds = array<i64: 2, 1, 32>}, {pipeline_mode = #tpu.pipeline_mode<synchronous>, transform_indices = @transform_13, window_bounds = array<i64: 2, 1, 32>}, {pipeline_mode = #tpu.pipeline_mode<synchronous>, transform_indices = @transform_14, window_bounds = array<i64: 2, 1, 32>}, {pipeline_mode = #tpu.pipeline_mode<synchronous>, transform_indices = @transform_15, window_bounds = array<i64: 1, 32>}, {pipeline_mode = #tpu.pipeline_mode<synchronous>, transform_indices = @transform_16, window_bounds = array<i64: 1, 32>}, {pipeline_mode = #tpu.pipeline_mode<synchronous>, transform_indices = @transform_17, window_bounds = array<i64: 2, 32, 96>}, {pipeline_mode = #tpu.pipeline_mode<synchronous>, transform_indices = @transform_18, window_bounds = array<i64: 2, 1, 96>}, {pipeline_mode = #tpu.pipeline_mode<synchronous>, transform_indices = @transform_19, window_bounds = array<i64: 2, 32, 32>}, {pipeline_mode = #tpu.pipeline_mode<synchronous>, transform_indices = @transform_20, window_bounds = array<i64: 2, 1, 32>}, {pipeline_mode = #tpu.pipeline_mode<synchronous>, transform_indices = @transform_21, window_bounds = array<i64: 2, 1, 32>}, {pipeline_mode = #tpu.pipeline_mode<synchronous>, transform_indices = @transform_22, window_bounds = array<i64: 2, 1, 32>}, {pipeline_mode = #tpu.pipeline_mode<synchronous>, transform_indices = @transform_23, window_bounds = array<i64: 2, 32, 32>}, {pipeline_mode = #tpu.pipeline_mode<synchronous>, transform_indices = @transform_24, window_bounds = array<i64: 2, 1, 32>}, {pipeline_mode = #tpu.pipeline_mode<synchronous>, transform_indices = @transform_25, window_bounds = array<i64: 2, 32, 64>}, {pipeline_mode = #tpu.pipeline_mode<synchronous>, transform_indices = @transform_26, window_bounds = array<i64: 2, 1, 64>}, {pipeline_mode = #tpu.pipeline_mode<synchronous>, transform_indices = @transform_27, window_bounds = array<i64: 2, 32, 32>}, {pipeline_mode = #tpu.pipeline_mode<synchronous>, transform_indices = @transform_28, window_bounds = array<i64: 2, 1, 32>}, {pipeline_mode = #tpu.pipeline_mode<synchronous>, transform_indices = @transform_29, window_bounds = array<i64: 2, 1, 32>}, {pipeline_mode = #tpu.pipeline_mode<synchronous>, transform_indices = @transform_30, window_bounds = array<i64: 2, 1, 32>}, {pipeline_mode = #tpu.pipeline_mode<synchronous>, transform_indices = @transform_31, window_bounds = array<i64: 2, 32, 64>}, {pipeline_mode = #tpu.pipeline_mode<synchronous>, transform_indices = @transform_32, window_bounds = array<i64: 2, 1, 64>}, {pipeline_mode = #tpu.pipeline_mode<synchronous>, transform_indices = @transform_33, window_bounds = array<i64: 2, 64, 32>}, {pipeline_mode = #tpu.pipeline_mode<synchronous>, transform_indices = @transform_34, window_bounds = array<i64: 2, 1, 32>}, {pipeline_mode = #tpu.pipeline_mode<synchronous>, transform_indices = @transform_35, window_bounds = array<i64: 2, 1, 32>}, {pipeline_mode = #tpu.pipeline_mode<synchronous>, transform_indices = @transform_36, window_bounds = array<i64: 2, 1, 32>}, {pipeline_mode = #tpu.pipeline_mode<synchronous>, transform_indices = @transform_37, window_bounds = array<i64: 1, 32>}, {pipeline_mode = #tpu.pipeline_mode<synchronous>, transform_indices = @transform_38, window_bounds = array<i64: 1, 32>}, {pipeline_mode = #tpu.pipeline_mode<synchronous>, transform_indices = @transform_39, window_bounds = array<i64: 32, 128>}, {pipeline_mode = #tpu.pipeline_mode<synchronous>, transform_indices = @transform_40, window_bounds = array<i64: 1, 128>}, {transform_indices = @transform_41, window_bounds = array<i64: 1, 8, 128>}]} {
    %c0 = arith.constant 0 : index
    %c0_0 = arith.constant 0 : index
    %0 = vector.load %arg3[%c0, %c0_0] : memref<64x2xf32, #tpu.memory_space<vmem>>, vector<64x2xf32>
    %c0_1 = arith.constant 0 : index
    %c0_2 = arith.constant 0 : index
    %c0_3 = arith.constant 0 : index
    %1 = vector.load %arg1[%c0_1, %c0_2, %c0_3] : memref<1x8x32xf32, #tpu.memory_space<vmem>>, vector<1x8x32xf32>
    %2 = vector.shape_cast %1 : vector<1x8x32xf32> to vector<8x32xf32>
    %c0_4 = arith.constant 0 : index
    %c0_5 = arith.constant 0 : index
    %c0_6 = arith.constant 0 : index
    %3 = vector.load %arg4[%c0_4, %c0_5, %c0_6] : memref<2x32x96xf32, #tpu.memory_space<vmem>>, vector<1x32x96xf32>
    %4 = vector.shape_cast %3 : vector<1x32x96xf32> to vector<32x96xf32>
    %c0_7 = arith.constant 0 : index
    %c0_8 = arith.constant 0 : index
    %c0_9 = arith.constant 0 : index
    %5 = vector.load %arg5[%c0_7, %c0_8, %c0_9] : memref<2x1x96xf32, #tpu.memory_space<vmem>>, vector<1x1x96xf32>
    %6 = vector.shape_cast %5 : vector<1x1x96xf32> to vector<1x96xf32>
    %c0_10 = arith.constant 0 : index
    %c0_11 = arith.constant 0 : index
    %c0_12 = arith.constant 0 : index
    %7 = vector.load %arg6[%c0_10, %c0_11, %c0_12] : memref<2x32x32xf32, #tpu.memory_space<vmem>>, vector<1x32x32xf32>
    %8 = vector.shape_cast %7 : vector<1x32x32xf32> to vector<32x32xf32>
    %c0_13 = arith.constant 0 : index
    %c0_14 = arith.constant 0 : index
    %c0_15 = arith.constant 0 : index
    %9 = vector.load %arg7[%c0_13, %c0_14, %c0_15] : memref<2x1x32xf32, #tpu.memory_space<vmem>>, vector<1x1x32xf32>
    %10 = vector.shape_cast %9 : vector<1x1x32xf32> to vector<1x32xf32>
    %cst = arith.constant dense<0.000000e+00> : vector<8x96xf32>
    %11 = tpu.matmul %2, %4, %cst {dimension_numbers = #tpu.dot_dimension_numbers<[1], [0], [0], [1], [0, 0, 1, 1], [], []>} : vector<8x32xf32>, vector<32x96xf32>, vector<8x96xf32> -> vector<8x96xf32>
    %12 = vector.broadcast %6 : vector<1x96xf32> to vector<8x96xf32>
    %13 = arith.addf %11, %12 : vector<8x96xf32>
    %14 = vector.extract_strided_slice %13 {offsets = [0, 0], sizes = [8, 32], strides = [1, 1]} : vector<8x96xf32> to vector<8x32xf32>
    %15 = vector.extract_strided_slice %13 {offsets = [0, 32], sizes = [8, 32], strides = [1, 1]} : vector<8x96xf32> to vector<8x32xf32>
    %16 = vector.extract_strided_slice %13 {offsets = [0, 64], sizes = [8, 32], strides = [1, 1]} : vector<8x96xf32> to vector<8x32xf32>
    %17 = vector.shape_cast %14 : vector<8x32xf32> to vector<8x4x8xf32>
    %18 = tpu.transpose %17, [1, 0, 2] : vector<8x4x8xf32> -> vector<4x8x8xf32>
    %19 = vector.shape_cast %15 : vector<8x32xf32> to vector<8x4x8xf32>
    %20 = tpu.transpose %19, [1, 0, 2] : vector<8x4x8xf32> -> vector<4x8x8xf32>
    %21 = vector.shape_cast %16 : vector<8x32xf32> to vector<8x4x8xf32>
    %22 = tpu.transpose %21, [1, 0, 2] : vector<8x4x8xf32> -> vector<4x8x8xf32>
    "tpu.trace_start"() <{level = 10 : i32, message = "hqd,hkd->hqk"}> : () -> ()
    %cst_16 = arith.constant dense<0.000000e+00> : vector<4x8x8xf32>
    %23 = tpu.matmul %18, %20, %cst_16 {dimension_numbers = #tpu.dot_dimension_numbers<[2], [2], [1], [1], [0, 0, 0, 1, 1, 1], [0], [0]>} : vector<4x8x8xf32>, vector<4x8x8xf32>, vector<4x8x8xf32> -> vector<4x8x8xf32>
    "tpu.trace_stop"() : () -> ()
    %cst_17 = arith.constant dense<0xFF800000> : vector<4x8xf32>
    %24 = vector.multi_reduction <maximumf>, %23, %cst_17 [2] : vector<4x8x8xf32> to vector<4x8xf32>
    %25 = vector.shape_cast %24 : vector<4x8xf32> to vector<4x8x1xf32>
    %26 = vector.broadcast %25 : vector<4x8x1xf32> to vector<4x8x8xf32>
    %27 = arith.subf %23, %26 : vector<4x8x8xf32>
    %28 = math.exp %27 : vector<4x8x8xf32>
    %cst_18 = arith.constant dense<0.000000e+00> : vector<4x8xf32>
    %29 = vector.multi_reduction <add>, %28, %cst_18 [2] : vector<4x8x8xf32> to vector<4x8xf32>
    %30 = vector.shape_cast %29 : vector<4x8xf32> to vector<4x8x1xf32>
    %31 = tpu.reciprocal %30 {approx = true} : vector<4x8x1xf32> -> vector<4x8x1xf32>
    %32 = vector.broadcast %31 : vector<4x8x1xf32> to vector<4x8x8xf32>
    %33 = arith.mulf %28, %32 : vector<4x8x8xf32>
    "tpu.trace_start"() <{level = 10 : i32, message = "hqk,hkd->hqd"}> : () -> ()
    %cst_19 = arith.constant dense<0.000000e+00> : vector<4x8x8xf32>
    %34 = tpu.matmul %33, %22, %cst_19 {dimension_numbers = #tpu.dot_dimension_numbers<[2], [1], [1], [2], [0, 0, 0, 1, 1, 2], [0], [0]>} : vector<4x8x8xf32>, vector<4x8x8xf32>, vector<4x8x8xf32> -> vector<4x8x8xf32>
    "tpu.trace_stop"() : () -> ()
    %35 = tpu.transpose %34, [1, 0, 2] : vector<4x8x8xf32> -> vector<8x4x8xf32>
    %36 = vector.shape_cast %35 : vector<8x4x8xf32> to vector<8x32xf32>
    %cst_20 = arith.constant dense<0.000000e+00> : vector<8x32xf32>
    %37 = tpu.matmul %36, %8, %cst_20 {dimension_numbers = #tpu.dot_dimension_numbers<[1], [0], [0], [1], [0, 0, 1, 1], [], []>} : vector<8x32xf32>, vector<32x32xf32>, vector<8x32xf32> -> vector<8x32xf32>
    %38 = vector.broadcast %10 : vector<1x32xf32> to vector<8x32xf32>
    %39 = arith.addf %37, %38 : vector<8x32xf32>
    %40 = arith.addf %2, %39 : vector<8x32xf32>
    %c0_21 = arith.constant 0 : index
    %c0_22 = arith.constant 0 : index
    %c0_23 = arith.constant 0 : index
    %41 = vector.load %arg8[%c0_21, %c0_22, %c0_23] : memref<2x1x32xf32, #tpu.memory_space<vmem>>, vector<1x1x32xf32>
    %42 = vector.shape_cast %41 : vector<1x1x32xf32> to vector<1x32xf32>
    %c0_24 = arith.constant 0 : index
    %c0_25 = arith.constant 0 : index
    %c0_26 = arith.constant 0 : index
    %43 = vector.load %arg9[%c0_24, %c0_25, %c0_26] : memref<2x1x32xf32, #tpu.memory_space<vmem>>, vector<1x1x32xf32>
    %44 = vector.shape_cast %43 : vector<1x1x32xf32> to vector<1x32xf32>
    %45 = arith.mulf %40, %40 : vector<8x32xf32>
    %46 = tpu.concatenate %40, %45 in 1 : vector<8x32xf32>, vector<8x32xf32> -> vector<8x64xf32>
    %cst_27 = arith.constant dense<0.000000e+00> : vector<8x2xf32>
    %47 = tpu.matmul %46, %0, %cst_27 {dimension_numbers = #tpu.dot_dimension_numbers<[1], [0], [0], [1], [0, 0, 1, 1], [], []>} : vector<8x64xf32>, vector<64x2xf32>, vector<8x2xf32> -> vector<8x2xf32>
    %48 = vector.extract_strided_slice %47 {offsets = [0, 0], sizes = [8, 1], strides = [1, 1]} : vector<8x2xf32> to vector<8x1xf32>
    %49 = vector.extract_strided_slice %47 {offsets = [0, 1], sizes = [8, 1], strides = [1, 1]} : vector<8x2xf32> to vector<8x1xf32>
    %50 = arith.mulf %48, %48 : vector<8x1xf32>
    %51 = arith.subf %49, %50 : vector<8x1xf32>
    %52 = vector.broadcast %48 : vector<8x1xf32> to vector<8x32xf32>
    %53 = arith.subf %40, %52 : vector<8x32xf32>
    %cst_28 = arith.constant 9.99999974E-6 : f32
    %54 = vector.broadcast %cst_28 : f32 to vector<8x1xf32>
    %55 = arith.addf %51, %54 : vector<8x1xf32>
    %56 = math.rsqrt %55 : vector<8x1xf32>
    %57 = vector.broadcast %56 : vector<8x1xf32> to vector<8x32xf32>
    %58 = arith.mulf %53, %57 : vector<8x32xf32>
    %59 = vector.broadcast %42 : vector<1x32xf32> to vector<8x32xf32>
    %60 = arith.mulf %58, %59 : vector<8x32xf32>
    %61 = vector.broadcast %44 : vector<1x32xf32> to vector<8x32xf32>
    %62 = arith.addf %60, %61 : vector<8x32xf32>
    %c0_29 = arith.constant 0 : index
    %c0_30 = arith.constant 0 : index
    %c0_31 = arith.constant 0 : index
    %63 = vector.load %arg10[%c0_29, %c0_30, %c0_31] : memref<2x32x64xf32, #tpu.memory_space<vmem>>, vector<1x32x64xf32>
    %64 = vector.shape_cast %63 : vector<1x32x64xf32> to vector<32x64xf32>
    %c0_32 = arith.constant 0 : index
    %c0_33 = arith.constant 0 : index
    %c0_34 = arith.constant 0 : index
    %65 = vector.load %arg11[%c0_32, %c0_33, %c0_34] : memref<2x1x64xf32, #tpu.memory_space<vmem>>, vector<1x1x64xf32>
    %66 = vector.shape_cast %65 : vector<1x1x64xf32> to vector<1x64xf32>
    %c0_35 = arith.constant 0 : index
    %c0_36 = arith.constant 0 : index
    %c0_37 = arith.constant 0 : index
    %67 = vector.load %arg12[%c0_35, %c0_36, %c0_37] : memref<2x64x32xf32, #tpu.memory_space<vmem>>, vector<1x64x32xf32>
    %68 = vector.shape_cast %67 : vector<1x64x32xf32> to vector<64x32xf32>
    %c0_38 = arith.constant 0 : index
    %c0_39 = arith.constant 0 : index
    %c0_40 = arith.constant 0 : index
    %69 = vector.load %arg13[%c0_38, %c0_39, %c0_40] : memref<2x1x32xf32, #tpu.memory_space<vmem>>, vector<1x1x32xf32>
    %70 = vector.shape_cast %69 : vector<1x1x32xf32> to vector<1x32xf32>
    %cst_41 = arith.constant dense<0.000000e+00> : vector<8x64xf32>
    %71 = tpu.matmul %62, %64, %cst_41 {dimension_numbers = #tpu.dot_dimension_numbers<[1], [0], [0], [1], [0, 0, 1, 1], [], []>} : vector<8x32xf32>, vector<32x64xf32>, vector<8x64xf32> -> vector<8x64xf32>
    %72 = vector.broadcast %66 : vector<1x64xf32> to vector<8x64xf32>
    %73 = arith.addf %71, %72 : vector<8x64xf32>
    %cst_42 = arith.constant 0.000000e+00 : f32
    %74 = vector.broadcast %cst_42 : f32 to vector<8x64xf32>
    %75 = arith.maximumf %73, %74 : vector<8x64xf32>
    %cst_43 = arith.constant dense<0.000000e+00> : vector<8x32xf32>
    %76 = tpu.matmul %75, %68, %cst_43 {dimension_numbers = #tpu.dot_dimension_numbers<[1], [0], [0], [1], [0, 0, 1, 1], [], []>} : vector<8x64xf32>, vector<64x32xf32>, vector<8x32xf32> -> vector<8x32xf32>
    %77 = vector.broadcast %70 : vector<1x32xf32> to vector<8x32xf32>
    %78 = arith.addf %76, %77 : vector<8x32xf32>
    %79 = arith.addf %62, %78 : vector<8x32xf32>
    %c0_44 = arith.constant 0 : index
    %c0_45 = arith.constant 0 : index
    %c0_46 = arith.constant 0 : index
    %80 = vector.load %arg14[%c0_44, %c0_45, %c0_46] : memref<2x1x32xf32, #tpu.memory_space<vmem>>, vector<1x1x32xf32>
    %81 = vector.shape_cast %80 : vector<1x1x32xf32> to vector<1x32xf32>
    %c0_47 = arith.constant 0 : index
    %c0_48 = arith.constant 0 : index
    %c0_49 = arith.constant 0 : index
    %82 = vector.load %arg15[%c0_47, %c0_48, %c0_49] : memref<2x1x32xf32, #tpu.memory_space<vmem>>, vector<1x1x32xf32>
    %83 = vector.shape_cast %82 : vector<1x1x32xf32> to vector<1x32xf32>
    %84 = arith.mulf %79, %79 : vector<8x32xf32>
    %85 = tpu.concatenate %79, %84 in 1 : vector<8x32xf32>, vector<8x32xf32> -> vector<8x64xf32>
    %cst_50 = arith.constant dense<0.000000e+00> : vector<8x2xf32>
    %86 = tpu.matmul %85, %0, %cst_50 {dimension_numbers = #tpu.dot_dimension_numbers<[1], [0], [0], [1], [0, 0, 1, 1], [], []>} : vector<8x64xf32>, vector<64x2xf32>, vector<8x2xf32> -> vector<8x2xf32>
    %87 = vector.extract_strided_slice %86 {offsets = [0, 0], sizes = [8, 1], strides = [1, 1]} : vector<8x2xf32> to vector<8x1xf32>
    %88 = vector.extract_strided_slice %86 {offsets = [0, 1], sizes = [8, 1], strides = [1, 1]} : vector<8x2xf32> to vector<8x1xf32>
    %89 = arith.mulf %87, %87 : vector<8x1xf32>
    %90 = arith.subf %88, %89 : vector<8x1xf32>
    %91 = vector.broadcast %87 : vector<8x1xf32> to vector<8x32xf32>
    %92 = arith.subf %79, %91 : vector<8x32xf32>
    %cst_51 = arith.constant 9.99999974E-6 : f32
    %93 = vector.broadcast %cst_51 : f32 to vector<8x1xf32>
    %94 = arith.addf %90, %93 : vector<8x1xf32>
    %95 = math.rsqrt %94 : vector<8x1xf32>
    %96 = vector.broadcast %95 : vector<8x1xf32> to vector<8x32xf32>
    %97 = arith.mulf %92, %96 : vector<8x32xf32>
    %98 = vector.broadcast %81 : vector<1x32xf32> to vector<8x32xf32>
    %99 = arith.mulf %97, %98 : vector<8x32xf32>
    %100 = vector.broadcast %83 : vector<1x32xf32> to vector<8x32xf32>
    %101 = arith.addf %99, %100 : vector<8x32xf32>
    %c1 = arith.constant 1 : index
    %c0_52 = arith.constant 0 : index
    %c0_53 = arith.constant 0 : index
    %102 = vector.load %arg4[%c1, %c0_52, %c0_53] : memref<2x32x96xf32, #tpu.memory_space<vmem>>, vector<1x32x96xf32>
    %103 = vector.shape_cast %102 : vector<1x32x96xf32> to vector<32x96xf32>
    %c1_54 = arith.constant 1 : index
    %c0_55 = arith.constant 0 : index
    %c0_56 = arith.constant 0 : index
    %104 = vector.load %arg5[%c1_54, %c0_55, %c0_56] : memref<2x1x96xf32, #tpu.memory_space<vmem>>, vector<1x1x96xf32>
    %105 = vector.shape_cast %104 : vector<1x1x96xf32> to vector<1x96xf32>
    %c1_57 = arith.constant 1 : index
    %c0_58 = arith.constant 0 : index
    %c0_59 = arith.constant 0 : index
    %106 = vector.load %arg6[%c1_57, %c0_58, %c0_59] : memref<2x32x32xf32, #tpu.memory_space<vmem>>, vector<1x32x32xf32>
    %107 = vector.shape_cast %106 : vector<1x32x32xf32> to vector<32x32xf32>
    %c1_60 = arith.constant 1 : index
    %c0_61 = arith.constant 0 : index
    %c0_62 = arith.constant 0 : index
    %108 = vector.load %arg7[%c1_60, %c0_61, %c0_62] : memref<2x1x32xf32, #tpu.memory_space<vmem>>, vector<1x1x32xf32>
    %109 = vector.shape_cast %108 : vector<1x1x32xf32> to vector<1x32xf32>
    %cst_63 = arith.constant dense<0.000000e+00> : vector<8x96xf32>
    %110 = tpu.matmul %101, %103, %cst_63 {dimension_numbers = #tpu.dot_dimension_numbers<[1], [0], [0], [1], [0, 0, 1, 1], [], []>} : vector<8x32xf32>, vector<32x96xf32>, vector<8x96xf32> -> vector<8x96xf32>
    %111 = vector.broadcast %105 : vector<1x96xf32> to vector<8x96xf32>
    %112 = arith.addf %110, %111 : vector<8x96xf32>
    %113 = vector.extract_strided_slice %112 {offsets = [0, 0], sizes = [8, 32], strides = [1, 1]} : vector<8x96xf32> to vector<8x32xf32>
    %114 = vector.extract_strided_slice %112 {offsets = [0, 32], sizes = [8, 32], strides = [1, 1]} : vector<8x96xf32> to vector<8x32xf32>
    %115 = vector.extract_strided_slice %112 {offsets = [0, 64], sizes = [8, 32], strides = [1, 1]} : vector<8x96xf32> to vector<8x32xf32>
    %116 = vector.shape_cast %113 : vector<8x32xf32> to vector<8x4x8xf32>
    %117 = tpu.transpose %116, [1, 0, 2] : vector<8x4x8xf32> -> vector<4x8x8xf32>
    %118 = vector.shape_cast %114 : vector<8x32xf32> to vector<8x4x8xf32>
    %119 = tpu.transpose %118, [1, 0, 2] : vector<8x4x8xf32> -> vector<4x8x8xf32>
    %120 = vector.shape_cast %115 : vector<8x32xf32> to vector<8x4x8xf32>
    %121 = tpu.transpose %120, [1, 0, 2] : vector<8x4x8xf32> -> vector<4x8x8xf32>
    "tpu.trace_start"() <{level = 10 : i32, message = "hqd,hkd->hqk"}> : () -> ()
    %cst_64 = arith.constant dense<0.000000e+00> : vector<4x8x8xf32>
    %122 = tpu.matmul %117, %119, %cst_64 {dimension_numbers = #tpu.dot_dimension_numbers<[2], [2], [1], [1], [0, 0, 0, 1, 1, 1], [0], [0]>} : vector<4x8x8xf32>, vector<4x8x8xf32>, vector<4x8x8xf32> -> vector<4x8x8xf32>
    "tpu.trace_stop"() : () -> ()
    %cst_65 = arith.constant dense<0xFF800000> : vector<4x8xf32>
    %123 = vector.multi_reduction <maximumf>, %122, %cst_65 [2] : vector<4x8x8xf32> to vector<4x8xf32>
    %124 = vector.shape_cast %123 : vector<4x8xf32> to vector<4x8x1xf32>
    %125 = vector.broadcast %124 : vector<4x8x1xf32> to vector<4x8x8xf32>
    %126 = arith.subf %122, %125 : vector<4x8x8xf32>
    %127 = math.exp %126 : vector<4x8x8xf32>
    %cst_66 = arith.constant dense<0.000000e+00> : vector<4x8xf32>
    %128 = vector.multi_reduction <add>, %127, %cst_66 [2] : vector<4x8x8xf32> to vector<4x8xf32>
    %129 = vector.shape_cast %128 : vector<4x8xf32> to vector<4x8x1xf32>
    %130 = tpu.reciprocal %129 {approx = true} : vector<4x8x1xf32> -> vector<4x8x1xf32>
    %131 = vector.broadcast %130 : vector<4x8x1xf32> to vector<4x8x8xf32>
    %132 = arith.mulf %127, %131 : vector<4x8x8xf32>
    "tpu.trace_start"() <{level = 10 : i32, message = "hqk,hkd->hqd"}> : () -> ()
    %cst_67 = arith.constant dense<0.000000e+00> : vector<4x8x8xf32>
    %133 = tpu.matmul %132, %121, %cst_67 {dimension_numbers = #tpu.dot_dimension_numbers<[2], [1], [1], [2], [0, 0, 0, 1, 1, 2], [0], [0]>} : vector<4x8x8xf32>, vector<4x8x8xf32>, vector<4x8x8xf32> -> vector<4x8x8xf32>
    "tpu.trace_stop"() : () -> ()
    %134 = tpu.transpose %133, [1, 0, 2] : vector<4x8x8xf32> -> vector<8x4x8xf32>
    %135 = vector.shape_cast %134 : vector<8x4x8xf32> to vector<8x32xf32>
    %cst_68 = arith.constant dense<0.000000e+00> : vector<8x32xf32>
    %136 = tpu.matmul %135, %107, %cst_68 {dimension_numbers = #tpu.dot_dimension_numbers<[1], [0], [0], [1], [0, 0, 1, 1], [], []>} : vector<8x32xf32>, vector<32x32xf32>, vector<8x32xf32> -> vector<8x32xf32>
    %137 = vector.broadcast %109 : vector<1x32xf32> to vector<8x32xf32>
    %138 = arith.addf %136, %137 : vector<8x32xf32>
    %139 = arith.addf %101, %138 : vector<8x32xf32>
    %c1_69 = arith.constant 1 : index
    %c0_70 = arith.constant 0 : index
    %c0_71 = arith.constant 0 : index
    %140 = vector.load %arg8[%c1_69, %c0_70, %c0_71] : memref<2x1x32xf32, #tpu.memory_space<vmem>>, vector<1x1x32xf32>
    %141 = vector.shape_cast %140 : vector<1x1x32xf32> to vector<1x32xf32>
    %c1_72 = arith.constant 1 : index
    %c0_73 = arith.constant 0 : index
    %c0_74 = arith.constant 0 : index
    %142 = vector.load %arg9[%c1_72, %c0_73, %c0_74] : memref<2x1x32xf32, #tpu.memory_space<vmem>>, vector<1x1x32xf32>
    %143 = vector.shape_cast %142 : vector<1x1x32xf32> to vector<1x32xf32>
    %144 = arith.mulf %139, %139 : vector<8x32xf32>
    %145 = tpu.concatenate %139, %144 in 1 : vector<8x32xf32>, vector<8x32xf32> -> vector<8x64xf32>
    %cst_75 = arith.constant dense<0.000000e+00> : vector<8x2xf32>
    %146 = tpu.matmul %145, %0, %cst_75 {dimension_numbers = #tpu.dot_dimension_numbers<[1], [0], [0], [1], [0, 0, 1, 1], [], []>} : vector<8x64xf32>, vector<64x2xf32>, vector<8x2xf32> -> vector<8x2xf32>
    %147 = vector.extract_strided_slice %146 {offsets = [0, 0], sizes = [8, 1], strides = [1, 1]} : vector<8x2xf32> to vector<8x1xf32>
    %148 = vector.extract_strided_slice %146 {offsets = [0, 1], sizes = [8, 1], strides = [1, 1]} : vector<8x2xf32> to vector<8x1xf32>
    %149 = arith.mulf %147, %147 : vector<8x1xf32>
    %150 = arith.subf %148, %149 : vector<8x1xf32>
    %151 = vector.broadcast %147 : vector<8x1xf32> to vector<8x32xf32>
    %152 = arith.subf %139, %151 : vector<8x32xf32>
    %cst_76 = arith.constant 9.99999974E-6 : f32
    %153 = vector.broadcast %cst_76 : f32 to vector<8x1xf32>
    %154 = arith.addf %150, %153 : vector<8x1xf32>
    %155 = math.rsqrt %154 : vector<8x1xf32>
    %156 = vector.broadcast %155 : vector<8x1xf32> to vector<8x32xf32>
    %157 = arith.mulf %152, %156 : vector<8x32xf32>
    %158 = vector.broadcast %141 : vector<1x32xf32> to vector<8x32xf32>
    %159 = arith.mulf %157, %158 : vector<8x32xf32>
    %160 = vector.broadcast %143 : vector<1x32xf32> to vector<8x32xf32>
    %161 = arith.addf %159, %160 : vector<8x32xf32>
    %c1_77 = arith.constant 1 : index
    %c0_78 = arith.constant 0 : index
    %c0_79 = arith.constant 0 : index
    %162 = vector.load %arg10[%c1_77, %c0_78, %c0_79] : memref<2x32x64xf32, #tpu.memory_space<vmem>>, vector<1x32x64xf32>
    %163 = vector.shape_cast %162 : vector<1x32x64xf32> to vector<32x64xf32>
    %c1_80 = arith.constant 1 : index
    %c0_81 = arith.constant 0 : index
    %c0_82 = arith.constant 0 : index
    %164 = vector.load %arg11[%c1_80, %c0_81, %c0_82] : memref<2x1x64xf32, #tpu.memory_space<vmem>>, vector<1x1x64xf32>
    %165 = vector.shape_cast %164 : vector<1x1x64xf32> to vector<1x64xf32>
    %c1_83 = arith.constant 1 : index
    %c0_84 = arith.constant 0 : index
    %c0_85 = arith.constant 0 : index
    %166 = vector.load %arg12[%c1_83, %c0_84, %c0_85] : memref<2x64x32xf32, #tpu.memory_space<vmem>>, vector<1x64x32xf32>
    %167 = vector.shape_cast %166 : vector<1x64x32xf32> to vector<64x32xf32>
    %c1_86 = arith.constant 1 : index
    %c0_87 = arith.constant 0 : index
    %c0_88 = arith.constant 0 : index
    %168 = vector.load %arg13[%c1_86, %c0_87, %c0_88] : memref<2x1x32xf32, #tpu.memory_space<vmem>>, vector<1x1x32xf32>
    %169 = vector.shape_cast %168 : vector<1x1x32xf32> to vector<1x32xf32>
    %cst_89 = arith.constant dense<0.000000e+00> : vector<8x64xf32>
    %170 = tpu.matmul %161, %163, %cst_89 {dimension_numbers = #tpu.dot_dimension_numbers<[1], [0], [0], [1], [0, 0, 1, 1], [], []>} : vector<8x32xf32>, vector<32x64xf32>, vector<8x64xf32> -> vector<8x64xf32>
    %171 = vector.broadcast %165 : vector<1x64xf32> to vector<8x64xf32>
    %172 = arith.addf %170, %171 : vector<8x64xf32>
    %cst_90 = arith.constant 0.000000e+00 : f32
    %173 = vector.broadcast %cst_90 : f32 to vector<8x64xf32>
    %174 = arith.maximumf %172, %173 : vector<8x64xf32>
    %cst_91 = arith.constant dense<0.000000e+00> : vector<8x32xf32>
    %175 = tpu.matmul %174, %167, %cst_91 {dimension_numbers = #tpu.dot_dimension_numbers<[1], [0], [0], [1], [0, 0, 1, 1], [], []>} : vector<8x64xf32>, vector<64x32xf32>, vector<8x32xf32> -> vector<8x32xf32>
    %176 = vector.broadcast %169 : vector<1x32xf32> to vector<8x32xf32>
    %177 = arith.addf %175, %176 : vector<8x32xf32>
    %178 = arith.addf %161, %177 : vector<8x32xf32>
    %c1_92 = arith.constant 1 : index
    %c0_93 = arith.constant 0 : index
    %c0_94 = arith.constant 0 : index
    %179 = vector.load %arg14[%c1_92, %c0_93, %c0_94] : memref<2x1x32xf32, #tpu.memory_space<vmem>>, vector<1x1x32xf32>
    %180 = vector.shape_cast %179 : vector<1x1x32xf32> to vector<1x32xf32>
    %c1_95 = arith.constant 1 : index
    %c0_96 = arith.constant 0 : index
    %c0_97 = arith.constant 0 : index
    %181 = vector.load %arg15[%c1_95, %c0_96, %c0_97] : memref<2x1x32xf32, #tpu.memory_space<vmem>>, vector<1x1x32xf32>
    %182 = vector.shape_cast %181 : vector<1x1x32xf32> to vector<1x32xf32>
    %183 = arith.mulf %178, %178 : vector<8x32xf32>
    %184 = tpu.concatenate %178, %183 in 1 : vector<8x32xf32>, vector<8x32xf32> -> vector<8x64xf32>
    %cst_98 = arith.constant dense<0.000000e+00> : vector<8x2xf32>
    %185 = tpu.matmul %184, %0, %cst_98 {dimension_numbers = #tpu.dot_dimension_numbers<[1], [0], [0], [1], [0, 0, 1, 1], [], []>} : vector<8x64xf32>, vector<64x2xf32>, vector<8x2xf32> -> vector<8x2xf32>
    %186 = vector.extract_strided_slice %185 {offsets = [0, 0], sizes = [8, 1], strides = [1, 1]} : vector<8x2xf32> to vector<8x1xf32>
    %187 = vector.extract_strided_slice %185 {offsets = [0, 1], sizes = [8, 1], strides = [1, 1]} : vector<8x2xf32> to vector<8x1xf32>
    %188 = arith.mulf %186, %186 : vector<8x1xf32>
    %189 = arith.subf %187, %188 : vector<8x1xf32>
    %190 = vector.broadcast %186 : vector<8x1xf32> to vector<8x32xf32>
    %191 = arith.subf %178, %190 : vector<8x32xf32>
    %cst_99 = arith.constant 9.99999974E-6 : f32
    %192 = vector.broadcast %cst_99 : f32 to vector<8x1xf32>
    %193 = arith.addf %189, %192 : vector<8x1xf32>
    %194 = math.rsqrt %193 : vector<8x1xf32>
    %195 = vector.broadcast %194 : vector<8x1xf32> to vector<8x32xf32>
    %196 = arith.mulf %191, %195 : vector<8x32xf32>
    %197 = vector.broadcast %180 : vector<1x32xf32> to vector<8x32xf32>
    %198 = arith.mulf %196, %197 : vector<8x32xf32>
    %199 = vector.broadcast %182 : vector<1x32xf32> to vector<8x32xf32>
    %200 = arith.addf %198, %199 : vector<8x32xf32>
    %c0_100 = arith.constant 0 : index
    %c0_101 = arith.constant 0 : index
    %201 = vector.load %arg16[%c0_100, %c0_101] : memref<1x32xf32, #tpu.memory_space<vmem>>, vector<1x32xf32>
    %c0_102 = arith.constant 0 : index
    %c0_103 = arith.constant 0 : index
    %202 = vector.load %arg17[%c0_102, %c0_103] : memref<1x32xf32, #tpu.memory_space<vmem>>, vector<1x32xf32>
    %203 = arith.mulf %200, %200 : vector<8x32xf32>
    %204 = tpu.concatenate %200, %203 in 1 : vector<8x32xf32>, vector<8x32xf32> -> vector<8x64xf32>
    %cst_104 = arith.constant dense<0.000000e+00> : vector<8x2xf32>
    %205 = tpu.matmul %204, %0, %cst_104 {dimension_numbers = #tpu.dot_dimension_numbers<[1], [0], [0], [1], [0, 0, 1, 1], [], []>} : vector<8x64xf32>, vector<64x2xf32>, vector<8x2xf32> -> vector<8x2xf32>
    %206 = vector.extract_strided_slice %205 {offsets = [0, 0], sizes = [8, 1], strides = [1, 1]} : vector<8x2xf32> to vector<8x1xf32>
    %207 = vector.extract_strided_slice %205 {offsets = [0, 1], sizes = [8, 1], strides = [1, 1]} : vector<8x2xf32> to vector<8x1xf32>
    %208 = arith.mulf %206, %206 : vector<8x1xf32>
    %209 = arith.subf %207, %208 : vector<8x1xf32>
    %210 = vector.broadcast %206 : vector<8x1xf32> to vector<8x32xf32>
    %211 = arith.subf %200, %210 : vector<8x32xf32>
    %cst_105 = arith.constant 9.99999974E-6 : f32
    %212 = vector.broadcast %cst_105 : f32 to vector<8x1xf32>
    %213 = arith.addf %209, %212 : vector<8x1xf32>
    %214 = math.rsqrt %213 : vector<8x1xf32>
    %215 = vector.broadcast %214 : vector<8x1xf32> to vector<8x32xf32>
    %216 = arith.mulf %211, %215 : vector<8x32xf32>
    %217 = vector.broadcast %201 : vector<1x32xf32> to vector<8x32xf32>
    %218 = arith.mulf %216, %217 : vector<8x32xf32>
    %219 = vector.broadcast %202 : vector<1x32xf32> to vector<8x32xf32>
    %220 = arith.addf %218, %219 : vector<8x32xf32>
    %c0_106 = arith.constant 0 : index
    %c0_107 = arith.constant 0 : index
    %c0_108 = arith.constant 0 : index
    %221 = vector.load %arg2[%c0_106, %c0_107, %c0_108] : memref<1x8x32xf32, #tpu.memory_space<vmem>>, vector<1x8x32xf32>
    %222 = vector.shape_cast %221 : vector<1x8x32xf32> to vector<8x32xf32>
    %c0_109 = arith.constant 0 : index
    %c0_110 = arith.constant 0 : index
    %c0_111 = arith.constant 0 : index
    %223 = vector.load %arg18[%c0_109, %c0_110, %c0_111] : memref<2x32x96xf32, #tpu.memory_space<vmem>>, vector<1x32x96xf32>
    %224 = vector.shape_cast %223 : vector<1x32x96xf32> to vector<32x96xf32>
    %c0_112 = arith.constant 0 : index
    %c0_113 = arith.constant 0 : index
    %c0_114 = arith.constant 0 : index
    %225 = vector.load %arg19[%c0_112, %c0_113, %c0_114] : memref<2x1x96xf32, #tpu.memory_space<vmem>>, vector<1x1x96xf32>
    %226 = vector.shape_cast %225 : vector<1x1x96xf32> to vector<1x96xf32>
    %c0_115 = arith.constant 0 : index
    %c0_116 = arith.constant 0 : index
    %c0_117 = arith.constant 0 : index
    %227 = vector.load %arg20[%c0_115, %c0_116, %c0_117] : memref<2x32x32xf32, #tpu.memory_space<vmem>>, vector<1x32x32xf32>
    %228 = vector.shape_cast %227 : vector<1x32x32xf32> to vector<32x32xf32>
    %c0_118 = arith.constant 0 : index
    %c0_119 = arith.constant 0 : index
    %c0_120 = arith.constant 0 : index
    %229 = vector.load %arg21[%c0_118, %c0_119, %c0_120] : memref<2x1x32xf32, #tpu.memory_space<vmem>>, vector<1x1x32xf32>
    %230 = vector.shape_cast %229 : vector<1x1x32xf32> to vector<1x32xf32>
    %cst_121 = arith.constant dense<0.000000e+00> : vector<8x96xf32>
    %231 = tpu.matmul %222, %224, %cst_121 {dimension_numbers = #tpu.dot_dimension_numbers<[1], [0], [0], [1], [0, 0, 1, 1], [], []>} : vector<8x32xf32>, vector<32x96xf32>, vector<8x96xf32> -> vector<8x96xf32>
    %232 = vector.broadcast %226 : vector<1x96xf32> to vector<8x96xf32>
    %233 = arith.addf %231, %232 : vector<8x96xf32>
    %234 = vector.extract_strided_slice %233 {offsets = [0, 0], sizes = [8, 32], strides = [1, 1]} : vector<8x96xf32> to vector<8x32xf32>
    %235 = vector.extract_strided_slice %233 {offsets = [0, 32], sizes = [8, 32], strides = [1, 1]} : vector<8x96xf32> to vector<8x32xf32>
    %236 = vector.extract_strided_slice %233 {offsets = [0, 64], sizes = [8, 32], strides = [1, 1]} : vector<8x96xf32> to vector<8x32xf32>
    %237 = vector.shape_cast %234 : vector<8x32xf32> to vector<8x4x8xf32>
    %238 = tpu.transpose %237, [1, 0, 2] : vector<8x4x8xf32> -> vector<4x8x8xf32>
    %239 = vector.shape_cast %235 : vector<8x32xf32> to vector<8x4x8xf32>
    %240 = tpu.transpose %239, [1, 0, 2] : vector<8x4x8xf32> -> vector<4x8x8xf32>
    %241 = vector.shape_cast %236 : vector<8x32xf32> to vector<8x4x8xf32>
    %242 = tpu.transpose %241, [1, 0, 2] : vector<8x4x8xf32> -> vector<4x8x8xf32>
    "tpu.trace_start"() <{level = 10 : i32, message = "hqd,hkd->hqk"}> : () -> ()
    %cst_122 = arith.constant dense<0.000000e+00> : vector<4x8x8xf32>
    %243 = tpu.matmul %238, %240, %cst_122 {dimension_numbers = #tpu.dot_dimension_numbers<[2], [2], [1], [1], [0, 0, 0, 1, 1, 1], [0], [0]>} : vector<4x8x8xf32>, vector<4x8x8xf32>, vector<4x8x8xf32> -> vector<4x8x8xf32>
    "tpu.trace_stop"() : () -> ()
    %cst_123 = arith.constant dense<0xFF800000> : vector<4x8xf32>
    %244 = vector.multi_reduction <maximumf>, %243, %cst_123 [2] : vector<4x8x8xf32> to vector<4x8xf32>
    %245 = vector.shape_cast %244 : vector<4x8xf32> to vector<4x8x1xf32>
    %246 = vector.broadcast %245 : vector<4x8x1xf32> to vector<4x8x8xf32>
    %247 = arith.subf %243, %246 : vector<4x8x8xf32>
    %248 = math.exp %247 : vector<4x8x8xf32>
    %cst_124 = arith.constant dense<0.000000e+00> : vector<4x8xf32>
    %249 = vector.multi_reduction <add>, %248, %cst_124 [2] : vector<4x8x8xf32> to vector<4x8xf32>
    %250 = vector.shape_cast %249 : vector<4x8xf32> to vector<4x8x1xf32>
    %251 = tpu.reciprocal %250 {approx = true} : vector<4x8x1xf32> -> vector<4x8x1xf32>
    %252 = vector.broadcast %251 : vector<4x8x1xf32> to vector<4x8x8xf32>
    %253 = arith.mulf %248, %252 : vector<4x8x8xf32>
    "tpu.trace_start"() <{level = 10 : i32, message = "hqk,hkd->hqd"}> : () -> ()
    %cst_125 = arith.constant dense<0.000000e+00> : vector<4x8x8xf32>
    %254 = tpu.matmul %253, %242, %cst_125 {dimension_numbers = #tpu.dot_dimension_numbers<[2], [1], [1], [2], [0, 0, 0, 1, 1, 2], [0], [0]>} : vector<4x8x8xf32>, vector<4x8x8xf32>, vector<4x8x8xf32> -> vector<4x8x8xf32>
    "tpu.trace_stop"() : () -> ()
    %255 = tpu.transpose %254, [1, 0, 2] : vector<4x8x8xf32> -> vector<8x4x8xf32>
    %256 = vector.shape_cast %255 : vector<8x4x8xf32> to vector<8x32xf32>
    %cst_126 = arith.constant dense<0.000000e+00> : vector<8x32xf32>
    %257 = tpu.matmul %256, %228, %cst_126 {dimension_numbers = #tpu.dot_dimension_numbers<[1], [0], [0], [1], [0, 0, 1, 1], [], []>} : vector<8x32xf32>, vector<32x32xf32>, vector<8x32xf32> -> vector<8x32xf32>
    %258 = vector.broadcast %230 : vector<1x32xf32> to vector<8x32xf32>
    %259 = arith.addf %257, %258 : vector<8x32xf32>
    %260 = arith.addf %222, %259 : vector<8x32xf32>
    %c0_127 = arith.constant 0 : index
    %c0_128 = arith.constant 0 : index
    %c0_129 = arith.constant 0 : index
    %261 = vector.load %arg22[%c0_127, %c0_128, %c0_129] : memref<2x1x32xf32, #tpu.memory_space<vmem>>, vector<1x1x32xf32>
    %262 = vector.shape_cast %261 : vector<1x1x32xf32> to vector<1x32xf32>
    %c0_130 = arith.constant 0 : index
    %c0_131 = arith.constant 0 : index
    %c0_132 = arith.constant 0 : index
    %263 = vector.load %arg23[%c0_130, %c0_131, %c0_132] : memref<2x1x32xf32, #tpu.memory_space<vmem>>, vector<1x1x32xf32>
    %264 = vector.shape_cast %263 : vector<1x1x32xf32> to vector<1x32xf32>
    %265 = arith.mulf %260, %260 : vector<8x32xf32>
    %266 = tpu.concatenate %260, %265 in 1 : vector<8x32xf32>, vector<8x32xf32> -> vector<8x64xf32>
    %cst_133 = arith.constant dense<0.000000e+00> : vector<8x2xf32>
    %267 = tpu.matmul %266, %0, %cst_133 {dimension_numbers = #tpu.dot_dimension_numbers<[1], [0], [0], [1], [0, 0, 1, 1], [], []>} : vector<8x64xf32>, vector<64x2xf32>, vector<8x2xf32> -> vector<8x2xf32>
    %268 = vector.extract_strided_slice %267 {offsets = [0, 0], sizes = [8, 1], strides = [1, 1]} : vector<8x2xf32> to vector<8x1xf32>
    %269 = vector.extract_strided_slice %267 {offsets = [0, 1], sizes = [8, 1], strides = [1, 1]} : vector<8x2xf32> to vector<8x1xf32>
    %270 = arith.mulf %268, %268 : vector<8x1xf32>
    %271 = arith.subf %269, %270 : vector<8x1xf32>
    %272 = vector.broadcast %268 : vector<8x1xf32> to vector<8x32xf32>
    %273 = arith.subf %260, %272 : vector<8x32xf32>
    %cst_134 = arith.constant 9.99999974E-6 : f32
    %274 = vector.broadcast %cst_134 : f32 to vector<8x1xf32>
    %275 = arith.addf %271, %274 : vector<8x1xf32>
    %276 = math.rsqrt %275 : vector<8x1xf32>
    %277 = vector.broadcast %276 : vector<8x1xf32> to vector<8x32xf32>
    %278 = arith.mulf %273, %277 : vector<8x32xf32>
    %279 = vector.broadcast %262 : vector<1x32xf32> to vector<8x32xf32>
    %280 = arith.mulf %278, %279 : vector<8x32xf32>
    %281 = vector.broadcast %264 : vector<1x32xf32> to vector<8x32xf32>
    %282 = arith.addf %280, %281 : vector<8x32xf32>
    %c0_135 = arith.constant 0 : index
    %c0_136 = arith.constant 0 : index
    %c0_137 = arith.constant 0 : index
    %283 = vector.load %arg24[%c0_135, %c0_136, %c0_137] : memref<2x32x32xf32, #tpu.memory_space<vmem>>, vector<1x32x32xf32>
    %284 = vector.shape_cast %283 : vector<1x32x32xf32> to vector<32x32xf32>
    %c0_138 = arith.constant 0 : index
    %c0_139 = arith.constant 0 : index
    %c0_140 = arith.constant 0 : index
    %285 = vector.load %arg25[%c0_138, %c0_139, %c0_140] : memref<2x1x32xf32, #tpu.memory_space<vmem>>, vector<1x1x32xf32>
    %286 = vector.shape_cast %285 : vector<1x1x32xf32> to vector<1x32xf32>
    %c0_141 = arith.constant 0 : index
    %c0_142 = arith.constant 0 : index
    %c0_143 = arith.constant 0 : index
    %287 = vector.load %arg26[%c0_141, %c0_142, %c0_143] : memref<2x32x64xf32, #tpu.memory_space<vmem>>, vector<1x32x64xf32>
    %288 = vector.shape_cast %287 : vector<1x32x64xf32> to vector<32x64xf32>
    %c0_144 = arith.constant 0 : index
    %c0_145 = arith.constant 0 : index
    %c0_146 = arith.constant 0 : index
    %289 = vector.load %arg27[%c0_144, %c0_145, %c0_146] : memref<2x1x64xf32, #tpu.memory_space<vmem>>, vector<1x1x64xf32>
    %290 = vector.shape_cast %289 : vector<1x1x64xf32> to vector<1x64xf32>
    %c0_147 = arith.constant 0 : index
    %c0_148 = arith.constant 0 : index
    %c0_149 = arith.constant 0 : index
    %291 = vector.load %arg28[%c0_147, %c0_148, %c0_149] : memref<2x32x32xf32, #tpu.memory_space<vmem>>, vector<1x32x32xf32>
    %292 = vector.shape_cast %291 : vector<1x32x32xf32> to vector<32x32xf32>
    %c0_150 = arith.constant 0 : index
    %c0_151 = arith.constant 0 : index
    %c0_152 = arith.constant 0 : index
    %293 = vector.load %arg29[%c0_150, %c0_151, %c0_152] : memref<2x1x32xf32, #tpu.memory_space<vmem>>, vector<1x1x32xf32>
    %294 = vector.shape_cast %293 : vector<1x1x32xf32> to vector<1x32xf32>
    %cst_153 = arith.constant dense<0.000000e+00> : vector<8x32xf32>
    %295 = tpu.matmul %282, %284, %cst_153 {dimension_numbers = #tpu.dot_dimension_numbers<[1], [0], [0], [1], [0, 0, 1, 1], [], []>} : vector<8x32xf32>, vector<32x32xf32>, vector<8x32xf32> -> vector<8x32xf32>
    %296 = vector.broadcast %286 : vector<1x32xf32> to vector<8x32xf32>
    %297 = arith.addf %295, %296 : vector<8x32xf32>
    %cst_154 = arith.constant dense<0.000000e+00> : vector<8x64xf32>
    %298 = tpu.matmul %220, %288, %cst_154 {dimension_numbers = #tpu.dot_dimension_numbers<[1], [0], [0], [1], [0, 0, 1, 1], [], []>} : vector<8x32xf32>, vector<32x64xf32>, vector<8x64xf32> -> vector<8x64xf32>
    %299 = vector.broadcast %290 : vector<1x64xf32> to vector<8x64xf32>
    %300 = arith.addf %298, %299 : vector<8x64xf32>
    %301 = vector.extract_strided_slice %300 {offsets = [0, 0], sizes = [8, 32], strides = [1, 1]} : vector<8x64xf32> to vector<8x32xf32>
    %302 = vector.extract_strided_slice %300 {offsets = [0, 32], sizes = [8, 32], strides = [1, 1]} : vector<8x64xf32> to vector<8x32xf32>
    %303 = vector.shape_cast %297 : vector<8x32xf32> to vector<8x4x8xf32>
    %304 = tpu.transpose %303, [1, 0, 2] : vector<8x4x8xf32> -> vector<4x8x8xf32>
    %305 = vector.shape_cast %301 : vector<8x32xf32> to vector<8x4x8xf32>
    %306 = tpu.transpose %305, [1, 0, 2] : vector<8x4x8xf32> -> vector<4x8x8xf32>
    %307 = vector.shape_cast %302 : vector<8x32xf32> to vector<8x4x8xf32>
    %308 = tpu.transpose %307, [1, 0, 2] : vector<8x4x8xf32> -> vector<4x8x8xf32>
    "tpu.trace_start"() <{level = 10 : i32, message = "hqd,hkd->hqk"}> : () -> ()
    %cst_155 = arith.constant dense<0.000000e+00> : vector<4x8x8xf32>
    %309 = tpu.matmul %304, %306, %cst_155 {dimension_numbers = #tpu.dot_dimension_numbers<[2], [2], [1], [1], [0, 0, 0, 1, 1, 1], [0], [0]>} : vector<4x8x8xf32>, vector<4x8x8xf32>, vector<4x8x8xf32> -> vector<4x8x8xf32>
    "tpu.trace_stop"() : () -> ()
    %cst_156 = arith.constant dense<0xFF800000> : vector<4x8xf32>
    %310 = vector.multi_reduction <maximumf>, %309, %cst_156 [2] : vector<4x8x8xf32> to vector<4x8xf32>
    %311 = vector.shape_cast %310 : vector<4x8xf32> to vector<4x8x1xf32>
    %312 = vector.broadcast %311 : vector<4x8x1xf32> to vector<4x8x8xf32>
    %313 = arith.subf %309, %312 : vector<4x8x8xf32>
    %314 = math.exp %313 : vector<4x8x8xf32>
    %cst_157 = arith.constant dense<0.000000e+00> : vector<4x8xf32>
    %315 = vector.multi_reduction <add>, %314, %cst_157 [2] : vector<4x8x8xf32> to vector<4x8xf32>
    %316 = vector.shape_cast %315 : vector<4x8xf32> to vector<4x8x1xf32>
    %317 = tpu.reciprocal %316 {approx = true} : vector<4x8x1xf32> -> vector<4x8x1xf32>
    %318 = vector.broadcast %317 : vector<4x8x1xf32> to vector<4x8x8xf32>
    %319 = arith.mulf %314, %318 : vector<4x8x8xf32>
    "tpu.trace_start"() <{level = 10 : i32, message = "hqk,hkd->hqd"}> : () -> ()
    %cst_158 = arith.constant dense<0.000000e+00> : vector<4x8x8xf32>
    %320 = tpu.matmul %319, %308, %cst_158 {dimension_numbers = #tpu.dot_dimension_numbers<[2], [1], [1], [2], [0, 0, 0, 1, 1, 2], [0], [0]>} : vector<4x8x8xf32>, vector<4x8x8xf32>, vector<4x8x8xf32> -> vector<4x8x8xf32>
    "tpu.trace_stop"() : () -> ()
    %321 = tpu.transpose %320, [1, 0, 2] : vector<4x8x8xf32> -> vector<8x4x8xf32>
    %322 = vector.shape_cast %321 : vector<8x4x8xf32> to vector<8x32xf32>
    %cst_159 = arith.constant dense<0.000000e+00> : vector<8x32xf32>
    %323 = tpu.matmul %322, %292, %cst_159 {dimension_numbers = #tpu.dot_dimension_numbers<[1], [0], [0], [1], [0, 0, 1, 1], [], []>} : vector<8x32xf32>, vector<32x32xf32>, vector<8x32xf32> -> vector<8x32xf32>
    %324 = vector.broadcast %294 : vector<1x32xf32> to vector<8x32xf32>
    %325 = arith.addf %323, %324 : vector<8x32xf32>
    %326 = arith.addf %282, %325 : vector<8x32xf32>
    %c0_160 = arith.constant 0 : index
    %c0_161 = arith.constant 0 : index
    %c0_162 = arith.constant 0 : index
    %327 = vector.load %arg30[%c0_160, %c0_161, %c0_162] : memref<2x1x32xf32, #tpu.memory_space<vmem>>, vector<1x1x32xf32>
    %328 = vector.shape_cast %327 : vector<1x1x32xf32> to vector<1x32xf32>
    %c0_163 = arith.constant 0 : index
    %c0_164 = arith.constant 0 : index
    %c0_165 = arith.constant 0 : index
    %329 = vector.load %arg31[%c0_163, %c0_164, %c0_165] : memref<2x1x32xf32, #tpu.memory_space<vmem>>, vector<1x1x32xf32>
    %330 = vector.shape_cast %329 : vector<1x1x32xf32> to vector<1x32xf32>
    %331 = arith.mulf %326, %326 : vector<8x32xf32>
    %332 = tpu.concatenate %326, %331 in 1 : vector<8x32xf32>, vector<8x32xf32> -> vector<8x64xf32>
    %cst_166 = arith.constant dense<0.000000e+00> : vector<8x2xf32>
    %333 = tpu.matmul %332, %0, %cst_166 {dimension_numbers = #tpu.dot_dimension_numbers<[1], [0], [0], [1], [0, 0, 1, 1], [], []>} : vector<8x64xf32>, vector<64x2xf32>, vector<8x2xf32> -> vector<8x2xf32>
    %334 = vector.extract_strided_slice %333 {offsets = [0, 0], sizes = [8, 1], strides = [1, 1]} : vector<8x2xf32> to vector<8x1xf32>
    %335 = vector.extract_strided_slice %333 {offsets = [0, 1], sizes = [8, 1], strides = [1, 1]} : vector<8x2xf32> to vector<8x1xf32>
    %336 = arith.mulf %334, %334 : vector<8x1xf32>
    %337 = arith.subf %335, %336 : vector<8x1xf32>
    %338 = vector.broadcast %334 : vector<8x1xf32> to vector<8x32xf32>
    %339 = arith.subf %326, %338 : vector<8x32xf32>
    %cst_167 = arith.constant 9.99999974E-6 : f32
    %340 = vector.broadcast %cst_167 : f32 to vector<8x1xf32>
    %341 = arith.addf %337, %340 : vector<8x1xf32>
    %342 = math.rsqrt %341 : vector<8x1xf32>
    %343 = vector.broadcast %342 : vector<8x1xf32> to vector<8x32xf32>
    %344 = arith.mulf %339, %343 : vector<8x32xf32>
    %345 = vector.broadcast %328 : vector<1x32xf32> to vector<8x32xf32>
    %346 = arith.mulf %344, %345 : vector<8x32xf32>
    %347 = vector.broadcast %330 : vector<1x32xf32> to vector<8x32xf32>
    %348 = arith.addf %346, %347 : vector<8x32xf32>
    %c0_168 = arith.constant 0 : index
    %c0_169 = arith.constant 0 : index
    %c0_170 = arith.constant 0 : index
    %349 = vector.load %arg32[%c0_168, %c0_169, %c0_170] : memref<2x32x64xf32, #tpu.memory_space<vmem>>, vector<1x32x64xf32>
    %350 = vector.shape_cast %349 : vector<1x32x64xf32> to vector<32x64xf32>
    %c0_171 = arith.constant 0 : index
    %c0_172 = arith.constant 0 : index
    %c0_173 = arith.constant 0 : index
    %351 = vector.load %arg33[%c0_171, %c0_172, %c0_173] : memref<2x1x64xf32, #tpu.memory_space<vmem>>, vector<1x1x64xf32>
    %352 = vector.shape_cast %351 : vector<1x1x64xf32> to vector<1x64xf32>
    %c0_174 = arith.constant 0 : index
    %c0_175 = arith.constant 0 : index
    %c0_176 = arith.constant 0 : index
    %353 = vector.load %arg34[%c0_174, %c0_175, %c0_176] : memref<2x64x32xf32, #tpu.memory_space<vmem>>, vector<1x64x32xf32>
    %354 = vector.shape_cast %353 : vector<1x64x32xf32> to vector<64x32xf32>
    %c0_177 = arith.constant 0 : index
    %c0_178 = arith.constant 0 : index
    %c0_179 = arith.constant 0 : index
    %355 = vector.load %arg35[%c0_177, %c0_178, %c0_179] : memref<2x1x32xf32, #tpu.memory_space<vmem>>, vector<1x1x32xf32>
    %356 = vector.shape_cast %355 : vector<1x1x32xf32> to vector<1x32xf32>
    %cst_180 = arith.constant dense<0.000000e+00> : vector<8x64xf32>
    %357 = tpu.matmul %348, %350, %cst_180 {dimension_numbers = #tpu.dot_dimension_numbers<[1], [0], [0], [1], [0, 0, 1, 1], [], []>} : vector<8x32xf32>, vector<32x64xf32>, vector<8x64xf32> -> vector<8x64xf32>
    %358 = vector.broadcast %352 : vector<1x64xf32> to vector<8x64xf32>
    %359 = arith.addf %357, %358 : vector<8x64xf32>
    %cst_181 = arith.constant 0.000000e+00 : f32
    %360 = vector.broadcast %cst_181 : f32 to vector<8x64xf32>
    %361 = arith.maximumf %359, %360 : vector<8x64xf32>
    %cst_182 = arith.constant dense<0.000000e+00> : vector<8x32xf32>
    %362 = tpu.matmul %361, %354, %cst_182 {dimension_numbers = #tpu.dot_dimension_numbers<[1], [0], [0], [1], [0, 0, 1, 1], [], []>} : vector<8x64xf32>, vector<64x32xf32>, vector<8x32xf32> -> vector<8x32xf32>
    %363 = vector.broadcast %356 : vector<1x32xf32> to vector<8x32xf32>
    %364 = arith.addf %362, %363 : vector<8x32xf32>
    %365 = arith.addf %348, %364 : vector<8x32xf32>
    %c0_183 = arith.constant 0 : index
    %c0_184 = arith.constant 0 : index
    %c0_185 = arith.constant 0 : index
    %366 = vector.load %arg36[%c0_183, %c0_184, %c0_185] : memref<2x1x32xf32, #tpu.memory_space<vmem>>, vector<1x1x32xf32>
    %367 = vector.shape_cast %366 : vector<1x1x32xf32> to vector<1x32xf32>
    %c0_186 = arith.constant 0 : index
    %c0_187 = arith.constant 0 : index
    %c0_188 = arith.constant 0 : index
    %368 = vector.load %arg37[%c0_186, %c0_187, %c0_188] : memref<2x1x32xf32, #tpu.memory_space<vmem>>, vector<1x1x32xf32>
    %369 = vector.shape_cast %368 : vector<1x1x32xf32> to vector<1x32xf32>
    %370 = arith.mulf %365, %365 : vector<8x32xf32>
    %371 = tpu.concatenate %365, %370 in 1 : vector<8x32xf32>, vector<8x32xf32> -> vector<8x64xf32>
    %cst_189 = arith.constant dense<0.000000e+00> : vector<8x2xf32>
    %372 = tpu.matmul %371, %0, %cst_189 {dimension_numbers = #tpu.dot_dimension_numbers<[1], [0], [0], [1], [0, 0, 1, 1], [], []>} : vector<8x64xf32>, vector<64x2xf32>, vector<8x2xf32> -> vector<8x2xf32>
    %373 = vector.extract_strided_slice %372 {offsets = [0, 0], sizes = [8, 1], strides = [1, 1]} : vector<8x2xf32> to vector<8x1xf32>
    %374 = vector.extract_strided_slice %372 {offsets = [0, 1], sizes = [8, 1], strides = [1, 1]} : vector<8x2xf32> to vector<8x1xf32>
    %375 = arith.mulf %373, %373 : vector<8x1xf32>
    %376 = arith.subf %374, %375 : vector<8x1xf32>
    %377 = vector.broadcast %373 : vector<8x1xf32> to vector<8x32xf32>
    %378 = arith.subf %365, %377 : vector<8x32xf32>
    %cst_190 = arith.constant 9.99999974E-6 : f32
    %379 = vector.broadcast %cst_190 : f32 to vector<8x1xf32>
    %380 = arith.addf %376, %379 : vector<8x1xf32>
    %381 = math.rsqrt %380 : vector<8x1xf32>
    %382 = vector.broadcast %381 : vector<8x1xf32> to vector<8x32xf32>
    %383 = arith.mulf %378, %382 : vector<8x32xf32>
    %384 = vector.broadcast %367 : vector<1x32xf32> to vector<8x32xf32>
    %385 = arith.mulf %383, %384 : vector<8x32xf32>
    %386 = vector.broadcast %369 : vector<1x32xf32> to vector<8x32xf32>
    %387 = arith.addf %385, %386 : vector<8x32xf32>
    %c1_191 = arith.constant 1 : index
    %c0_192 = arith.constant 0 : index
    %c0_193 = arith.constant 0 : index
    %388 = vector.load %arg18[%c1_191, %c0_192, %c0_193] : memref<2x32x96xf32, #tpu.memory_space<vmem>>, vector<1x32x96xf32>
    %389 = vector.shape_cast %388 : vector<1x32x96xf32> to vector<32x96xf32>
    %c1_194 = arith.constant 1 : index
    %c0_195 = arith.constant 0 : index
    %c0_196 = arith.constant 0 : index
    %390 = vector.load %arg19[%c1_194, %c0_195, %c0_196] : memref<2x1x96xf32, #tpu.memory_space<vmem>>, vector<1x1x96xf32>
    %391 = vector.shape_cast %390 : vector<1x1x96xf32> to vector<1x96xf32>
    %c1_197 = arith.constant 1 : index
    %c0_198 = arith.constant 0 : index
    %c0_199 = arith.constant 0 : index
    %392 = vector.load %arg20[%c1_197, %c0_198, %c0_199] : memref<2x32x32xf32, #tpu.memory_space<vmem>>, vector<1x32x32xf32>
    %393 = vector.shape_cast %392 : vector<1x32x32xf32> to vector<32x32xf32>
    %c1_200 = arith.constant 1 : index
    %c0_201 = arith.constant 0 : index
    %c0_202 = arith.constant 0 : index
    %394 = vector.load %arg21[%c1_200, %c0_201, %c0_202] : memref<2x1x32xf32, #tpu.memory_space<vmem>>, vector<1x1x32xf32>
    %395 = vector.shape_cast %394 : vector<1x1x32xf32> to vector<1x32xf32>
    %cst_203 = arith.constant dense<0.000000e+00> : vector<8x96xf32>
    %396 = tpu.matmul %387, %389, %cst_203 {dimension_numbers = #tpu.dot_dimension_numbers<[1], [0], [0], [1], [0, 0, 1, 1], [], []>} : vector<8x32xf32>, vector<32x96xf32>, vector<8x96xf32> -> vector<8x96xf32>
    %397 = vector.broadcast %391 : vector<1x96xf32> to vector<8x96xf32>
    %398 = arith.addf %396, %397 : vector<8x96xf32>
    %399 = vector.extract_strided_slice %398 {offsets = [0, 0], sizes = [8, 32], strides = [1, 1]} : vector<8x96xf32> to vector<8x32xf32>
    %400 = vector.extract_strided_slice %398 {offsets = [0, 32], sizes = [8, 32], strides = [1, 1]} : vector<8x96xf32> to vector<8x32xf32>
    %401 = vector.extract_strided_slice %398 {offsets = [0, 64], sizes = [8, 32], strides = [1, 1]} : vector<8x96xf32> to vector<8x32xf32>
    %402 = vector.shape_cast %399 : vector<8x32xf32> to vector<8x4x8xf32>
    %403 = tpu.transpose %402, [1, 0, 2] : vector<8x4x8xf32> -> vector<4x8x8xf32>
    %404 = vector.shape_cast %400 : vector<8x32xf32> to vector<8x4x8xf32>
    %405 = tpu.transpose %404, [1, 0, 2] : vector<8x4x8xf32> -> vector<4x8x8xf32>
    %406 = vector.shape_cast %401 : vector<8x32xf32> to vector<8x4x8xf32>
    %407 = tpu.transpose %406, [1, 0, 2] : vector<8x4x8xf32> -> vector<4x8x8xf32>
    "tpu.trace_start"() <{level = 10 : i32, message = "hqd,hkd->hqk"}> : () -> ()
    %cst_204 = arith.constant dense<0.000000e+00> : vector<4x8x8xf32>
    %408 = tpu.matmul %403, %405, %cst_204 {dimension_numbers = #tpu.dot_dimension_numbers<[2], [2], [1], [1], [0, 0, 0, 1, 1, 1], [0], [0]>} : vector<4x8x8xf32>, vector<4x8x8xf32>, vector<4x8x8xf32> -> vector<4x8x8xf32>
    "tpu.trace_stop"() : () -> ()
    %cst_205 = arith.constant dense<0xFF800000> : vector<4x8xf32>
    %409 = vector.multi_reduction <maximumf>, %408, %cst_205 [2] : vector<4x8x8xf32> to vector<4x8xf32>
    %410 = vector.shape_cast %409 : vector<4x8xf32> to vector<4x8x1xf32>
    %411 = vector.broadcast %410 : vector<4x8x1xf32> to vector<4x8x8xf32>
    %412 = arith.subf %408, %411 : vector<4x8x8xf32>
    %413 = math.exp %412 : vector<4x8x8xf32>
    %cst_206 = arith.constant dense<0.000000e+00> : vector<4x8xf32>
    %414 = vector.multi_reduction <add>, %413, %cst_206 [2] : vector<4x8x8xf32> to vector<4x8xf32>
    %415 = vector.shape_cast %414 : vector<4x8xf32> to vector<4x8x1xf32>
    %416 = tpu.reciprocal %415 {approx = true} : vector<4x8x1xf32> -> vector<4x8x1xf32>
    %417 = vector.broadcast %416 : vector<4x8x1xf32> to vector<4x8x8xf32>
    %418 = arith.mulf %413, %417 : vector<4x8x8xf32>
    "tpu.trace_start"() <{level = 10 : i32, message = "hqk,hkd->hqd"}> : () -> ()
    %cst_207 = arith.constant dense<0.000000e+00> : vector<4x8x8xf32>
    %419 = tpu.matmul %418, %407, %cst_207 {dimension_numbers = #tpu.dot_dimension_numbers<[2], [1], [1], [2], [0, 0, 0, 1, 1, 2], [0], [0]>} : vector<4x8x8xf32>, vector<4x8x8xf32>, vector<4x8x8xf32> -> vector<4x8x8xf32>
    "tpu.trace_stop"() : () -> ()
    %420 = tpu.transpose %419, [1, 0, 2] : vector<4x8x8xf32> -> vector<8x4x8xf32>
    %421 = vector.shape_cast %420 : vector<8x4x8xf32> to vector<8x32xf32>
    %cst_208 = arith.constant dense<0.000000e+00> : vector<8x32xf32>
    %422 = tpu.matmul %421, %393, %cst_208 {dimension_numbers = #tpu.dot_dimension_numbers<[1], [0], [0], [1], [0, 0, 1, 1], [], []>} : vector<8x32xf32>, vector<32x32xf32>, vector<8x32xf32> -> vector<8x32xf32>
    %423 = vector.broadcast %395 : vector<1x32xf32> to vector<8x32xf32>
    %424 = arith.addf %422, %423 : vector<8x32xf32>
    %425 = arith.addf %387, %424 : vector<8x32xf32>
    %c1_209 = arith.constant 1 : index
    %c0_210 = arith.constant 0 : index
    %c0_211 = arith.constant 0 : index
    %426 = vector.load %arg22[%c1_209, %c0_210, %c0_211] : memref<2x1x32xf32, #tpu.memory_space<vmem>>, vector<1x1x32xf32>
    %427 = vector.shape_cast %426 : vector<1x1x32xf32> to vector<1x32xf32>
    %c1_212 = arith.constant 1 : index
    %c0_213 = arith.constant 0 : index
    %c0_214 = arith.constant 0 : index
    %428 = vector.load %arg23[%c1_212, %c0_213, %c0_214] : memref<2x1x32xf32, #tpu.memory_space<vmem>>, vector<1x1x32xf32>
    %429 = vector.shape_cast %428 : vector<1x1x32xf32> to vector<1x32xf32>
    %430 = arith.mulf %425, %425 : vector<8x32xf32>
    %431 = tpu.concatenate %425, %430 in 1 : vector<8x32xf32>, vector<8x32xf32> -> vector<8x64xf32>
    %cst_215 = arith.constant dense<0.000000e+00> : vector<8x2xf32>
    %432 = tpu.matmul %431, %0, %cst_215 {dimension_numbers = #tpu.dot_dimension_numbers<[1], [0], [0], [1], [0, 0, 1, 1], [], []>} : vector<8x64xf32>, vector<64x2xf32>, vector<8x2xf32> -> vector<8x2xf32>
    %433 = vector.extract_strided_slice %432 {offsets = [0, 0], sizes = [8, 1], strides = [1, 1]} : vector<8x2xf32> to vector<8x1xf32>
    %434 = vector.extract_strided_slice %432 {offsets = [0, 1], sizes = [8, 1], strides = [1, 1]} : vector<8x2xf32> to vector<8x1xf32>
    %435 = arith.mulf %433, %433 : vector<8x1xf32>
    %436 = arith.subf %434, %435 : vector<8x1xf32>
    %437 = vector.broadcast %433 : vector<8x1xf32> to vector<8x32xf32>
    %438 = arith.subf %425, %437 : vector<8x32xf32>
    %cst_216 = arith.constant 9.99999974E-6 : f32
    %439 = vector.broadcast %cst_216 : f32 to vector<8x1xf32>
    %440 = arith.addf %436, %439 : vector<8x1xf32>
    %441 = math.rsqrt %440 : vector<8x1xf32>
    %442 = vector.broadcast %441 : vector<8x1xf32> to vector<8x32xf32>
    %443 = arith.mulf %438, %442 : vector<8x32xf32>
    %444 = vector.broadcast %427 : vector<1x32xf32> to vector<8x32xf32>
    %445 = arith.mulf %443, %444 : vector<8x32xf32>
    %446 = vector.broadcast %429 : vector<1x32xf32> to vector<8x32xf32>
    %447 = arith.addf %445, %446 : vector<8x32xf32>
    %c1_217 = arith.constant 1 : index
    %c0_218 = arith.constant 0 : index
    %c0_219 = arith.constant 0 : index
    %448 = vector.load %arg24[%c1_217, %c0_218, %c0_219] : memref<2x32x32xf32, #tpu.memory_space<vmem>>, vector<1x32x32xf32>
    %449 = vector.shape_cast %448 : vector<1x32x32xf32> to vector<32x32xf32>
    %c1_220 = arith.constant 1 : index
    %c0_221 = arith.constant 0 : index
    %c0_222 = arith.constant 0 : index
    %450 = vector.load %arg25[%c1_220, %c0_221, %c0_222] : memref<2x1x32xf32, #tpu.memory_space<vmem>>, vector<1x1x32xf32>
    %451 = vector.shape_cast %450 : vector<1x1x32xf32> to vector<1x32xf32>
    %c1_223 = arith.constant 1 : index
    %c0_224 = arith.constant 0 : index
    %c0_225 = arith.constant 0 : index
    %452 = vector.load %arg26[%c1_223, %c0_224, %c0_225] : memref<2x32x64xf32, #tpu.memory_space<vmem>>, vector<1x32x64xf32>
    %453 = vector.shape_cast %452 : vector<1x32x64xf32> to vector<32x64xf32>
    %c1_226 = arith.constant 1 : index
    %c0_227 = arith.constant 0 : index
    %c0_228 = arith.constant 0 : index
    %454 = vector.load %arg27[%c1_226, %c0_227, %c0_228] : memref<2x1x64xf32, #tpu.memory_space<vmem>>, vector<1x1x64xf32>
    %455 = vector.shape_cast %454 : vector<1x1x64xf32> to vector<1x64xf32>
    %c1_229 = arith.constant 1 : index
    %c0_230 = arith.constant 0 : index
    %c0_231 = arith.constant 0 : index
    %456 = vector.load %arg28[%c1_229, %c0_230, %c0_231] : memref<2x32x32xf32, #tpu.memory_space<vmem>>, vector<1x32x32xf32>
    %457 = vector.shape_cast %456 : vector<1x32x32xf32> to vector<32x32xf32>
    %c1_232 = arith.constant 1 : index
    %c0_233 = arith.constant 0 : index
    %c0_234 = arith.constant 0 : index
    %458 = vector.load %arg29[%c1_232, %c0_233, %c0_234] : memref<2x1x32xf32, #tpu.memory_space<vmem>>, vector<1x1x32xf32>
    %459 = vector.shape_cast %458 : vector<1x1x32xf32> to vector<1x32xf32>
    %cst_235 = arith.constant dense<0.000000e+00> : vector<8x32xf32>
    %460 = tpu.matmul %447, %449, %cst_235 {dimension_numbers = #tpu.dot_dimension_numbers<[1], [0], [0], [1], [0, 0, 1, 1], [], []>} : vector<8x32xf32>, vector<32x32xf32>, vector<8x32xf32> -> vector<8x32xf32>
    %461 = vector.broadcast %451 : vector<1x32xf32> to vector<8x32xf32>
    %462 = arith.addf %460, %461 : vector<8x32xf32>
    %cst_236 = arith.constant dense<0.000000e+00> : vector<8x64xf32>
    %463 = tpu.matmul %220, %453, %cst_236 {dimension_numbers = #tpu.dot_dimension_numbers<[1], [0], [0], [1], [0, 0, 1, 1], [], []>} : vector<8x32xf32>, vector<32x64xf32>, vector<8x64xf32> -> vector<8x64xf32>
    %464 = vector.broadcast %455 : vector<1x64xf32> to vector<8x64xf32>
    %465 = arith.addf %463, %464 : vector<8x64xf32>
    %466 = vector.extract_strided_slice %465 {offsets = [0, 0], sizes = [8, 32], strides = [1, 1]} : vector<8x64xf32> to vector<8x32xf32>
    %467 = vector.extract_strided_slice %465 {offsets = [0, 32], sizes = [8, 32], strides = [1, 1]} : vector<8x64xf32> to vector<8x32xf32>
    %468 = vector.shape_cast %462 : vector<8x32xf32> to vector<8x4x8xf32>
    %469 = tpu.transpose %468, [1, 0, 2] : vector<8x4x8xf32> -> vector<4x8x8xf32>
    %470 = vector.shape_cast %466 : vector<8x32xf32> to vector<8x4x8xf32>
    %471 = tpu.transpose %470, [1, 0, 2] : vector<8x4x8xf32> -> vector<4x8x8xf32>
    %472 = vector.shape_cast %467 : vector<8x32xf32> to vector<8x4x8xf32>
    %473 = tpu.transpose %472, [1, 0, 2] : vector<8x4x8xf32> -> vector<4x8x8xf32>
    "tpu.trace_start"() <{level = 10 : i32, message = "hqd,hkd->hqk"}> : () -> ()
    %cst_237 = arith.constant dense<0.000000e+00> : vector<4x8x8xf32>
    %474 = tpu.matmul %469, %471, %cst_237 {dimension_numbers = #tpu.dot_dimension_numbers<[2], [2], [1], [1], [0, 0, 0, 1, 1, 1], [0], [0]>} : vector<4x8x8xf32>, vector<4x8x8xf32>, vector<4x8x8xf32> -> vector<4x8x8xf32>
    "tpu.trace_stop"() : () -> ()
    %cst_238 = arith.constant dense<0xFF800000> : vector<4x8xf32>
    %475 = vector.multi_reduction <maximumf>, %474, %cst_238 [2] : vector<4x8x8xf32> to vector<4x8xf32>
    %476 = vector.shape_cast %475 : vector<4x8xf32> to vector<4x8x1xf32>
    %477 = vector.broadcast %476 : vector<4x8x1xf32> to vector<4x8x8xf32>
    %478 = arith.subf %474, %477 : vector<4x8x8xf32>
    %479 = math.exp %478 : vector<4x8x8xf32>
    %cst_239 = arith.constant dense<0.000000e+00> : vector<4x8xf32>
    %480 = vector.multi_reduction <add>, %479, %cst_239 [2] : vector<4x8x8xf32> to vector<4x8xf32>
    %481 = vector.shape_cast %480 : vector<4x8xf32> to vector<4x8x1xf32>
    %482 = tpu.reciprocal %481 {approx = true} : vector<4x8x1xf32> -> vector<4x8x1xf32>
    %483 = vector.broadcast %482 : vector<4x8x1xf32> to vector<4x8x8xf32>
    %484 = arith.mulf %479, %483 : vector<4x8x8xf32>
    "tpu.trace_start"() <{level = 10 : i32, message = "hqk,hkd->hqd"}> : () -> ()
    %cst_240 = arith.constant dense<0.000000e+00> : vector<4x8x8xf32>
    %485 = tpu.matmul %484, %473, %cst_240 {dimension_numbers = #tpu.dot_dimension_numbers<[2], [1], [1], [2], [0, 0, 0, 1, 1, 2], [0], [0]>} : vector<4x8x8xf32>, vector<4x8x8xf32>, vector<4x8x8xf32> -> vector<4x8x8xf32>
    "tpu.trace_stop"() : () -> ()
    %486 = tpu.transpose %485, [1, 0, 2] : vector<4x8x8xf32> -> vector<8x4x8xf32>
    %487 = vector.shape_cast %486 : vector<8x4x8xf32> to vector<8x32xf32>
    %cst_241 = arith.constant dense<0.000000e+00> : vector<8x32xf32>
    %488 = tpu.matmul %487, %457, %cst_241 {dimension_numbers = #tpu.dot_dimension_numbers<[1], [0], [0], [1], [0, 0, 1, 1], [], []>} : vector<8x32xf32>, vector<32x32xf32>, vector<8x32xf32> -> vector<8x32xf32>
    %489 = vector.broadcast %459 : vector<1x32xf32> to vector<8x32xf32>
    %490 = arith.addf %488, %489 : vector<8x32xf32>
    %491 = arith.addf %447, %490 : vector<8x32xf32>
    %c1_242 = arith.constant 1 : index
    %c0_243 = arith.constant 0 : index
    %c0_244 = arith.constant 0 : index
    %492 = vector.load %arg30[%c1_242, %c0_243, %c0_244] : memref<2x1x32xf32, #tpu.memory_space<vmem>>, vector<1x1x32xf32>
    %493 = vector.shape_cast %492 : vector<1x1x32xf32> to vector<1x32xf32>
    %c1_245 = arith.constant 1 : index
    %c0_246 = arith.constant 0 : index
    %c0_247 = arith.constant 0 : index
    %494 = vector.load %arg31[%c1_245, %c0_246, %c0_247] : memref<2x1x32xf32, #tpu.memory_space<vmem>>, vector<1x1x32xf32>
    %495 = vector.shape_cast %494 : vector<1x1x32xf32> to vector<1x32xf32>
    %496 = arith.mulf %491, %491 : vector<8x32xf32>
    %497 = tpu.concatenate %491, %496 in 1 : vector<8x32xf32>, vector<8x32xf32> -> vector<8x64xf32>
    %cst_248 = arith.constant dense<0.000000e+00> : vector<8x2xf32>
    %498 = tpu.matmul %497, %0, %cst_248 {dimension_numbers = #tpu.dot_dimension_numbers<[1], [0], [0], [1], [0, 0, 1, 1], [], []>} : vector<8x64xf32>, vector<64x2xf32>, vector<8x2xf32> -> vector<8x2xf32>
    %499 = vector.extract_strided_slice %498 {offsets = [0, 0], sizes = [8, 1], strides = [1, 1]} : vector<8x2xf32> to vector<8x1xf32>
    %500 = vector.extract_strided_slice %498 {offsets = [0, 1], sizes = [8, 1], strides = [1, 1]} : vector<8x2xf32> to vector<8x1xf32>
    %501 = arith.mulf %499, %499 : vector<8x1xf32>
    %502 = arith.subf %500, %501 : vector<8x1xf32>
    %503 = vector.broadcast %499 : vector<8x1xf32> to vector<8x32xf32>
    %504 = arith.subf %491, %503 : vector<8x32xf32>
    %cst_249 = arith.constant 9.99999974E-6 : f32
    %505 = vector.broadcast %cst_249 : f32 to vector<8x1xf32>
    %506 = arith.addf %502, %505 : vector<8x1xf32>
    %507 = math.rsqrt %506 : vector<8x1xf32>
    %508 = vector.broadcast %507 : vector<8x1xf32> to vector<8x32xf32>
    %509 = arith.mulf %504, %508 : vector<8x32xf32>
    %510 = vector.broadcast %493 : vector<1x32xf32> to vector<8x32xf32>
    %511 = arith.mulf %509, %510 : vector<8x32xf32>
    %512 = vector.broadcast %495 : vector<1x32xf32> to vector<8x32xf32>
    %513 = arith.addf %511, %512 : vector<8x32xf32>
    %c1_250 = arith.constant 1 : index
    %c0_251 = arith.constant 0 : index
    %c0_252 = arith.constant 0 : index
    %514 = vector.load %arg32[%c1_250, %c0_251, %c0_252] : memref<2x32x64xf32, #tpu.memory_space<vmem>>, vector<1x32x64xf32>
    %515 = vector.shape_cast %514 : vector<1x32x64xf32> to vector<32x64xf32>
    %c1_253 = arith.constant 1 : index
    %c0_254 = arith.constant 0 : index
    %c0_255 = arith.constant 0 : index
    %516 = vector.load %arg33[%c1_253, %c0_254, %c0_255] : memref<2x1x64xf32, #tpu.memory_space<vmem>>, vector<1x1x64xf32>
    %517 = vector.shape_cast %516 : vector<1x1x64xf32> to vector<1x64xf32>
    %c1_256 = arith.constant 1 : index
    %c0_257 = arith.constant 0 : index
    %c0_258 = arith.constant 0 : index
    %518 = vector.load %arg34[%c1_256, %c0_257, %c0_258] : memref<2x64x32xf32, #tpu.memory_space<vmem>>, vector<1x64x32xf32>
    %519 = vector.shape_cast %518 : vector<1x64x32xf32> to vector<64x32xf32>
    %c1_259 = arith.constant 1 : index
    %c0_260 = arith.constant 0 : index
    %c0_261 = arith.constant 0 : index
    %520 = vector.load %arg35[%c1_259, %c0_260, %c0_261] : memref<2x1x32xf32, #tpu.memory_space<vmem>>, vector<1x1x32xf32>
    %521 = vector.shape_cast %520 : vector<1x1x32xf32> to vector<1x32xf32>
    %cst_262 = arith.constant dense<0.000000e+00> : vector<8x64xf32>
    %522 = tpu.matmul %513, %515, %cst_262 {dimension_numbers = #tpu.dot_dimension_numbers<[1], [0], [0], [1], [0, 0, 1, 1], [], []>} : vector<8x32xf32>, vector<32x64xf32>, vector<8x64xf32> -> vector<8x64xf32>
    %523 = vector.broadcast %517 : vector<1x64xf32> to vector<8x64xf32>
    %524 = arith.addf %522, %523 : vector<8x64xf32>
    %cst_263 = arith.constant 0.000000e+00 : f32
    %525 = vector.broadcast %cst_263 : f32 to vector<8x64xf32>
    %526 = arith.maximumf %524, %525 : vector<8x64xf32>
    %cst_264 = arith.constant dense<0.000000e+00> : vector<8x32xf32>
    %527 = tpu.matmul %526, %519, %cst_264 {dimension_numbers = #tpu.dot_dimension_numbers<[1], [0], [0], [1], [0, 0, 1, 1], [], []>} : vector<8x64xf32>, vector<64x32xf32>, vector<8x32xf32> -> vector<8x32xf32>
    %528 = vector.broadcast %521 : vector<1x32xf32> to vector<8x32xf32>
    %529 = arith.addf %527, %528 : vector<8x32xf32>
    %530 = arith.addf %513, %529 : vector<8x32xf32>
    %c1_265 = arith.constant 1 : index
    %c0_266 = arith.constant 0 : index
    %c0_267 = arith.constant 0 : index
    %531 = vector.load %arg36[%c1_265, %c0_266, %c0_267] : memref<2x1x32xf32, #tpu.memory_space<vmem>>, vector<1x1x32xf32>
    %532 = vector.shape_cast %531 : vector<1x1x32xf32> to vector<1x32xf32>
    %c1_268 = arith.constant 1 : index
    %c0_269 = arith.constant 0 : index
    %c0_270 = arith.constant 0 : index
    %533 = vector.load %arg37[%c1_268, %c0_269, %c0_270] : memref<2x1x32xf32, #tpu.memory_space<vmem>>, vector<1x1x32xf32>
    %534 = vector.shape_cast %533 : vector<1x1x32xf32> to vector<1x32xf32>
    %535 = arith.mulf %530, %530 : vector<8x32xf32>
    %536 = tpu.concatenate %530, %535 in 1 : vector<8x32xf32>, vector<8x32xf32> -> vector<8x64xf32>
    %cst_271 = arith.constant dense<0.000000e+00> : vector<8x2xf32>
    %537 = tpu.matmul %536, %0, %cst_271 {dimension_numbers = #tpu.dot_dimension_numbers<[1], [0], [0], [1], [0, 0, 1, 1], [], []>} : vector<8x64xf32>, vector<64x2xf32>, vector<8x2xf32> -> vector<8x2xf32>
    %538 = vector.extract_strided_slice %537 {offsets = [0, 0], sizes = [8, 1], strides = [1, 1]} : vector<8x2xf32> to vector<8x1xf32>
    %539 = vector.extract_strided_slice %537 {offsets = [0, 1], sizes = [8, 1], strides = [1, 1]} : vector<8x2xf32> to vector<8x1xf32>
    %540 = arith.mulf %538, %538 : vector<8x1xf32>
    %541 = arith.subf %539, %540 : vector<8x1xf32>
    %542 = vector.broadcast %538 : vector<8x1xf32> to vector<8x32xf32>
    %543 = arith.subf %530, %542 : vector<8x32xf32>
    %cst_272 = arith.constant 9.99999974E-6 : f32
    %544 = vector.broadcast %cst_272 : f32 to vector<8x1xf32>
    %545 = arith.addf %541, %544 : vector<8x1xf32>
    %546 = math.rsqrt %545 : vector<8x1xf32>
    %547 = vector.broadcast %546 : vector<8x1xf32> to vector<8x32xf32>
    %548 = arith.mulf %543, %547 : vector<8x32xf32>
    %549 = vector.broadcast %532 : vector<1x32xf32> to vector<8x32xf32>
    %550 = arith.mulf %548, %549 : vector<8x32xf32>
    %551 = vector.broadcast %534 : vector<1x32xf32> to vector<8x32xf32>
    %552 = arith.addf %550, %551 : vector<8x32xf32>
    %c0_273 = arith.constant 0 : index
    %c0_274 = arith.constant 0 : index
    %553 = vector.load %arg38[%c0_273, %c0_274] : memref<1x32xf32, #tpu.memory_space<vmem>>, vector<1x32xf32>
    %c0_275 = arith.constant 0 : index
    %c0_276 = arith.constant 0 : index
    %554 = vector.load %arg39[%c0_275, %c0_276] : memref<1x32xf32, #tpu.memory_space<vmem>>, vector<1x32xf32>
    %555 = arith.mulf %552, %552 : vector<8x32xf32>
    %556 = tpu.concatenate %552, %555 in 1 : vector<8x32xf32>, vector<8x32xf32> -> vector<8x64xf32>
    %cst_277 = arith.constant dense<0.000000e+00> : vector<8x2xf32>
    %557 = tpu.matmul %556, %0, %cst_277 {dimension_numbers = #tpu.dot_dimension_numbers<[1], [0], [0], [1], [0, 0, 1, 1], [], []>} : vector<8x64xf32>, vector<64x2xf32>, vector<8x2xf32> -> vector<8x2xf32>
    %558 = vector.extract_strided_slice %557 {offsets = [0, 0], sizes = [8, 1], strides = [1, 1]} : vector<8x2xf32> to vector<8x1xf32>
    %559 = vector.extract_strided_slice %557 {offsets = [0, 1], sizes = [8, 1], strides = [1, 1]} : vector<8x2xf32> to vector<8x1xf32>
    %560 = arith.mulf %558, %558 : vector<8x1xf32>
    %561 = arith.subf %559, %560 : vector<8x1xf32>
    %562 = vector.broadcast %558 : vector<8x1xf32> to vector<8x32xf32>
    %563 = arith.subf %552, %562 : vector<8x32xf32>
    %cst_278 = arith.constant 9.99999974E-6 : f32
    %564 = vector.broadcast %cst_278 : f32 to vector<8x1xf32>
    %565 = arith.addf %561, %564 : vector<8x1xf32>
    %566 = math.rsqrt %565 : vector<8x1xf32>
    %567 = vector.broadcast %566 : vector<8x1xf32> to vector<8x32xf32>
    %568 = arith.mulf %563, %567 : vector<8x32xf32>
    %569 = vector.broadcast %553 : vector<1x32xf32> to vector<8x32xf32>
    %570 = arith.mulf %568, %569 : vector<8x32xf32>
    %571 = vector.broadcast %554 : vector<1x32xf32> to vector<8x32xf32>
    %572 = arith.addf %570, %571 : vector<8x32xf32>
    %c0_279 = arith.constant 0 : index
    %c0_280 = arith.constant 0 : index
    %573 = vector.load %arg40[%c0_279, %c0_280] : memref<32x128xf32, #tpu.memory_space<vmem>>, vector<32x128xf32>
    %cst_281 = arith.constant dense<0.000000e+00> : vector<8x128xf32>
    %574 = tpu.matmul %572, %573, %cst_281 {dimension_numbers = #tpu.dot_dimension_numbers<[1], [0], [0], [1], [0, 0, 1, 1], [], []>} : vector<8x32xf32>, vector<32x128xf32>, vector<8x128xf32> -> vector<8x128xf32>
    %c0_282 = arith.constant 0 : index
    %c0_283 = arith.constant 0 : index
    %575 = vector.load %arg41[%c0_282, %c0_283] : memref<1x128xf32, #tpu.memory_space<vmem>>, vector<1x128xf32>
    %576 = vector.broadcast %575 : vector<1x128xf32> to vector<8x128xf32>
    %577 = arith.addf %574, %576 : vector<8x128xf32>
    %c0_284 = arith.constant 0 : index
    %c0_285 = arith.constant 0 : index
    %c0_286 = arith.constant 0 : index
    %578 = vector.load %arg42[%c0_284, %c0_285, %c0_286] : memref<1x8x128xf32, #tpu.memory_space<vmem>>, vector<1x8x128xf32>
    %579 = vector.shape_cast %578 : vector<1x8x128xf32> to vector<8x128xf32>
    %580 = vector.shape_cast %577 : vector<8x128xf32> to vector<1x8x128xf32>
    tpu.vector_store %arg42[%c0_284, %c0_285, %c0_286], %580 {strides = array<i32>} : memref<1x8x128xf32, #tpu.memory_space<vmem>>, vector<1x8x128xf32>,
    return
  }
  func.func @transform_0(%arg0: i32) -> (i32, i32, i32) {
    %c0_i32 = arith.constant 0 : i32
    %c0_i32_0 = arith.constant 0 : i32
    %c0_i32_1 = arith.constant 0 : i32
    return %arg0, %c0_i32, %c0_i32_0 : i32, i32, i32
  }
  func.func @transform_1(%arg0: i32) -> (i32, i32, i32) {
    %c0_i32 = arith.constant 0 : i32
    %c0_i32_0 = arith.constant 0 : i32
    %c0_i32_1 = arith.constant 0 : i32
    return %arg0, %c0_i32, %c0_i32_0 : i32, i32, i32
  }
  func.func @transform_2(%arg0: i32) -> (i32, i32) {
    %c0_i32 = arith.constant 0 : i32
    %c0_i32_0 = arith.constant 0 : i32
    %c0_i32_1 = arith.constant 0 : i32
    return %c0_i32, %c0_i32_0 : i32, i32
  }
  func.func @transform_3(%arg0: i32) -> (i32, i32, i32) {
    %c0_i32 = arith.constant 0 : i32
    %c0_i32_0 = arith.constant 0 : i32
    %c0_i32_1 = arith.constant 0 : i32
    %c0_i32_2 = arith.constant 0 : i32
    return %c0_i32, %c0_i32_0, %c0_i32_1 : i32, i32, i32
  }
  func.func @transform_4(%arg0: i32) -> (i32, i32, i32) {
    %c0_i32 = arith.constant 0 : i32
    %c0_i32_0 = arith.constant 0 : i32
    %c0_i32_1 = arith.constant 0 : i32
    %c0_i32_2 = arith.constant 0 : i32
    return %c0_i32, %c0_i32_0, %c0_i32_1 : i32, i32, i32
  }
  func.func @transform_5(%arg0: i32) -> (i32, i32, i32) {
    %c0_i32 = arith.constant 0 : i32
    %c0_i32_0 = arith.constant 0 : i32
    %c0_i32_1 = arith.constant 0 : i32
    %c0_i32_2 = arith.constant 0 : i32
    return %c0_i32, %c0_i32_0, %c0_i32_1 : i32, i32, i32
  }
  func.func @transform_6(%arg0: i32) -> (i32, i32, i32) {
    %c0_i32 = arith.constant 0 : i32
    %c0_i32_0 = arith.constant 0 : i32
    %c0_i32_1 = arith.constant 0 : i32
    %c0_i32_2 = arith.constant 0 : i32
    return %c0_i32, %c0_i32_0, %c0_i32_1 : i32, i32, i32
  }
  func.func @transform_7(%arg0: i32) -> (i32, i32, i32) {
    %c0_i32 = arith.constant 0 : i32
    %c0_i32_0 = arith.constant 0 : i32
    %c0_i32_1 = arith.constant 0 : i32
    %c0_i32_2 = arith.constant 0 : i32
    return %c0_i32, %c0_i32_0, %c0_i32_1 : i32, i32, i32
  }
  func.func @transform_8(%arg0: i32) -> (i32, i32, i32) {
    %c0_i32 = arith.constant 0 : i32
    %c0_i32_0 = arith.constant 0 : i32
    %c0_i32_1 = arith.constant 0 : i32
    %c0_i32_2 = arith.constant 0 : i32
    return %c0_i32, %c0_i32_0, %c0_i32_1 : i32, i32, i32
  }
  func.func @transform_9(%arg0: i32) -> (i32, i32, i32) {
    %c0_i32 = arith.constant 0 : i32
    %c0_i32_0 = arith.constant 0 : i32
    %c0_i32_1 = arith.constant 0 : i32
    %c0_i32_2 = arith.constant 0 : i32
    return %c0_i32, %c0_i32_0, %c0_i32_1 : i32, i32, i32
  }
  func.func @transform_10(%arg0: i32) -> (i32, i32, i32) {
    %c0_i32 = arith.constant 0 : i32
    %c0_i32_0 = arith.constant 0 : i32
    %c0_i32_1 = arith.constant 0 : i32
    %c0_i32_2 = arith.constant 0 : i32
    return %c0_i32, %c0_i32_0, %c0_i32_1 : i32, i32, i32
  }
  func.func @transform_11(%arg0: i32) -> (i32, i32, i32) {
    %c0_i32 = arith.constant 0 : i32
    %c0_i32_0 = arith.constant 0 : i32
    %c0_i32_1 = arith.constant 0 : i32
    %c0_i32_2 = arith.constant 0 : i32
    return %c0_i32, %c0_i32_0, %c0_i32_1 : i32, i32, i32
  }
  func.func @transform_12(%arg0: i32) -> (i32, i32, i32) {
    %c0_i32 = arith.constant 0 : i32
    %c0_i32_0 = arith.constant 0 : i32
    %c0_i32_1 = arith.constant 0 : i32
    %c0_i32_2 = arith.constant 0 : i32
    return %c0_i32, %c0_i32_0, %c0_i32_1 : i32, i32, i32
  }
  func.func @transform_13(%arg0: i32) -> (i32, i32, i32) {
    %c0_i32 = arith.constant 0 : i32
    %c0_i32_0 = arith.constant 0 : i32
    %c0_i32_1 = arith.constant 0 : i32
    %c0_i32_2 = arith.constant 0 : i32
    return %c0_i32, %c0_i32_0, %c0_i32_1 : i32, i32, i32
  }
  func.func @transform_14(%arg0: i32) -> (i32, i32, i32) {
    %c0_i32 = arith.constant 0 : i32
    %c0_i32_0 = arith.constant 0 : i32
    %c0_i32_1 = arith.constant 0 : i32
    %c0_i32_2 = arith.constant 0 : i32
    return %c0_i32, %c0_i32_0, %c0_i32_1 : i32, i32, i32
  }
  func.func @transform_15(%arg0: i32) -> (i32, i32) {
    %c0_i32 = arith.constant 0 : i32
    %c0_i32_0 = arith.constant 0 : i32
    %c0_i32_1 = arith.constant 0 : i32
    return %c0_i32, %c0_i32_0 : i32, i32
  }
  func.func @transform_16(%arg0: i32) -> (i32, i32) {
    %c0_i32 = arith.constant 0 : i32
    %c0_i32_0 = arith.constant 0 : i32
    %c0_i32_1 = arith.constant 0 : i32
    return %c0_i32, %c0_i32_0 : i32, i32
  }
  func.func @transform_17(%arg0: i32) -> (i32, i32, i32) {
    %c0_i32 = arith.constant 0 : i32
    %c0_i32_0 = arith.constant 0 : i32
    %c0_i32_1 = arith.constant 0 : i32
    %c0_i32_2 = arith.constant 0 : i32
    return %c0_i32, %c0_i32_0, %c0_i32_1 : i32, i32, i32
  }
  func.func @transform_18(%arg0: i32) -> (i32, i32, i32) {
    %c0_i32 = arith.constant 0 : i32
    %c0_i32_0 = arith.constant 0 : i32
    %c0_i32_1 = arith.constant 0 : i32
    %c0_i32_2 = arith.constant 0 : i32
    return %c0_i32, %c0_i32_0, %c0_i32_1 : i32, i32, i32
  }
  func.func @transform_19(%arg0: i32) -> (i32, i32, i32) {
    %c0_i32 = arith.constant 0 : i32
    %c0_i32_0 = arith.constant 0 : i32
    %c0_i32_1 = arith.constant 0 : i32
    %c0_i32_2 = arith.constant 0 : i32
    return %c0_i32, %c0_i32_0, %c0_i32_1 : i32, i32, i32
  }
  func.func @transform_20(%arg0: i32) -> (i32, i32, i32) {
    %c0_i32 = arith.constant 0 : i32
    %c0_i32_0 = arith.constant 0 : i32
    %c0_i32_1 = arith.constant 0 : i32
    %c0_i32_2 = arith.constant 0 : i32
    return %c0_i32, %c0_i32_0, %c0_i32_1 : i32, i32, i32
  }
  func.func @transform_21(%arg0: i32) -> (i32, i32, i32) {
    %c0_i32 = arith.constant 0 : i32
    %c0_i32_0 = arith.constant 0 : i32
    %c0_i32_1 = arith.constant 0 : i32
    %c0_i32_2 = arith.constant 0 : i32
    return %c0_i32, %c0_i32_0, %c0_i32_1 : i32, i32, i32
  }
  func.func @transform_22(%arg0: i32) -> (i32, i32, i32) {
    %c0_i32 = arith.constant 0 : i32
    %c0_i32_0 = arith.constant 0 : i32
    %c0_i32_1 = arith.constant 0 : i32
    %c0_i32_2 = arith.constant 0 : i32
    return %c0_i32, %c0_i32_0, %c0_i32_1 : i32, i32, i32
  }
  func.func @transform_23(%arg0: i32) -> (i32, i32, i32) {
    %c0_i32 = arith.constant 0 : i32
    %c0_i32_0 = arith.constant 0 : i32
    %c0_i32_1 = arith.constant 0 : i32
    %c0_i32_2 = arith.constant 0 : i32
    return %c0_i32, %c0_i32_0, %c0_i32_1 : i32, i32, i32
  }
  func.func @transform_24(%arg0: i32) -> (i32, i32, i32) {
    %c0_i32 = arith.constant 0 : i32
    %c0_i32_0 = arith.constant 0 : i32
    %c0_i32_1 = arith.constant 0 : i32
    %c0_i32_2 = arith.constant 0 : i32
    return %c0_i32, %c0_i32_0, %c0_i32_1 : i32, i32, i32
  }
  func.func @transform_25(%arg0: i32) -> (i32, i32, i32) {
    %c0_i32 = arith.constant 0 : i32
    %c0_i32_0 = arith.constant 0 : i32
    %c0_i32_1 = arith.constant 0 : i32
    %c0_i32_2 = arith.constant 0 : i32
    return %c0_i32, %c0_i32_0, %c0_i32_1 : i32, i32, i32
  }
  func.func @transform_26(%arg0: i32) -> (i32, i32, i32) {
    %c0_i32 = arith.constant 0 : i32
    %c0_i32_0 = arith.constant 0 : i32
    %c0_i32_1 = arith.constant 0 : i32
    %c0_i32_2 = arith.constant 0 : i32
    return %c0_i32, %c0_i32_0, %c0_i32_1 : i32, i32, i32
  }
  func.func @transform_27(%arg0: i32) -> (i32, i32, i32) {
    %c0_i32 = arith.constant 0 : i32
    %c0_i32_0 = arith.constant 0 : i32
    %c0_i32_1 = arith.constant 0 : i32
    %c0_i32_2 = arith.constant 0 : i32
    return %c0_i32, %c0_i32_0, %c0_i32_1 : i32, i32, i32
  }
  func.func @transform_28(%arg0: i32) -> (i32, i32, i32) {
    %c0_i32 = arith.constant 0 : i32
    %c0_i32_0 = arith.constant 0 : i32
    %c0_i32_1 = arith.constant 0 : i32
    %c0_i32_2 = arith.constant 0 : i32
    return %c0_i32, %c0_i32_0, %c0_i32_1 : i32, i32, i32
  }
  func.func @transform_29(%arg0: i32) -> (i32, i32, i32) {
    %c0_i32 = arith.constant 0 : i32
    %c0_i32_0 = arith.constant 0 : i32
    %c0_i32_1 = arith.constant 0 : i32
    %c0_i32_2 = arith.constant 0 : i32
    return %c0_i32, %c0_i32_0, %c0_i32_1 : i32, i32, i32
  }
  func.func @transform_30(%arg0: i32) -> (i32, i32, i32) {
    %c0_i32 = arith.constant 0 : i32
    %c0_i32_0 = arith.constant 0 : i32
    %c0_i32_1 = arith.constant 0 : i32
    %c0_i32_2 = arith.constant 0 : i32
    return %c0_i32, %c0_i32_0, %c0_i32_1 : i32, i32, i32
  }
  func.func @transform_31(%arg0: i32) -> (i32, i32, i32) {
    %c0_i32 = arith.constant 0 : i32
    %c0_i32_0 = arith.constant 0 : i32
    %c0_i32_1 = arith.constant 0 : i32
    %c0_i32_2 = arith.constant 0 : i32
    return %c0_i32, %c0_i32_0, %c0_i32_1 : i32, i32, i32
  }
  func.func @transform_32(%arg0: i32) -> (i32, i32, i32) {
    %c0_i32 = arith.constant 0 : i32
    %c0_i32_0 = arith.constant 0 : i32
    %c0_i32_1 = arith.constant 0 : i32
    %c0_i32_2 = arith.constant 0 : i32
    return %c0_i32, %c0_i32_0, %c0_i32_1 : i32, i32, i32
  }
  func.func @transform_33(%arg0: i32) -> (i32, i32, i32) {
    %c0_i32 = arith.constant 0 : i32
    %c0_i32_0 = arith.constant 0 : i32
    %c0_i32_1 = arith.constant 0 : i32
    %c0_i32_2 = arith.constant 0 : i32
    return %c0_i32, %c0_i32_0, %c0_i32_1 : i32, i32, i32
  }
  func.func @transform_34(%arg0: i32) -> (i32, i32, i32) {
    %c0_i32 = arith.constant 0 : i32
    %c0_i32_0 = arith.constant 0 : i32
    %c0_i32_1 = arith.constant 0 : i32
    %c0_i32_2 = arith.constant 0 : i32
    return %c0_i32, %c0_i32_0, %c0_i32_1 : i32, i32, i32
  }
  func.func @transform_35(%arg0: i32) -> (i32, i32, i32) {
    %c0_i32 = arith.constant 0 : i32
    %c0_i32_0 = arith.constant 0 : i32
    %c0_i32_1 = arith.constant 0 : i32
    %c0_i32_2 = arith.constant 0 : i32
    return %c0_i32, %c0_i32_0, %c0_i32_1 : i32, i32, i32
  }
  func.func @transform_36(%arg0: i32) -> (i32, i32, i32) {
    %c0_i32 = arith.constant 0 : i32
    %c0_i32_0 = arith.constant 0 : i32
    %c0_i32_1 = arith.constant 0 : i32
    %c0_i32_2 = arith.constant 0 : i32
    return %c0_i32, %c0_i32_0, %c0_i32_1 : i32, i32, i32
  }
  func.func @transform_37(%arg0: i32) -> (i32, i32) {
    %c0_i32 = arith.constant 0 : i32
    %c0_i32_0 = arith.constant 0 : i32
    %c0_i32_1 = arith.constant 0 : i32
    return %c0_i32, %c0_i32_0 : i32, i32
  }
  func.func @transform_38(%arg0: i32) -> (i32, i32) {
    %c0_i32 = arith.constant 0 : i32
    %c0_i32_0 = arith.constant 0 : i32
    %c0_i32_1 = arith.constant 0 : i32
    return %c0_i32, %c0_i32_0 : i32, i32
  }
  func.func @transform_39(%arg0: i32) -> (i32, i32) {
    %c0_i32 = arith.constant 0 : i32
    %c0_i32_0 = arith.constant 0 : i32
    %c0_i32_1 = arith.constant 0 : i32
    return %c0_i32, %c0_i32_0 : i32, i32
  }
  func.func @transform_40(%arg0: i32) -> (i32, i32) {
    %c0_i32 = arith.constant 0 : i32
    %c0_i32_0 = arith.constant 0 : i32
    %c0_i32_1 = arith.constant 0 : i32
    return %c0_i32, %c0_i32_0 : i32, i32
  }
  func.func @transform_41(%arg0: i32) -> (i32, i32, i32) {
    %c0_i32 = arith.constant 0 : i32
    %c0_i32_0 = arith.constant 0 : i32
    %c0_i32_1 = arith.constant 0 : i32
    return %arg0, %c0_i32, %c0_i32_0 : i32, i32, i32
  }
}

</mosaic_0001>

<llo_original>
// kernel: transformer_forward.1
$region0: #{transformer_forward.1}
  #allocation0 [shape = 'u32[]', space=smem, size = 0x4, offset = 0x4, fixed_abs, tag = 'smem constant byte address 0x4 - core index']
  #allocation1 [shape = 'u32[72,128]{1,0:T(1,128)}', space=vmem, size = 0x9000, scoped, tag = 'internal scratch']
  %s0 = inlined_call_operand.smem [shape: u32[42], index: -1, kind: input, shape index: {}]
  %s1 = sld [smem:[%s0]]
  %s2 = scalar_lea.smem %s0, 1
  %s3 = sld [smem:[%s2]]
  %s4 = scalar_lea.smem %s0, 2
  %s5 = sld [smem:[%s4]]
  %s6 = scalar_lea.smem %s0, 3
  %s7 = sld [smem:[%s6]]
  %s8 = scalar_lea.smem %s0, 4
  %s9 = sld [smem:[%s8]]
  %s10 = scalar_lea.smem %s0, 5
  %s11 = sld [smem:[%s10]]
  %s12 = scalar_lea.smem %s0, 6
  %s13 = sld [smem:[%s12]]
  %s14 = scalar_lea.smem %s0, 7
  %s15 = sld [smem:[%s14]]
  %s16 = scalar_lea.smem %s0, 8
  %s17 = sld [smem:[%s16]]
  %s18 = scalar_lea.smem %s0, 9
  %s19 = sld [smem:[%s18]]
  %s20 = scalar_lea.smem %s0, 10
  %s21 = sld [smem:[%s20]]
  %s22 = scalar_lea.smem %s0, 11
  %s23 = sld [smem:[%s22]]
  %s24 = scalar_lea.smem %s0, 12
  %s25 = sld [smem:[%s24]]
  %s26 = scalar_lea.smem %s0, 13
  %s27 = sld [smem:[%s26]]
  %s28 = scalar_lea.smem %s0, 14
  %s29 = sld [smem:[%s28]]
  %s30 = scalar_lea.smem %s0, 15
  %s31 = sld [smem:[%s30]]
  %s32 = scalar_lea.smem %s0, 16
  %s33 = sld [smem:[%s32]]
  %s34 = scalar_lea.smem %s0, 17
  %s35 = sld [smem:[%s34]]
  %s36 = scalar_lea.smem %s0, 18
  %s37 = sld [smem:[%s36]]
  %s38 = scalar_lea.smem %s0, 19
  %s39 = sld [smem:[%s38]]
  %s40 = scalar_lea.smem %s0, 20
  %s41 = sld [smem:[%s40]]
  %s42 = scalar_lea.smem %s0, 21
  %s43 = sld [smem:[%s42]]
  %s44 = scalar_lea.smem %s0, 22
  %s45 = sld [smem:[%s44]]
  %s46 = scalar_lea.smem %s0, 23
  %s47 = sld [smem:[%s46]]
  %s48 = scalar_lea.smem %s0, 24
  %s49 = sld [smem:[%s48]]
  %s50 = scalar_lea.smem %s0, 25
  %s51 = sld [smem:[%s50]]
  %s52 = scalar_lea.smem %s0, 26
  %s53 = sld [smem:[%s52]]
  %s54 = scalar_lea.smem %s0, 27
  %s55 = sld [smem:[%s54]]
  %s56 = scalar_lea.smem %s0, 28
  %s57 = sld [smem:[%s56]]
  %s58 = scalar_lea.smem %s0, 29
  %s59 = sld [smem:[%s58]]
  %s60 = scalar_lea.smem %s0, 30
  %s61 = sld [smem:[%s60]]
  %s62 = scalar_lea.smem %s0, 31
  %s63 = sld [smem:[%s62]]
  %s64 = scalar_lea.smem %s0, 32
  %s65 = sld [smem:[%s64]]
  %s66 = scalar_lea.smem %s0, 33
  %s67 = sld [smem:[%s66]]
  %s68 = scalar_lea.smem %s0, 34
  %s69 = sld [smem:[%s68]]
  %s70 = scalar_lea.smem %s0, 35
  %s71 = sld [smem:[%s70]]
  %s72 = scalar_lea.smem %s0, 36
  %s73 = sld [smem:[%s72]]
  %s74 = scalar_lea.smem %s0, 37
  %s75 = sld [smem:[%s74]]
  %s76 = scalar_lea.smem %s0, 38
  %s77 = sld [smem:[%s76]]
  %s78 = scalar_lea.smem %s0, 39
  %s79 = sld [smem:[%s78]]
  %s80 = scalar_lea.smem %s0, 40
  %s81 = sld [smem:[%s80]]
  %s82 = scalar_lea.smem %s0, 41
  %s83 = sld [smem:[%s82]]
  %s84 = sld [smem:[#allocation0]]
  $region317: #{transformer_forward.1} parent=0
    _
  %s86 = ssub.s32 1, %s84
  %s87 = scalar_select 0, %s86, %s84
  $region1: #{transformer_forward.1} parent=0
    #allocation2 [shape = 'u8[8192]{0}', space=vmem, size = 0x2000, scoped, tag = 'input window, operand 0']
    #allocation3 [shape = 's32[2]{0}', space=sflag, size = 0x8, scoped, tag = 'scoped memory for transformer_forward.1']
    #allocation4 [shape = 's32[2]{0}', space=sflag, size = 0x8, scoped, tag = 'scoped memory for transformer_forward.1']
    #allocation5 [shape = 'u8[8192]{0}', space=vmem, size = 0x2000, scoped, tag = 'input window, operand 1']
    #allocation6 [shape = 's32[2]{0}', space=sflag, size = 0x8, scoped, tag = 'scoped memory for transformer_forward.1']
    #allocation7 [shape = 'u8[1024]{0}', space=vmem, size = 0x400, scoped, tag = 'input window, operand 7, single buffered']
    #allocation8 [shape = 'u8[1024]{0}', space=vmem, size = 0x400, scoped, tag = 'input window, operand 8, single buffered']
    #allocation9 [shape = 's32[1]{0}', space=sflag, size = 0x4, scoped, tag = 'scoped memory for transformer_forward.1']
    #allocation10 [shape = 'u8[1024]{0}', space=vmem, size = 0x400, scoped, tag = 'input window, operand 10, single buffered']
    #allocation11 [shape = 'u8[1024]{0}', space=vmem, size = 0x400, scoped, tag = 'input window, operand 12, single buffered']
    #allocation12 [shape = 's32[1]{0}', space=sflag, size = 0x4, scoped, tag = 'scoped memory for transformer_forward.1']
    #allocation13 [shape = 'u8[1024]{0}', space=vmem, size = 0x400, scoped, tag = 'input window, operand 13, single buffered']
    #allocation14 [shape = 'u8[1024]{0}', space=vmem, size = 0x400, scoped, tag = 'input window, operand 14, single buffered']
    #allocation15 [shape = 's32[1]{0}', space=sflag, size = 0x4, scoped, tag = 'scoped memory for transformer_forward.1']
    #allocation16 [shape = 'u8[512]{0}', space=vmem, size = 0x400, scoped, tag = 'input window, operand 15, single buffered']
    #allocation17 [shape = 'u8[512]{0}', space=vmem, size = 0x400, scoped, tag = 'input window, operand 16, single buffered']
    #allocation18 [shape = 's32[1]{0}', space=sflag, size = 0x4, scoped, tag = 'scoped memory for transformer_forward.1']
    #allocation19 [shape = 'u8[1024]{0}', space=vmem, size = 0x400, scoped, tag = 'input window, operand 18, single buffered']
    #allocation20 [shape = 'u8[1024]{0}', space=vmem, size = 0x400, scoped, tag = 'input window, operand 20, single buffered']
    #allocation21 [shape = 's32[1]{0}', space=sflag, size = 0x4, scoped, tag = 'scoped memory for transformer_forward.1']
    #allocation22 [shape = 'u8[1024]{0}', space=vmem, size = 0x400, scoped, tag = 'input window, operand 21, single buffered']
    #allocation23 [shape = 'u8[1024]{0}', space=vmem, size = 0x400, scoped, tag = 'input window, operand 22, single buffered']
    #allocation24 [shape = 's32[1]{0}', space=sflag, size = 0x4, scoped, tag = 'scoped memory for transformer_forward.1']
    #allocation25 [shape = 'u8[32768]{0}', space=vmem, size = 0x8000, scoped, tag = 'input window, operand 23, single buffered']
    #allocation26 [shape = 'u8[1024]{0}', space=vmem, size = 0x400, scoped, tag = 'input window, operand 24, single buffered']
    #allocation27 [shape = 's32[1]{0}', space=sflag, size = 0x4, scoped, tag = 'scoped memory for transformer_forward.1']
    #allocation28 [shape = 'u8[32768]{0}', space=vmem, size = 0x8000, scoped, tag = 'input window, operand 25, single buffered']
    #allocation29 [shape = 'u8[1024]{0}', space=vmem, size = 0x400, scoped, tag = 'input window, operand 26, single buffered']
    #allocation30 [shape = 's32[1]{0}', space=sflag, size = 0x4, scoped, tag = 'scoped memory for transformer_forward.1']
    #allocation31 [shape = 'u8[32768]{0}', space=vmem, size = 0x8000, scoped, tag = 'input window, operand 27, single buffered']
    #allocation32 [shape = 'u8[1024]{0}', space=vmem, size = 0x400, scoped, tag = 'input window, operand 28, single buffered']
    #allocation33 [shape = 's32[1]{0}', space=sflag, size = 0x4, scoped, tag = 'scoped memory for transformer_forward.1']
    #allocation34 [shape = 'u8[1024]{0}', space=vmem, size = 0x400, scoped, tag = 'input window, operand 29, single buffered']
    #allocation35 [shape = 'u8[1024]{0}', space=vmem, size = 0x400, scoped, tag = 'input window, operand 30, single buffered']
    #allocation36 [shape = 's32[1]{0}', space=sflag, size = 0x4, scoped, tag = 'scoped memory for transformer_forward.1']
    #allocation37 [shape = 'u8[32768]{0}', space=vmem, size = 0x8000, scoped, tag = 'input window, operand 31, single buffered']
    #allocation38 [shape = 'u8[1024]{0}', space=vmem, size = 0x400, scoped, tag = 'input window, operand 32, single buffered']
    #allocation39 [shape = 's32[1]{0}', space=sflag, size = 0x4, scoped, tag = 'scoped memory for transformer_forward.1']
    #allocation40 [shape = 'u8[1024]{0}', space=vmem, size = 0x400, scoped, tag = 'input window, operand 34, single buffered']
    #allocation41 [shape = 'u8[1024]{0}', space=vmem, size = 0x400, scoped, tag = 'input window, operand 35, single buffered']
    #allocation42 [shape = 's32[1]{0}', space=sflag, size = 0x4, scoped, tag = 'scoped memory for transformer_forward.1']
    #allocation43 [shape = 'u8[1024]{0}', space=vmem, size = 0x400, scoped, tag = 'input window, operand 36, single buffered']
    #allocation44 [shape = 'u8[512]{0}', space=vmem, size = 0x400, scoped, tag = 'input window, operand 37, single buffered']
    #allocation45 [shape = 's32[1]{0}', space=sflag, size = 0x4, scoped, tag = 'scoped memory for transformer_forward.1']
    #allocation46 [shape = 'u8[512]{0}', space=vmem, size = 0x400, scoped, tag = 'input window, operand 38, single buffered']
    #allocation47 [shape = 'u8[512]{0}', space=vmem, size = 0x400, scoped, tag = 'input window, operand 40, single buffered']
    #allocation48 [shape = 's32[1]{0}', space=sflag, size = 0x4, scoped, tag = 'scoped memory for transformer_forward.1']
    #allocation49 [shape = 'u8[8192]{0}', space=vmem, size = 0x2000, scoped, tag = 'output window, operand 0']
    %88 = vsyncpa [#allocation3], 0
    %s89 = scalar_lea.sflag [#allocation3], 1
    %90 = vsyncpa %s89, 0
    %91 = vsyncpa [#allocation6], 0
    %s92 = scalar_lea.sflag [#allocation6], 1
    %93 = vsyncpa %s92, 0
    %94 = vsyncpa [#allocation9], 0
    %95 = vsyncpa [#allocation12], 0
    %96 = vsyncpa [#allocation15], 0
    %97 = vsyncpa [#allocation18], 0
    %98 = vsyncpa [#allocation21], 0
    %99 = vsyncpa [#allocation24], 0
    %100 = vsyncpa [#allocation27], 0
    %101 = vsyncpa [#allocation30], 0
    %102 = vsyncpa [#allocation33], 0
    %103 = vsyncpa [#allocation36], 0
    %104 = vsyncpa [#allocation39], 0
    %105 = vsyncpa [#allocation42], 0
    %106 = vsyncpa [#allocation45], 0
    %107 = vsyncpa [#allocation48], 0
    %108 = vsyncpa [#allocation4], 0
    %s109 = scalar_lea.sflag [#allocation4], 1
    %110 = vsyncpa %s109, 0
    loop: start=0, step=1, limit=4
    $region2: #{transformer_forward.1} parent=1 // loop_pre_header
      _
    $region3: #{transformer_forward.1} parent=1 // loop_header
      %s112 = sphi 0, %s116
      %p113 = scmp.ge.s32.totalorder %s112, 4
      %s122 = sphi 0, %s124
      %s125 = sphi 0, %s122
      %s126 = sphi 0, %s125
      %s142 = sphi 0, %s126
      %s148 = sphi 0, %s150
      %s151 = sphi 0, %s148
      %s152 = sphi 0, %s151
      %s168 = sphi 0, %s152
      %s172 = sphi 0, %s172
      %s174 = sphi 0, %s172
      %s175 = sphi 0, %s174
      %s189 = sphi 0, %s175
      %s193 = sphi 0, %s193
      %s195 = sphi 0, %s193
      %s196 = sphi 0, %s195
      %s210 = sphi 0, %s196
      %s214 = sphi 0, %s214
      %s216 = sphi 0, %s214
      %s217 = sphi 0, %s216
      %s231 = sphi 0, %s217
      %s235 = sphi 0, %s235
      %s237 = sphi 0, %s235
      %s238 = sphi 0, %s237
      %s252 = sphi 0, %s238
      %s256 = sphi 0, %s256
      %s258 = sphi 0, %s256
      %s259 = sphi 0, %s258
      %s273 = sphi 0, %s259
      %s277 = sphi 0, %s277
      %s279 = sphi 0, %s277
      %s280 = sphi 0, %s279
      %s294 = sphi 0, %s280
      %s298 = sphi 0, %s298
      %s300 = sphi 0, %s298
      %s301 = sphi 0, %s300
      %s315 = sphi 0, %s301
      %s319 = sphi 0, %s319
      %s321 = sphi 0, %s319
      %s322 = sphi 0, %s321
      %s336 = sphi 0, %s322
      %s340 = sphi 0, %s340
      %s342 = sphi 0, %s340
      %s343 = sphi 0, %s342
      %s357 = sphi 0, %s343
      %s361 = sphi 0, %s361
      %s363 = sphi 0, %s361
      %s364 = sphi 0, %s363
      %s378 = sphi 0, %s364
      %s382 = sphi 0, %s382
      %s384 = sphi 0, %s382
      %s385 = sphi 0, %s384
      %s399 = sphi 0, %s385
      %s403 = sphi 0, %s403
      %s405 = sphi 0, %s403
      %s406 = sphi 0, %s405
      %s420 = sphi 0, %s406
      %s424 = sphi 0, %s424
      %s426 = sphi 0, %s424
      %s427 = sphi 0, %s426
      %s441 = sphi 0, %s427
      %s445 = sphi 0, %s445
      %s447 = sphi 0, %s445
      %s448 = sphi 0, %s447
      %s462 = sphi 0, %s448
      %s466 = sphi 0, %s466
      %s468 = sphi 0, %s466
      %s469 = sphi 0, %s468
      %s483 = sphi 0, %s469
      %s487 = sphi 0, %s487
      %s489 = sphi 0, %s487
      %s490 = sphi 0, %s489
      %s504 = sphi 0, %s490
      %s508 = sphi 0, %s508
      %s510 = sphi 0, %s508
      %s511 = sphi 0, %s510
      %s525 = sphi 0, %s511
      %s529 = sphi 0, %s529
      %s531 = sphi 0, %s529
      %s532 = sphi 0, %s531
      %s546 = sphi 0, %s532
      %s550 = sphi 0, %s550
      %s552 = sphi 0, %s550
      %s553 = sphi 0, %s552
      %s567 = sphi 0, %s553
      %s571 = sphi 0, %s571
      %s573 = sphi 0, %s571
      %s574 = sphi 0, %s573
      %s588 = sphi 0, %s574
      %s592 = sphi 0, %s592
      %s594 = sphi 0, %s592
      %s595 = sphi 0, %s594
      %s609 = sphi 0, %s595
      %s613 = sphi 0, %s613
      %s615 = sphi 0, %s613
      %s616 = sphi 0, %s615
      %s630 = sphi 0, %s616
      %s634 = sphi 0, %s634
      %s636 = sphi 0, %s634
      %s637 = sphi 0, %s636
      %s651 = sphi 0, %s637
      %s655 = sphi 0, %s655
      %s657 = sphi 0, %s655
      %s658 = sphi 0, %s657
      %s672 = sphi 0, %s658
      %s676 = sphi 0, %s676
      %s678 = sphi 0, %s676
      %s679 = sphi 0, %s678
      %s693 = sphi 0, %s679
      %s697 = sphi 0, %s697
      %s699 = sphi 0, %s697
      %s700 = sphi 0, %s699
      %s714 = sphi 0, %s700
      %s718 = sphi 0, %s718
      %s720 = sphi 0, %s718
      %s721 = sphi 0, %s720
      %s735 = sphi 0, %s721
      %s739 = sphi 0, %s739
      %s741 = sphi 0, %s739
      %s742 = sphi 0, %s741
      %s756 = sphi 0, %s742
      %s760 = sphi 0, %s760
      %s762 = sphi 0, %s760
      %s763 = sphi 0, %s762
      %s777 = sphi 0, %s763
      %s781 = sphi 0, %s781
      %s783 = sphi 0, %s781
      %s784 = sphi 0, %s783
      %s798 = sphi 0, %s784
      %s802 = sphi 0, %s802
      %s804 = sphi 0, %s802
      %s805 = sphi 0, %s804
      %s819 = sphi 0, %s805
      %s823 = sphi 0, %s823
      %s825 = sphi 0, %s823
      %s826 = sphi 0, %s825
      %s840 = sphi 0, %s826
      %s844 = sphi 0, %s844
      %s846 = sphi 0, %s844
      %s847 = sphi 0, %s846
      %s861 = sphi 0, %s847
      %s865 = sphi 0, %s865
      %s867 = sphi 0, %s865
      %s868 = sphi 0, %s867
      %s882 = sphi 0, %s868
      %s886 = sphi 0, %s886
      %s888 = sphi 0, %s886
      %s889 = sphi 0, %s888
      %s903 = sphi 0, %s889
      %s907 = sphi 0, %s907
      %s909 = sphi 0, %s907
      %s910 = sphi 0, %s909
      %s924 = sphi 0, %s910
      %s928 = sphi 0, %s928
      %s930 = sphi 0, %s928
      %s931 = sphi 0, %s930
      %s945 = sphi 0, %s931
      %s949 = sphi 0, %s949
      %s951 = sphi 0, %s949
      %s952 = sphi 0, %s951
      %s966 = sphi 0, %s952
      %s970 = sphi 0, %s970
      %s972 = sphi 0, %s970
      %s973 = sphi 0, %s972
      %s987 = sphi 0, %s973
      %s993 = sphi 0, %s995
      %s996 = sphi 0, %s993
      %s997 = sphi 0, %s996
      %s1013 = sphi 0, %s997
    $region4: #{transformer_forward.1} parent=1 // loop_header_branch
      %115 = sbr.rel (%p113) target = $region8
    $region5: #{transformer_forward.1} parent=1 // loop_body
      %s117 = ssub.s32 %s112, 1
      %s118 = ssub.s32 %s112, 2
      %s119 = sadd.s32 %s112, 1
      %s120 = ssub.s32 %s112, %s119
      %p121 = scmp.eq.s32.totalorder %s120, 0
      %s123 = sadd.s32 %s122, 1
      %s124 = scalar_select %p121, %s122, %s123
      %p127 = pneg %p121
      %p128 = scmp.eq.s32.totalorder %s112, 1
      %p129 = por %p127, %p128
      %p130 = scmp.ne.s32.totalorder %s122, %s125
      %p131 = scmp.eq.s32.totalorder %s112, 0
      %p132 = por %p130, %p131
      %p133 = scmp.ne.s32.totalorder %s122, %s125
      %p134 = scmp.eq.s32.totalorder %s117, 1
      %p135 = por %p133, %p134
      %p136 = scmp.ne.s32.totalorder %s125, %s126
      %p137 = scmp.eq.s32.totalorder %s117, 0
      %p138 = por %p136, %p137
      %p139 = scmp.ne.s32.totalorder %s125, %s126
      %p140 = scmp.eq.s32.totalorder %s118, 1
      %p141 = por %p139, %p140
      %p143 = scmp.ne.s32.totalorder %s126, %s142
      %p144 = scmp.eq.s32.totalorder %s118, 0
      %p145 = por %p143, %p144
      %s146 = ssub.s32 %s112, %s119
      %p147 = scmp.eq.s32.totalorder %s146, 0
      %s149 = sadd.s32 %s148, 1
      %s150 = scalar_select %p147, %s148, %s149
      %p153 = pneg %p147
      %p154 = scmp.eq.s32.totalorder %s112, 1
      %p155 = por %p153, %p154
      %p156 = scmp.ne.s32.totalorder %s148, %s151
      %p157 = scmp.eq.s32.totalorder %s112, 0
      %p158 = por %p156, %p157
      %p159 = scmp.ne.s32.totalorder %s148, %s151
      %p160 = scmp.eq.s32.totalorder %s117, 1
      %p161 = por %p159, %p160
      %p162 = scmp.ne.s32.totalorder %s151, %s152
      %p163 = scmp.eq.s32.totalorder %s117, 0
      %p164 = por %p162, %p163
      %p165 = scmp.ne.s32.totalorder %s151, %s152
      %p166 = scmp.eq.s32.totalorder %s118, 1
      %p167 = por %p165, %p166
      %p169 = scmp.ne.s32.totalorder %s152, %s168
      %p170 = scmp.eq.s32.totalorder %s118, 0
      %p171 = por %p169, %p170
      %s173 = sadd.s32 %s172, 1
      %p176 = scmp.eq.s32.totalorder %s112, 1
      %p177 = scmp.ne.s32.totalorder %s172, %s174
      %p178 = scmp.eq.s32.totalorder %s112, 0
      %p179 = por %p177, %p178
      %p180 = scmp.ne.s32.totalorder %s172, %s174
      %p181 = scmp.eq.s32.totalorder %s117, 1
      %p182 = por %p180, %p181
      %p183 = scmp.ne.s32.totalorder %s174, %s175
      %p184 = scmp.eq.s32.totalorder %s117, 0
      %p185 = por %p183, %p184
      %p186 = scmp.ne.s32.totalorder %s174, %s175
      %p187 = scmp.eq.s32.totalorder %s118, 1
      %p188 = por %p186, %p187
      %p190 = scmp.ne.s32.totalorder %s175, %s189
      %p191 = scmp.eq.s32.totalorder %s118, 0
      %p192 = por %p190, %p191
      %s194 = sadd.s32 %s193, 1
      %p197 = scmp.eq.s32.totalorder %s112, 1
      %p198 = scmp.ne.s32.totalorder %s193, %s195
      %p199 = scmp.eq.s32.totalorder %s112, 0
      %p200 = por %p198, %p199
      %p201 = scmp.ne.s32.totalorder %s193, %s195
      %p202 = scmp.eq.s32.totalorder %s117, 1
      %p203 = por %p201, %p202
      %p204 = scmp.ne.s32.totalorder %s195, %s196
      %p205 = scmp.eq.s32.totalorder %s117, 0
      %p206 = por %p204, %p205
      %p207 = scmp.ne.s32.totalorder %s195, %s196
      %p208 = scmp.eq.s32.totalorder %s118, 1
      %p209 = por %p207, %p208
      %p211 = scmp.ne.s32.totalorder %s196, %s210
      %p212 = scmp.eq.s32.totalorder %s118, 0
      %p213 = por %p211, %p212
      %s215 = sadd.s32 %s214, 1
      %p218 = scmp.eq.s32.totalorder %s112, 1
      %p219 = scmp.ne.s32.totalorder %s214, %s216
      %p220 = scmp.eq.s32.totalorder %s112, 0
      %p221 = por %p219, %p220
      %p222 = scmp.ne.s32.totalorder %s214, %s216
      %p223 = scmp.eq.s32.totalorder %s117, 1
      %p224 = por %p222, %p223
      %p225 = scmp.ne.s32.totalorder %s216, %s217
      %p226 = scmp.eq.s32.totalorder %s117, 0
      %p227 = por %p225, %p226
      %p228 = scmp.ne.s32.totalorder %s216, %s217
      %p229 = scmp.eq.s32.totalorder %s118, 1
      %p230 = por %p228, %p229
      %p232 = scmp.ne.s32.totalorder %s217, %s231
      %p233 = scmp.eq.s32.totalorder %s118, 0
      %p234 = por %p232, %p233
      %s236 = sadd.s32 %s235, 1
      %p239 = scmp.eq.s32.totalorder %s112, 1
      %p240 = scmp.ne.s32.totalorder %s235, %s237
      %p241 = scmp.eq.s32.totalorder %s112, 0
      %p242 = por %p240, %p241
      %p243 = scmp.ne.s32.totalorder %s235, %s237
      %p244 = scmp.eq.s32.totalorder %s117, 1
      %p245 = por %p243, %p244
      %p246 = scmp.ne.s32.totalorder %s237, %s238
      %p247 = scmp.eq.s32.totalorder %s117, 0
      %p248 = por %p246, %p247
      %p249 = scmp.ne.s32.totalorder %s237, %s238
      %p250 = scmp.eq.s32.totalorder %s118, 1
      %p251 = por %p249, %p250
      %p253 = scmp.ne.s32.totalorder %s238, %s252
      %p254 = scmp.eq.s32.totalorder %s118, 0
      %p255 = por %p253, %p254
      %s257 = sadd.s32 %s256, 1
      %p260 = scmp.eq.s32.totalorder %s112, 1
      %p261 = scmp.ne.s32.totalorder %s256, %s258
      %p262 = scmp.eq.s32.totalorder %s112, 0
      %p263 = por %p261, %p262
      %p264 = scmp.ne.s32.totalorder %s256, %s258
      %p265 = scmp.eq.s32.totalorder %s117, 1
      %p266 = por %p264, %p265
      %p267 = scmp.ne.s32.totalorder %s258, %s259
      %p268 = scmp.eq.s32.totalorder %s117, 0
      %p269 = por %p267, %p268
      %p270 = scmp.ne.s32.totalorder %s258, %s259
      %p271 = scmp.eq.s32.totalorder %s118, 1
      %p272 = por %p270, %p271
      %p274 = scmp.ne.s32.totalorder %s259, %s273
      %p275 = scmp.eq.s32.totalorder %s118, 0
      %p276 = por %p274, %p275
      %s278 = sadd.s32 %s277, 1
      %p281 = scmp.eq.s32.totalorder %s112, 1
      %p282 = scmp.ne.s32.totalorder %s277, %s279
      %p283 = scmp.eq.s32.totalorder %s112, 0
      %p284 = por %p282, %p283
      %p285 = scmp.ne.s32.totalorder %s277, %s279
      %p286 = scmp.eq.s32.totalorder %s117, 1
      %p287 = por %p285, %p286
      %p288 = scmp.ne.s32.totalorder %s279, %s280
      %p289 = scmp.eq.s32.totalorder %s117, 0
      %p290 = por %p288, %p289
      %p291 = scmp.ne.s32.totalorder %s279, %s280
      %p292 = scmp.eq.s32.totalorder %s118, 1
      %p293 = por %p291, %p292
      %p295 = scmp.ne.s32.totalorder %s280, %s294
      %p296 = scmp.eq.s32.totalorder %s118, 0
      %p297 = por %p295, %p296
      %s299 = sadd.s32 %s298, 1
      %p302 = scmp.eq.s32.totalorder %s112, 1
      %p303 = scmp.ne.s32.totalorder %s298, %s300
      %p304 = scmp.eq.s32.totalorder %s112, 0
      %p305 = por %p303, %p304
      %p306 = scmp.ne.s32.totalorder %s298, %s300
      %p307 = scmp.eq.s32.totalorder %s117, 1
      %p308 = por %p306, %p307
      %p309 = scmp.ne.s32.totalorder %s300, %s301
      %p310 = scmp.eq.s32.totalorder %s117, 0
      %p311 = por %p309, %p310
      %p312 = scmp.ne.s32.totalorder %s300, %s301
      %p313 = scmp.eq.s32.totalorder %s118, 1
      %p314 = por %p312, %p313
      %p316 = scmp.ne.s32.totalorder %s301, %s315
      %p317 = scmp.eq.s32.totalorder %s118, 0
      %p318 = por %p316, %p317
      %s320 = sadd.s32 %s319, 1
      %p323 = scmp.eq.s32.totalorder %s112, 1
      %p324 = scmp.ne.s32.totalorder %s319, %s321
      %p325 = scmp.eq.s32.totalorder %s112, 0
      %p326 = por %p324, %p325
      %p327 = scmp.ne.s32.totalorder %s319, %s321
      %p328 = scmp.eq.s32.totalorder %s117, 1
      %p329 = por %p327, %p328
      %p330 = scmp.ne.s32.totalorder %s321, %s322
      %p331 = scmp.eq.s32.totalorder %s117, 0
      %p332 = por %p330, %p331
      %p333 = scmp.ne.s32.totalorder %s321, %s322
      %p334 = scmp.eq.s32.totalorder %s118, 1
      %p335 = por %p333, %p334
      %p337 = scmp.ne.s32.totalorder %s322, %s336
      %p338 = scmp.eq.s32.totalorder %s118, 0
      %p339 = por %p337, %p338
      %s341 = sadd.s32 %s340, 1
      %p344 = scmp.eq.s32.totalorder %s112, 1
      %p345 = scmp.ne.s32.totalorder %s340, %s342
      %p346 = scmp.eq.s32.totalorder %s112, 0
      %p347 = por %p345, %p346
      %p348 = scmp.ne.s32.totalorder %s340, %s342
      %p349 = scmp.eq.s32.totalorder %s117, 1
      %p350 = por %p348, %p349
      %p351 = scmp.ne.s32.totalorder %s342, %s343
      %p352 = scmp.eq.s32.totalorder %s117, 0
      %p353 = por %p351, %p352
      %p354 = scmp.ne.s32.totalorder %s342, %s343
      %p355 = scmp.eq.s32.totalorder %s118, 1
      %p356 = por %p354, %p355
      %p358 = scmp.ne.s32.totalorder %s343, %s357
      %p359 = scmp.eq.s32.totalorder %s118, 0
      %p360 = por %p358, %p359
      %s362 = sadd.s32 %s361, 1
      %p365 = scmp.eq.s32.totalorder %s112, 1
      %p366 = scmp.ne.s32.totalorder %s361, %s363
      %p367 = scmp.eq.s32.totalorder %s112, 0
      %p368 = por %p366, %p367
      %p369 = scmp.ne.s32.totalorder %s361, %s363
      %p370 = scmp.eq.s32.totalorder %s117, 1
      %p371 = por %p369, %p370
      %p372 = scmp.ne.s32.totalorder %s363, %s364
      %p373 = scmp.eq.s32.totalorder %s117, 0
      %p374 = por %p372, %p373
      %p375 = scmp.ne.s32.totalorder %s363, %s364
      %p376 = scmp.eq.s32.totalorder %s118, 1
      %p377 = por %p375, %p376
      %p379 = scmp.ne.s32.totalorder %s364, %s378
      %p380 = scmp.eq.s32.totalorder %s118, 0
      %p381 = por %p379, %p380
      %s383 = sadd.s32 %s382, 1
      %p386 = scmp.eq.s32.totalorder %s112, 1
      %p387 = scmp.ne.s32.totalorder %s382, %s384
      %p388 = scmp.eq.s32.totalorder %s112, 0
      %p389 = por %p387, %p388
      %p390 = scmp.ne.s32.totalorder %s382, %s384
      %p391 = scmp.eq.s32.totalorder %s117, 1
      %p392 = por %p390, %p391
      %p393 = scmp.ne.s32.totalorder %s384, %s385
      %p394 = scmp.eq.s32.totalorder %s117, 0
      %p395 = por %p393, %p394
      %p396 = scmp.ne.s32.totalorder %s384, %s385
      %p397 = scmp.eq.s32.totalorder %s118, 1
      %p398 = por %p396, %p397
      %p400 = scmp.ne.s32.totalorder %s385, %s399
      %p401 = scmp.eq.s32.totalorder %s118, 0
      %p402 = por %p400, %p401
      %s404 = sadd.s32 %s403, 1
      %p407 = scmp.eq.s32.totalorder %s112, 1
      %p408 = scmp.ne.s32.totalorder %s403, %s405
      %p409 = scmp.eq.s32.totalorder %s112, 0
      %p410 = por %p408, %p409
      %p411 = scmp.ne.s32.totalorder %s403, %s405
      %p412 = scmp.eq.s32.totalorder %s117, 1
      %p413 = por %p411, %p412
      %p414 = scmp.ne.s32.totalorder %s405, %s406
      %p415 = scmp.eq.s32.totalorder %s117, 0
      %p416 = por %p414, %p415
      %p417 = scmp.ne.s32.totalorder %s405, %s406
      %p418 = scmp.eq.s32.totalorder %s118, 1
      %p419 = por %p417, %p418
      %p421 = scmp.ne.s32.totalorder %s406, %s420
      %p422 = scmp.eq.s32.totalorder %s118, 0
      %p423 = por %p421, %p422
      %s425 = sadd.s32 %s424, 1
      %p428 = scmp.eq.s32.totalorder %s112, 1
      %p429 = scmp.ne.s32.totalorder %s424, %s426
      %p430 = scmp.eq.s32.totalorder %s112, 0
      %p431 = por %p429, %p430
      %p432 = scmp.ne.s32.totalorder %s424, %s426
      %p433 = scmp.eq.s32.totalorder %s117, 1
      %p434 = por %p432, %p433
      %p435 = scmp.ne.s32.totalorder %s426, %s427
      %p436 = scmp.eq.s32.totalorder %s117, 0
      %p437 = por %p435, %p436
      %p438 = scmp.ne.s32.totalorder %s426, %s427
      %p439 = scmp.eq.s32.totalorder %s118, 1
      %p440 = por %p438, %p439
      %p442 = scmp.ne.s32.totalorder %s427, %s441
      %p443 = scmp.eq.s32.totalorder %s118, 0
      %p444 = por %p442, %p443
      %s446 = sadd.s32 %s445, 1
      %p449 = scmp.eq.s32.totalorder %s112, 1
      %p450 = scmp.ne.s32.totalorder %s445, %s447
      %p451 = scmp.eq.s32.totalorder %s112, 0
      %p452 = por %p450, %p451
      %p453 = scmp.ne.s32.totalorder %s445, %s447
      %p454 = scmp.eq.s32.totalorder %s117, 1
      %p455 = por %p453, %p454
      %p456 = scmp.ne.s32.totalorder %s447, %s448
      %p457 = scmp.eq.s32.totalorder %s117, 0
      %p458 = por %p456, %p457
      %p459 = scmp.ne.s32.totalorder %s447, %s448
      %p460 = scmp.eq.s32.totalorder %s118, 1
      %p461 = por %p459, %p460
      %p463 = scmp.ne.s32.totalorder %s448, %s462
      %p464 = scmp.eq.s32.totalorder %s118, 0
      %p465 = por %p463, %p464
      %s467 = sadd.s32 %s466, 1
      %p470 = scmp.eq.s32.totalorder %s112, 1
      %p471 = scmp.ne.s32.totalorder %s466, %s468
      %p472 = scmp.eq.s32.totalorder %s112, 0
      %p473 = por %p471, %p472
      %p474 = scmp.ne.s32.totalorder %s466, %s468
      %p475 = scmp.eq.s32.totalorder %s117, 1
      %p476 = por %p474, %p475
      %p477 = scmp.ne.s32.totalorder %s468, %s469
      %p478 = scmp.eq.s32.totalorder %s117, 0
      %p479 = por %p477, %p478
      %p480 = scmp.ne.s32.totalorder %s468, %s469
      %p481 = scmp.eq.s32.totalorder %s118, 1
      %p482 = por %p480, %p481
      %p484 = scmp.ne.s32.totalorder %s469, %s483
      %p485 = scmp.eq.s32.totalorder %s118, 0
      %p486 = por %p484, %p485
      %s488 = sadd.s32 %s487, 1
      %p491 = scmp.eq.s32.totalorder %s112, 1
      %p492 = scmp.ne.s32.totalorder %s487, %s489
      %p493 = scmp.eq.s32.totalorder %s112, 0
      %p494 = por %p492, %p493
      %p495 = scmp.ne.s32.totalorder %s487, %s489
      %p496 = scmp.eq.s32.totalorder %s117, 1
      %p497 = por %p495, %p496
      %p498 = scmp.ne.s32.totalorder %s489, %s490
      %p499 = scmp.eq.s32.totalorder %s117, 0
      %p500 = por %p498, %p499
      %p501 = scmp.ne.s32.totalorder %s489, %s490
      %p502 = scmp.eq.s32.totalorder %s118, 1
      %p503 = por %p501, %p502
      %p505 = scmp.ne.s32.totalorder %s490, %s504
      %p506 = scmp.eq.s32.totalorder %s118, 0
      %p507 = por %p505, %p506
      %s509 = sadd.s32 %s508, 1
      %p512 = scmp.eq.s32.totalorder %s112, 1
      %p513 = scmp.ne.s32.totalorder %s508, %s510
      %p514 = scmp.eq.s32.totalorder %s112, 0
      %p515 = por %p513, %p514
      %p516 = scmp.ne.s32.totalorder %s508, %s510
      %p517 = scmp.eq.s32.totalorder %s117, 1
      %p518 = por %p516, %p517
      %p519 = scmp.ne.s32.totalorder %s510, %s511
      %p520 = scmp.eq.s32.totalorder %s117, 0
      %p521 = por %p519, %p520
      %p522 = scmp.ne.s32.totalorder %s510, %s511
      %p523 = scmp.eq.s32.totalorder %s118, 1
      %p524 = por %p522, %p523
      %p526 = scmp.ne.s32.totalorder %s511, %s525
      %p527 = scmp.eq.s32.totalorder %s118, 0
      %p528 = por %p526, %p527
      %s530 = sadd.s32 %s529, 1
      %p533 = scmp.eq.s32.totalorder %s112, 1
      %p534 = scmp.ne.s32.totalorder %s529, %s531
      %p535 = scmp.eq.s32.totalorder %s112, 0
      %p536 = por %p534, %p535
      %p537 = scmp.ne.s32.totalorder %s529, %s531
      %p538 = scmp.eq.s32.totalorder %s117, 1
      %p539 = por %p537, %p538
      %p540 = scmp.ne.s32.totalorder %s531, %s532
      %p541 = scmp.eq.s32.totalorder %s117, 0
      %p542 = por %p540, %p541
      %p543 = scmp.ne.s32.totalorder %s531, %s532
      %p544 = scmp.eq.s32.totalorder %s118, 1
      %p545 = por %p543, %p544
      %p547 = scmp.ne.s32.totalorder %s532, %s546
      %p548 = scmp.eq.s32.totalorder %s118, 0
      %p549 = por %p547, %p548
      %s551 = sadd.s32 %s550, 1
      %p554 = scmp.eq.s32.totalorder %s112, 1
      %p555 = scmp.ne.s32.totalorder %s550, %s552
      %p556 = scmp.eq.s32.totalorder %s112, 0
      %p557 = por %p555, %p556
      %p558 = scmp.ne.s32.totalorder %s550, %s552
      %p559 = scmp.eq.s32.totalorder %s117, 1
      %p560 = por %p558, %p559
      %p561 = scmp.ne.s32.totalorder %s552, %s553
      %p562 = scmp.eq.s32.totalorder %s117, 0
      %p563 = por %p561, %p562
      %p564 = scmp.ne.s32.totalorder %s552, %s553
      %p565 = scmp.eq.s32.totalorder %s118, 1
      %p566 = por %p564, %p565
      %p568 = scmp.ne.s32.totalorder %s553, %s567
      %p569 = scmp.eq.s32.totalorder %s118, 0
      %p570 = por %p568, %p569
      %s572 = sadd.s32 %s571, 1
      %p575 = scmp.eq.s32.totalorder %s112, 1
      %p576 = scmp.ne.s32.totalorder %s571, %s573
      %p577 = scmp.eq.s32.totalorder %s112, 0
      %p578 = por %p576, %p577
      %p579 = scmp.ne.s32.totalorder %s571, %s573
      %p580 = scmp.eq.s32.totalorder %s117, 1
      %p581 = por %p579, %p580
      %p582 = scmp.ne.s32.totalorder %s573, %s574
      %p583 = scmp.eq.s32.totalorder %s117, 0
      %p584 = por %p582, %p583
      %p585 = scmp.ne.s32.totalorder %s573, %s574
      %p586 = scmp.eq.s32.totalorder %s118, 1
      %p587 = por %p585, %p586
      %p589 = scmp.ne.s32.totalorder %s574, %s588
      %p590 = scmp.eq.s32.totalorder %s118, 0
      %p591 = por %p589, %p590
      %s593 = sadd.s32 %s592, 1
      %p596 = scmp.eq.s32.totalorder %s112, 1
      %p597 = scmp.ne.s32.totalorder %s592, %s594
      %p598 = scmp.eq.s32.totalorder %s112, 0
      %p599 = por %p597, %p598
      %p600 = scmp.ne.s32.totalorder %s592, %s594
      %p601 = scmp.eq.s32.totalorder %s117, 1
      %p602 = por %p600, %p601
      %p603 = scmp.ne.s32.totalorder %s594, %s595
      %p604 = scmp.eq.s32.totalorder %s117, 0
      %p605 = por %p603, %p604
      %p606 = scmp.ne.s32.totalorder %s594, %s595
      %p607 = scmp.eq.s32.totalorder %s118, 1
      %p608 = por %p606, %p607
      %p610 = scmp.ne.s32.totalorder %s595, %s609
      %p611 = scmp.eq.s32.totalorder %s118, 0
      %p612 = por %p610, %p611
      %s614 = sadd.s32 %s613, 1
      %p617 = scmp.eq.s32.totalorder %s112, 1
      %p618 = scmp.ne.s32.totalorder %s613, %s615
      %p619 = scmp.eq.s32.totalorder %s112, 0
      %p620 = por %p618, %p619
      %p621 = scmp.ne.s32.totalorder %s613, %s615
      %p622 = scmp.eq.s32.totalorder %s117, 1
      %p623 = por %p621, %p622
      %p624 = scmp.ne.s32.totalorder %s615, %s616
      %p625 = scmp.eq.s32.totalorder %s117, 0
      %p626 = por %p624, %p625
      %p627 = scmp.ne.s32.totalorder %s615, %s616
      %p628 = scmp.eq.s32.totalorder %s118, 1
      %p629 = por %p627, %p628
      %p631 = scmp.ne.s32.totalorder %s616, %s630
      %p632 = scmp.eq.s32.totalorder %s118, 0
      %p633 = por %p631, %p632
      %s635 = sadd.s32 %s634, 1
      %p638 = scmp.eq.s32.totalorder %s112, 1
      %p639 = scmp.ne.s32.totalorder %s634, %s636
      %p640 = scmp.eq.s32.totalorder %s112, 0
      %p641 = por %p639, %p640
      %p642 = scmp.ne.s32.totalorder %s634, %s636
      %p643 = scmp.eq.s32.totalorder %s117, 1
      %p644 = por %p642, %p643
      %p645 = scmp.ne.s32.totalorder %s636, %s637
      %p646 = scmp.eq.s32.totalorder %s117, 0
      %p647 = por %p645, %p646
      %p648 = scmp.ne.s32.totalorder %s636, %s637
      %p649 = scmp.eq.s32.totalorder %s118, 1
      %p650 = por %p648, %p649
      %p652 = scmp.ne.s32.totalorder %s637, %s651
      %p653 = scmp.eq.s32.totalorder %s118, 0
      %p654 = por %p652, %p653
      %s656 = sadd.s32 %s655, 1
      %p659 = scmp.eq.s32.totalorder %s112, 1
      %p660 = scmp.ne.s32.totalorder %s655, %s657
      %p661 = scmp.eq.s32.totalorder %s112, 0
      %p662 = por %p660, %p661
      %p663 = scmp.ne.s32.totalorder %s655, %s657
      %p664 = scmp.eq.s32.totalorder %s117, 1
      %p665 = por %p663, %p664
      %p666 = scmp.ne.s32.totalorder %s657, %s658
      %p667 = scmp.eq.s32.totalorder %s117, 0
      %p668 = por %p666, %p667
      %p669 = scmp.ne.s32.totalorder %s657, %s658
      %p670 = scmp.eq.s32.totalorder %s118, 1
      %p671 = por %p669, %p670
      %p673 = scmp.ne.s32.totalorder %s658, %s672
      %p674 = scmp.eq.s32.totalorder %s118, 0
      %p675 = por %p673, %p674
      %s677 = sadd.s32 %s676, 1
      %p680 = scmp.eq.s32.totalorder %s112, 1
      %p681 = scmp.ne.s32.totalorder %s676, %s678
      %p682 = scmp.eq.s32.totalorder %s112, 0
      %p683 = por %p681, %p682
      %p684 = scmp.ne.s32.totalorder %s676, %s678
      %p685 = scmp.eq.s32.totalorder %s117, 1
      %p686 = por %p684, %p685
      %p687 = scmp.ne.s32.totalorder %s678, %s679
      %p688 = scmp.eq.s32.totalorder %s117, 0
      %p689 = por %p687, %p688
      %p690 = scmp.ne.s32.totalorder %s678, %s679
      %p691 = scmp.eq.s32.totalorder %s118, 1
      %p692 = por %p690, %p691
      %p694 = scmp.ne.s32.totalorder %s679, %s693
      %p695 = scmp.eq.s32.totalorder %s118, 0
      %p696 = por %p694, %p695
      %s698 = sadd.s32 %s697, 1
      %p701 = scmp.eq.s32.totalorder %s112, 1
      %p702 = scmp.ne.s32.totalorder %s697, %s699
      %p703 = scmp.eq.s32.totalorder %s112, 0
      %p704 = por %p702, %p703
      %p705 = scmp.ne.s32.totalorder %s697, %s699
      %p706 = scmp.eq.s32.totalorder %s117, 1
      %p707 = por %p705, %p706
      %p708 = scmp.ne.s32.totalorder %s699, %s700
      %p709 = scmp.eq.s32.totalorder %s117, 0
      %p710 = por %p708, %p709
      %p711 = scmp.ne.s32.totalorder %s699, %s700
      %p712 = scmp.eq.s32.totalorder %s118, 1
      %p713 = por %p711, %p712
      %p715 = scmp.ne.s32.totalorder %s700, %s714
      %p716 = scmp.eq.s32.totalorder %s118, 0
      %p717 = por %p715, %p716
      %s719 = sadd.s32 %s718, 1
      %p722 = scmp.eq.s32.totalorder %s112, 1
      %p723 = scmp.ne.s32.totalorder %s718, %s720
      %p724 = scmp.eq.s32.totalorder %s112, 0
      %p725 = por %p723, %p724
      %p726 = scmp.ne.s32.totalorder %s718, %s720
      %p727 = scmp.eq.s32.totalorder %s117, 1
      %p728 = por %p726, %p727
      %p729 = scmp.ne.s32.totalorder %s720, %s721
      %p730 = scmp.eq.s32.totalorder %s117, 0
      %p731 = por %p729, %p730
      %p732 = scmp.ne.s32.totalorder %s720, %s721
      %p733 = scmp.eq.s32.totalorder %s118, 1
      %p734 = por %p732, %p733
      %p736 = scmp.ne.s32.totalorder %s721, %s735
      %p737 = scmp.eq.s32.totalorder %s118, 0
      %p738 = por %p736, %p737
      %s740 = sadd.s32 %s739, 1
      %p743 = scmp.eq.s32.totalorder %s112, 1
      %p744 = scmp.ne.s32.totalorder %s739, %s741
      %p745 = scmp.eq.s32.totalorder %s112, 0
      %p746 = por %p744, %p745
      %p747 = scmp.ne.s32.totalorder %s739, %s741
      %p748 = scmp.eq.s32.totalorder %s117, 1
      %p749 = por %p747, %p748
      %p750 = scmp.ne.s32.totalorder %s741, %s742
      %p751 = scmp.eq.s32.totalorder %s117, 0
      %p752 = por %p750, %p751
      %p753 = scmp.ne.s32.totalorder %s741, %s742
      %p754 = scmp.eq.s32.totalorder %s118, 1
      %p755 = por %p753, %p754
      %p757 = scmp.ne.s32.totalorder %s742, %s756
      %p758 = scmp.eq.s32.totalorder %s118, 0
      %p759 = por %p757, %p758
      %s761 = sadd.s32 %s760, 1
      %p764 = scmp.eq.s32.totalorder %s112, 1
      %p765 = scmp.ne.s32.totalorder %s760, %s762
      %p766 = scmp.eq.s32.totalorder %s112, 0
      %p767 = por %p765, %p766
      %p768 = scmp.ne.s32.totalorder %s760, %s762
      %p769 = scmp.eq.s32.totalorder %s117, 1
      %p770 = por %p768, %p769
      %p771 = scmp.ne.s32.totalorder %s762, %s763
      %p772 = scmp.eq.s32.totalorder %s117, 0
      %p773 = por %p771, %p772
      %p774 = scmp.ne.s32.totalorder %s762, %s763
      %p775 = scmp.eq.s32.totalorder %s118, 1
      %p776 = por %p774, %p775
      %p778 = scmp.ne.s32.totalorder %s763, %s777
      %p779 = scmp.eq.s32.totalorder %s118, 0
      %p780 = por %p778, %p779
      %s782 = sadd.s32 %s781, 1
      %p785 = scmp.eq.s32.totalorder %s112, 1
      %p786 = scmp.ne.s32.totalorder %s781, %s783
      %p787 = scmp.eq.s32.totalorder %s112, 0
      %p788 = por %p786, %p787
      %p789 = scmp.ne.s32.totalorder %s781, %s783
      %p790 = scmp.eq.s32.totalorder %s117, 1
      %p791 = por %p789, %p790
      %p792 = scmp.ne.s32.totalorder %s783, %s784
      %p793 = scmp.eq.s32.totalorder %s117, 0
      %p794 = por %p792, %p793
      %p795 = scmp.ne.s32.totalorder %s783, %s784
      %p796 = scmp.eq.s32.totalorder %s118, 1
      %p797 = por %p795, %p796
      %p799 = scmp.ne.s32.totalorder %s784, %s798
      %p800 = scmp.eq.s32.totalorder %s118, 0
      %p801 = por %p799, %p800
      %s803 = sadd.s32 %s802, 1
      %p806 = scmp.eq.s32.totalorder %s112, 1
      %p807 = scmp.ne.s32.totalorder %s802, %s804
      %p808 = scmp.eq.s32.totalorder %s112, 0
      %p809 = por %p807, %p808
      %p810 = scmp.ne.s32.totalorder %s802, %s804
      %p811 = scmp.eq.s32.totalorder %s117, 1
      %p812 = por %p810, %p811
      %p813 = scmp.ne.s32.totalorder %s804, %s805
      %p814 = scmp.eq.s32.totalorder %s117, 0
      %p815 = por %p813, %p814
      %p816 = scmp.ne.s32.totalorder %s804, %s805
      %p817 = scmp.eq.s32.totalorder %s118, 1
      %p818 = por %p816, %p817
      %p820 = scmp.ne.s32.totalorder %s805, %s819
      %p821 = scmp.eq.s32.totalorder %s118, 0
      %p822 = por %p820, %p821
      %s824 = sadd.s32 %s823, 1
      %p827 = scmp.eq.s32.totalorder %s112, 1
      %p828 = scmp.ne.s32.totalorder %s823, %s825
      %p829 = scmp.eq.s32.totalorder %s112, 0
      %p830 = por %p828, %p829
      %p831 = scmp.ne.s32.totalorder %s823, %s825
      %p832 = scmp.eq.s32.totalorder %s117, 1
      %p833 = por %p831, %p832
      %p834 = scmp.ne.s32.totalorder %s825, %s826
      %p835 = scmp.eq.s32.totalorder %s117, 0
      %p836 = por %p834, %p835
      %p837 = scmp.ne.s32.totalorder %s825, %s826
      %p838 = scmp.eq.s32.totalorder %s118, 1
      %p839 = por %p837, %p838
      %p841 = scmp.ne.s32.totalorder %s826, %s840
      %p842 = scmp.eq.s32.totalorder %s118, 0
      %p843 = por %p841, %p842
      %s845 = sadd.s32 %s844, 1
      %p848 = scmp.eq.s32.totalorder %s112, 1
      %p849 = scmp.ne.s32.totalorder %s844, %s846
      %p850 = scmp.eq.s32.totalorder %s112, 0
      %p851 = por %p849, %p850
      %p852 = scmp.ne.s32.totalorder %s844, %s846
      %p853 = scmp.eq.s32.totalorder %s117, 1
      %p854 = por %p852, %p853
      %p855 = scmp.ne.s32.totalorder %s846, %s847
      %p856 = scmp.eq.s32.totalorder %s117, 0
      %p857 = por %p855, %p856
      %p858 = scmp.ne.s32.totalorder %s846, %s847
      %p859 = scmp.eq.s32.totalorder %s118, 1
      %p860 = por %p858, %p859
      %p862 = scmp.ne.s32.totalorder %s847, %s861
      %p863 = scmp.eq.s32.totalorder %s118, 0
      %p864 = por %p862, %p863
      %s866 = sadd.s32 %s865, 1
      %p869 = scmp.eq.s32.totalorder %s112, 1
      %p870 = scmp.ne.s32.totalorder %s865, %s867
      %p871 = scmp.eq.s32.totalorder %s112, 0
      %p872 = por %p870, %p871
      %p873 = scmp.ne.s32.totalorder %s865, %s867
      %p874 = scmp.eq.s32.totalorder %s117, 1
      %p875 = por %p873, %p874
      %p876 = scmp.ne.s32.totalorder %s867, %s868
      %p877 = scmp.eq.s32.totalorder %s117, 0
      %p878 = por %p876, %p877
      %p879 = scmp.ne.s32.totalorder %s867, %s868
      %p880 = scmp.eq.s32.totalorder %s118, 1
      %p881 = por %p879, %p880
      %p883 = scmp.ne.s32.totalorder %s868, %s882
      %p884 = scmp.eq.s32.totalorder %s118, 0
      %p885 = por %p883, %p884
      %s887 = sadd.s32 %s886, 1
      %p890 = scmp.eq.s32.totalorder %s112, 1
      %p891 = scmp.ne.s32.totalorder %s886, %s888
      %p892 = scmp.eq.s32.totalorder %s112, 0
      %p893 = por %p891, %p892
      %p894 = scmp.ne.s32.totalorder %s886, %s888
      %p895 = scmp.eq.s32.totalorder %s117, 1
      %p896 = por %p894, %p895
      %p897 = scmp.ne.s32.totalorder %s888, %s889
      %p898 = scmp.eq.s32.totalorder %s117, 0
      %p899 = por %p897, %p898
      %p900 = scmp.ne.s32.totalorder %s888, %s889
      %p901 = scmp.eq.s32.totalorder %s118, 1
      %p902 = por %p900, %p901
      %p904 = scmp.ne.s32.totalorder %s889, %s903
      %p905 = scmp.eq.s32.totalorder %s118, 0
      %p906 = por %p904, %p905
      %s908 = sadd.s32 %s907, 1
      %p911 = scmp.eq.s32.totalorder %s112, 1
      %p912 = scmp.ne.s32.totalorder %s907, %s909
      %p913 = scmp.eq.s32.totalorder %s112, 0
      %p914 = por %p912, %p913
      %p915 = scmp.ne.s32.totalorder %s907, %s909
      %p916 = scmp.eq.s32.totalorder %s117, 1
      %p917 = por %p915, %p916
      %p918 = scmp.ne.s32.totalorder %s909, %s910
      %p919 = scmp.eq.s32.totalorder %s117, 0
      %p920 = por %p918, %p919
      %p921 = scmp.ne.s32.totalorder %s909, %s910
      %p922 = scmp.eq.s32.totalorder %s118, 1
      %p923 = por %p921, %p922
      %p925 = scmp.ne.s32.totalorder %s910, %s924
      %p926 = scmp.eq.s32.totalorder %s118, 0
      %p927 = por %p925, %p926
      %s929 = sadd.s32 %s928, 1
      %p932 = scmp.eq.s32.totalorder %s112, 1
      %p933 = scmp.ne.s32.totalorder %s928, %s930
      %p934 = scmp.eq.s32.totalorder %s112, 0
      %p935 = por %p933, %p934
      %p936 = scmp.ne.s32.totalorder %s928, %s930
      %p937 = scmp.eq.s32.totalorder %s117, 1
      %p938 = por %p936, %p937
      %p939 = scmp.ne.s32.totalorder %s930, %s931
      %p940 = scmp.eq.s32.totalorder %s117, 0
      %p941 = por %p939, %p940
      %p942 = scmp.ne.s32.totalorder %s930, %s931
      %p943 = scmp.eq.s32.totalorder %s118, 1
      %p944 = por %p942, %p943
      %p946 = scmp.ne.s32.totalorder %s931, %s945
      %p947 = scmp.eq.s32.totalorder %s118, 0
      %p948 = por %p946, %p947
      %s950 = sadd.s32 %s949, 1
      %p953 = scmp.eq.s32.totalorder %s112, 1
      %p954 = scmp.ne.s32.totalorder %s949, %s951
      %p955 = scmp.eq.s32.totalorder %s112, 0
      %p956 = por %p954, %p955
      %p957 = scmp.ne.s32.totalorder %s949, %s951
      %p958 = scmp.eq.s32.totalorder %s117, 1
      %p959 = por %p957, %p958
      %p960 = scmp.ne.s32.totalorder %s951, %s952
      %p961 = scmp.eq.s32.totalorder %s117, 0
      %p962 = por %p960, %p961
      %p963 = scmp.ne.s32.totalorder %s951, %s952
      %p964 = scmp.eq.s32.totalorder %s118, 1
      %p965 = por %p963, %p964
      %p967 = scmp.ne.s32.totalorder %s952, %s966
      %p968 = scmp.eq.s32.totalorder %s118, 0
      %p969 = por %p967, %p968
      %s971 = sadd.s32 %s970, 1
      %p974 = scmp.eq.s32.totalorder %s112, 1
      %p975 = scmp.ne.s32.totalorder %s970, %s972
      %p976 = scmp.eq.s32.totalorder %s112, 0
      %p977 = por %p975, %p976
      %p978 = scmp.ne.s32.totalorder %s970, %s972
      %p979 = scmp.eq.s32.totalorder %s117, 1
      %p980 = por %p978, %p979
      %p981 = scmp.ne.s32.totalorder %s972, %s973
      %p982 = scmp.eq.s32.totalorder %s117, 0
      %p983 = por %p981, %p982
      %p984 = scmp.ne.s32.totalorder %s972, %s973
      %p985 = scmp.eq.s32.totalorder %s118, 1
      %p986 = por %p984, %p985
      %p988 = scmp.ne.s32.totalorder %s973, %s987
      %p989 = scmp.eq.s32.totalorder %s118, 0
      %p990 = por %p988, %p989
      %s991 = ssub.s32 %s112, %s119
      %p992 = scmp.eq.s32.totalorder %s991, 0
      %s994 = sadd.s32 %s993, 1
      %s995 = scalar_select %p992, %s993, %s994
      %p998 = pneg %p992
      %p999 = scmp.eq.s32.totalorder %s112, 1
      %p1000 = por %p998, %p999
      %p1001 = scmp.ne.s32.totalorder %s993, %s996
      %p1002 = scmp.eq.s32.totalorder %s112, 0
      %p1003 = por %p1001, %p1002
      %p1004 = scmp.ne.s32.totalorder %s993, %s996
      %p1005 = scmp.eq.s32.totalorder %s117, 1
      %p1006 = por %p1004, %p1005
      %p1007 = scmp.ne.s32.totalorder %s996, %s997
      %p1008 = scmp.eq.s32.totalorder %s117, 0
      %p1009 = por %p1007, %p1008
      %p1010 = scmp.ne.s32.totalorder %s996, %s997
      %p1011 = scmp.eq.s32.totalorder %s118, 1
      %p1012 = por %p1010, %p1011
      %p1014 = scmp.ne.s32.totalorder %s997, %s1013
      %p1015 = scmp.eq.s32.totalorder %s118, 0
      %p1016 = por %p1014, %p1015
      %p1017 = scmp.le.s32.totalorder 1, %s112
      %p1018 = scmp.lt.s32.totalorder %s112, 3
      %p1019 = pnand %p1017, %p1018
      %p1020 = pneg %p1019
      // Predicated region
      $region9: #{transformer_forward.1} parent=5 // pred_check
        _
      $region10: #{transformer_forward.1} parent=5 // pred_check_branch
        %1022 = sbr.rel (%p1019) target = $region12
      $region11: #{transformer_forward.1} parent=5 // pred_region
        %s1023 = ssub.s32 %s112, 1
        // Predicated region
        $region13: #{transformer_forward.1} parent=11 // pred_check
          %p1024 = pneg %p185
        $region14: #{transformer_forward.1} parent=11 // pred_check_branch
          %1026 = sbr.rel (%p1024) target = $region16
        $region15: #{transformer_forward.1} parent=11 // pred_region
          _
        $region16: #{transformer_forward.1} parent=11 // pred_fallthru
          _
        // Predicated region
        $region17: #{transformer_forward.1} parent=11 // pred_check
          %p1027 = pneg %p206
        $region18: #{transformer_forward.1} parent=11 // pred_check_branch
          %1029 = sbr.rel (%p1027) target = $region20
        $region19: #{transformer_forward.1} parent=11 // pred_region
          _
        $region20: #{transformer_forward.1} parent=11 // pred_fallthru
          _
        // Predicated region
        $region21: #{transformer_forward.1} parent=11 // pred_check
          %p1030 = pneg %p227
        $region22: #{transformer_forward.1} parent=11 // pred_check_branch
          %1032 = sbr.rel (%p1030) target = $region24
        $region23: #{transformer_forward.1} parent=11 // pred_region
          _
        $region24: #{transformer_forward.1} parent=11 // pred_fallthru
          _
        // Predicated region
        $region25: #{transformer_forward.1} parent=11 // pred_check
          %p1033 = pneg %p248
        $region26: #{transformer_forward.1} parent=11 // pred_check_branch
          %1035 = sbr.rel (%p1033) target = $region28
        $region27: #{transformer_forward.1} parent=11 // pred_region
          _
        $region28: #{transformer_forward.1} parent=11 // pred_fallthru
          _
        // Predicated region
        $region29: #{transformer_forward.1} parent=11 // pred_check
          %p1036 = pneg %p269
        $region30: #{transformer_forward.1} parent=11 // pred_check_branch
          %1038 = sbr.rel (%p1036) target = $region32
        $region31: #{transformer_forward.1} parent=11 // pred_region
          _
        $region32: #{transformer_forward.1} parent=11 // pred_fallthru
          _
        // Predicated region
        $region33: #{transformer_forward.1} parent=11 // pred_check
          %p1039 = pneg %p290
        $region34: #{transformer_forward.1} parent=11 // pred_check_branch
          %1041 = sbr.rel (%p1039) target = $region36
        $region35: #{transformer_forward.1} parent=11 // pred_region
          %1043 = vsyncadd [#allocation6], 0
          %s1044 = sshll.u32 %s15, 4
          %s1045 = int_to_ptr.hbm [resolvable:$true] %s1044
          %s1046 = sshll.u32 [#allocation7], 4
          %s1047 = int_to_ptr.vmem [resolvable:$true] %s1046
          %1052 = dma.hbm_to_vmem [thread:$0]  %s1045, 32, %s1047, [#allocation6], 16, 16, 1
        $region36: #{transformer_forward.1} parent=11 // pred_fallthru
          _
        // Predicated region
        $region37: #{transformer_forward.1} parent=11 // pred_check
          %p1053 = pneg %p311
        $region38: #{transformer_forward.1} parent=11 // pred_check_branch
          %1055 = sbr.rel (%p1053) target = $region40
        $region39: #{transformer_forward.1} parent=11 // pred_region
          %1057 = vsyncadd [#allocation9], 0
          %s1058 = sshll.u32 %s17, 4
          %s1059 = int_to_ptr.hbm [resolvable:$true] %s1058
          %s1060 = sshll.u32 [#allocation8], 4
          %s1061 = int_to_ptr.vmem [resolvable:$true] %s1060
          %1066 = dma.hbm_to_vmem [thread:$0]  %s1059, 32, %s1061, [#allocation9], 16, 16, 1
        $region40: #{transformer_forward.1} parent=11 // pred_fallthru
          _
        // Predicated region
        $region41: #{transformer_forward.1} parent=11 // pred_check
          %p1067 = pneg %p332
        $region42: #{transformer_forward.1} parent=11 // pred_check_branch
          %1069 = sbr.rel (%p1067) target = $region44
        $region43: #{transformer_forward.1} parent=11 // pred_region
          _
        $region44: #{transformer_forward.1} parent=11 // pred_fallthru
          _
        // Predicated region
        $region45: #{transformer_forward.1} parent=11 // pred_check
          %p1070 = pneg %p353
        $region46: #{transformer_forward.1} parent=11 // pred_check_branch
          %1072 = sbr.rel (%p1070) target = $region48
        $region47: #{transformer_forward.1} parent=11 // pred_region
          %1074 = vsyncadd [#allocation9], 0
          %s1075 = sshll.u32 %s21, 4
          %s1076 = int_to_ptr.hbm [resolvable:$true] %s1075
          %s1077 = sshll.u32 [#allocation10], 4
          %s1078 = int_to_ptr.vmem [resolvable:$true] %s1077
          %1083 = dma.hbm_to_vmem [thread:$0]  %s1076, 32, %s1078, [#allocation9], 16, 16, 1
        $region48: #{transformer_forward.1} parent=11 // pred_fallthru
          _
        // Predicated region
        $region49: #{transformer_forward.1} parent=11 // pred_check
          %p1084 = pneg %p374
        $region50: #{transformer_forward.1} parent=11 // pred_check_branch
          %1086 = sbr.rel (%p1084) target = $region52
        $region51: #{transformer_forward.1} parent=11 // pred_region
          _
        $region52: #{transformer_forward.1} parent=11 // pred_fallthru
          _
        // Predicated region
        $region53: #{transformer_forward.1} parent=11 // pred_check
          %p1087 = pneg %p395
        $region54: #{transformer_forward.1} parent=11 // pred_check_branch
          %1089 = sbr.rel (%p1087) target = $region56
        $region55: #{transformer_forward.1} parent=11 // pred_region
          %1091 = vsyncadd [#allocation12], 0
          %s1092 = sshll.u32 %s25, 4
          %s1093 = int_to_ptr.hbm [resolvable:$true] %s1092
          %s1094 = sshll.u32 [#allocation11], 4
          %s1095 = int_to_ptr.vmem [resolvable:$true] %s1094
          %1100 = dma.hbm_to_vmem [thread:$0]  %s1093, 32, %s1095, [#allocation12], 16, 16, 1
        $region56: #{transformer_forward.1} parent=11 // pred_fallthru
          _
        // Predicated region
        $region57: #{transformer_forward.1} parent=11 // pred_check
          %p1101 = pneg %p416
        $region58: #{transformer_forward.1} parent=11 // pred_check_branch
          %1103 = sbr.rel (%p1101) target = $region60
        $region59: #{transformer_forward.1} parent=11 // pred_region
          %1105 = vsyncadd [#allocation12], 0
          %s1106 = sshll.u32 %s27, 4
          %s1107 = int_to_ptr.hbm [resolvable:$true] %s1106
          %s1108 = sshll.u32 [#allocation13], 4
          %s1109 = int_to_ptr.vmem [resolvable:$true] %s1108
          %1114 = dma.hbm_to_vmem [thread:$0]  %s1107, 32, %s1109, [#allocation12], 16, 16, 1
        $region60: #{transformer_forward.1} parent=11 // pred_fallthru
          _
        // Predicated region
        $region61: #{transformer_forward.1} parent=11 // pred_check
          %p1115 = pneg %p437
        $region62: #{transformer_forward.1} parent=11 // pred_check_branch
          %1117 = sbr.rel (%p1115) target = $region64
        $region63: #{transformer_forward.1} parent=11 // pred_region
          %1119 = vsyncadd [#allocation15], 0
          %s1120 = sshll.u32 %s29, 4
          %s1121 = int_to_ptr.hbm [resolvable:$true] %s1120
          %s1122 = sshll.u32 [#allocation14], 4
          %s1123 = int_to_ptr.vmem [resolvable:$true] %s1122
          %1128 = dma.hbm_to_vmem [thread:$0]  %s1121, 32, %s1123, [#allocation15], 16, 16, 1
        $region64: #{transformer_forward.1} parent=11 // pred_fallthru
          _
        // Predicated region
        $region65: #{transformer_forward.1} parent=11 // pred_check
          %p1129 = pneg %p458
        $region66: #{transformer_forward.1} parent=11 // pred_check_branch
          %1131 = sbr.rel (%p1129) target = $region68
        $region67: #{transformer_forward.1} parent=11 // pred_region
          %1133 = vsyncadd [#allocation15], 0
          %s1135 = sshll.u32 %s31, 4
          %s1136 = int_to_ptr.hbm [resolvable:$true] %s1135
          %s1137 = sshll.u32 [#allocation16], 4
          %s1138 = int_to_ptr.vmem [resolvable:$true] %s1137
          %1140 = dma.hbm_to_vmem [thread:$0]  %s1136, 16, %s1138, [#allocation15]
        $region68: #{transformer_forward.1} parent=11 // pred_fallthru
          _
        // Predicated region
        $region69: #{transformer_forward.1} parent=11 // pred_check
          %p1141 = pneg %p479
        $region70: #{transformer_forward.1} parent=11 // pred_check_branch
          %1143 = sbr.rel (%p1141) target = $region72
        $region71: #{transformer_forward.1} parent=11 // pred_region
          %1145 = vsyncadd [#allocation18], 0
          %s1147 = sshll.u32 %s33, 4
          %s1148 = int_to_ptr.hbm [resolvable:$true] %s1147
          %s1149 = sshll.u32 [#allocation17], 4
          %s1150 = int_to_ptr.vmem [resolvable:$true] %s1149
          %1152 = dma.hbm_to_vmem [thread:$0]  %s1148, 16, %s1150, [#allocation18]
        $region72: #{transformer_forward.1} parent=11 // pred_fallthru
          _
        // Predicated region
        $region73: #{transformer_forward.1} parent=11 // pred_check
          %p1153 = pneg %p500
        $region74: #{transformer_forward.1} parent=11 // pred_check_branch
          %1155 = sbr.rel (%p1153) target = $region76
        $region75: #{transformer_forward.1} parent=11 // pred_region
          _
        $region76: #{transformer_forward.1} parent=11 // pred_fallthru
          _
        // Predicated region
        $region77: #{transformer_forward.1} parent=11 // pred_check
          %p1156 = pneg %p521
        $region78: #{transformer_forward.1} parent=11 // pred_check_branch
          %1158 = sbr.rel (%p1156) target = $region80
        $region79: #{transformer_forward.1} parent=11 // pred_region
          %1160 = vsyncadd [#allocation18], 0
          %s1161 = sshll.u32 %s37, 4
          %s1162 = int_to_ptr.hbm [resolvable:$true] %s1161
          %s1163 = sshll.u32 [#allocation19], 4
          %s1164 = int_to_ptr.vmem [resolvable:$true] %s1163
          %1169 = dma.hbm_to_vmem [thread:$0]  %s1162, 32, %s1164, [#allocation18], 16, 16, 1
        $region80: #{transformer_forward.1} parent=11 // pred_fallthru
          _
        // Predicated region
        $region81: #{transformer_forward.1} parent=11 // pred_check
          %p1170 = pneg %p542
        $region82: #{transformer_forward.1} parent=11 // pred_check_branch
          %1172 = sbr.rel (%p1170) target = $region84
        $region83: #{transformer_forward.1} parent=11 // pred_region
          _
        $region84: #{transformer_forward.1} parent=11 // pred_fallthru
          _
        // Predicated region
        $region85: #{transformer_forward.1} parent=11 // pred_check
          %p1173 = pneg %p563
        $region86: #{transformer_forward.1} parent=11 // pred_check_branch
          %1175 = sbr.rel (%p1173) target = $region88
        $region87: #{transformer_forward.1} parent=11 // pred_region
          %1177 = vsyncadd [#allocation21], 0
          %s1178 = sshll.u32 %s41, 4
          %s1179 = int_to_ptr.hbm [resolvable:$true] %s1178
          %s1180 = sshll.u32 [#allocation20], 4
          %s1181 = int_to_ptr.vmem [resolvable:$true] %s1180
          %1186 = dma.hbm_to_vmem [thread:$0]  %s1179, 32, %s1181, [#allocation21], 16, 16, 1
        $region88: #{transformer_forward.1} parent=11 // pred_fallthru
          _
        // Predicated region
        $region89: #{transformer_forward.1} parent=11 // pred_check
          %p1187 = pneg %p584
        $region90: #{transformer_forward.1} parent=11 // pred_check_branch
          %1189 = sbr.rel (%p1187) target = $region92
        $region91: #{transformer_forward.1} parent=11 // pred_region
          %1191 = vsyncadd [#allocation21], 0
          %s1192 = sshll.u32 %s43, 4
          %s1193 = int_to_ptr.hbm [resolvable:$true] %s1192
          %s1194 = sshll.u32 [#allocation22], 4
          %s1195 = int_to_ptr.vmem [resolvable:$true] %s1194
          %1200 = dma.hbm_to_vmem [thread:$0]  %s1193, 32, %s1195, [#allocation21], 16, 16, 1
        $region92: #{transformer_forward.1} parent=11 // pred_fallthru
          _
        // Predicated region
        $region93: #{transformer_forward.1} parent=11 // pred_check
          %p1201 = pneg %p605
        $region94: #{transformer_forward.1} parent=11 // pred_check_branch
          %1203 = sbr.rel (%p1201) target = $region96
        $region95: #{transformer_forward.1} parent=11 // pred_region
          %1205 = vsyncadd [#allocation24], 0
          %s1206 = sshll.u32 %s45, 4
          %s1207 = int_to_ptr.hbm [resolvable:$true] %s1206
          %s1208 = sshll.u32 [#allocation23], 4
          %s1209 = int_to_ptr.vmem [resolvable:$true] %s1208
          %1214 = dma.hbm_to_vmem [thread:$0]  %s1207, 32, %s1209, [#allocation24], 16, 16, 1
        $region96: #{transformer_forward.1} parent=11 // pred_fallthru
          _
        // Predicated region
        $region97: #{transformer_forward.1} parent=11 // pred_check
          %p1215 = pneg %p626
        $region98: #{transformer_forward.1} parent=11 // pred_check_branch
          %1217 = sbr.rel (%p1215) target = $region100
        $region99: #{transformer_forward.1} parent=11 // pred_region
          %1219 = vsyncadd [#allocation24], 0
          %s1220 = sshll.u32 %s47, 4
          %s1221 = int_to_ptr.hbm [resolvable:$true] %s1220
          %s1222 = sshll.u32 [#allocation25], 4
          %s1223 = int_to_ptr.vmem [resolvable:$true] %s1222
          %1228 = dma.hbm_to_vmem [thread:$0]  %s1221, 1024, %s1223, [#allocation24], 128, 128, 8
        $region100: #{transformer_forward.1} parent=11 // pred_fallthru
          _
        // Predicated region
        $region101: #{transformer_forward.1} parent=11 // pred_check
          %p1229 = pneg %p647
        $region102: #{transformer_forward.1} parent=11 // pred_check_branch
          %1231 = sbr.rel (%p1229) target = $region104
        $region103: #{transformer_forward.1} parent=11 // pred_region
          %1233 = vsyncadd [#allocation27], 0
          %s1234 = sshll.u32 %s49, 4
          %s1235 = int_to_ptr.hbm [resolvable:$true] %s1234
          %s1236 = sshll.u32 [#allocation26], 4
          %s1237 = int_to_ptr.vmem [resolvable:$true] %s1236
          %1242 = dma.hbm_to_vmem [thread:$0]  %s1235, 32, %s1237, [#allocation27], 16, 16, 1
        $region104: #{transformer_forward.1} parent=11 // pred_fallthru
          _
        // Predicated region
        $region105: #{transformer_forward.1} parent=11 // pred_check
          %p1243 = pneg %p668
        $region106: #{transformer_forward.1} parent=11 // pred_check_branch
          %1245 = sbr.rel (%p1243) target = $region108
        $region107: #{transformer_forward.1} parent=11 // pred_region
          %1247 = vsyncadd [#allocation27], 0
          %s1248 = sshll.u32 %s51, 4
          %s1249 = int_to_ptr.hbm [resolvable:$true] %s1248
          %s1250 = sshll.u32 [#allocation28], 4
          %s1251 = int_to_ptr.vmem [resolvable:$true] %s1250
          %1256 = dma.hbm_to_vmem [thread:$0]  %s1249, 1024, %s1251, [#allocation27], 128, 128, 8
        $region108: #{transformer_forward.1} parent=11 // pred_fallthru
          _
        // Predicated region
        $region109: #{transformer_forward.1} parent=11 // pred_check
          %p1257 = pneg %p689
        $region110: #{transformer_forward.1} parent=11 // pred_check_branch
          %1259 = sbr.rel (%p1257) target = $region112
        $region111: #{transformer_forward.1} parent=11 // pred_region
          %1261 = vsyncadd [#allocation30], 0
          %s1262 = sshll.u32 %s53, 4
          %s1263 = int_to_ptr.hbm [resolvable:$true] %s1262
          %s1264 = sshll.u32 [#allocation29], 4
          %s1265 = int_to_ptr.vmem [resolvable:$true] %s1264
          %1270 = dma.hbm_to_vmem [thread:$0]  %s1263, 32, %s1265, [#allocation30], 16, 16, 1
        $region112: #{transformer_forward.1} parent=11 // pred_fallthru
          _
        // Predicated region
        $region113: #{transformer_forward.1} parent=11 // pred_check
          %p1271 = pneg %p710
        $region114: #{transformer_forward.1} parent=11 // pred_check_branch
          %1273 = sbr.rel (%p1271) target = $region116
        $region115: #{transformer_forward.1} parent=11 // pred_region
          %1275 = vsyncadd [#allocation30], 0
          %s1276 = sshll.u32 %s55, 4
          %s1277 = int_to_ptr.hbm [resolvable:$true] %s1276
          %s1278 = sshll.u32 [#allocation31], 4
          %s1279 = int_to_ptr.vmem [resolvable:$true] %s1278
          %1284 = dma.hbm_to_vmem [thread:$0]  %s1277, 1024, %s1279, [#allocation30], 128, 128, 8
        $region116: #{transformer_forward.1} parent=11 // pred_fallthru
          _
        // Predicated region
        $region117: #{transformer_forward.1} parent=11 // pred_check
          %p1285 = pneg %p731
        $region118: #{transformer_forward.1} parent=11 // pred_check_branch
          %1287 = sbr.rel (%p1285) target = $region120
        $region119: #{transformer_forward.1} parent=11 // pred_region
          %1289 = vsyncadd [#allocation33], 0
          %s1290 = sshll.u32 %s57, 4
          %s1291 = int_to_ptr.hbm [resolvable:$true] %s1290
          %s1292 = sshll.u32 [#allocation32], 4
          %s1293 = int_to_ptr.vmem [resolvable:$true] %s1292
          %1298 = dma.hbm_to_vmem [thread:$0]  %s1291, 32, %s1293, [#allocation33], 16, 16, 1
        $region120: #{transformer_forward.1} parent=11 // pred_fallthru
          _
        // Predicated region
        $region121: #{transformer_forward.1} parent=11 // pred_check
          %p1299 = pneg %p752
        $region122: #{transformer_forward.1} parent=11 // pred_check_branch
          %1301 = sbr.rel (%p1299) target = $region124
        $region123: #{transformer_forward.1} parent=11 // pred_region
          %1303 = vsyncadd [#allocation33], 0
          %s1304 = sshll.u32 %s59, 4
          %s1305 = int_to_ptr.hbm [resolvable:$true] %s1304
          %s1306 = sshll.u32 [#allocation34], 4
          %s1307 = int_to_ptr.vmem [resolvable:$true] %s1306
          %1312 = dma.hbm_to_vmem [thread:$0]  %s1305, 32, %s1307, [#allocation33], 16, 16, 1
        $region124: #{transformer_forward.1} parent=11 // pred_fallthru
          _
        // Predicated region
        $region125: #{transformer_forward.1} parent=11 // pred_check
          %p1313 = pneg %p773
        $region126: #{transformer_forward.1} parent=11 // pred_check_branch
          %1315 = sbr.rel (%p1313) target = $region128
        $region127: #{transformer_forward.1} parent=11 // pred_region
          %1317 = vsyncadd [#allocation36], 0
          %s1318 = sshll.u32 %s61, 4
          %s1319 = int_to_ptr.hbm [resolvable:$true] %s1318
          %s1320 = sshll.u32 [#allocation35], 4
          %s1321 = int_to_ptr.vmem [resolvable:$true] %s1320
          %1326 = dma.hbm_to_vmem [thread:$0]  %s1319, 32, %s1321, [#allocation36], 16, 16, 1
        $region128: #{transformer_forward.1} parent=11 // pred_fallthru
          _
        // Predicated region
        $region129: #{transformer_forward.1} parent=11 // pred_check
          %p1327 = pneg %p794
        $region130: #{transformer_forward.1} parent=11 // pred_check_branch
          %1329 = sbr.rel (%p1327) target = $region132
        $region131: #{transformer_forward.1} parent=11 // pred_region
          %1331 = vsyncadd [#allocation36], 0
          %s1332 = sshll.u32 %s63, 4
          %s1333 = int_to_ptr.hbm [resolvable:$true] %s1332
          %s1334 = sshll.u32 [#allocation37], 4
          %s1335 = int_to_ptr.vmem [resolvable:$true] %s1334
          %1340 = dma.hbm_to_vmem [thread:$0]  %s1333, 1024, %s1335, [#allocation36], 128, 128, 8
        $region132: #{transformer_forward.1} parent=11 // pred_fallthru
          _
        // Predicated region
        $region133: #{transformer_forward.1} parent=11 // pred_check
          %p1341 = pneg %p815
        $region134: #{transformer_forward.1} parent=11 // pred_check_branch
          %1343 = sbr.rel (%p1341) target = $region136
        $region135: #{transformer_forward.1} parent=11 // pred_region
          %1345 = vsyncadd [#allocation39], 0
          %s1346 = sshll.u32 %s65, 4
          %s1347 = int_to_ptr.hbm [resolvable:$true] %s1346
          %s1348 = sshll.u32 [#allocation38], 4
          %s1349 = int_to_ptr.vmem [resolvable:$true] %s1348
          %1354 = dma.hbm_to_vmem [thread:$0]  %s1347, 32, %s1349, [#allocation39], 16, 16, 1
        $region136: #{transformer_forward.1} parent=11 // pred_fallthru
          _
        // Predicated region
        $region137: #{transformer_forward.1} parent=11 // pred_check
          %p1355 = pneg %p836
        $region138: #{transformer_forward.1} parent=11 // pred_check_branch
          %1357 = sbr.rel (%p1355) target = $region140
        $region139: #{transformer_forward.1} parent=11 // pred_region
          _
        $region140: #{transformer_forward.1} parent=11 // pred_fallthru
          _
        // Predicated region
        $region141: #{transformer_forward.1} parent=11 // pred_check
          %p1358 = pneg %p857
        $region142: #{transformer_forward.1} parent=11 // pred_check_branch
          %1360 = sbr.rel (%p1358) target = $region144
        $region143: #{transformer_forward.1} parent=11 // pred_region
          %1362 = vsyncadd [#allocation39], 0
          %s1363 = sshll.u32 %s69, 4
          %s1364 = int_to_ptr.hbm [resolvable:$true] %s1363
          %s1365 = sshll.u32 [#allocation40], 4
          %s1366 = int_to_ptr.vmem [resolvable:$true] %s1365
          %1371 = dma.hbm_to_vmem [thread:$0]  %s1364, 32, %s1366, [#allocation39], 16, 16, 1
        $region144: #{transformer_forward.1} parent=11 // pred_fallthru
          _
        // Predicated region
        $region145: #{transformer_forward.1} parent=11 // pred_check
          %p1372 = pneg %p878
        $region146: #{transformer_forward.1} parent=11 // pred_check_branch
          %1374 = sbr.rel (%p1372) target = $region148
        $region147: #{transformer_forward.1} parent=11 // pred_region
          %1376 = vsyncadd [#allocation42], 0
          %s1377 = sshll.u32 %s71, 4
          %s1378 = int_to_ptr.hbm [resolvable:$true] %s1377
          %s1379 = sshll.u32 [#allocation41], 4
          %s1380 = int_to_ptr.vmem [resolvable:$true] %s1379
          %1385 = dma.hbm_to_vmem [thread:$0]  %s1378, 32, %s1380, [#allocation42], 16, 16, 1
        $region148: #{transformer_forward.1} parent=11 // pred_fallthru
          _
        // Predicated region
        $region149: #{transformer_forward.1} parent=11 // pred_check
          %p1386 = pneg %p899
        $region150: #{transformer_forward.1} parent=11 // pred_check_branch
          %1388 = sbr.rel (%p1386) target = $region152
        $region151: #{transformer_forward.1} parent=11 // pred_region
          %1390 = vsyncadd [#allocation42], 0
          %s1391 = sshll.u32 %s73, 4
          %s1392 = int_to_ptr.hbm [resolvable:$true] %s1391
          %s1393 = sshll.u32 [#allocation43], 4
          %s1394 = int_to_ptr.vmem [resolvable:$true] %s1393
          %1399 = dma.hbm_to_vmem [thread:$0]  %s1392, 32, %s1394, [#allocation42], 16, 16, 1
        $region152: #{transformer_forward.1} parent=11 // pred_fallthru
          _
        // Predicated region
        $region153: #{transformer_forward.1} parent=11 // pred_check
          %p1400 = pneg %p920
        $region154: #{transformer_forward.1} parent=11 // pred_check_branch
          %1402 = sbr.rel (%p1400) target = $region156
        $region155: #{transformer_forward.1} parent=11 // pred_region
          %1404 = vsyncadd [#allocation45], 0
          %s1406 = sshll.u32 %s75, 4
          %s1407 = int_to_ptr.hbm [resolvable:$true] %s1406
          %s1408 = sshll.u32 [#allocation44], 4
          %s1409 = int_to_ptr.vmem [resolvable:$true] %s1408
          %1411 = dma.hbm_to_vmem [thread:$0]  %s1407, 16, %s1409, [#allocation45]
        $region156: #{transformer_forward.1} parent=11 // pred_fallthru
          _
        // Predicated region
        $region157: #{transformer_forward.1} parent=11 // pred_check
          %p1412 = pneg %p941
        $region158: #{transformer_forward.1} parent=11 // pred_check_branch
          %1414 = sbr.rel (%p1412) target = $region160
        $region159: #{transformer_forward.1} parent=11 // pred_region
          %1416 = vsyncadd [#allocation45], 0
          %s1418 = sshll.u32 %s77, 4
          %s1419 = int_to_ptr.hbm [resolvable:$true] %s1418
          %s1420 = sshll.u32 [#allocation46], 4
          %s1421 = int_to_ptr.vmem [resolvable:$true] %s1420
          %1423 = dma.hbm_to_vmem [thread:$0]  %s1419, 16, %s1421, [#allocation45]
        $region160: #{transformer_forward.1} parent=11 // pred_fallthru
          _
        // Predicated region
        $region161: #{transformer_forward.1} parent=11 // pred_check
          %p1424 = pneg %p962
        $region162: #{transformer_forward.1} parent=11 // pred_check_branch
          %1426 = sbr.rel (%p1424) target = $region164
        $region163: #{transformer_forward.1} parent=11 // pred_region
          _
        $region164: #{transformer_forward.1} parent=11 // pred_fallthru
          _
        // Predicated region
        $region165: #{transformer_forward.1} parent=11 // pred_check
          %p1427 = pneg %p983
        $region166: #{transformer_forward.1} parent=11 // pred_check_branch
          %1429 = sbr.rel (%p1427) target = $region168
        $region167: #{transformer_forward.1} parent=11 // pred_region
          %1431 = vsyncadd [#allocation48], 0
          %s1433 = sshll.u32 %s81, 4
          %s1434 = int_to_ptr.hbm [resolvable:$true] %s1433
          %s1435 = sshll.u32 [#allocation47], 4
          %s1436 = int_to_ptr.vmem [resolvable:$true] %s1435
          %1438 = dma.hbm_to_vmem [thread:$0]  %s1434, 16, %s1436, [#allocation48]
        $region168: #{transformer_forward.1} parent=11 // pred_fallthru
          _
      $region12: #{transformer_forward.1} parent=5 // pred_fallthru
        _
      %p1439 = scmp.lt.s32.totalorder %s112, 2
      // Predicated region
      $region169: #{transformer_forward.1} parent=5 // pred_check
        %p1440 = pneg %p1439
      $region170: #{transformer_forward.1} parent=5 // pred_check_branch
        %1442 = sbr.rel (%p1440) target = $region172
      $region171: #{transformer_forward.1} parent=5 // pred_region
        // Predicated region
        $region173: #{transformer_forward.1} parent=171 // pred_check
          %p1443 = pneg %p132
        $region174: #{transformer_forward.1} parent=171 // pred_check_branch
          %1445 = sbr.rel (%p1443) target = $region176
        $region175: #{transformer_forward.1} parent=171 // pred_region
          %s1446 = sand.u32 %s122, 1
          %s1447 = scalar_lea.sflag [#allocation3], %s1446
          %s1448 = sand.u32 %s122, 1
          %s1449 = smul.addr %s1448, 8
          %s1450 = scalar_lea.vmem [#allocation2], %s1449
          %1452 = vsyncadd %s1447, 0
          %s1453 = smul.addr %s112, 8
          %s1454 = scalar_lea.hbm %s1, %s1453
          %s1456 = sshll.u32 %s1454, 4
          %s1457 = int_to_ptr.hbm [resolvable:$true] %s1456
          %s1458 = sshll.u32 %s1450, 4
          %s1459 = int_to_ptr.vmem [resolvable:$true] %s1458
          %1461 = dma.hbm_to_vmem [thread:$0]  %s1457, 128, %s1459, %s1447
        $region176: #{transformer_forward.1} parent=171 // pred_fallthru
          _
        // Predicated region
        $region177: #{transformer_forward.1} parent=171 // pred_check
          %p1462 = pneg %p158
        $region178: #{transformer_forward.1} parent=171 // pred_check_branch
          %1464 = sbr.rel (%p1462) target = $region180
        $region179: #{transformer_forward.1} parent=171 // pred_region
          %s1465 = sand.u32 %s112, 1
          %s1466 = scalar_lea.sflag [#allocation6], %s1465
          %s1467 = sand.u32 %s148, 1
          %s1468 = smul.addr %s1467, 8
          %s1469 = scalar_lea.vmem [#allocation5], %s1468
          %1471 = vsyncadd %s1466, 0
          %s1472 = smul.addr %s112, 8
          %s1473 = scalar_lea.hbm %s3, %s1472
          %s1475 = sshll.u32 %s1473, 4
          %s1476 = int_to_ptr.hbm [resolvable:$true] %s1475
          %s1477 = sshll.u32 %s1469, 4
          %s1478 = int_to_ptr.vmem [resolvable:$true] %s1477
          %1480 = dma.hbm_to_vmem [thread:$0]  %s1476, 128, %s1478, %s1466
        $region180: #{transformer_forward.1} parent=171 // pred_fallthru
          _
      $region172: #{transformer_forward.1} parent=5 // pred_fallthru
        _
      %p1481 = scmp.le.s32.totalorder 1, %s112
      %p1482 = scmp.lt.s32.totalorder %s112, 3
      %p1483 = pnand %p1481, %p1482
      %p1484 = pneg %p1483
      // Predicated region
      $region181: #{transformer_forward.1} parent=5 // pred_check
        _
      $region182: #{transformer_forward.1} parent=5 // pred_check_branch
        %1486 = sbr.rel (%p1483) target = $region184
      $region183: #{transformer_forward.1} parent=5 // pred_region
        %s1487 = ssub.s32 %s112, 1
        %s1488 = sand.u32 %s125, 1
        %s1489 = scalar_lea.sflag [#allocation3], %s1488
        %s1490 = sand.u32 %s125, 1
        %s1491 = smul.addr %s1490, 8
        %s1492 = scalar_lea.vmem [#allocation2], %s1491
        // Predicated region
        $region185: #{transformer_forward.1} parent=183 // pred_check
          %p1493 = pneg %p138
        $region186: #{transformer_forward.1} parent=183 // pred_check_branch
          %1495 = sbr.rel (%p1493) target = $region188
        $region187: #{transformer_forward.1} parent=183 // pred_region
          %1497 = dma.done %s1489, 128
        $region188: #{transformer_forward.1} parent=183 // pred_fallthru
          _
        %s1498 = sand.u32 %s117, 1
        %s1499 = scalar_lea.sflag [#allocation6], %s1498
        %s1500 = sand.u32 %s151, 1
        %s1501 = smul.addr %s1500, 8
        %s1502 = scalar_lea.vmem [#allocation5], %s1501
        // Predicated region
        $region189: #{transformer_forward.1} parent=183 // pred_check
          %p1503 = pneg %p164
        $region190: #{transformer_forward.1} parent=183 // pred_check_branch
          %1505 = sbr.rel (%p1503) target = $region192
        $region191: #{transformer_forward.1} parent=183 // pred_region
          %1507 = dma.done %s1499, 128
        $region192: #{transformer_forward.1} parent=183 // pred_fallthru
          _
        // Predicated region
        $region193: #{transformer_forward.1} parent=183 // pred_check
          %p1508 = pneg %p290
        $region194: #{transformer_forward.1} parent=183 // pred_check_branch
          %1510 = sbr.rel (%p1508) target = $region196
        $region195: #{transformer_forward.1} parent=183 // pred_region
          %1512 = dma.done [#allocation6], 32
        $region196: #{transformer_forward.1} parent=183 // pred_fallthru
          _
        // Predicated region
        $region197: #{transformer_forward.1} parent=183 // pred_check
          %p1513 = pneg %p311
        $region198: #{transformer_forward.1} parent=183 // pred_check_branch
          %1515 = sbr.rel (%p1513) target = $region200
        $region199: #{transformer_forward.1} parent=183 // pred_region
          %1517 = dma.done [#allocation9], 32
        $region200: #{transformer_forward.1} parent=183 // pred_fallthru
          _
        // Predicated region
        $region201: #{transformer_forward.1} parent=183 // pred_check
          %p1518 = pneg %p353
        $region202: #{transformer_forward.1} parent=183 // pred_check_branch
          %1520 = sbr.rel (%p1518) target = $region204
        $region203: #{transformer_forward.1} parent=183 // pred_region
          %1522 = dma.done [#allocation9], 32
        $region204: #{transformer_forward.1} parent=183 // pred_fallthru
          _
        // Predicated region
        $region205: #{transformer_forward.1} parent=183 // pred_check
          %p1523 = pneg %p395
        $region206: #{transformer_forward.1} parent=183 // pred_check_branch
          %1525 = sbr.rel (%p1523) target = $region208
        $region207: #{transformer_forward.1} parent=183 // pred_region
          %1527 = dma.done [#allocation12], 32
        $region208: #{transformer_forward.1} parent=183 // pred_fallthru
          _
        // Predicated region
        $region209: #{transformer_forward.1} parent=183 // pred_check
          %p1528 = pneg %p416
        $region210: #{transformer_forward.1} parent=183 // pred_check_branch
          %1530 = sbr.rel (%p1528) target = $region212
        $region211: #{transformer_forward.1} parent=183 // pred_region
          %1532 = dma.done [#allocation12], 32
        $region212: #{transformer_forward.1} parent=183 // pred_fallthru
          _
        // Predicated region
        $region213: #{transformer_forward.1} parent=183 // pred_check
          %p1533 = pneg %p437
        $region214: #{transformer_forward.1} parent=183 // pred_check_branch
          %1535 = sbr.rel (%p1533) target = $region216
        $region215: #{transformer_forward.1} parent=183 // pred_region
          %1537 = dma.done [#allocation15], 32
        $region216: #{transformer_forward.1} parent=183 // pred_fallthru
          _
        // Predicated region
        $region217: #{transformer_forward.1} parent=183 // pred_check
          %p1538 = pneg %p458
        $region218: #{transformer_forward.1} parent=183 // pred_check_branch
          %1540 = sbr.rel (%p1538) target = $region220
        $region219: #{transformer_forward.1} parent=183 // pred_region
          %1542 = dma.done [#allocation15], 16
        $region220: #{transformer_forward.1} parent=183 // pred_fallthru
          _
        // Predicated region
        $region221: #{transformer_forward.1} parent=183 // pred_check
          %p1543 = pneg %p479
        $region222: #{transformer_forward.1} parent=183 // pred_check_branch
          %1545 = sbr.rel (%p1543) target = $region224
        $region223: #{transformer_forward.1} parent=183 // pred_region
          %1547 = dma.done [#allocation18], 16
        $region224: #{transformer_forward.1} parent=183 // pred_fallthru
          _
        // Predicated region
        $region225: #{transformer_forward.1} parent=183 // pred_check
          %p1548 = pneg %p521
        $region226: #{transformer_forward.1} parent=183 // pred_check_branch
          %1550 = sbr.rel (%p1548) target = $region228
        $region227: #{transformer_forward.1} parent=183 // pred_region
          %1552 = dma.done [#allocation18], 32
        $region228: #{transformer_forward.1} parent=183 // pred_fallthru
          _
        // Predicated region
        $region229: #{transformer_forward.1} parent=183 // pred_check
          %p1553 = pneg %p563
        $region230: #{transformer_forward.1} parent=183 // pred_check_branch
          %1555 = sbr.rel (%p1553) target = $region232
        $region231: #{transformer_forward.1} parent=183 // pred_region
          %1557 = dma.done [#allocation21], 32
        $region232: #{transformer_forward.1} parent=183 // pred_fallthru
          _
        // Predicated region
        $region233: #{transformer_forward.1} parent=183 // pred_check
          %p1558 = pneg %p584
        $region234: #{transformer_forward.1} parent=183 // pred_check_branch
          %1560 = sbr.rel (%p1558) target = $region236
        $region235: #{transformer_forward.1} parent=183 // pred_region
          %1562 = dma.done [#allocation21], 32
        $region236: #{transformer_forward.1} parent=183 // pred_fallthru
          _
        // Predicated region
        $region237: #{transformer_forward.1} parent=183 // pred_check
          %p1563 = pneg %p605
        $region238: #{transformer_forward.1} parent=183 // pred_check_branch
          %1565 = sbr.rel (%p1563) target = $region240
        $region239: #{transformer_forward.1} parent=183 // pred_region
          %1567 = dma.done [#allocation24], 32
        $region240: #{transformer_forward.1} parent=183 // pred_fallthru
          _
        // Predicated region
        $region241: #{transformer_forward.1} parent=183 // pred_check
          %p1568 = pneg %p626
        $region242: #{transformer_forward.1} parent=183 // pred_check_branch
          %1570 = sbr.rel (%p1568) target = $region244
        $region243: #{transformer_forward.1} parent=183 // pred_region
          %1572 = dma.done [#allocation24], 1024
        $region244: #{transformer_forward.1} parent=183 // pred_fallthru
          _
        // Predicated region
        $region245: #{transformer_forward.1} parent=183 // pred_check
          %p1573 = pneg %p647
        $region246: #{transformer_forward.1} parent=183 // pred_check_branch
          %1575 = sbr.rel (%p1573) target = $region248
        $region247: #{transformer_forward.1} parent=183 // pred_region
          %1577 = dma.done [#allocation27], 32
        $region248: #{transformer_forward.1} parent=183 // pred_fallthru
          _
        // Predicated region
        $region249: #{transformer_forward.1} parent=183 // pred_check
          %p1578 = pneg %p668
        $region250: #{transformer_forward.1} parent=183 // pred_check_branch
          %1580 = sbr.rel (%p1578) target = $region252
        $region251: #{transformer_forward.1} parent=183 // pred_region
          %1582 = dma.done [#allocation27], 1024
        $region252: #{transformer_forward.1} parent=183 // pred_fallthru
          _
        // Predicated region
        $region253: #{transformer_forward.1} parent=183 // pred_check
          %p1583 = pneg %p689
        $region254: #{transformer_forward.1} parent=183 // pred_check_branch
          %1585 = sbr.rel (%p1583) target = $region256
        $region255: #{transformer_forward.1} parent=183 // pred_region
          %1587 = dma.done [#allocation30], 32
        $region256: #{transformer_forward.1} parent=183 // pred_fallthru
          _
        // Predicated region
        $region257: #{transformer_forward.1} parent=183 // pred_check
          %p1588 = pneg %p710
        $region258: #{transformer_forward.1} parent=183 // pred_check_branch
          %1590 = sbr.rel (%p1588) target = $region260
        $region259: #{transformer_forward.1} parent=183 // pred_region
          %1592 = dma.done [#allocation30], 1024
        $region260: #{transformer_forward.1} parent=183 // pred_fallthru
          _
        // Predicated region
        $region261: #{transformer_forward.1} parent=183 // pred_check
          %p1593 = pneg %p731
        $region262: #{transformer_forward.1} parent=183 // pred_check_branch
          %1595 = sbr.rel (%p1593) target = $region264
        $region263: #{transformer_forward.1} parent=183 // pred_region
          %1597 = dma.done [#allocation33], 32
        $region264: #{transformer_forward.1} parent=183 // pred_fallthru
          _
        // Predicated region
        $region265: #{transformer_forward.1} parent=183 // pred_check
          %p1598 = pneg %p752
        $region266: #{transformer_forward.1} parent=183 // pred_check_branch
          %1600 = sbr.rel (%p1598) target = $region268
        $region267: #{transformer_forward.1} parent=183 // pred_region
          %1602 = dma.done [#allocation33], 32
        $region268: #{transformer_forward.1} parent=183 // pred_fallthru
          _
        // Predicated region
        $region269: #{transformer_forward.1} parent=183 // pred_check
          %p1603 = pneg %p773
        $region270: #{transformer_forward.1} parent=183 // pred_check_branch
          %1605 = sbr.rel (%p1603) target = $region272
        $region271: #{transformer_forward.1} parent=183 // pred_region
          %1607 = dma.done [#allocation36], 32
        $region272: #{transformer_forward.1} parent=183 // pred_fallthru
          _
        // Predicated region
        $region273: #{transformer_forward.1} parent=183 // pred_check
          %p1608 = pneg %p794
        $region274: #{transformer_forward.1} parent=183 // pred_check_branch
          %1610 = sbr.rel (%p1608) target = $region276
        $region275: #{transformer_forward.1} parent=183 // pred_region
          %1612 = dma.done [#allocation36], 1024
        $region276: #{transformer_forward.1} parent=183 // pred_fallthru
          _
        // Predicated region
        $region277: #{transformer_forward.1} parent=183 // pred_check
          %p1613 = pneg %p815
        $region278: #{transformer_forward.1} parent=183 // pred_check_branch
          %1615 = sbr.rel (%p1613) target = $region280
        $region279: #{transformer_forward.1} parent=183 // pred_region
          %1617 = dma.done [#allocation39], 32
        $region280: #{transformer_forward.1} parent=183 // pred_fallthru
          _
        // Predicated region
        $region281: #{transformer_forward.1} parent=183 // pred_check
          %p1618 = pneg %p857
        $region282: #{transformer_forward.1} parent=183 // pred_check_branch
          %1620 = sbr.rel (%p1618) target = $region284
        $region283: #{transformer_forward.1} parent=183 // pred_region
          %1622 = dma.done [#allocation39], 32
        $region284: #{transformer_forward.1} parent=183 // pred_fallthru
          _
        // Predicated region
        $region285: #{transformer_forward.1} parent=183 // pred_check
          %p1623 = pneg %p878
        $region286: #{transformer_forward.1} parent=183 // pred_check_branch
          %1625 = sbr.rel (%p1623) target = $region288
        $region287: #{transformer_forward.1} parent=183 // pred_region
          %1627 = dma.done [#allocation42], 32
        $region288: #{transformer_forward.1} parent=183 // pred_fallthru
          _
        // Predicated region
        $region289: #{transformer_forward.1} parent=183 // pred_check
          %p1628 = pneg %p899
        $region290: #{transformer_forward.1} parent=183 // pred_check_branch
          %1630 = sbr.rel (%p1628) target = $region292
        $region291: #{transformer_forward.1} parent=183 // pred_region
          %1632 = dma.done [#allocation42], 32
        $region292: #{transformer_forward.1} parent=183 // pred_fallthru
          _
        // Predicated region
        $region293: #{transformer_forward.1} parent=183 // pred_check
          %p1633 = pneg %p920
        $region294: #{transformer_forward.1} parent=183 // pred_check_branch
          %1635 = sbr.rel (%p1633) target = $region296
        $region295: #{transformer_forward.1} parent=183 // pred_region
          %1637 = dma.done [#allocation45], 16
        $region296: #{transformer_forward.1} parent=183 // pred_fallthru
          _
        // Predicated region
        $region297: #{transformer_forward.1} parent=183 // pred_check
          %p1638 = pneg %p941
        $region298: #{transformer_forward.1} parent=183 // pred_check_branch
          %1640 = sbr.rel (%p1638) target = $region300
        $region299: #{transformer_forward.1} parent=183 // pred_region
          %1642 = dma.done [#allocation45], 16
        $region300: #{transformer_forward.1} parent=183 // pred_fallthru
          _
        // Predicated region
        $region301: #{transformer_forward.1} parent=183 // pred_check
          %p1643 = pneg %p983
        $region302: #{transformer_forward.1} parent=183 // pred_check_branch
          %1645 = sbr.rel (%p1643) target = $region304
        $region303: #{transformer_forward.1} parent=183 // pred_region
          %1647 = dma.done [#allocation48], 16
        $region304: #{transformer_forward.1} parent=183 // pred_fallthru
          _
        %s1648 = sand.u32 %s125, 1
        %s1649 = scalar_lea.sflag [#allocation3], %s1648
        %s1650 = sand.u32 %s125, 1
        %s1651 = smul.addr %s1650, 8
        %s1652 = scalar_lea.vmem [#allocation2], %s1651
        %p1653 = pneg %p138
        %p1654 = pneg %p135
        %s1655 = sand.u32 %s117, 1
        %s1656 = scalar_lea.sflag [#allocation6], %s1655
        %s1657 = sand.u32 %s151, 1
        %s1658 = smul.addr %s1657, 8
        %s1659 = scalar_lea.vmem [#allocation5], %s1658
        %p1660 = pneg %p164
        %p1661 = pneg %p161
        %p1662 = pneg %p185
        %p1663 = pneg %p182
        %p1664 = pneg %p206
        %p1665 = pneg %p203
        %p1666 = pneg %p227
        %p1667 = pneg %p224
        %p1668 = pneg %p248
        %p1669 = pneg %p245
        %p1670 = pneg %p269
        %p1671 = pneg %p266
        %p1672 = pneg %p290
        %p1673 = pneg %p287
        %p1674 = pneg %p311
        %p1675 = pneg %p308
        %p1676 = pneg %p332
        %p1677 = pneg %p329
        %p1678 = pneg %p353
        %p1679 = pneg %p350
        %p1680 = pneg %p374
        %p1681 = pneg %p371
        %p1682 = pneg %p395
        %p1683 = pneg %p392
        %p1684 = pneg %p416
        %p1685 = pneg %p413
        %p1686 = pneg %p437
        %p1687 = pneg %p434
        %p1688 = pneg %p458
        %p1689 = pneg %p455
        %p1690 = pneg %p479
        %p1691 = pneg %p476
        %p1692 = pneg %p500
        %p1693 = pneg %p497
        %p1694 = pneg %p521
        %p1695 = pneg %p518
        %p1696 = pneg %p542
        %p1697 = pneg %p539
        %p1698 = pneg %p563
        %p1699 = pneg %p560
        %p1700 = pneg %p584
        %p1701 = pneg %p581
        %p1702 = pneg %p605
        %p1703 = pneg %p602
        %p1704 = pneg %p626
        %p1705 = pneg %p623
        %p1706 = pneg %p647
        %p1707 = pneg %p644
        %p1708 = pneg %p668
        %p1709 = pneg %p665
        %p1710 = pneg %p689
        %p1711 = pneg %p686
        %p1712 = pneg %p710
        %p1713 = pneg %p707
        %p1714 = pneg %p731
        %p1715 = pneg %p728
        %p1716 = pneg %p752
        %p1717 = pneg %p749
        %p1718 = pneg %p773
        %p1719 = pneg %p770
        %p1720 = pneg %p794
        %p1721 = pneg %p791
        %p1722 = pneg %p815
        %p1723 = pneg %p812
        %p1724 = pneg %p836
        %p1725 = pneg %p833
        %p1726 = pneg %p857
        %p1727 = pneg %p854
        %p1728 = pneg %p878
        %p1729 = pneg %p875
        %p1730 = pneg %p899
        %p1731 = pneg %p896
        %p1732 = pneg %p920
        %p1733 = pneg %p917
        %p1734 = pneg %p941
        %p1735 = pneg %p938
        %p1736 = pneg %p962
        %p1737 = pneg %p959
        %p1738 = pneg %p983
        %p1739 = pneg %p980
        %p1740 = pneg %p1009
        %p1741 = pneg %p1006
        %s1742 = sand.u32 %s996, 1
        %s1743 = scalar_lea.sflag [#allocation4], %s1742
        %s1744 = sand.u32 %s996, 1
        %s1745 = smul.addr %s1744, 8
        %s1746 = scalar_lea.vmem [#allocation49], %s1745
        %v1747 = vld [vmem:[%s5] sm:$0xff]
        %v1748 = vld [vmem:[%s5 + $0x8] sm:$0xff]
        %v1749 = vld [vmem:[%s5 + $0x10] sm:$0xff]
        %v1750 = vld [vmem:[%s5 + $0x18] sm:$0xff]
        %v1751 = vld [vmem:[%s5 + $0x20] sm:$0xff]
        %v1752 = vld [vmem:[%s5 + $0x28] sm:$0xff]
        %v1753 = vld [vmem:[%s5 + $0x30] sm:$0xff]
        %v1754 = vld [vmem:[%s5 + $0x38] sm:$0xff]
        %v1755 = vld [vmem:[%s1492] sm:$0xff]
        %v1756 = vld [vmem:[%s7] sm:$0xff]
        %v1757 = vld [vmem:[%s7 + $0x8] sm:$0xff]
        %v1758 = vld [vmem:[%s7 + $0x10] sm:$0xff]
        %v1759 = vld [vmem:[%s7 + $0x18] sm:$0xff]
        %v1760 = vld [vmem:[%s9] sm:$0x1]
        %v1761 = vld [vmem:[%s11] sm:$0xff]
        %v1762 = vld [vmem:[%s11 + $0x8] sm:$0xff]
        %v1763 = vld [vmem:[%s11 + $0x10] sm:$0xff]
        %v1764 = vld [vmem:[%s11 + $0x18] sm:$0xff]
        %v1765 = vld [vmem:[%s13] sm:$0x1]
        %v1767 = vperm.slane %v1760, 0
        %vm1769 = vcmask 261120
        %v1771 = vsel %vm1769, %v1755, 0
        %1773 = vmatpush.msra.mxu0 0.0
        %1774 = vmatpush.msra.mxu0 0.0
        %1775 = vmatpush.msra.mxu0 0.0
        %1776 = vmatpush.msra.mxu0 0.0
        %1777 = vmatpush.msra.mxu0 0.0
        %1778 = vmatpush.msra.mxu0 0.0
        %1779 = vmatpush.msra.mxu0 0.0
        %1780 = vmatpush.msra.mxu0 0.0
        %1781 = vmatpush.msra.mxu0 0.0
        %1782 = vmatpush.msra.mxu0 0.0
        %1783 = vmatpush.msra.mxu0 0.0
        %1784 = vmatpush.msra.mxu0 0.0
        %1785 = vmatpush.msra.mxu0 %v1759
        %1786 = vmatpush.msra.mxu0 %v1758
        %1787 = vmatpush.msra.mxu0 %v1757
        %1788 = vmatpush.msra.mxu0 %v1756
        %1789 = vmatmul.f32.gmra.mxu0 %v1771
        %v1790 = vpop.f32.mrf.mxu0
        %v1791 = vadd.f32 %v1767, %v1790
        %1792 = vdwg.mxu0
        %1794 = vrot.lane.b32.xlu0 %v1791, 120
        %v1795 = vpop.permute.xlu0 %1794
        %1797 = vrot.lane.b32.xlu0 %v1791, 112
        %v1798 = vpop.permute.xlu0 %1797
        %1800 = vrot.lane.b32.xlu0 %v1791, 104
        %v1801 = vpop.permute.xlu0 %1800
        %v1803 = vrot.slane %v1798, 4
        %vm1804 = vcmask 1047556
        %v1805 = vsel %vm1804, %v1803, %v1791
        %v1806 = vrot.slane %v1791, 4
        %v1807 = vsel %vm1804, %v1798, %v1806
        %v1809 = vunpack.c.l.s4 1983009808
        %v1810 = vunpack.c.0.s8 %v1809
        %v1811 = vperm.slane %v1805, %v1810
        %v1813 = vunpack.c.l.s4 1983009808
        %v1814 = vunpack.c.0.s8 %v1813
        %v1815 = vperm.slane %v1807, %v1814
        %v1816 = vrot.slane %v1801, 4
        %v1817 = vsel %vm1804, %v1816, %v1795
        %v1818 = vrot.slane %v1795, 4
        %v1819 = vsel %vm1804, %v1801, %v1818
        %v1821 = vunpack.c.l.s4 1983009808
        %v1822 = vunpack.c.0.s8 %v1821
        %v1823 = vperm.slane %v1817, %v1822
        %v1825 = vunpack.c.l.s4 1983009808
        %v1826 = vunpack.c.0.s8 %v1825
        %v1827 = vperm.slane %v1819, %v1826
        %v1828 = vrot.slane %v1823, 4
        %v1829 = vsel %vm1804, %v1828, %v1811
        %v1830 = vrot.slane %v1811, 4
        %v1831 = vsel %vm1804, %v1823, %v1830
        %v1833 = vunpack.c.l.s4 1934713408
        %v1834 = vunpack.c.0.s8 %v1833
        %v1835 = vperm.slane %v1829, %v1834
        %v1837 = vunpack.c.l.s4 1934713408
        %v1838 = vunpack.c.0.s8 %v1837
        %v1839 = vperm.slane %v1831, %v1838
        %v1840 = vrot.slane %v1827, 4
        %v1841 = vsel %vm1804, %v1840, %v1815
        %v1842 = vrot.slane %v1815, 4
        %v1843 = vsel %vm1804, %v1827, %v1842
        %v1845 = vunpack.c.l.s4 1934713408
        %v1846 = vunpack.c.0.s8 %v1845
        %v1847 = vperm.slane %v1841, %v1846
        %v1849 = vunpack.c.l.s4 1934713408
        %v1850 = vunpack.c.0.s8 %v1849
        %v1851 = vperm.slane %v1843, %v1850
        %v1852 = vrot.slane %v1835, 4
        %v1853 = vsel %vm1804, 0.0, %v1852
        %v1854 = vrot.slane %v1839, 4
        %v1855 = vsel %vm1804, 0.0, %v1854
        %v1856 = vrot.slane %v1847, 4
        %v1857 = vsel %vm1804, 0.0, %v1856
        %v1858 = vrot.slane %v1851, 4
        %v1859 = vsel %vm1804, 0.0, %v1858
        %v1860 = vsel %vm1804, %v1854, %v1835
        %v1862 = vunpack.c.l.s4 1983009808
        %v1863 = vunpack.c.0.s8 %v1862
        %v1864 = vperm.slane %v1860, %v1863
        %v1865 = vrot.slane %v1855, 4
        %v1866 = vsel %vm1804, %v1865, %v1853
        %v1868 = vunpack.c.l.s4 1983009808
        %v1869 = vunpack.c.0.s8 %v1868
        %v1870 = vperm.slane %v1866, %v1869
        %v1871 = vsel %vm1804, %v1858, %v1847
        %v1873 = vunpack.c.l.s4 1983009808
        %v1874 = vunpack.c.0.s8 %v1873
        %v1875 = vperm.slane %v1871, %v1874
        %v1876 = vrot.slane %v1859, 4
        %v1877 = vsel %vm1804, %v1876, %v1857
        %v1879 = vunpack.c.l.s4 1983009808
        %v1880 = vunpack.c.0.s8 %v1879
        %v1881 = vperm.slane %v1877, %v1880
        %v1882 = vrot.slane %v1870, 4
        %v1883 = vsel %vm1804, %v1882, %v1864
        %v1884 = vrot.slane %v1864, 4
        %v1885 = vsel %vm1804, %v1870, %v1884
        %v1887 = vunpack.c.l.s4 1934713408
        %v1888 = vunpack.c.0.s8 %v1887
        %v1889 = vperm.slane %v1883, %v1888
        %v1891 = vunpack.c.l.s4 1934713408
        %v1892 = vunpack.c.0.s8 %v1891
        %v1893 = vperm.slane %v1885, %v1892
        %v1894 = vrot.slane %v1881, 4
        %v1895 = vsel %vm1804, %v1894, %v1875
        %v1896 = vrot.slane %v1875, 4
        %v1897 = vsel %vm1804, %v1881, %v1896
        %v1899 = vunpack.c.l.s4 1934713408
        %v1900 = vunpack.c.0.s8 %v1899
        %v1901 = vperm.slane %v1895, %v1900
        %v1903 = vunpack.c.l.s4 1934713408
        %v1904 = vunpack.c.0.s8 %v1903
        %v1905 = vperm.slane %v1897, %v1904
        %v1906 = vrot.slane %v1901, 4
        %v1907 = vsel %vm1804, %v1906, %v1889
        %v1908 = vrot.slane %v1889, 4
        %v1909 = vsel %vm1804, %v1901, %v1908
        %v1910 = vrot.slane %v1905, 4
        %v1911 = vsel %vm1804, %v1910, %v1893
        %v1912 = vrot.slane %v1893, 4
        %v1913 = vsel %vm1804, %v1905, %v1912
        %1914 = vrot.lane.b32.xlu0 %v1791, 96
        %v1915 = vpop.permute.xlu0 %1914
        %1916 = vrot.lane.b32.xlu0 %v1795, 96
        %v1917 = vpop.permute.xlu0 %1916
        %1918 = vrot.lane.b32.xlu0 %v1798, 96
        %v1919 = vpop.permute.xlu0 %1918
        %1920 = vrot.lane.b32.xlu0 %v1801, 96
        %v1921 = vpop.permute.xlu0 %1920
        %v1926 = vrot.slane %v1919, 4
        %v1927 = vsel %vm1804, %v1926, %v1915
        %v1928 = vrot.slane %v1915, 4
        %v1929 = vsel %vm1804, %v1919, %v1928
        %v1931 = vunpack.c.l.s4 1983009808
        %v1932 = vunpack.c.0.s8 %v1931
        %v1933 = vperm.slane %v1927, %v1932
        %v1935 = vunpack.c.l.s4 1983009808
        %v1936 = vunpack.c.0.s8 %v1935
        %v1937 = vperm.slane %v1929, %v1936
        %v1938 = vrot.slane %v1921, 4
        %v1939 = vsel %vm1804, %v1938, %v1917
        %v1940 = vrot.slane %v1917, 4
        %v1941 = vsel %vm1804, %v1921, %v1940
        %v1943 = vunpack.c.l.s4 1983009808
        %v1944 = vunpack.c.0.s8 %v1943
        %v1945 = vperm.slane %v1939, %v1944
        %v1947 = vunpack.c.l.s4 1983009808
        %v1948 = vunpack.c.0.s8 %v1947
        %v1949 = vperm.slane %v1941, %v1948
        %v1950 = vrot.slane %v1945, 4
        %v1951 = vsel %vm1804, %v1950, %v1933
        %v1952 = vrot.slane %v1933, 4
        %v1953 = vsel %vm1804, %v1945, %v1952
        %v1955 = vunpack.c.l.s4 1934713408
        %v1956 = vunpack.c.0.s8 %v1955
        %v1957 = vperm.slane %v1951, %v1956
        %v1959 = vunpack.c.l.s4 1934713408
        %v1960 = vunpack.c.0.s8 %v1959
        %v1961 = vperm.slane %v1953, %v1960
        %v1962 = vrot.slane %v1949, 4
        %v1963 = vsel %vm1804, %v1962, %v1937
        %v1964 = vrot.slane %v1937, 4
        %v1965 = vsel %vm1804, %v1949, %v1964
        %v1967 = vunpack.c.l.s4 1934713408
        %v1968 = vunpack.c.0.s8 %v1967
        %v1969 = vperm.slane %v1963, %v1968
        %v1971 = vunpack.c.l.s4 1934713408
        %v1972 = vunpack.c.0.s8 %v1971
        %v1973 = vperm.slane %v1965, %v1972
        %v1974 = vrot.slane %v1957, 4
        %v1975 = vsel %vm1804, 0.0, %v1974
        %v1976 = vrot.slane %v1961, 4
        %v1977 = vsel %vm1804, 0.0, %v1976
        %v1978 = vrot.slane %v1969, 4
        %v1979 = vsel %vm1804, 0.0, %v1978
        %v1980 = vrot.slane %v1973, 4
        %v1981 = vsel %vm1804, 0.0, %v1980
        %v1982 = vsel %vm1804, %v1976, %v1957
        %v1984 = vunpack.c.l.s4 1983009808
        %v1985 = vunpack.c.0.s8 %v1984
        %v1986 = vperm.slane %v1982, %v1985
        %v1987 = vrot.slane %v1977, 4
        %v1988 = vsel %vm1804, %v1987, %v1975
        %v1990 = vunpack.c.l.s4 1983009808
        %v1991 = vunpack.c.0.s8 %v1990
        %v1992 = vperm.slane %v1988, %v1991
        %v1993 = vsel %vm1804, %v1980, %v1969
        %v1995 = vunpack.c.l.s4 1983009808
        %v1996 = vunpack.c.0.s8 %v1995
        %v1997 = vperm.slane %v1993, %v1996
        %v1998 = vrot.slane %v1981, 4
        %v1999 = vsel %vm1804, %v1998, %v1979
        %v2001 = vunpack.c.l.s4 1983009808
        %v2002 = vunpack.c.0.s8 %v2001
        %v2003 = vperm.slane %v1999, %v2002
        %v2004 = vrot.slane %v1992, 4
        %v2005 = vsel %vm1804, %v2004, %v1986
        %v2006 = vrot.slane %v1986, 4
        %v2007 = vsel %vm1804, %v1992, %v2006
        %v2009 = vunpack.c.l.s4 1934713408
        %v2010 = vunpack.c.0.s8 %v2009
        %v2011 = vperm.slane %v2005, %v2010
        %v2013 = vunpack.c.l.s4 1934713408
        %v2014 = vunpack.c.0.s8 %v2013
        %v2015 = vperm.slane %v2007, %v2014
        %v2016 = vrot.slane %v2003, 4
        %v2017 = vsel %vm1804, %v2016, %v1997
        %v2018 = vrot.slane %v1997, 4
        %v2019 = vsel %vm1804, %v2003, %v2018
        %v2021 = vunpack.c.l.s4 1934713408
        %v2022 = vunpack.c.0.s8 %v2021
        %v2023 = vperm.slane %v2017, %v2022
        %v2025 = vunpack.c.l.s4 1934713408
        %v2026 = vunpack.c.0.s8 %v2025
        %v2027 = vperm.slane %v2019, %v2026
        %v2028 = vrot.slane %v2023, 4
        %v2029 = vsel %vm1804, %v2028, %v2011
        %v2030 = vrot.slane %v2011, 4
        %v2031 = vsel %vm1804, %v2023, %v2030
        %v2032 = vrot.slane %v2027, 4
        %v2033 = vsel %vm1804, %v2032, %v2015
        %v2034 = vrot.slane %v2015, 4
        %v2035 = vsel %vm1804, %v2027, %v2034
        %2036 = vrot.lane.b32.xlu0 %v1791, 64
        %v2037 = vpop.permute.xlu0 %2036
        %2038 = vrot.lane.b32.xlu0 %v1795, 64
        %v2039 = vpop.permute.xlu0 %2038
        %2040 = vrot.lane.b32.xlu0 %v1798, 64
        %v2041 = vpop.permute.xlu0 %2040
        %2042 = vrot.lane.b32.xlu0 %v1801, 64
        %v2043 = vpop.permute.xlu0 %2042
        %v2048 = vrot.slane %v2041, 4
        %v2049 = vsel %vm1804, %v2048, %v2037
        %v2050 = vrot.slane %v2037, 4
        %v2051 = vsel %vm1804, %v2041, %v2050
        %v2053 = vunpack.c.l.s4 1983009808
        %v2054 = vunpack.c.0.s8 %v2053
        %v2055 = vperm.slane %v2049, %v2054
        %v2057 = vunpack.c.l.s4 1983009808
        %v2058 = vunpack.c.0.s8 %v2057
        %v2059 = vperm.slane %v2051, %v2058
        %v2060 = vrot.slane %v2043, 4
        %v2061 = vsel %vm1804, %v2060, %v2039
        %v2062 = vrot.slane %v2039, 4
        %v2063 = vsel %vm1804, %v2043, %v2062
        %v2065 = vunpack.c.l.s4 1983009808
        %v2066 = vunpack.c.0.s8 %v2065
        %v2067 = vperm.slane %v2061, %v2066
        %v2069 = vunpack.c.l.s4 1983009808
        %v2070 = vunpack.c.0.s8 %v2069
        %v2071 = vperm.slane %v2063, %v2070
        %v2072 = vrot.slane %v2067, 4
        %v2073 = vsel %vm1804, %v2072, %v2055
        %v2074 = vrot.slane %v2055, 4
        %v2075 = vsel %vm1804, %v2067, %v2074
        %v2077 = vunpack.c.l.s4 1934713408
        %v2078 = vunpack.c.0.s8 %v2077
        %v2079 = vperm.slane %v2073, %v2078
        %v2081 = vunpack.c.l.s4 1934713408
        %v2082 = vunpack.c.0.s8 %v2081
        %v2083 = vperm.slane %v2075, %v2082
        %v2084 = vrot.slane %v2071, 4
        %v2085 = vsel %vm1804, %v2084, %v2059
        %v2086 = vrot.slane %v2059, 4
        %v2087 = vsel %vm1804, %v2071, %v2086
        %v2089 = vunpack.c.l.s4 1934713408
        %v2090 = vunpack.c.0.s8 %v2089
        %v2091 = vperm.slane %v2085, %v2090
        %v2093 = vunpack.c.l.s4 1934713408
        %v2094 = vunpack.c.0.s8 %v2093
        %v2095 = vperm.slane %v2087, %v2094
        %v2096 = vrot.slane %v2079, 4
        %v2097 = vsel %vm1804, 0.0, %v2096
        %v2098 = vrot.slane %v2083, 4
        %v2099 = vsel %vm1804, 0.0, %v2098
        %v2100 = vrot.slane %v2091, 4
        %v2101 = vsel %vm1804, 0.0, %v2100
        %v2102 = vrot.slane %v2095, 4
        %v2103 = vsel %vm1804, 0.0, %v2102
        %v2104 = vsel %vm1804, %v2098, %v2079
        %v2106 = vunpack.c.l.s4 1983009808
        %v2107 = vunpack.c.0.s8 %v2106
        %v2108 = vperm.slane %v2104, %v2107
        %v2109 = vrot.slane %v2099, 4
        %v2110 = vsel %vm1804, %v2109, %v2097
        %v2112 = vunpack.c.l.s4 1983009808
        %v2113 = vunpack.c.0.s8 %v2112
        %v2114 = vperm.slane %v2110, %v2113
        %v2115 = vsel %vm1804, %v2102, %v2091
        %v2117 = vunpack.c.l.s4 1983009808
        %v2118 = vunpack.c.0.s8 %v2117
        %v2119 = vperm.slane %v2115, %v2118
        %v2120 = vrot.slane %v2103, 4
        %v2121 = vsel %vm1804, %v2120, %v2101
        %v2123 = vunpack.c.l.s4 1983009808
        %v2124 = vunpack.c.0.s8 %v2123
        %v2125 = vperm.slane %v2121, %v2124
        %v2126 = vrot.slane %v2114, 4
        %v2127 = vsel %vm1804, %v2126, %v2108
        %v2128 = vrot.slane %v2108, 4
        %v2129 = vsel %vm1804, %v2114, %v2128
        %v2131 = vunpack.c.l.s4 1934713408
        %v2132 = vunpack.c.0.s8 %v2131
        %v2133 = vperm.slane %v2127, %v2132
        %v2135 = vunpack.c.l.s4 1934713408
        %v2136 = vunpack.c.0.s8 %v2135
        %v2137 = vperm.slane %v2129, %v2136
        %v2138 = vrot.slane %v2125, 4
        %v2139 = vsel %vm1804, %v2138, %v2119
        %v2140 = vrot.slane %v2119, 4
        %v2141 = vsel %vm1804, %v2125, %v2140
        %v2143 = vunpack.c.l.s4 1934713408
        %v2144 = vunpack.c.0.s8 %v2143
        %v2145 = vperm.slane %v2139, %v2144
        %v2147 = vunpack.c.l.s4 1934713408
        %v2148 = vunpack.c.0.s8 %v2147
        %v2149 = vperm.slane %v2141, %v2148
        %v2150 = vrot.slane %v2145, 4
        %v2151 = vsel %vm1804, %v2150, %v2133
        %v2152 = vrot.slane %v2133, 4
        %v2153 = vsel %vm1804, %v2145, %v2152
        %v2154 = vrot.slane %v2149, 4
        %v2155 = vsel %vm1804, %v2154, %v2137
        %v2156 = vrot.slane %v2137, 4
        %v2157 = vsel %vm1804, %v2149, %v2156
        %vm2158 = vcmask 64512
        %v2160 = vsel %vm2158, %v1907, 0
        %v2163 = vsel %vm2158, %v2029, 0
        %2165 = vmatpush.xpose.msra.mxu0 0.0
        %2166 = vmatpush.xpose.msra.mxu0 0.0
        %2167 = vmatpush.xpose.msra.mxu0 0.0
        %2168 = vmatpush.xpose.msra.mxu0 0.0
        %2169 = vmatpush.xpose.msra.mxu0 0.0
        %2170 = vmatpush.xpose.msra.mxu0 0.0
        %2171 = vmatpush.xpose.msra.mxu0 0.0
        %2172 = vmatpush.xpose.msra.mxu0 0.0
        %2173 = vmatpush.xpose.msra.mxu0 0.0
        %2174 = vmatpush.xpose.msra.mxu0 0.0
        %2175 = vmatpush.xpose.msra.mxu0 0.0
        %2176 = vmatpush.xpose.msra.mxu0 0.0
        %2177 = vmatpush.xpose.msra.mxu0 0.0
        %2178 = vmatpush.xpose.msra.mxu0 0.0
        %2179 = vmatpush.xpose.msra.mxu0 0.0
        %2180 = vmatpush.xpose.msra.mxu0 %v2163
        %2181 = vmatmul.f32.gmra.mxu0 %v2160
        %v2182 = vpop.f32.mrf.mxu0
        %v2183 = vadd.f32 0.0, %v2182
        %2184 = vdwg.mxu0
        %v2186 = vsel %vm2158, %v1909, 0
        %v2189 = vsel %vm2158, %v2031, 0
        %2191 = vmatpush.xpose.msra.mxu0 0.0
        %2192 = vmatpush.xpose.msra.mxu0 0.0
        %2193 = vmatpush.xpose.msra.mxu0 0.0
        %2194 = vmatpush.xpose.msra.mxu0 0.0
        %2195 = vmatpush.xpose.msra.mxu0 0.0
        %2196 = vmatpush.xpose.msra.mxu0 0.0
        %2197 = vmatpush.xpose.msra.mxu0 0.0
        %2198 = vmatpush.xpose.msra.mxu0 0.0
        %2199 = vmatpush.xpose.msra.mxu0 0.0
        %2200 = vmatpush.xpose.msra.mxu0 0.0
        %2201 = vmatpush.xpose.msra.mxu0 0.0
        %2202 = vmatpush.xpose.msra.mxu0 0.0
        %2203 = vmatpush.xpose.msra.mxu0 0.0
        %2204 = vmatpush.xpose.msra.mxu0 0.0
        %2205 = vmatpush.xpose.msra.mxu0 0.0
        %2206 = vmatpush.xpose.msra.mxu0 %v2189
        %2207 = vmatmul.f32.gmra.mxu0 %v2186
        %v2208 = vpop.f32.mrf.mxu0
        %v2209 = vadd.f32 0.0, %v2208
        %2210 = vdwg.mxu0
        %v2212 = vsel %vm2158, %v1911, 0
        %v2215 = vsel %vm2158, %v2033, 0
        %2217 = vmatpush.xpose.msra.mxu0 0.0
        %2218 = vmatpush.xpose.msra.mxu0 0.0
        %2219 = vmatpush.xpose.msra.mxu0 0.0
        %2220 = vmatpush.xpose.msra.mxu0 0.0
        %2221 = vmatpush.xpose.msra.mxu0 0.0
        %2222 = vmatpush.xpose.msra.mxu0 0.0
        %2223 = vmatpush.xpose.msra.mxu0 0.0
        %2224 = vmatpush.xpose.msra.mxu0 0.0
        %2225 = vmatpush.xpose.msra.mxu0 0.0
        %2226 = vmatpush.xpose.msra.mxu0 0.0
        %2227 = vmatpush.xpose.msra.mxu0 0.0
        %2228 = vmatpush.xpose.msra.mxu0 0.0
        %2229 = vmatpush.xpose.msra.mxu0 0.0
        %2230 = vmatpush.xpose.msra.mxu0 0.0
        %2231 = vmatpush.xpose.msra.mxu0 0.0
        %2232 = vmatpush.xpose.msra.mxu0 %v2215
        %2233 = vmatmul.f32.gmra.mxu0 %v2212
        %v2234 = vpop.f32.mrf.mxu0
        %v2235 = vadd.f32 0.0, %v2234
        %2236 = vdwg.mxu0
        %v2238 = vsel %vm2158, %v1913, 0
        %v2241 = vsel %vm2158, %v2035, 0
        %2243 = vmatpush.xpose.msra.mxu0 0.0
        %2244 = vmatpush.xpose.msra.mxu0 0.0
        %2245 = vmatpush.xpose.msra.mxu0 0.0
        %2246 = vmatpush.xpose.msra.mxu0 0.0
        %2247 = vmatpush.xpose.msra.mxu0 0.0
        %2248 = vmatpush.xpose.msra.mxu0 0.0
        %2249 = vmatpush.xpose.msra.mxu0 0.0
        %2250 = vmatpush.xpose.msra.mxu0 0.0
        %2251 = vmatpush.xpose.msra.mxu0 0.0
        %2252 = vmatpush.xpose.msra.mxu0 0.0
        %2253 = vmatpush.xpose.msra.mxu0 0.0
        %2254 = vmatpush.xpose.msra.mxu0 0.0
        %2255 = vmatpush.xpose.msra.mxu0 0.0
        %2256 = vmatpush.xpose.msra.mxu0 0.0
        %2257 = vmatpush.xpose.msra.mxu0 0.0
        %2258 = vmatpush.xpose.msra.mxu0 %v2241
        %2259 = vmatmul.f32.gmra.mxu0 %v2238
        %v2260 = vpop.f32.mrf.mxu0
        %v2261 = vadd.f32 0.0, %v2260
        %2262 = vdwg.mxu0
        %v2263 = vsel %vm2158, %v2183, -inf
        %2264 = vmax.xlane.f32.xlu0 %v2263
        %v2265 = vpop.xlane.xlu0 %2264
        %v2266 = vsel %vm2158, %v2209, -inf
        %2267 = vmax.xlane.f32.xlu0 %v2266
        %v2268 = vpop.xlane.xlu0 %2267
        %v2269 = vsel %vm2158, %v2235, -inf
        %2270 = vmax.xlane.f32.xlu0 %v2269
        %v2271 = vpop.xlane.xlu0 %2270
        %v2272 = vsel %vm2158, %v2261, -inf
        %2273 = vmax.xlane.f32.xlu0 %v2272
        %v2274 = vpop.xlane.xlu0 %2273
        %v2275 = vsub.f32 %v2183, %v2265
        %v2276 = vsub.f32 %v2209, %v2268
        %v2277 = vsub.f32 %v2235, %v2271
        %v2278 = vsub.f32 %v2261, %v2274
        %v2279 = vmul.f32 %v2275, 1.442695
        %v2280 = vpow.pop %v2279
        %v2281 = vmul.f32 %v2276, 1.442695
        %v2282 = vpow.pop %v2281
        %v2283 = vmul.f32 %v2277, 1.442695
        %v2284 = vpow.pop %v2283
        %v2285 = vmul.f32 %v2278, 1.442695
        %v2286 = vpow.pop %v2285
        %v2287 = vsel %vm2158, %v2280, 0.0
        %2288 = vadd.xlane.f32.xlu0 %v2287
        %v2289 = vpop.xlane.xlu0 %2288
        %v2290 = vsel %vm2158, %v2282, 0.0
        %2291 = vadd.xlane.f32.xlu0 %v2290
        %v2292 = vpop.xlane.xlu0 %2291
        %v2293 = vsel %vm2158, %v2284, 0.0
        %2294 = vadd.xlane.f32.xlu0 %v2293
        %v2295 = vpop.xlane.xlu0 %2294
        %v2296 = vsel %vm2158, %v2286, 0.0
        %2297 = vadd.xlane.f32.xlu0 %v2296
        %v2298 = vpop.xlane.xlu0 %2297
        %v2299 = vrcp.pop %v2289
        %v2300 = vrcp.pop %v2292
        %v2301 = vrcp.pop %v2295
        %v2302 = vrcp.pop %v2298
        %v2303 = vmul.f32 %v2280, %v2299
        %v2304 = vmul.f32 %v2282, %v2300
        %v2305 = vmul.f32 %v2284, %v2301
        %v2306 = vmul.f32 %v2286, %v2302
        %v2308 = vsel %vm2158, %v2303, 0
        %2310 = vmatpush.msra.mxu0 0.0
        %2311 = vmatpush.msra.mxu0 0.0
        %2312 = vmatpush.msra.mxu0 0.0
        %2313 = vmatpush.msra.mxu0 0.0
        %2314 = vmatpush.msra.mxu0 0.0
        %2315 = vmatpush.msra.mxu0 0.0
        %2316 = vmatpush.msra.mxu0 0.0
        %2317 = vmatpush.msra.mxu0 0.0
        %2318 = vmatpush.msra.mxu0 0.0
        %2319 = vmatpush.msra.mxu0 0.0
        %2320 = vmatpush.msra.mxu0 0.0
        %2321 = vmatpush.msra.mxu0 0.0
        %2322 = vmatpush.msra.mxu0 0.0
        %2323 = vmatpush.msra.mxu0 0.0
        %2324 = vmatpush.msra.mxu0 0.0
        %2325 = vmatpush.msra.mxu0 %v2151
        %2326 = vmatmul.f32.gmra.mxu0 %v2308
        %v2327 = vpop.f32.mrf.mxu0
        %v2328 = vadd.f32 0.0, %v2327
        %2329 = vdwg.mxu0
        %v2331 = vsel %vm2158, %v2304, 0
        %2333 = vmatpush.msra.mxu0 0.0
        %2334 = vmatpush.msra.mxu0 0.0
        %2335 = vmatpush.msra.mxu0 0.0
        %2336 = vmatpush.msra.mxu0 0.0
        %2337 = vmatpush.msra.mxu0 0.0
        %2338 = vmatpush.msra.mxu0 0.0
        %2339 = vmatpush.msra.mxu0 0.0
        %2340 = vmatpush.msra.mxu0 0.0
        %2341 = vmatpush.msra.mxu0 0.0
        %2342 = vmatpush.msra.mxu0 0.0
        %2343 = vmatpush.msra.mxu0 0.0
        %2344 = vmatpush.msra.mxu0 0.0
        %2345 = vmatpush.msra.mxu0 0.0
        %2346 = vmatpush.msra.mxu0 0.0
        %2347 = vmatpush.msra.mxu0 0.0
        %2348 = vmatpush.msra.mxu0 %v2153
        %2349 = vmatmul.f32.gmra.mxu0 %v2331
        %v2350 = vpop.f32.mrf.mxu0
        %v2351 = vadd.f32 0.0, %v2350
        %2352 = vdwg.mxu0
        %v2354 = vsel %vm2158, %v2305, 0
        %2356 = vmatpush.msra.mxu0 0.0
        %2357 = vmatpush.msra.mxu0 0.0
        %2358 = vmatpush.msra.mxu0 0.0
        %2359 = vmatpush.msra.mxu0 0.0
        %2360 = vmatpush.msra.mxu0 0.0
        %2361 = vmatpush.msra.mxu0 0.0
        %2362 = vmatpush.msra.mxu0 0.0
        %2363 = vmatpush.msra.mxu0 0.0
        %2364 = vmatpush.msra.mxu0 0.0
        %2365 = vmatpush.msra.mxu0 0.0
        %2366 = vmatpush.msra.mxu0 0.0
        %2367 = vmatpush.msra.mxu0 0.0
        %2368 = vmatpush.msra.mxu0 0.0
        %2369 = vmatpush.msra.mxu0 0.0
        %2370 = vmatpush.msra.mxu0 0.0
        %2371 = vmatpush.msra.mxu0 %v2155
        %2372 = vmatmul.f32.gmra.mxu0 %v2354
        %v2373 = vpop.f32.mrf.mxu0
        %v2374 = vadd.f32 0.0, %v2373
        %2375 = vdwg.mxu0
        %v2377 = vsel %vm2158, %v2306, 0
        %2379 = vmatpush.msra.mxu0 0.0
        %2380 = vmatpush.msra.mxu0 0.0
        %2381 = vmatpush.msra.mxu0 0.0
        %2382 = vmatpush.msra.mxu0 0.0
        %2383 = vmatpush.msra.mxu0 0.0
        %2384 = vmatpush.msra.mxu0 0.0
        %2385 = vmatpush.msra.mxu0 0.0
        %2386 = vmatpush.msra.mxu0 0.0
        %2387 = vmatpush.msra.mxu0 0.0
        %2388 = vmatpush.msra.mxu0 0.0
        %2389 = vmatpush.msra.mxu0 0.0
        %2390 = vmatpush.msra.mxu0 0.0
        %2391 = vmatpush.msra.mxu0 0.0
        %2392 = vmatpush.msra.mxu0 0.0
        %2393 = vmatpush.msra.mxu0 0.0
        %2394 = vmatpush.msra.mxu0 %v2157
        %2395 = vmatmul.f32.gmra.mxu0 %v2377
        %v2396 = vpop.f32.mrf.mxu0
        %v2397 = vadd.f32 0.0, %v2396
        %2398 = vdwg.mxu0
        %v2399 = vrot.slane %v2374, 4
        %v2400 = vsel %vm1804, %v2399, %v2328
        %v2401 = vrot.slane %v2328, 4
        %v2402 = vsel %vm1804, %v2374, %v2401
        %v2404 = vunpack.c.l.s4 1983009808
        %v2405 = vunpack.c.0.s8 %v2404
        %v2406 = vperm.slane %v2400, %v2405
        %v2408 = vunpack.c.l.s4 1983009808
        %v2409 = vunpack.c.0.s8 %v2408
        %v2410 = vperm.slane %v2402, %v2409
        %v2411 = vrot.slane %v2397, 4
        %v2412 = vsel %vm1804, %v2411, %v2351
        %v2413 = vrot.slane %v2351, 4
        %v2414 = vsel %vm1804, %v2397, %v2413
        %v2416 = vunpack.c.l.s4 1983009808
        %v2417 = vunpack.c.0.s8 %v2416
        %v2418 = vperm.slane %v2412, %v2417
        %v2420 = vunpack.c.l.s4 1983009808
        %v2421 = vunpack.c.0.s8 %v2420
        %v2422 = vperm.slane %v2414, %v2421
        %v2423 = vrot.slane %v2418, 4
        %v2424 = vsel %vm1804, %v2423, %v2406
        %v2425 = vrot.slane %v2406, 4
        %v2426 = vsel %vm1804, %v2418, %v2425
        %v2428 = vunpack.c.l.s4 1934713408
        %v2429 = vunpack.c.0.s8 %v2428
        %v2430 = vperm.slane %v2424, %v2429
        %v2432 = vunpack.c.l.s4 1934713408
        %v2433 = vunpack.c.0.s8 %v2432
        %v2434 = vperm.slane %v2426, %v2433
        %v2435 = vrot.slane %v2422, 4
        %v2436 = vsel %vm1804, %v2435, %v2410
        %v2437 = vrot.slane %v2410, 4
        %v2438 = vsel %vm1804, %v2422, %v2437
        %v2440 = vunpack.c.l.s4 1934713408
        %v2441 = vunpack.c.0.s8 %v2440
        %v2442 = vperm.slane %v2436, %v2441
        %v2444 = vunpack.c.l.s4 1934713408
        %v2445 = vunpack.c.0.s8 %v2444
        %v2446 = vperm.slane %v2438, %v2445
        %v2447 = vrot.slane %v2430, 4
        %v2448 = vsel %vm1804, 0.0, %v2447
        %v2449 = vrot.slane %v2434, 4
        %v2450 = vsel %vm1804, 0.0, %v2449
        %v2451 = vrot.slane %v2442, 4
        %v2452 = vsel %vm1804, 0.0, %v2451
        %v2453 = vrot.slane %v2446, 4
        %v2454 = vsel %vm1804, 0.0, %v2453
        %v2455 = vsel %vm1804, %v2449, %v2430
        %v2457 = vunpack.c.l.s4 1983009808
        %v2458 = vunpack.c.0.s8 %v2457
        %v2459 = vperm.slane %v2455, %v2458
        %v2460 = vrot.slane %v2450, 4
        %v2461 = vsel %vm1804, %v2460, %v2448
        %v2463 = vunpack.c.l.s4 1983009808
        %v2464 = vunpack.c.0.s8 %v2463
        %v2465 = vperm.slane %v2461, %v2464
        %v2466 = vsel %vm1804, %v2453, %v2442
        %v2468 = vunpack.c.l.s4 1983009808
        %v2469 = vunpack.c.0.s8 %v2468
        %v2470 = vperm.slane %v2466, %v2469
        %v2471 = vrot.slane %v2454, 4
        %v2472 = vsel %vm1804, %v2471, %v2452
        %v2474 = vunpack.c.l.s4 1983009808
        %v2475 = vunpack.c.0.s8 %v2474
        %v2476 = vperm.slane %v2472, %v2475
        %v2477 = vrot.slane %v2465, 4
        %v2478 = vsel %vm1804, %v2477, %v2459
        %v2479 = vrot.slane %v2459, 4
        %v2480 = vsel %vm1804, %v2465, %v2479
        %v2482 = vunpack.c.l.s4 1934713408
        %v2483 = vunpack.c.0.s8 %v2482
        %v2484 = vperm.slane %v2478, %v2483
        %v2486 = vunpack.c.l.s4 1934713408
        %v2487 = vunpack.c.0.s8 %v2486
        %v2488 = vperm.slane %v2480, %v2487
        %v2489 = vrot.slane %v2476, 4
        %v2490 = vsel %vm1804, %v2489, %v2470
        %v2491 = vrot.slane %v2470, 4
        %v2492 = vsel %vm1804, %v2476, %v2491
        %v2494 = vunpack.c.l.s4 1934713408
        %v2495 = vunpack.c.0.s8 %v2494
        %v2496 = vperm.slane %v2490, %v2495
        %v2498 = vunpack.c.l.s4 1934713408
        %v2499 = vunpack.c.0.s8 %v2498
        %v2500 = vperm.slane %v2492, %v2499
        %v2501 = vrot.slane %v2496, 4
        %v2502 = vsel %vm1804, %v2501, %v2484
        %v2503 = vrot.slane %v2484, 4
        %v2504 = vsel %vm1804, %v2496, %v2503
        %v2505 = vrot.slane %v2500, 4
        %v2506 = vsel %vm1804, %v2505, %v2488
        %v2507 = vrot.slane %v2488, 4
        %v2508 = vsel %vm1804, %v2500, %v2507
        %2510 = vrot.lane.b32.xlu0 %v2504, 8
        %v2511 = vpop.permute.xlu0 %2510
        %2514 = vrot.lane.b32.xlu0 %v2506, 16
        %v2515 = vpop.permute.xlu0 %2514
        %2518 = vrot.lane.b32.xlu0 %v2508, 24
        %v2519 = vpop.permute.xlu0 %2518
        %v2521 = vsel %vm2158, %v2502, %v2511
        %vm2522 = vcmask 130048
        %v2523 = vsel %vm2522, %v2521, %v2515
        %vm2524 = vcmask 195584
        %v2525 = vsel %vm2524, %v2523, %v2519
        %v2527 = vperm.slane %v1765, 0
        %v2530 = vsel %vm1769, %v2525, 0
        %2532 = vmatpush.msra.mxu0 0.0
        %2533 = vmatpush.msra.mxu0 0.0
        %2534 = vmatpush.msra.mxu0 0.0
        %2535 = vmatpush.msra.mxu0 0.0
        %2536 = vmatpush.msra.mxu0 0.0
        %2537 = vmatpush.msra.mxu0 0.0
        %2538 = vmatpush.msra.mxu0 0.0
        %2539 = vmatpush.msra.mxu0 0.0
        %2540 = vmatpush.msra.mxu0 0.0
        %2541 = vmatpush.msra.mxu0 0.0
        %2542 = vmatpush.msra.mxu0 0.0
        %2543 = vmatpush.msra.mxu0 0.0
        %2544 = vmatpush.msra.mxu0 %v1764
        %2545 = vmatpush.msra.mxu0 %v1763
        %2546 = vmatpush.msra.mxu0 %v1762
        %2547 = vmatpush.msra.mxu0 %v1761
        %2548 = vmatmul.f32.gmra.mxu0 %v2530
        %v2549 = vpop.f32.mrf.mxu0
        %v2550 = vadd.f32 %v2527, %v2549
        %2551 = vdwg.mxu0
        %v2552 = vadd.f32 %v1755, %v2550
        %v2553 = vld [vmem:[#allocation7] sm:$0x1]
        %v2554 = vld [vmem:[#allocation8] sm:$0x1]
        %v2555 = vmul.f32 %v2552, %v2552
        %2557 = vrot.lane.b32.xlu0 %v2555, 32
        %v2558 = vpop.permute.xlu0 %2557
        %v2560 = vsel %vm1769, %v2552, %v2558
        %vm2561 = vcmask 523264
        %v2563 = vsel %vm2561, %v2560, 0
        %2565 = vmatpush.msra.mxu0 0.0
        %2566 = vmatpush.msra.mxu0 0.0
        %2567 = vmatpush.msra.mxu0 0.0
        %2568 = vmatpush.msra.mxu0 0.0
        %2569 = vmatpush.msra.mxu0 0.0
        %2570 = vmatpush.msra.mxu0 0.0
        %2571 = vmatpush.msra.mxu0 0.0
        %2572 = vmatpush.msra.mxu0 0.0
        %2573 = vmatpush.msra.mxu0 %v1754
        %2574 = vmatpush.msra.mxu0 %v1753
        %2575 = vmatpush.msra.mxu0 %v1752
        %2576 = vmatpush.msra.mxu0 %v1751
        %2577 = vmatpush.msra.mxu0 %v1750
        %2578 = vmatpush.msra.mxu0 %v1749
        %2579 = vmatpush.msra.mxu0 %v1748
        %2580 = vmatpush.msra.mxu0 %v1747
        %2581 = vmatmul.f32.gmra.mxu0 %v2563
        %v2582 = vpop.f32.mrf.mxu0
        %v2583 = vadd.f32 0.0, %v2582
        %2584 = vdwg.mxu0
        %v2585 = vmul.f32 %v2583, %v2583
        %2587 = vrot.lane.b32.xlu0 %v2585, 1
        %v2588 = vpop.permute.xlu0 %2587
        %v2590 = vsub.f32 %v2583, %v2588
        %2592 = vset.pattern.permute.xlu0 0
        %2593 = vperm.xlu0 %2592, %v2583
        %v2594 = vpop.permute.xlu0 %2593
        %v2596 = vsub.f32 %v2552, %v2594
        %v2597 = vadd.f32 %v2590, 1e-05
        %v2598 = vrsqrt.pop %v2597
        %v2599 = vmul.f32 %v2598, %v2597
        %v2600 = vmul.f32 %v2599, %v2598
        %v2601 = vmul.f32 0.5, %v2600
        %v2602 = vsub.f32 1.5, %v2601
        %v2603 = vmul.f32 %v2598, %v2602
        %vm2604 = vweird.f32 %v2597
        %vm2605 = vweird.f32 %v2598
        %vm2606 = vmor %vm2604, %vm2605
        %v2607 = vsel %vm2606, %v2598, %v2603
        %2609 = vset.pattern.permute.xlu0 1
        %2610 = vperm.xlu0 %2609, %v2607
        %v2611 = vpop.permute.xlu0 %2610
        %v2613 = vmul.f32 %v2596, %v2611
        %v2615 = vperm.slane %v2553, 0
        %v2617 = vmul.f32 %v2613, %v2615
        %v2619 = vperm.slane %v2554, 0
        %v2621 = vadd.f32 %v2617, %v2619
        %v2622 = vld [vmem:[%s19] sm:$0xff]
        %v2623 = vld [vmem:[%s19 + $0x8] sm:$0xff]
        %v2624 = vld [vmem:[%s19 + $0x10] sm:$0xff]
        %v2625 = vld [vmem:[%s19 + $0x18] sm:$0xff]
        %v2626 = vld [vmem:[#allocation10] sm:$0x1]
        %v2627 = vld [vmem:[%s23] sm:$0xff]
        %v2628 = vld [vmem:[%s23 + $0x8] sm:$0xff]
        %v2629 = vld [vmem:[%s23 + $0x10] sm:$0xff]
        %v2630 = vld [vmem:[%s23 + $0x18] sm:$0xff]
        %v2631 = vld [vmem:[%s23 + $0x20] sm:$0xff]
        %v2632 = vld [vmem:[%s23 + $0x28] sm:$0xff]
        %v2633 = vld [vmem:[%s23 + $0x30] sm:$0xff]
        %v2634 = vld [vmem:[%s23 + $0x38] sm:$0xff]
        %v2635 = vld [vmem:[#allocation11] sm:$0x1]
        %v2637 = vperm.slane %v2626, 0
        %v2640 = vsel %vm1769, %v2621, 0
        %2642 = vmatpush.msra.mxu0 0.0
        %2643 = vmatpush.msra.mxu0 0.0
        %2644 = vmatpush.msra.mxu0 0.0
        %2645 = vmatpush.msra.mxu0 0.0
        %2646 = vmatpush.msra.mxu0 0.0
        %2647 = vmatpush.msra.mxu0 0.0
        %2648 = vmatpush.msra.mxu0 0.0
        %2649 = vmatpush.msra.mxu0 0.0
        %2650 = vmatpush.msra.mxu0 0.0
        %2651 = vmatpush.msra.mxu0 0.0
        %2652 = vmatpush.msra.mxu0 0.0
        %2653 = vmatpush.msra.mxu0 0.0
        %2654 = vmatpush.msra.mxu0 %v2625
        %2655 = vmatpush.msra.mxu0 %v2624
        %2656 = vmatpush.msra.mxu0 %v2623
        %2657 = vmatpush.msra.mxu0 %v2622
        %2658 = vmatmul.f32.gmra.mxu0 %v2640
        %v2659 = vpop.f32.mrf.mxu0
        %v2660 = vadd.f32 %v2637, %v2659
        %2661 = vdwg.mxu0
        %v2662 = vmax.f32 %v2660, 0.0
        %v2664 = vperm.slane %v2635, 0
        %v2667 = vsel %vm2561, %v2662, 0
        %2669 = vmatpush.msra.mxu0 0.0
        %2670 = vmatpush.msra.mxu0 0.0
        %2671 = vmatpush.msra.mxu0 0.0
        %2672 = vmatpush.msra.mxu0 0.0
        %2673 = vmatpush.msra.mxu0 0.0
        %2674 = vmatpush.msra.mxu0 0.0
        %2675 = vmatpush.msra.mxu0 0.0
        %2676 = vmatpush.msra.mxu0 0.0
        %2677 = vmatpush.msra.mxu0 %v2634
        %2678 = vmatpush.msra.mxu0 %v2633
        %2679 = vmatpush.msra.mxu0 %v2632
        %2680 = vmatpush.msra.mxu0 %v2631
        %2681 = vmatpush.msra.mxu0 %v2630
        %2682 = vmatpush.msra.mxu0 %v2629
        %2683 = vmatpush.msra.mxu0 %v2628
        %2684 = vmatpush.msra.mxu0 %v2627
        %2685 = vmatmul.f32.gmra.mxu0 %v2667
        %v2686 = vpop.f32.mrf.mxu0
        %v2687 = vadd.f32 %v2664, %v2686
        %2688 = vdwg.mxu0
        %v2689 = vadd.f32 %v2621, %v2687
        %v2690 = vld [vmem:[#allocation13] sm:$0x1]
        %v2691 = vld [vmem:[#allocation14] sm:$0x1]
        %v2692 = vmul.f32 %v2689, %v2689
        %2694 = vrot.lane.b32.xlu0 %v2692, 32
        %v2695 = vpop.permute.xlu0 %2694
        %v2697 = vsel %vm1769, %v2689, %v2695
        %v2699 = vsel %vm2561, %v2697, 0
        %2701 = vmatpush.msra.mxu0 0.0
        %2702 = vmatpush.msra.mxu0 0.0
        %2703 = vmatpush.msra.mxu0 0.0
        %2704 = vmatpush.msra.mxu0 0.0
        %2705 = vmatpush.msra.mxu0 0.0
        %2706 = vmatpush.msra.mxu0 0.0
        %2707 = vmatpush.msra.mxu0 0.0
        %2708 = vmatpush.msra.mxu0 0.0
        %2709 = vmatpush.msra.mxu0 %v1754
        %2710 = vmatpush.msra.mxu0 %v1753
        %2711 = vmatpush.msra.mxu0 %v1752
        %2712 = vmatpush.msra.mxu0 %v1751
        %2713 = vmatpush.msra.mxu0 %v1750
        %2714 = vmatpush.msra.mxu0 %v1749
        %2715 = vmatpush.msra.mxu0 %v1748
        %2716 = vmatpush.msra.mxu0 %v1747
        %2717 = vmatmul.f32.gmra.mxu0 %v2699
        %v2718 = vpop.f32.mrf.mxu0
        %v2719 = vadd.f32 0.0, %v2718
        %2720 = vdwg.mxu0
        %v2721 = vmul.f32 %v2719, %v2719
        %2723 = vrot.lane.b32.xlu0 %v2721, 1
        %v2724 = vpop.permute.xlu0 %2723
        %v2726 = vsub.f32 %v2719, %v2724
        %2728 = vset.pattern.permute.xlu0 0
        %2729 = vperm.xlu0 %2728, %v2719
        %v2730 = vpop.permute.xlu0 %2729
        %v2732 = vsub.f32 %v2689, %v2730
        %v2733 = vadd.f32 %v2726, 1e-05
        %v2734 = vrsqrt.pop %v2733
        %v2735 = vmul.f32 %v2734, %v2733
        %v2736 = vmul.f32 %v2735, %v2734
        %v2737 = vmul.f32 0.5, %v2736
        %v2738 = vsub.f32 1.5, %v2737
        %v2739 = vmul.f32 %v2734, %v2738
        %vm2740 = vweird.f32 %v2733
        %vm2741 = vweird.f32 %v2734
        %vm2742 = vmor %vm2740, %vm2741
        %v2743 = vsel %vm2742, %v2734, %v2739
        %2745 = vset.pattern.permute.xlu0 1
        %2746 = vperm.xlu0 %2745, %v2743
        %v2747 = vpop.permute.xlu0 %2746
        %v2749 = vmul.f32 %v2732, %v2747
        %v2751 = vperm.slane %v2690, 0
        %v2753 = vmul.f32 %v2749, %v2751
        %v2755 = vperm.slane %v2691, 0
        %v2757 = vadd.f32 %v2753, %v2755
        %s2758 = scalar_lea.vmem %s7, 32
        %v2759 = vld [vmem:[%s2758] sm:$0xff]
        %v2760 = vld [vmem:[%s2758 + $0x8] sm:$0xff]
        %v2761 = vld [vmem:[%s2758 + $0x10] sm:$0xff]
        %v2762 = vld [vmem:[%s2758 + $0x18] sm:$0xff]
        %s2763 = scalar_lea.vmem %s9, 1
        %v2764 = vld [vmem:[%s2763] sm:$0x1]
        %s2765 = scalar_lea.vmem %s11, 32
        %v2766 = vld [vmem:[%s2765] sm:$0xff]
        %v2767 = vld [vmem:[%s2765 + $0x8] sm:$0xff]
        %v2768 = vld [vmem:[%s2765 + $0x10] sm:$0xff]
        %v2769 = vld [vmem:[%s2765 + $0x18] sm:$0xff]
        %s2770 = scalar_lea.vmem %s13, 1
        %v2771 = vld [vmem:[%s2770] sm:$0x1]
        %v2773 = vperm.slane %v2764, 0
        %v2776 = vsel %vm1769, %v2757, 0
        %2778 = vmatpush.msra.mxu0 0.0
        %2779 = vmatpush.msra.mxu0 0.0
        %2780 = vmatpush.msra.mxu0 0.0
        %2781 = vmatpush.msra.mxu0 0.0
        %2782 = vmatpush.msra.mxu0 0.0
        %2783 = vmatpush.msra.mxu0 0.0
        %2784 = vmatpush.msra.mxu0 0.0
        %2785 = vmatpush.msra.mxu0 0.0
        %2786 = vmatpush.msra.mxu0 0.0
        %2787 = vmatpush.msra.mxu0 0.0
        %2788 = vmatpush.msra.mxu0 0.0
        %2789 = vmatpush.msra.mxu0 0.0
        %2790 = vmatpush.msra.mxu0 %v2762
        %2791 = vmatpush.msra.mxu0 %v2761
        %2792 = vmatpush.msra.mxu0 %v2760
        %2793 = vmatpush.msra.mxu0 %v2759
        %2794 = vmatmul.f32.gmra.mxu0 %v2776
        %v2795 = vpop.f32.mrf.mxu0
        %v2796 = vadd.f32 %v2773, %v2795
        %2797 = vdwg.mxu0
        %2799 = vrot.lane.b32.xlu0 %v2796, 120
        %v2800 = vpop.permute.xlu0 %2799
        %2802 = vrot.lane.b32.xlu0 %v2796, 112
        %v2803 = vpop.permute.xlu0 %2802
        %2805 = vrot.lane.b32.xlu0 %v2796, 104
        %v2806 = vpop.permute.xlu0 %2805
        %v2808 = vrot.slane %v2803, 4
        %v2809 = vsel %vm1804, %v2808, %v2796
        %v2810 = vrot.slane %v2796, 4
        %v2811 = vsel %vm1804, %v2803, %v2810
        %v2813 = vunpack.c.l.s4 1983009808
        %v2814 = vunpack.c.0.s8 %v2813
        %v2815 = vperm.slane %v2809, %v2814
        %v2817 = vunpack.c.l.s4 1983009808
        %v2818 = vunpack.c.0.s8 %v2817
        %v2819 = vperm.slane %v2811, %v2818
        %v2820 = vrot.slane %v2806, 4
        %v2821 = vsel %vm1804, %v2820, %v2800
        %v2822 = vrot.slane %v2800, 4
        %v2823 = vsel %vm1804, %v2806, %v2822
        %v2825 = vunpack.c.l.s4 1983009808
        %v2826 = vunpack.c.0.s8 %v2825
        %v2827 = vperm.slane %v2821, %v2826
        %v2829 = vunpack.c.l.s4 1983009808
        %v2830 = vunpack.c.0.s8 %v2829
        %v2831 = vperm.slane %v2823, %v2830
        %v2832 = vrot.slane %v2827, 4
        %v2833 = vsel %vm1804, %v2832, %v2815
        %v2834 = vrot.slane %v2815, 4
        %v2835 = vsel %vm1804, %v2827, %v2834
        %v2837 = vunpack.c.l.s4 1934713408
        %v2838 = vunpack.c.0.s8 %v2837
        %v2839 = vperm.slane %v2833, %v2838
        %v2841 = vunpack.c.l.s4 1934713408
        %v2842 = vunpack.c.0.s8 %v2841
        %v2843 = vperm.slane %v2835, %v2842
        %v2844 = vrot.slane %v2831, 4
        %v2845 = vsel %vm1804, %v2844, %v2819
        %v2846 = vrot.slane %v2819, 4
        %v2847 = vsel %vm1804, %v2831, %v2846
        %v2849 = vunpack.c.l.s4 1934713408
        %v2850 = vunpack.c.0.s8 %v2849
        %v2851 = vperm.slane %v2845, %v2850
        %v2853 = vunpack.c.l.s4 1934713408
        %v2854 = vunpack.c.0.s8 %v2853
        %v2855 = vperm.slane %v2847, %v2854
        %v2856 = vrot.slane %v2839, 4
        %v2857 = vsel %vm1804, 0.0, %v2856
        %v2858 = vrot.slane %v2843, 4
        %v2859 = vsel %vm1804, 0.0, %v2858
        %v2860 = vrot.slane %v2851, 4
        %v2861 = vsel %vm1804, 0.0, %v2860
        %v2862 = vrot.slane %v2855, 4
        %v2863 = vsel %vm1804, 0.0, %v2862
        %v2864 = vsel %vm1804, %v2858, %v2839
        %v2866 = vunpack.c.l.s4 1983009808
        %v2867 = vunpack.c.0.s8 %v2866
        %v2868 = vperm.slane %v2864, %v2867
        %v2869 = vrot.slane %v2859, 4
        %v2870 = vsel %vm1804, %v2869, %v2857
        %v2872 = vunpack.c.l.s4 1983009808
        %v2873 = vunpack.c.0.s8 %v2872
        %v2874 = vperm.slane %v2870, %v2873
        %v2875 = vsel %vm1804, %v2862, %v2851
        %v2877 = vunpack.c.l.s4 1983009808
        %v2878 = vunpack.c.0.s8 %v2877
        %v2879 = vperm.slane %v2875, %v2878
        %v2880 = vrot.slane %v2863, 4
        %v2881 = vsel %vm1804, %v2880, %v2861
        %v2883 = vunpack.c.l.s4 1983009808
        %v2884 = vunpack.c.0.s8 %v2883
        %v2885 = vperm.slane %v2881, %v2884
        %v2886 = vrot.slane %v2874, 4
        %v2887 = vsel %vm1804, %v2886, %v2868
        %v2888 = vrot.slane %v2868, 4
        %v2889 = vsel %vm1804, %v2874, %v2888
        %v2891 = vunpack.c.l.s4 1934713408
        %v2892 = vunpack.c.0.s8 %v2891
        %v2893 = vperm.slane %v2887, %v2892
        %v2895 = vunpack.c.l.s4 1934713408
        %v2896 = vunpack.c.0.s8 %v2895
        %v2897 = vperm.slane %v2889, %v2896
        %v2898 = vrot.slane %v2885, 4
        %v2899 = vsel %vm1804, %v2898, %v2879
        %v2900 = vrot.slane %v2879, 4
        %v2901 = vsel %vm1804, %v2885, %v2900
        %v2903 = vunpack.c.l.s4 1934713408
        %v2904 = vunpack.c.0.s8 %v2903
        %v2905 = vperm.slane %v2899, %v2904
        %v2907 = vunpack.c.l.s4 1934713408
        %v2908 = vunpack.c.0.s8 %v2907
        %v2909 = vperm.slane %v2901, %v2908
        %v2910 = vrot.slane %v2905, 4
        %v2911 = vsel %vm1804, %v2910, %v2893
        %v2912 = vrot.slane %v2893, 4
        %v2913 = vsel %vm1804, %v2905, %v2912
        %v2914 = vrot.slane %v2909, 4
        %v2915 = vsel %vm1804, %v2914, %v2897
        %v2916 = vrot.slane %v2897, 4
        %v2917 = vsel %vm1804, %v2909, %v2916
        %2918 = vrot.lane.b32.xlu0 %v2796, 96
        %v2919 = vpop.permute.xlu0 %2918
        %2920 = vrot.lane.b32.xlu0 %v2800, 96
        %v2921 = vpop.permute.xlu0 %2920
        %2922 = vrot.lane.b32.xlu0 %v2803, 96
        %v2923 = vpop.permute.xlu0 %2922
        %2924 = vrot.lane.b32.xlu0 %v2806, 96
        %v2925 = vpop.permute.xlu0 %2924
        %v2930 = vrot.slane %v2923, 4
        %v2931 = vsel %vm1804, %v2930, %v2919
        %v2932 = vrot.slane %v2919, 4
        %v2933 = vsel %vm1804, %v2923, %v2932
        %v2935 = vunpack.c.l.s4 1983009808
        %v2936 = vunpack.c.0.s8 %v2935
        %v2937 = vperm.slane %v2931, %v2936
        %v2939 = vunpack.c.l.s4 1983009808
        %v2940 = vunpack.c.0.s8 %v2939
        %v2941 = vperm.slane %v2933, %v2940
        %v2942 = vrot.slane %v2925, 4
        %v2943 = vsel %vm1804, %v2942, %v2921
        %v2944 = vrot.slane %v2921, 4
        %v2945 = vsel %vm1804, %v2925, %v2944
        %v2947 = vunpack.c.l.s4 1983009808
        %v2948 = vunpack.c.0.s8 %v2947
        %v2949 = vperm.slane %v2943, %v2948
        %v2951 = vunpack.c.l.s4 1983009808
        %v2952 = vunpack.c.0.s8 %v2951
        %v2953 = vperm.slane %v2945, %v2952
        %v2954 = vrot.slane %v2949, 4
        %v2955 = vsel %vm1804, %v2954, %v2937
        %v2956 = vrot.slane %v2937, 4
        %v2957 = vsel %vm1804, %v2949, %v2956
        %v2959 = vunpack.c.l.s4 1934713408
        %v2960 = vunpack.c.0.s8 %v2959
        %v2961 = vperm.slane %v2955, %v2960
        %v2963 = vunpack.c.l.s4 1934713408
        %v2964 = vunpack.c.0.s8 %v2963
        %v2965 = vperm.slane %v2957, %v2964
        %v2966 = vrot.slane %v2953, 4
        %v2967 = vsel %vm1804, %v2966, %v2941
        %v2968 = vrot.slane %v2941, 4
        %v2969 = vsel %vm1804, %v2953, %v2968
        %v2971 = vunpack.c.l.s4 1934713408
        %v2972 = vunpack.c.0.s8 %v2971
        %v2973 = vperm.slane %v2967, %v2972
        %v2975 = vunpack.c.l.s4 1934713408
        %v2976 = vunpack.c.0.s8 %v2975
        %v2977 = vperm.slane %v2969, %v2976
        %v2978 = vrot.slane %v2961, 4
        %v2979 = vsel %vm1804, 0.0, %v2978
        %v2980 = vrot.slane %v2965, 4
        %v2981 = vsel %vm1804, 0.0, %v2980
        %v2982 = vrot.slane %v2973, 4
        %v2983 = vsel %vm1804, 0.0, %v2982
        %v2984 = vrot.slane %v2977, 4
        %v2985 = vsel %vm1804, 0.0, %v2984
        %v2986 = vsel %vm1804, %v2980, %v2961
        %v2988 = vunpack.c.l.s4 1983009808
        %v2989 = vunpack.c.0.s8 %v2988
        %v2990 = vperm.slane %v2986, %v2989
        %v2991 = vrot.slane %v2981, 4
        %v2992 = vsel %vm1804, %v2991, %v2979
        %v2994 = vunpack.c.l.s4 1983009808
        %v2995 = vunpack.c.0.s8 %v2994
        %v2996 = vperm.slane %v2992, %v2995
        %v2997 = vsel %vm1804, %v2984, %v2973
        %v2999 = vunpack.c.l.s4 1983009808
        %v3000 = vunpack.c.0.s8 %v2999
        %v3001 = vperm.slane %v2997, %v3000
        %v3002 = vrot.slane %v2985, 4
        %v3003 = vsel %vm1804, %v3002, %v2983
        %v3005 = vunpack.c.l.s4 1983009808
        %v3006 = vunpack.c.0.s8 %v3005
        %v3007 = vperm.slane %v3003, %v3006
        %v3008 = vrot.slane %v2996, 4
        %v3009 = vsel %vm1804, %v3008, %v2990
        %v3010 = vrot.slane %v2990, 4
        %v3011 = vsel %vm1804, %v2996, %v3010
        %v3013 = vunpack.c.l.s4 1934713408
        %v3014 = vunpack.c.0.s8 %v3013
        %v3015 = vperm.slane %v3009, %v3014
        %v3017 = vunpack.c.l.s4 1934713408
        %v3018 = vunpack.c.0.s8 %v3017
        %v3019 = vperm.slane %v3011, %v3018
        %v3020 = vrot.slane %v3007, 4
        %v3021 = vsel %vm1804, %v3020, %v3001
        %v3022 = vrot.slane %v3001, 4
        %v3023 = vsel %vm1804, %v3007, %v3022
        %v3025 = vunpack.c.l.s4 1934713408
        %v3026 = vunpack.c.0.s8 %v3025
        %v3027 = vperm.slane %v3021, %v3026
        %v3029 = vunpack.c.l.s4 1934713408
        %v3030 = vunpack.c.0.s8 %v3029
        %v3031 = vperm.slane %v3023, %v3030
        %v3032 = vrot.slane %v3027, 4
        %v3033 = vsel %vm1804, %v3032, %v3015
        %v3034 = vrot.slane %v3015, 4
        %v3035 = vsel %vm1804, %v3027, %v3034
        %v3036 = vrot.slane %v3031, 4
        %v3037 = vsel %vm1804, %v3036, %v3019
        %v3038 = vrot.slane %v3019, 4
        %v3039 = vsel %vm1804, %v3031, %v3038
        %3040 = vrot.lane.b32.xlu0 %v2796, 64
        %v3041 = vpop.permute.xlu0 %3040
        %3042 = vrot.lane.b32.xlu0 %v2800, 64
        %v3043 = vpop.permute.xlu0 %3042
        %3044 = vrot.lane.b32.xlu0 %v2803, 64
        %v3045 = vpop.permute.xlu0 %3044
        %3046 = vrot.lane.b32.xlu0 %v2806, 64
        %v3047 = vpop.permute.xlu0 %3046
        %v3052 = vrot.slane %v3045, 4
        %v3053 = vsel %vm1804, %v3052, %v3041
        %v3054 = vrot.slane %v3041, 4
        %v3055 = vsel %vm1804, %v3045, %v3054
        %v3057 = vunpack.c.l.s4 1983009808
        %v3058 = vunpack.c.0.s8 %v3057
        %v3059 = vperm.slane %v3053, %v3058
        %v3061 = vunpack.c.l.s4 1983009808
        %v3062 = vunpack.c.0.s8 %v3061
        %v3063 = vperm.slane %v3055, %v3062
        %v3064 = vrot.slane %v3047, 4
        %v3065 = vsel %vm1804, %v3064, %v3043
        %v3066 = vrot.slane %v3043, 4
        %v3067 = vsel %vm1804, %v3047, %v3066
        %v3069 = vunpack.c.l.s4 1983009808
        %v3070 = vunpack.c.0.s8 %v3069
        %v3071 = vperm.slane %v3065, %v3070
        %v3073 = vunpack.c.l.s4 1983009808
        %v3074 = vunpack.c.0.s8 %v3073
        %v3075 = vperm.slane %v3067, %v3074
        %v3076 = vrot.slane %v3071, 4
        %v3077 = vsel %vm1804, %v3076, %v3059
        %v3078 = vrot.slane %v3059, 4
        %v3079 = vsel %vm1804, %v3071, %v3078
        %v3081 = vunpack.c.l.s4 1934713408
        %v3082 = vunpack.c.0.s8 %v3081
        %v3083 = vperm.slane %v3077, %v3082
        %v3085 = vunpack.c.l.s4 1934713408
        %v3086 = vunpack.c.0.s8 %v3085
        %v3087 = vperm.slane %v3079, %v3086
        %v3088 = vrot.slane %v3075, 4
        %v3089 = vsel %vm1804, %v3088, %v3063
        %v3090 = vrot.slane %v3063, 4
        %v3091 = vsel %vm1804, %v3075, %v3090
        %v3093 = vunpack.c.l.s4 1934713408
        %v3094 = vunpack.c.0.s8 %v3093
        %v3095 = vperm.slane %v3089, %v3094
        %v3097 = vunpack.c.l.s4 1934713408
        %v3098 = vunpack.c.0.s8 %v3097
        %v3099 = vperm.slane %v3091, %v3098
        %v3100 = vrot.slane %v3083, 4
        %v3101 = vsel %vm1804, 0.0, %v3100
        %v3102 = vrot.slane %v3087, 4
        %v3103 = vsel %vm1804, 0.0, %v3102
        %v3104 = vrot.slane %v3095, 4
        %v3105 = vsel %vm1804, 0.0, %v3104
        %v3106 = vrot.slane %v3099, 4
        %v3107 = vsel %vm1804, 0.0, %v3106
        %v3108 = vsel %vm1804, %v3102, %v3083
        %v3110 = vunpack.c.l.s4 1983009808
        %v3111 = vunpack.c.0.s8 %v3110
        %v3112 = vperm.slane %v3108, %v3111
        %v3113 = vrot.slane %v3103, 4
        %v3114 = vsel %vm1804, %v3113, %v3101
        %v3116 = vunpack.c.l.s4 1983009808
        %v3117 = vunpack.c.0.s8 %v3116
        %v3118 = vperm.slane %v3114, %v3117
        %v3119 = vsel %vm1804, %v3106, %v3095
        %v3121 = vunpack.c.l.s4 1983009808
        %v3122 = vunpack.c.0.s8 %v3121
        %v3123 = vperm.slane %v3119, %v3122
        %v3124 = vrot.slane %v3107, 4
        %v3125 = vsel %vm1804, %v3124, %v3105
        %v3127 = vunpack.c.l.s4 1983009808
        %v3128 = vunpack.c.0.s8 %v3127
        %v3129 = vperm.slane %v3125, %v3128
        %v3130 = vrot.slane %v3118, 4
        %v3131 = vsel %vm1804, %v3130, %v3112
        %v3132 = vrot.slane %v3112, 4
        %v3133 = vsel %vm1804, %v3118, %v3132
        %v3135 = vunpack.c.l.s4 1934713408
        %v3136 = vunpack.c.0.s8 %v3135
        %v3137 = vperm.slane %v3131, %v3136
        %v3139 = vunpack.c.l.s4 1934713408
        %v3140 = vunpack.c.0.s8 %v3139
        %v3141 = vperm.slane %v3133, %v3140
        %v3142 = vrot.slane %v3129, 4
        %v3143 = vsel %vm1804, %v3142, %v3123
        %v3144 = vrot.slane %v3123, 4
        %v3145 = vsel %vm1804, %v3129, %v3144
        %v3147 = vunpack.c.l.s4 1934713408
        %v3148 = vunpack.c.0.s8 %v3147
        %v3149 = vperm.slane %v3143, %v3148
        %v3151 = vunpack.c.l.s4 1934713408
        %v3152 = vunpack.c.0.s8 %v3151
        %v3153 = vperm.slane %v3145, %v3152
        %v3154 = vrot.slane %v3149, 4
        %v3155 = vsel %vm1804, %v3154, %v3137
        %v3156 = vrot.slane %v3137, 4
        %v3157 = vsel %vm1804, %v3149, %v3156
        %v3158 = vrot.slane %v3153, 4
        %v3159 = vsel %vm1804, %v3158, %v3141
        %v3160 = vrot.slane %v3141, 4
        %v3161 = vsel %vm1804, %v3153, %v3160
        %v3163 = vsel %vm2158, %v2911, 0
        %v3166 = vsel %vm2158, %v3033, 0
        %3168 = vmatpush.xpose.msra.mxu0 0.0
        %3169 = vmatpush.xpose.msra.mxu0 0.0
        %3170 = vmatpush.xpose.msra.mxu0 0.0
        %3171 = vmatpush.xpose.msra.mxu0 0.0
        %3172 = vmatpush.xpose.msra.mxu0 0.0
        %3173 = vmatpush.xpose.msra.mxu0 0.0
        %3174 = vmatpush.xpose.msra.mxu0 0.0
        %3175 = vmatpush.xpose.msra.mxu0 0.0
        %3176 = vmatpush.xpose.msra.mxu0 0.0
        %3177 = vmatpush.xpose.msra.mxu0 0.0
        %3178 = vmatpush.xpose.msra.mxu0 0.0
        %3179 = vmatpush.xpose.msra.mxu0 0.0
        %3180 = vmatpush.xpose.msra.mxu0 0.0
        %3181 = vmatpush.xpose.msra.mxu0 0.0
        %3182 = vmatpush.xpose.msra.mxu0 0.0
        %3183 = vmatpush.xpose.msra.mxu0 %v3166
        %3184 = vmatmul.f32.gmra.mxu0 %v3163
        %v3185 = vpop.f32.mrf.mxu0
        %v3186 = vadd.f32 0.0, %v3185
        %3187 = vdwg.mxu0
        %v3189 = vsel %vm2158, %v2913, 0
        %v3192 = vsel %vm2158, %v3035, 0
        %3194 = vmatpush.xpose.msra.mxu0 0.0
        %3195 = vmatpush.xpose.msra.mxu0 0.0
        %3196 = vmatpush.xpose.msra.mxu0 0.0
        %3197 = vmatpush.xpose.msra.mxu0 0.0
        %3198 = vmatpush.xpose.msra.mxu0 0.0
        %3199 = vmatpush.xpose.msra.mxu0 0.0
        %3200 = vmatpush.xpose.msra.mxu0 0.0
        %3201 = vmatpush.xpose.msra.mxu0 0.0
        %3202 = vmatpush.xpose.msra.mxu0 0.0
        %3203 = vmatpush.xpose.msra.mxu0 0.0
        %3204 = vmatpush.xpose.msra.mxu0 0.0
        %3205 = vmatpush.xpose.msra.mxu0 0.0
        %3206 = vmatpush.xpose.msra.mxu0 0.0
        %3207 = vmatpush.xpose.msra.mxu0 0.0
        %3208 = vmatpush.xpose.msra.mxu0 0.0
        %3209 = vmatpush.xpose.msra.mxu0 %v3192
        %3210 = vmatmul.f32.gmra.mxu0 %v3189
        %v3211 = vpop.f32.mrf.mxu0
        %v3212 = vadd.f32 0.0, %v3211
        %3213 = vdwg.mxu0
        %v3215 = vsel %vm2158, %v2915, 0
        %v3218 = vsel %vm2158, %v3037, 0
        %3220 = vmatpush.xpose.msra.mxu0 0.0
        %3221 = vmatpush.xpose.msra.mxu0 0.0
        %3222 = vmatpush.xpose.msra.mxu0 0.0
        %3223 = vmatpush.xpose.msra.mxu0 0.0
        %3224 = vmatpush.xpose.msra.mxu0 0.0
        %3225 = vmatpush.xpose.msra.mxu0 0.0
        %3226 = vmatpush.xpose.msra.mxu0 0.0
        %3227 = vmatpush.xpose.msra.mxu0 0.0
        %3228 = vmatpush.xpose.msra.mxu0 0.0
        %3229 = vmatpush.xpose.msra.mxu0 0.0
        %3230 = vmatpush.xpose.msra.mxu0 0.0
        %3231 = vmatpush.xpose.msra.mxu0 0.0
        %3232 = vmatpush.xpose.msra.mxu0 0.0
        %3233 = vmatpush.xpose.msra.mxu0 0.0
        %3234 = vmatpush.xpose.msra.mxu0 0.0
        %3235 = vmatpush.xpose.msra.mxu0 %v3218
        %3236 = vmatmul.f32.gmra.mxu0 %v3215
        %v3237 = vpop.f32.mrf.mxu0
        %v3238 = vadd.f32 0.0, %v3237
        %3239 = vdwg.mxu0
        %v3241 = vsel %vm2158, %v2917, 0
        %v3244 = vsel %vm2158, %v3039, 0
        %3246 = vmatpush.xpose.msra.mxu0 0.0
        %3247 = vmatpush.xpose.msra.mxu0 0.0
        %3248 = vmatpush.xpose.msra.mxu0 0.0
        %3249 = vmatpush.xpose.msra.mxu0 0.0
        %3250 = vmatpush.xpose.msra.mxu0 0.0
        %3251 = vmatpush.xpose.msra.mxu0 0.0
        %3252 = vmatpush.xpose.msra.mxu0 0.0
        %3253 = vmatpush.xpose.msra.mxu0 0.0
        %3254 = vmatpush.xpose.msra.mxu0 0.0
        %3255 = vmatpush.xpose.msra.mxu0 0.0
        %3256 = vmatpush.xpose.msra.mxu0 0.0
        %3257 = vmatpush.xpose.msra.mxu0 0.0
        %3258 = vmatpush.xpose.msra.mxu0 0.0
        %3259 = vmatpush.xpose.msra.mxu0 0.0
        %3260 = vmatpush.xpose.msra.mxu0 0.0
        %3261 = vmatpush.xpose.msra.mxu0 %v3244
        %3262 = vmatmul.f32.gmra.mxu0 %v3241
        %v3263 = vpop.f32.mrf.mxu0
        %v3264 = vadd.f32 0.0, %v3263
        %3265 = vdwg.mxu0
        %v3266 = vsel %vm2158, %v3186, -inf
        %3267 = vmax.xlane.f32.xlu0 %v3266
        %v3268 = vpop.xlane.xlu0 %3267
        %v3269 = vsel %vm2158, %v3212, -inf
        %3270 = vmax.xlane.f32.xlu0 %v3269
        %v3271 = vpop.xlane.xlu0 %3270
        %v3272 = vsel %vm2158, %v3238, -inf
        %3273 = vmax.xlane.f32.xlu0 %v3272
        %v3274 = vpop.xlane.xlu0 %3273
        %v3275 = vsel %vm2158, %v3264, -inf
        %3276 = vmax.xlane.f32.xlu0 %v3275
        %v3277 = vpop.xlane.xlu0 %3276
        %v3278 = vsub.f32 %v3186, %v3268
        %v3279 = vsub.f32 %v3212, %v3271
        %v3280 = vsub.f32 %v3238, %v3274
        %v3281 = vsub.f32 %v3264, %v3277
        %v3282 = vmul.f32 %v3278, 1.442695
        %v3283 = vpow.pop %v3282
        %v3284 = vmul.f32 %v3279, 1.442695
        %v3285 = vpow.pop %v3284
        %v3286 = vmul.f32 %v3280, 1.442695
        %v3287 = vpow.pop %v3286
        %v3288 = vmul.f32 %v3281, 1.442695
        %v3289 = vpow.pop %v3288
        %v3290 = vsel %vm2158, %v3283, 0.0
        %3291 = vadd.xlane.f32.xlu0 %v3290
        %v3292 = vpop.xlane.xlu0 %3291
        %v3293 = vsel %vm2158, %v3285, 0.0
        %3294 = vadd.xlane.f32.xlu0 %v3293
        %v3295 = vpop.xlane.xlu0 %3294
        %v3296 = vsel %vm2158, %v3287, 0.0
        %3297 = vadd.xlane.f32.xlu0 %v3296
        %v3298 = vpop.xlane.xlu0 %3297
        %v3299 = vsel %vm2158, %v3289, 0.0
        %3300 = vadd.xlane.f32.xlu0 %v3299
        %v3301 = vpop.xlane.xlu0 %3300
        %v3302 = vrcp.pop %v3292
        %v3303 = vrcp.pop %v3295
        %v3304 = vrcp.pop %v3298
        %v3305 = vrcp.pop %v3301
        %v3306 = vmul.f32 %v3283, %v3302
        %v3307 = vmul.f32 %v3285, %v3303
        %v3308 = vmul.f32 %v3287, %v3304
        %v3309 = vmul.f32 %v3289, %v3305
        %v3311 = vsel %vm2158, %v3306, 0
        %3313 = vmatpush.msra.mxu0 0.0
        %3314 = vmatpush.msra.mxu0 0.0
        %3315 = vmatpush.msra.mxu0 0.0
        %3316 = vmatpush.msra.mxu0 0.0
        %3317 = vmatpush.msra.mxu0 0.0
        %3318 = vmatpush.msra.mxu0 0.0
        %3319 = vmatpush.msra.mxu0 0.0
        %3320 = vmatpush.msra.mxu0 0.0
        %3321 = vmatpush.msra.mxu0 0.0
        %3322 = vmatpush.msra.mxu0 0.0
        %3323 = vmatpush.msra.mxu0 0.0
        %3324 = vmatpush.msra.mxu0 0.0
        %3325 = vmatpush.msra.mxu0 0.0
        %3326 = vmatpush.msra.mxu0 0.0
        %3327 = vmatpush.msra.mxu0 0.0
        %3328 = vmatpush.msra.mxu0 %v3155
        %3329 = vmatmul.f32.gmra.mxu0 %v3311
        %v3330 = vpop.f32.mrf.mxu0
        %v3331 = vadd.f32 0.0, %v3330
        %3332 = vdwg.mxu0
        %v3334 = vsel %vm2158, %v3307, 0
        %3336 = vmatpush.msra.mxu0 0.0
        %3337 = vmatpush.msra.mxu0 0.0
        %3338 = vmatpush.msra.mxu0 0.0
        %3339 = vmatpush.msra.mxu0 0.0
        %3340 = vmatpush.msra.mxu0 0.0
        %3341 = vmatpush.msra.mxu0 0.0
        %3342 = vmatpush.msra.mxu0 0.0
        %3343 = vmatpush.msra.mxu0 0.0
        %3344 = vmatpush.msra.mxu0 0.0
        %3345 = vmatpush.msra.mxu0 0.0
        %3346 = vmatpush.msra.mxu0 0.0
        %3347 = vmatpush.msra.mxu0 0.0
        %3348 = vmatpush.msra.mxu0 0.0
        %3349 = vmatpush.msra.mxu0 0.0
        %3350 = vmatpush.msra.mxu0 0.0
        %3351 = vmatpush.msra.mxu0 %v3157
        %3352 = vmatmul.f32.gmra.mxu0 %v3334
        %v3353 = vpop.f32.mrf.mxu0
        %v3354 = vadd.f32 0.0, %v3353
        %3355 = vdwg.mxu0
        %v3357 = vsel %vm2158, %v3308, 0
        %3359 = vmatpush.msra.mxu0 0.0
        %3360 = vmatpush.msra.mxu0 0.0
        %3361 = vmatpush.msra.mxu0 0.0
        %3362 = vmatpush.msra.mxu0 0.0
        %3363 = vmatpush.msra.mxu0 0.0
        %3364 = vmatpush.msra.mxu0 0.0
        %3365 = vmatpush.msra.mxu0 0.0
        %3366 = vmatpush.msra.mxu0 0.0
        %3367 = vmatpush.msra.mxu0 0.0
        %3368 = vmatpush.msra.mxu0 0.0
        %3369 = vmatpush.msra.mxu0 0.0
        %3370 = vmatpush.msra.mxu0 0.0
        %3371 = vmatpush.msra.mxu0 0.0
        %3372 = vmatpush.msra.mxu0 0.0
        %3373 = vmatpush.msra.mxu0 0.0
        %3374 = vmatpush.msra.mxu0 %v3159
        %3375 = vmatmul.f32.gmra.mxu0 %v3357
        %v3376 = vpop.f32.mrf.mxu0
        %v3377 = vadd.f32 0.0, %v3376
        %3378 = vdwg.mxu0
        %v3380 = vsel %vm2158, %v3309, 0
        %3382 = vmatpush.msra.mxu0 0.0
        %3383 = vmatpush.msra.mxu0 0.0
        %3384 = vmatpush.msra.mxu0 0.0
        %3385 = vmatpush.msra.mxu0 0.0
        %3386 = vmatpush.msra.mxu0 0.0
        %3387 = vmatpush.msra.mxu0 0.0
        %3388 = vmatpush.msra.mxu0 0.0
        %3389 = vmatpush.msra.mxu0 0.0
        %3390 = vmatpush.msra.mxu0 0.0
        %3391 = vmatpush.msra.mxu0 0.0
        %3392 = vmatpush.msra.mxu0 0.0
        %3393 = vmatpush.msra.mxu0 0.0
        %3394 = vmatpush.msra.mxu0 0.0
        %3395 = vmatpush.msra.mxu0 0.0
        %3396 = vmatpush.msra.mxu0 0.0
        %3397 = vmatpush.msra.mxu0 %v3161
        %3398 = vmatmul.f32.gmra.mxu0 %v3380
        %v3399 = vpop.f32.mrf.mxu0
        %v3400 = vadd.f32 0.0, %v3399
        %3401 = vdwg.mxu0
        %v3402 = vrot.slane %v3377, 4
        %v3403 = vsel %vm1804, %v3402, %v3331
        %v3404 = vrot.slane %v3331, 4
        %v3405 = vsel %vm1804, %v3377, %v3404
        %v3407 = vunpack.c.l.s4 1983009808
        %v3408 = vunpack.c.0.s8 %v3407
        %v3409 = vperm.slane %v3403, %v3408
        %v3411 = vunpack.c.l.s4 1983009808
        %v3412 = vunpack.c.0.s8 %v3411
        %v3413 = vperm.slane %v3405, %v3412
        %v3414 = vrot.slane %v3400, 4
        %v3415 = vsel %vm1804, %v3414, %v3354
        %v3416 = vrot.slane %v3354, 4
        %v3417 = vsel %vm1804, %v3400, %v3416
        %v3419 = vunpack.c.l.s4 1983009808
        %v3420 = vunpack.c.0.s8 %v3419
        %v3421 = vperm.slane %v3415, %v3420
        %v3423 = vunpack.c.l.s4 1983009808
        %v3424 = vunpack.c.0.s8 %v3423
        %v3425 = vperm.slane %v3417, %v3424
        %v3426 = vrot.slane %v3421, 4
        %v3427 = vsel %vm1804, %v3426, %v3409
        %v3428 = vrot.slane %v3409, 4
        %v3429 = vsel %vm1804, %v3421, %v3428
        %v3431 = vunpack.c.l.s4 1934713408
        %v3432 = vunpack.c.0.s8 %v3431
        %v3433 = vperm.slane %v3427, %v3432
        %v3435 = vunpack.c.l.s4 1934713408
        %v3436 = vunpack.c.0.s8 %v3435
        %v3437 = vperm.slane %v3429, %v3436
        %v3438 = vrot.slane %v3425, 4
        %v3439 = vsel %vm1804, %v3438, %v3413
        %v3440 = vrot.slane %v3413, 4
        %v3441 = vsel %vm1804, %v3425, %v3440
        %v3443 = vunpack.c.l.s4 1934713408
        %v3444 = vunpack.c.0.s8 %v3443
        %v3445 = vperm.slane %v3439, %v3444
        %v3447 = vunpack.c.l.s4 1934713408
        %v3448 = vunpack.c.0.s8 %v3447
        %v3449 = vperm.slane %v3441, %v3448
        %v3450 = vrot.slane %v3433, 4
        %v3451 = vsel %vm1804, 0.0, %v3450
        %v3452 = vrot.slane %v3437, 4
        %v3453 = vsel %vm1804, 0.0, %v3452
        %v3454 = vrot.slane %v3445, 4
        %v3455 = vsel %vm1804, 0.0, %v3454
        %v3456 = vrot.slane %v3449, 4
        %v3457 = vsel %vm1804, 0.0, %v3456
        %v3458 = vsel %vm1804, %v3452, %v3433
        %v3460 = vunpack.c.l.s4 1983009808
        %v3461 = vunpack.c.0.s8 %v3460
        %v3462 = vperm.slane %v3458, %v3461
        %v3463 = vrot.slane %v3453, 4
        %v3464 = vsel %vm1804, %v3463, %v3451
        %v3466 = vunpack.c.l.s4 1983009808
        %v3467 = vunpack.c.0.s8 %v3466
        %v3468 = vperm.slane %v3464, %v3467
        %v3469 = vsel %vm1804, %v3456, %v3445
        %v3471 = vunpack.c.l.s4 1983009808
        %v3472 = vunpack.c.0.s8 %v3471
        %v3473 = vperm.slane %v3469, %v3472
        %v3474 = vrot.slane %v3457, 4
        %v3475 = vsel %vm1804, %v3474, %v3455
        %v3477 = vunpack.c.l.s4 1983009808
        %v3478 = vunpack.c.0.s8 %v3477
        %v3479 = vperm.slane %v3475, %v3478
        %v3480 = vrot.slane %v3468, 4
        %v3481 = vsel %vm1804, %v3480, %v3462
        %v3482 = vrot.slane %v3462, 4
        %v3483 = vsel %vm1804, %v3468, %v3482
        %v3485 = vunpack.c.l.s4 1934713408
        %v3486 = vunpack.c.0.s8 %v3485
        %v3487 = vperm.slane %v3481, %v3486
        %v3489 = vunpack.c.l.s4 1934713408
        %v3490 = vunpack.c.0.s8 %v3489
        %v3491 = vperm.slane %v3483, %v3490
        %v3492 = vrot.slane %v3479, 4
        %v3493 = vsel %vm1804, %v3492, %v3473
        %v3494 = vrot.slane %v3473, 4
        %v3495 = vsel %vm1804, %v3479, %v3494
        %v3497 = vunpack.c.l.s4 1934713408
        %v3498 = vunpack.c.0.s8 %v3497
        %v3499 = vperm.slane %v3493, %v3498
        %v3501 = vunpack.c.l.s4 1934713408
        %v3502 = vunpack.c.0.s8 %v3501
        %v3503 = vperm.slane %v3495, %v3502
        %v3504 = vrot.slane %v3499, 4
        %v3505 = vsel %vm1804, %v3504, %v3487
        %v3506 = vrot.slane %v3487, 4
        %v3507 = vsel %vm1804, %v3499, %v3506
        %v3508 = vrot.slane %v3503, 4
        %v3509 = vsel %vm1804, %v3508, %v3491
        %v3510 = vrot.slane %v3491, 4
        %v3511 = vsel %vm1804, %v3503, %v3510
        %3513 = vrot.lane.b32.xlu0 %v3507, 8
        %v3514 = vpop.permute.xlu0 %3513
        %3517 = vrot.lane.b32.xlu0 %v3509, 16
        %v3518 = vpop.permute.xlu0 %3517
        %3521 = vrot.lane.b32.xlu0 %v3511, 24
        %v3522 = vpop.permute.xlu0 %3521
        %v3524 = vsel %vm2158, %v3505, %v3514
        %v3525 = vsel %vm2522, %v3524, %v3518
        %v3526 = vsel %vm2524, %v3525, %v3522
        %v3528 = vperm.slane %v2771, 0
        %v3531 = vsel %vm1769, %v3526, 0
        %3533 = vmatpush.msra.mxu0 0.0
        %3534 = vmatpush.msra.mxu0 0.0
        %3535 = vmatpush.msra.mxu0 0.0
        %3536 = vmatpush.msra.mxu0 0.0
        %3537 = vmatpush.msra.mxu0 0.0
        %3538 = vmatpush.msra.mxu0 0.0
        %3539 = vmatpush.msra.mxu0 0.0
        %3540 = vmatpush.msra.mxu0 0.0
        %3541 = vmatpush.msra.mxu0 0.0
        %3542 = vmatpush.msra.mxu0 0.0
        %3543 = vmatpush.msra.mxu0 0.0
        %3544 = vmatpush.msra.mxu0 0.0
        %3545 = vmatpush.msra.mxu0 %v2769
        %3546 = vmatpush.msra.mxu0 %v2768
        %3547 = vmatpush.msra.mxu0 %v2767
        %3548 = vmatpush.msra.mxu0 %v2766
        %3549 = vmatmul.f32.gmra.mxu0 %v3531
        %v3550 = vpop.f32.mrf.mxu0
        %v3551 = vadd.f32 %v3528, %v3550
        %3552 = vdwg.mxu0
        %v3553 = vadd.f32 %v2757, %v3551
        %s3554 = scalar_lea.vmem [#allocation7], 1
        %v3555 = vld [vmem:[%s3554] sm:$0x1]
        %s3556 = scalar_lea.vmem [#allocation8], 1
        %v3557 = vld [vmem:[%s3556] sm:$0x1]
        %v3558 = vmul.f32 %v3553, %v3553
        %3560 = vrot.lane.b32.xlu0 %v3558, 32
        %v3561 = vpop.permute.xlu0 %3560
        %v3563 = vsel %vm1769, %v3553, %v3561
        %v3565 = vsel %vm2561, %v3563, 0
        %3567 = vmatpush.msra.mxu0 0.0
        %3568 = vmatpush.msra.mxu0 0.0
        %3569 = vmatpush.msra.mxu0 0.0
        %3570 = vmatpush.msra.mxu0 0.0
        %3571 = vmatpush.msra.mxu0 0.0
        %3572 = vmatpush.msra.mxu0 0.0
        %3573 = vmatpush.msra.mxu0 0.0
        %3574 = vmatpush.msra.mxu0 0.0
        %3575 = vmatpush.msra.mxu0 %v1754
        %3576 = vmatpush.msra.mxu0 %v1753
        %3577 = vmatpush.msra.mxu0 %v1752
        %3578 = vmatpush.msra.mxu0 %v1751
        %3579 = vmatpush.msra.mxu0 %v1750
        %3580 = vmatpush.msra.mxu0 %v1749
        %3581 = vmatpush.msra.mxu0 %v1748
        %3582 = vmatpush.msra.mxu0 %v1747
        %3583 = vmatmul.f32.gmra.mxu0 %v3565
        %v3584 = vpop.f32.mrf.mxu0
        %v3585 = vadd.f32 0.0, %v3584
        %3586 = vdwg.mxu0
        %v3587 = vmul.f32 %v3585, %v3585
        %3589 = vrot.lane.b32.xlu0 %v3587, 1
        %v3590 = vpop.permute.xlu0 %3589
        %v3592 = vsub.f32 %v3585, %v3590
        %3594 = vset.pattern.permute.xlu0 0
        %3595 = vperm.xlu0 %3594, %v3585
        %v3596 = vpop.permute.xlu0 %3595
        %v3598 = vsub.f32 %v3553, %v3596
        %v3599 = vadd.f32 %v3592, 1e-05
        %v3600 = vrsqrt.pop %v3599
        %v3601 = vmul.f32 %v3600, %v3599
        %v3602 = vmul.f32 %v3601, %v3600
        %v3603 = vmul.f32 0.5, %v3602
        %v3604 = vsub.f32 1.5, %v3603
        %v3605 = vmul.f32 %v3600, %v3604
        %vm3606 = vweird.f32 %v3599
        %vm3607 = vweird.f32 %v3600
        %vm3608 = vmor %vm3606, %vm3607
        %v3609 = vsel %vm3608, %v3600, %v3605
        %3611 = vset.pattern.permute.xlu0 1
        %3612 = vperm.xlu0 %3611, %v3609
        %v3613 = vpop.permute.xlu0 %3612
        %v3615 = vmul.f32 %v3598, %v3613
        %v3617 = vperm.slane %v3555, 0
        %v3619 = vmul.f32 %v3615, %v3617
        %v3621 = vperm.slane %v3557, 0
        %v3623 = vadd.f32 %v3619, %v3621
        %s3624 = scalar_lea.vmem %s19, 32
        %v3625 = vld [vmem:[%s3624] sm:$0xff]
        %v3626 = vld [vmem:[%s3624 + $0x8] sm:$0xff]
        %v3627 = vld [vmem:[%s3624 + $0x10] sm:$0xff]
        %v3628 = vld [vmem:[%s3624 + $0x18] sm:$0xff]
        %s3629 = scalar_lea.vmem [#allocation10], 1
        %v3630 = vld [vmem:[%s3629] sm:$0x1]
        %s3631 = scalar_lea.vmem %s23, 64
        %v3632 = vld [vmem:[%s3631] sm:$0xff]
        %v3633 = vld [vmem:[%s3631 + $0x8] sm:$0xff]
        %v3634 = vld [vmem:[%s3631 + $0x10] sm:$0xff]
        %v3635 = vld [vmem:[%s3631 + $0x18] sm:$0xff]
        %v3636 = vld [vmem:[%s3631 + $0x20] sm:$0xff]
        %v3637 = vld [vmem:[%s3631 + $0x28] sm:$0xff]
        %v3638 = vld [vmem:[%s3631 + $0x30] sm:$0xff]
        %v3639 = vld [vmem:[%s3631 + $0x38] sm:$0xff]
        %s3640 = scalar_lea.vmem [#allocation11], 1
        %v3641 = vld [vmem:[%s3640] sm:$0x1]
        %v3643 = vperm.slane %v3630, 0
        %v3646 = vsel %vm1769, %v3623, 0
        %3648 = vmatpush.msra.mxu0 0.0
        %3649 = vmatpush.msra.mxu0 0.0
        %3650 = vmatpush.msra.mxu0 0.0
        %3651 = vmatpush.msra.mxu0 0.0
        %3652 = vmatpush.msra.mxu0 0.0
        %3653 = vmatpush.msra.mxu0 0.0
        %3654 = vmatpush.msra.mxu0 0.0
        %3655 = vmatpush.msra.mxu0 0.0
        %3656 = vmatpush.msra.mxu0 0.0
        %3657 = vmatpush.msra.mxu0 0.0
        %3658 = vmatpush.msra.mxu0 0.0
        %3659 = vmatpush.msra.mxu0 0.0
        %3660 = vmatpush.msra.mxu0 %v3628
        %3661 = vmatpush.msra.mxu0 %v3627
        %3662 = vmatpush.msra.mxu0 %v3626
        %3663 = vmatpush.msra.mxu0 %v3625
        %3664 = vmatmul.f32.gmra.mxu0 %v3646
        %v3665 = vpop.f32.mrf.mxu0
        %v3666 = vadd.f32 %v3643, %v3665
        %3667 = vdwg.mxu0
        %v3668 = vmax.f32 %v3666, 0.0
        %v3670 = vperm.slane %v3641, 0
        %v3673 = vsel %vm2561, %v3668, 0
        %3675 = vmatpush.msra.mxu0 0.0
        %3676 = vmatpush.msra.mxu0 0.0
        %3677 = vmatpush.msra.mxu0 0.0
        %3678 = vmatpush.msra.mxu0 0.0
        %3679 = vmatpush.msra.mxu0 0.0
        %3680 = vmatpush.msra.mxu0 0.0
        %3681 = vmatpush.msra.mxu0 0.0
        %3682 = vmatpush.msra.mxu0 0.0
        %3683 = vmatpush.msra.mxu0 %v3639
        %3684 = vmatpush.msra.mxu0 %v3638
        %3685 = vmatpush.msra.mxu0 %v3637
        %3686 = vmatpush.msra.mxu0 %v3636
        %3687 = vmatpush.msra.mxu0 %v3635
        %3688 = vmatpush.msra.mxu0 %v3634
        %3689 = vmatpush.msra.mxu0 %v3633
        %3690 = vmatpush.msra.mxu0 %v3632
        %3691 = vmatmul.f32.gmra.mxu0 %v3673
        %v3692 = vpop.f32.mrf.mxu0
        %v3693 = vadd.f32 %v3670, %v3692
        %3694 = vdwg.mxu0
        %v3695 = vadd.f32 %v3623, %v3693
        %s3696 = scalar_lea.vmem [#allocation13], 1
        %v3697 = vld [vmem:[%s3696] sm:$0x1]
        %s3698 = scalar_lea.vmem [#allocation14], 1
        %v3699 = vld [vmem:[%s3698] sm:$0x1]
        %v3700 = vmul.f32 %v3695, %v3695
        %3702 = vrot.lane.b32.xlu0 %v3700, 32
        %v3703 = vpop.permute.xlu0 %3702
        %v3705 = vsel %vm1769, %v3695, %v3703
        %v3707 = vsel %vm2561, %v3705, 0
        %3709 = vmatpush.msra.mxu0 0.0
        %3710 = vmatpush.msra.mxu0 0.0
        %3711 = vmatpush.msra.mxu0 0.0
        %3712 = vmatpush.msra.mxu0 0.0
        %3713 = vmatpush.msra.mxu0 0.0
        %3714 = vmatpush.msra.mxu0 0.0
        %3715 = vmatpush.msra.mxu0 0.0
        %3716 = vmatpush.msra.mxu0 0.0
        %3717 = vmatpush.msra.mxu0 %v1754
        %3718 = vmatpush.msra.mxu0 %v1753
        %3719 = vmatpush.msra.mxu0 %v1752
        %3720 = vmatpush.msra.mxu0 %v1751
        %3721 = vmatpush.msra.mxu0 %v1750
        %3722 = vmatpush.msra.mxu0 %v1749
        %3723 = vmatpush.msra.mxu0 %v1748
        %3724 = vmatpush.msra.mxu0 %v1747
        %3725 = vmatmul.f32.gmra.mxu0 %v3707
        %v3726 = vpop.f32.mrf.mxu0
        %v3727 = vadd.f32 0.0, %v3726
        %3728 = vdwg.mxu0
        %v3729 = vmul.f32 %v3727, %v3727
        %3731 = vrot.lane.b32.xlu0 %v3729, 1
        %v3732 = vpop.permute.xlu0 %3731
        %v3734 = vsub.f32 %v3727, %v3732
        %3736 = vset.pattern.permute.xlu0 0
        %3737 = vperm.xlu0 %3736, %v3727
        %v3738 = vpop.permute.xlu0 %3737
        %v3740 = vsub.f32 %v3695, %v3738
        %v3741 = vadd.f32 %v3734, 1e-05
        %v3742 = vrsqrt.pop %v3741
        %v3743 = vmul.f32 %v3742, %v3741
        %v3744 = vmul.f32 %v3743, %v3742
        %v3745 = vmul.f32 0.5, %v3744
        %v3746 = vsub.f32 1.5, %v3745
        %v3747 = vmul.f32 %v3742, %v3746
        %vm3748 = vweird.f32 %v3741
        %vm3749 = vweird.f32 %v3742
        %vm3750 = vmor %vm3748, %vm3749
        %v3751 = vsel %vm3750, %v3742, %v3747
        %3753 = vset.pattern.permute.xlu0 1
        %3754 = vperm.xlu0 %3753, %v3751
        %v3755 = vpop.permute.xlu0 %3754
        %v3757 = vmul.f32 %v3740, %v3755
        %v3759 = vperm.slane %v3697, 0
        %v3761 = vmul.f32 %v3757, %v3759
        %v3763 = vperm.slane %v3699, 0
        %v3765 = vadd.f32 %v3761, %v3763
        %v3766 = vld [vmem:[#allocation16] sm:$0x1]
        %v3767 = vld [vmem:[#allocation17] sm:$0x1]
        %v3768 = vmul.f32 %v3765, %v3765
        %3770 = vrot.lane.b32.xlu0 %v3768, 32
        %v3771 = vpop.permute.xlu0 %3770
        %v3773 = vsel %vm1769, %v3765, %v3771
        %v3775 = vsel %vm2561, %v3773, 0
        %3777 = vmatpush.msra.mxu0 0.0
        %3778 = vmatpush.msra.mxu0 0.0
        %3779 = vmatpush.msra.mxu0 0.0
        %3780 = vmatpush.msra.mxu0 0.0
        %3781 = vmatpush.msra.mxu0 0.0
        %3782 = vmatpush.msra.mxu0 0.0
        %3783 = vmatpush.msra.mxu0 0.0
        %3784 = vmatpush.msra.mxu0 0.0
        %3785 = vmatpush.msra.mxu0 %v1754
        %3786 = vmatpush.msra.mxu0 %v1753
        %3787 = vmatpush.msra.mxu0 %v1752
        %3788 = vmatpush.msra.mxu0 %v1751
        %3789 = vmatpush.msra.mxu0 %v1750
        %3790 = vmatpush.msra.mxu0 %v1749
        %3791 = vmatpush.msra.mxu0 %v1748
        %3792 = vmatpush.msra.mxu0 %v1747
        %3793 = vmatmul.f32.gmra.mxu0 %v3775
        %v3794 = vpop.f32.mrf.mxu0
        %v3795 = vadd.f32 0.0, %v3794
        %3796 = vdwg.mxu0
        %v3797 = vmul.f32 %v3795, %v3795
        %3799 = vrot.lane.b32.xlu0 %v3797, 1
        %v3800 = vpop.permute.xlu0 %3799
        %v3802 = vsub.f32 %v3795, %v3800
        %3804 = vset.pattern.permute.xlu0 0
        %3805 = vperm.xlu0 %3804, %v3795
        %v3806 = vpop.permute.xlu0 %3805
        %v3808 = vsub.f32 %v3765, %v3806
        %v3809 = vadd.f32 %v3802, 1e-05
        %v3810 = vrsqrt.pop %v3809
        %v3811 = vmul.f32 %v3810, %v3809
        %v3812 = vmul.f32 %v3811, %v3810
        %v3813 = vmul.f32 0.5, %v3812
        %v3814 = vsub.f32 1.5, %v3813
        %v3815 = vmul.f32 %v3810, %v3814
        %vm3816 = vweird.f32 %v3809
        %vm3817 = vweird.f32 %v3810
        %vm3818 = vmor %vm3816, %vm3817
        %v3819 = vsel %vm3818, %v3810, %v3815
        %3821 = vset.pattern.permute.xlu0 1
        %3822 = vperm.xlu0 %3821, %v3819
        %v3823 = vpop.permute.xlu0 %3822
        %v3825 = vmul.f32 %v3808, %v3823
        %v3827 = vperm.slane %v3766, 0
        %v3829 = vmul.f32 %v3825, %v3827
        %v3831 = vperm.slane %v3767, 0
        %v3833 = vadd.f32 %v3829, %v3831
        %v3834 = vld [vmem:[%s1502] sm:$0xff]
        %v3835 = vld [vmem:[%s35] sm:$0xff]
        %v3836 = vld [vmem:[%s35 + $0x8] sm:$0xff]
        %v3837 = vld [vmem:[%s35 + $0x10] sm:$0xff]
        %v3838 = vld [vmem:[%s35 + $0x18] sm:$0xff]
        %v3839 = vld [vmem:[#allocation19] sm:$0x1]
        %v3840 = vld [vmem:[%s39] sm:$0xff]
        %v3841 = vld [vmem:[%s39 + $0x8] sm:$0xff]
        %v3842 = vld [vmem:[%s39 + $0x10] sm:$0xff]
        %v3843 = vld [vmem:[%s39 + $0x18] sm:$0xff]
        %v3844 = vld [vmem:[#allocation20] sm:$0x1]
        %v3846 = vperm.slane %v3839, 0
        %v3849 = vsel %vm1769, %v3834, 0
        %3851 = vmatpush.msra.mxu0 0.0
        %3852 = vmatpush.msra.mxu0 0.0
        %3853 = vmatpush.msra.mxu0 0.0
        %3854 = vmatpush.msra.mxu0 0.0
        %3855 = vmatpush.msra.mxu0 0.0
        %3856 = vmatpush.msra.mxu0 0.0
        %3857 = vmatpush.msra.mxu0 0.0
        %3858 = vmatpush.msra.mxu0 0.0
        %3859 = vmatpush.msra.mxu0 0.0
        %3860 = vmatpush.msra.mxu0 0.0
        %3861 = vmatpush.msra.mxu0 0.0
        %3862 = vmatpush.msra.mxu0 0.0
        %3863 = vmatpush.msra.mxu0 %v3838
        %3864 = vmatpush.msra.mxu0 %v3837
        %3865 = vmatpush.msra.mxu0 %v3836
        %3866 = vmatpush.msra.mxu0 %v3835
        %3867 = vmatmul.f32.gmra.mxu0 %v3849
        %v3868 = vpop.f32.mrf.mxu0
        %v3869 = vadd.f32 %v3846, %v3868
        %3870 = vdwg.mxu0
        %3872 = vrot.lane.b32.xlu0 %v3869, 120
        %v3873 = vpop.permute.xlu0 %3872
        %3875 = vrot.lane.b32.xlu0 %v3869, 112
        %v3876 = vpop.permute.xlu0 %3875
        %3878 = vrot.lane.b32.xlu0 %v3869, 104
        %v3879 = vpop.permute.xlu0 %3878
        %v3881 = vrot.slane %v3876, 4
        %v3882 = vsel %vm1804, %v3881, %v3869
        %v3883 = vrot.slane %v3869, 4
        %v3884 = vsel %vm1804, %v3876, %v3883
        %v3886 = vunpack.c.l.s4 1983009808
        %v3887 = vunpack.c.0.s8 %v3886
        %v3888 = vperm.slane %v3882, %v3887
        %v3890 = vunpack.c.l.s4 1983009808
        %v3891 = vunpack.c.0.s8 %v3890
        %v3892 = vperm.slane %v3884, %v3891
        %v3893 = vrot.slane %v3879, 4
        %v3894 = vsel %vm1804, %v3893, %v3873
        %v3895 = vrot.slane %v3873, 4
        %v3896 = vsel %vm1804, %v3879, %v3895
        %v3898 = vunpack.c.l.s4 1983009808
        %v3899 = vunpack.c.0.s8 %v3898
        %v3900 = vperm.slane %v3894, %v3899
        %v3902 = vunpack.c.l.s4 1983009808
        %v3903 = vunpack.c.0.s8 %v3902
        %v3904 = vperm.slane %v3896, %v3903
        %v3905 = vrot.slane %v3900, 4
        %v3906 = vsel %vm1804, %v3905, %v3888
        %v3907 = vrot.slane %v3888, 4
        %v3908 = vsel %vm1804, %v3900, %v3907
        %v3910 = vunpack.c.l.s4 1934713408
        %v3911 = vunpack.c.0.s8 %v3910
        %v3912 = vperm.slane %v3906, %v3911
        %v3914 = vunpack.c.l.s4 1934713408
        %v3915 = vunpack.c.0.s8 %v3914
        %v3916 = vperm.slane %v3908, %v3915
        %v3917 = vrot.slane %v3904, 4
        %v3918 = vsel %vm1804, %v3917, %v3892
        %v3919 = vrot.slane %v3892, 4
        %v3920 = vsel %vm1804, %v3904, %v3919
        %v3922 = vunpack.c.l.s4 1934713408
        %v3923 = vunpack.c.0.s8 %v3922
        %v3924 = vperm.slane %v3918, %v3923
        %v3926 = vunpack.c.l.s4 1934713408
        %v3927 = vunpack.c.0.s8 %v3926
        %v3928 = vperm.slane %v3920, %v3927
        %v3929 = vrot.slane %v3912, 4
        %v3930 = vsel %vm1804, 0.0, %v3929
        %v3931 = vrot.slane %v3916, 4
        %v3932 = vsel %vm1804, 0.0, %v3931
        %v3933 = vrot.slane %v3924, 4
        %v3934 = vsel %vm1804, 0.0, %v3933
        %v3935 = vrot.slane %v3928, 4
        %v3936 = vsel %vm1804, 0.0, %v3935
        %v3937 = vsel %vm1804, %v3931, %v3912
        %v3939 = vunpack.c.l.s4 1983009808
        %v3940 = vunpack.c.0.s8 %v3939
        %v3941 = vperm.slane %v3937, %v3940
        %v3942 = vrot.slane %v3932, 4
        %v3943 = vsel %vm1804, %v3942, %v3930
        %v3945 = vunpack.c.l.s4 1983009808
        %v3946 = vunpack.c.0.s8 %v3945
        %v3947 = vperm.slane %v3943, %v3946
        %v3948 = vsel %vm1804, %v3935, %v3924
        %v3950 = vunpack.c.l.s4 1983009808
        %v3951 = vunpack.c.0.s8 %v3950
        %v3952 = vperm.slane %v3948, %v3951
        %v3953 = vrot.slane %v3936, 4
        %v3954 = vsel %vm1804, %v3953, %v3934
        %v3956 = vunpack.c.l.s4 1983009808
        %v3957 = vunpack.c.0.s8 %v3956
        %v3958 = vperm.slane %v3954, %v3957
        %v3959 = vrot.slane %v3947, 4
        %v3960 = vsel %vm1804, %v3959, %v3941
        %v3961 = vrot.slane %v3941, 4
        %v3962 = vsel %vm1804, %v3947, %v3961
        %v3964 = vunpack.c.l.s4 1934713408
        %v3965 = vunpack.c.0.s8 %v3964
        %v3966 = vperm.slane %v3960, %v3965
        %v3968 = vunpack.c.l.s4 1934713408
        %v3969 = vunpack.c.0.s8 %v3968
        %v3970 = vperm.slane %v3962, %v3969
        %v3971 = vrot.slane %v3958, 4
        %v3972 = vsel %vm1804, %v3971, %v3952
        %v3973 = vrot.slane %v3952, 4
        %v3974 = vsel %vm1804, %v3958, %v3973
        %v3976 = vunpack.c.l.s4 1934713408
        %v3977 = vunpack.c.0.s8 %v3976
        %v3978 = vperm.slane %v3972, %v3977
        %v3980 = vunpack.c.l.s4 1934713408
        %v3981 = vunpack.c.0.s8 %v3980
        %v3982 = vperm.slane %v3974, %v3981
        %v3983 = vrot.slane %v3978, 4
        %v3984 = vsel %vm1804, %v3983, %v3966
        %v3985 = vrot.slane %v3966, 4
        %v3986 = vsel %vm1804, %v3978, %v3985
        %v3987 = vrot.slane %v3982, 4
        %v3988 = vsel %vm1804, %v3987, %v3970
        %v3989 = vrot.slane %v3970, 4
        %v3990 = vsel %vm1804, %v3982, %v3989
        %3991 = vrot.lane.b32.xlu0 %v3869, 96
        %v3992 = vpop.permute.xlu0 %3991
        %3993 = vrot.lane.b32.xlu0 %v3873, 96
        %v3994 = vpop.permute.xlu0 %3993
        %3995 = vrot.lane.b32.xlu0 %v3876, 96
        %v3996 = vpop.permute.xlu0 %3995
        %3997 = vrot.lane.b32.xlu0 %v3879, 96
        %v3998 = vpop.permute.xlu0 %3997
        %v4003 = vrot.slane %v3996, 4
        %v4004 = vsel %vm1804, %v4003, %v3992
        %v4005 = vrot.slane %v3992, 4
        %v4006 = vsel %vm1804, %v3996, %v4005
        %v4008 = vunpack.c.l.s4 1983009808
        %v4009 = vunpack.c.0.s8 %v4008
        %v4010 = vperm.slane %v4004, %v4009
        %v4012 = vunpack.c.l.s4 1983009808
        %v4013 = vunpack.c.0.s8 %v4012
        %v4014 = vperm.slane %v4006, %v4013
        %v4015 = vrot.slane %v3998, 4
        %v4016 = vsel %vm1804, %v4015, %v3994
        %v4017 = vrot.slane %v3994, 4
        %v4018 = vsel %vm1804, %v3998, %v4017
        %v4020 = vunpack.c.l.s4 1983009808
        %v4021 = vunpack.c.0.s8 %v4020
        %v4022 = vperm.slane %v4016, %v4021
        %v4024 = vunpack.c.l.s4 1983009808
        %v4025 = vunpack.c.0.s8 %v4024
        %v4026 = vperm.slane %v4018, %v4025
        %v4027 = vrot.slane %v4022, 4
        %v4028 = vsel %vm1804, %v4027, %v4010
        %v4029 = vrot.slane %v4010, 4
        %v4030 = vsel %vm1804, %v4022, %v4029
        %v4032 = vunpack.c.l.s4 1934713408
        %v4033 = vunpack.c.0.s8 %v4032
        %v4034 = vperm.slane %v4028, %v4033
        %v4036 = vunpack.c.l.s4 1934713408
        %v4037 = vunpack.c.0.s8 %v4036
        %v4038 = vperm.slane %v4030, %v4037
        %v4039 = vrot.slane %v4026, 4
        %v4040 = vsel %vm1804, %v4039, %v4014
        %v4041 = vrot.slane %v4014, 4
        %v4042 = vsel %vm1804, %v4026, %v4041
        %v4044 = vunpack.c.l.s4 1934713408
        %v4045 = vunpack.c.0.s8 %v4044
        %v4046 = vperm.slane %v4040, %v4045
        %v4048 = vunpack.c.l.s4 1934713408
        %v4049 = vunpack.c.0.s8 %v4048
        %v4050 = vperm.slane %v4042, %v4049
        %v4051 = vrot.slane %v4034, 4
        %v4052 = vsel %vm1804, 0.0, %v4051
        %v4053 = vrot.slane %v4038, 4
        %v4054 = vsel %vm1804, 0.0, %v4053
        %v4055 = vrot.slane %v4046, 4
        %v4056 = vsel %vm1804, 0.0, %v4055
        %v4057 = vrot.slane %v4050, 4
        %v4058 = vsel %vm1804, 0.0, %v4057
        %v4059 = vsel %vm1804, %v4053, %v4034
        %v4061 = vunpack.c.l.s4 1983009808
        %v4062 = vunpack.c.0.s8 %v4061
        %v4063 = vperm.slane %v4059, %v4062
        %v4064 = vrot.slane %v4054, 4
        %v4065 = vsel %vm1804, %v4064, %v4052
        %v4067 = vunpack.c.l.s4 1983009808
        %v4068 = vunpack.c.0.s8 %v4067
        %v4069 = vperm.slane %v4065, %v4068
        %v4070 = vsel %vm1804, %v4057, %v4046
        %v4072 = vunpack.c.l.s4 1983009808
        %v4073 = vunpack.c.0.s8 %v4072
        %v4074 = vperm.slane %v4070, %v4073
        %v4075 = vrot.slane %v4058, 4
        %v4076 = vsel %vm1804, %v4075, %v4056
        %v4078 = vunpack.c.l.s4 1983009808
        %v4079 = vunpack.c.0.s8 %v4078
        %v4080 = vperm.slane %v4076, %v4079
        %v4081 = vrot.slane %v4069, 4
        %v4082 = vsel %vm1804, %v4081, %v4063
        %v4083 = vrot.slane %v4063, 4
        %v4084 = vsel %vm1804, %v4069, %v4083
        %v4086 = vunpack.c.l.s4 1934713408
        %v4087 = vunpack.c.0.s8 %v4086
        %v4088 = vperm.slane %v4082, %v4087
        %v4090 = vunpack.c.l.s4 1934713408
        %v4091 = vunpack.c.0.s8 %v4090
        %v4092 = vperm.slane %v4084, %v4091
        %v4093 = vrot.slane %v4080, 4
        %v4094 = vsel %vm1804, %v4093, %v4074
        %v4095 = vrot.slane %v4074, 4
        %v4096 = vsel %vm1804, %v4080, %v4095
        %v4098 = vunpack.c.l.s4 1934713408
        %v4099 = vunpack.c.0.s8 %v4098
        %v4100 = vperm.slane %v4094, %v4099
        %v4102 = vunpack.c.l.s4 1934713408
        %v4103 = vunpack.c.0.s8 %v4102
        %v4104 = vperm.slane %v4096, %v4103
        %v4105 = vrot.slane %v4100, 4
        %v4106 = vsel %vm1804, %v4105, %v4088
        %v4107 = vrot.slane %v4088, 4
        %v4108 = vsel %vm1804, %v4100, %v4107
        %v4109 = vrot.slane %v4104, 4
        %v4110 = vsel %vm1804, %v4109, %v4092
        %v4111 = vrot.slane %v4092, 4
        %v4112 = vsel %vm1804, %v4104, %v4111
        %4113 = vrot.lane.b32.xlu0 %v3869, 64
        %v4114 = vpop.permute.xlu0 %4113
        %4115 = vrot.lane.b32.xlu0 %v3873, 64
        %v4116 = vpop.permute.xlu0 %4115
        %4117 = vrot.lane.b32.xlu0 %v3876, 64
        %v4118 = vpop.permute.xlu0 %4117
        %4119 = vrot.lane.b32.xlu0 %v3879, 64
        %v4120 = vpop.permute.xlu0 %4119
        %v4125 = vrot.slane %v4118, 4
        %v4126 = vsel %vm1804, %v4125, %v4114
        %v4127 = vrot.slane %v4114, 4
        %v4128 = vsel %vm1804, %v4118, %v4127
        %v4130 = vunpack.c.l.s4 1983009808
        %v4131 = vunpack.c.0.s8 %v4130
        %v4132 = vperm.slane %v4126, %v4131
        %v4134 = vunpack.c.l.s4 1983009808
        %v4135 = vunpack.c.0.s8 %v4134
        %v4136 = vperm.slane %v4128, %v4135
        %v4137 = vrot.slane %v4120, 4
        %v4138 = vsel %vm1804, %v4137, %v4116
        %v4139 = vrot.slane %v4116, 4
        %v4140 = vsel %vm1804, %v4120, %v4139
        %v4142 = vunpack.c.l.s4 1983009808
        %v4143 = vunpack.c.0.s8 %v4142
        %v4144 = vperm.slane %v4138, %v4143
        %v4146 = vunpack.c.l.s4 1983009808
        %v4147 = vunpack.c.0.s8 %v4146
        %v4148 = vperm.slane %v4140, %v4147
        %v4149 = vrot.slane %v4144, 4
        %v4150 = vsel %vm1804, %v4149, %v4132
        %v4151 = vrot.slane %v4132, 4
        %v4152 = vsel %vm1804, %v4144, %v4151
        %v4154 = vunpack.c.l.s4 1934713408
        %v4155 = vunpack.c.0.s8 %v4154
        %v4156 = vperm.slane %v4150, %v4155
        %v4158 = vunpack.c.l.s4 1934713408
        %v4159 = vunpack.c.0.s8 %v4158
        %v4160 = vperm.slane %v4152, %v4159
        %v4161 = vrot.slane %v4148, 4
        %v4162 = vsel %vm1804, %v4161, %v4136
        %v4163 = vrot.slane %v4136, 4
        %v4164 = vsel %vm1804, %v4148, %v4163
        %v4166 = vunpack.c.l.s4 1934713408
        %v4167 = vunpack.c.0.s8 %v4166
        %v4168 = vperm.slane %v4162, %v4167
        %v4170 = vunpack.c.l.s4 1934713408
        %v4171 = vunpack.c.0.s8 %v4170
        %v4172 = vperm.slane %v4164, %v4171
        %v4173 = vrot.slane %v4156, 4
        %v4174 = vsel %vm1804, 0.0, %v4173
        %v4175 = vrot.slane %v4160, 4
        %v4176 = vsel %vm1804, 0.0, %v4175
        %v4177 = vrot.slane %v4168, 4
        %v4178 = vsel %vm1804, 0.0, %v4177
        %v4179 = vrot.slane %v4172, 4
        %v4180 = vsel %vm1804, 0.0, %v4179
        %v4181 = vsel %vm1804, %v4175, %v4156
        %v4183 = vunpack.c.l.s4 1983009808
        %v4184 = vunpack.c.0.s8 %v4183
        %v4185 = vperm.slane %v4181, %v4184
        %v4186 = vrot.slane %v4176, 4
        %v4187 = vsel %vm1804, %v4186, %v4174
        %v4189 = vunpack.c.l.s4 1983009808
        %v4190 = vunpack.c.0.s8 %v4189
        %v4191 = vperm.slane %v4187, %v4190
        %v4192 = vsel %vm1804, %v4179, %v4168
        %v4194 = vunpack.c.l.s4 1983009808
        %v4195 = vunpack.c.0.s8 %v4194
        %v4196 = vperm.slane %v4192, %v4195
        %v4197 = vrot.slane %v4180, 4
        %v4198 = vsel %vm1804, %v4197, %v4178
        %v4200 = vunpack.c.l.s4 1983009808
        %v4201 = vunpack.c.0.s8 %v4200
        %v4202 = vperm.slane %v4198, %v4201
        %v4203 = vrot.slane %v4191, 4
        %v4204 = vsel %vm1804, %v4203, %v4185
        %v4205 = vrot.slane %v4185, 4
        %v4206 = vsel %vm1804, %v4191, %v4205
        %v4208 = vunpack.c.l.s4 1934713408
        %v4209 = vunpack.c.0.s8 %v4208
        %v4210 = vperm.slane %v4204, %v4209
        %v4212 = vunpack.c.l.s4 1934713408
        %v4213 = vunpack.c.0.s8 %v4212
        %v4214 = vperm.slane %v4206, %v4213
        %v4215 = vrot.slane %v4202, 4
        %v4216 = vsel %vm1804, %v4215, %v4196
        %v4217 = vrot.slane %v4196, 4
        %v4218 = vsel %vm1804, %v4202, %v4217
        %v4220 = vunpack.c.l.s4 1934713408
        %v4221 = vunpack.c.0.s8 %v4220
        %v4222 = vperm.slane %v4216, %v4221
        %v4224 = vunpack.c.l.s4 1934713408
        %v4225 = vunpack.c.0.s8 %v4224
        %v4226 = vperm.slane %v4218, %v4225
        %v4227 = vrot.slane %v4222, 4
        %v4228 = vsel %vm1804, %v4227, %v4210
        %v4229 = vrot.slane %v4210, 4
        %v4230 = vsel %vm1804, %v4222, %v4229
        %v4231 = vrot.slane %v4226, 4
        %v4232 = vsel %vm1804, %v4231, %v4214
        %v4233 = vrot.slane %v4214, 4
        %v4234 = vsel %vm1804, %v4226, %v4233
        %v4236 = vsel %vm2158, %v3984, 0
        %v4239 = vsel %vm2158, %v4106, 0
        %4241 = vmatpush.xpose.msra.mxu0 0.0
        %4242 = vmatpush.xpose.msra.mxu0 0.0
        %4243 = vmatpush.xpose.msra.mxu0 0.0
        %4244 = vmatpush.xpose.msra.mxu0 0.0
        %4245 = vmatpush.xpose.msra.mxu0 0.0
        %4246 = vmatpush.xpose.msra.mxu0 0.0
        %4247 = vmatpush.xpose.msra.mxu0 0.0
        %4248 = vmatpush.xpose.msra.mxu0 0.0
        %4249 = vmatpush.xpose.msra.mxu0 0.0
        %4250 = vmatpush.xpose.msra.mxu0 0.0
        %4251 = vmatpush.xpose.msra.mxu0 0.0
        %4252 = vmatpush.xpose.msra.mxu0 0.0
        %4253 = vmatpush.xpose.msra.mxu0 0.0
        %4254 = vmatpush.xpose.msra.mxu0 0.0
        %4255 = vmatpush.xpose.msra.mxu0 0.0
        %4256 = vmatpush.xpose.msra.mxu0 %v4239
        %4257 = vmatmul.f32.gmra.mxu0 %v4236
        %v4258 = vpop.f32.mrf.mxu0
        %v4259 = vadd.f32 0.0, %v4258
        %4260 = vdwg.mxu0
        %v4262 = vsel %vm2158, %v3986, 0
        %v4265 = vsel %vm2158, %v4108, 0
        %4267 = vmatpush.xpose.msra.mxu0 0.0
        %4268 = vmatpush.xpose.msra.mxu0 0.0
        %4269 = vmatpush.xpose.msra.mxu0 0.0
        %4270 = vmatpush.xpose.msra.mxu0 0.0
        %4271 = vmatpush.xpose.msra.mxu0 0.0
        %4272 = vmatpush.xpose.msra.mxu0 0.0
        %4273 = vmatpush.xpose.msra.mxu0 0.0
        %4274 = vmatpush.xpose.msra.mxu0 0.0
        %4275 = vmatpush.xpose.msra.mxu0 0.0
        %4276 = vmatpush.xpose.msra.mxu0 0.0
        %4277 = vmatpush.xpose.msra.mxu0 0.0
        %4278 = vmatpush.xpose.msra.mxu0 0.0
        %4279 = vmatpush.xpose.msra.mxu0 0.0
        %4280 = vmatpush.xpose.msra.mxu0 0.0
        %4281 = vmatpush.xpose.msra.mxu0 0.0
        %4282 = vmatpush.xpose.msra.mxu0 %v4265
        %4283 = vmatmul.f32.gmra.mxu0 %v4262
        %v4284 = vpop.f32.mrf.mxu0
        %v4285 = vadd.f32 0.0, %v4284
        %4286 = vdwg.mxu0
        %v4288 = vsel %vm2158, %v3988, 0
        %v4291 = vsel %vm2158, %v4110, 0
        %4293 = vmatpush.xpose.msra.mxu0 0.0
        %4294 = vmatpush.xpose.msra.mxu0 0.0
        %4295 = vmatpush.xpose.msra.mxu0 0.0
        %4296 = vmatpush.xpose.msra.mxu0 0.0
        %4297 = vmatpush.xpose.msra.mxu0 0.0
        %4298 = vmatpush.xpose.msra.mxu0 0.0
        %4299 = vmatpush.xpose.msra.mxu0 0.0
        %4300 = vmatpush.xpose.msra.mxu0 0.0
        %4301 = vmatpush.xpose.msra.mxu0 0.0
        %4302 = vmatpush.xpose.msra.mxu0 0.0
        %4303 = vmatpush.xpose.msra.mxu0 0.0
        %4304 = vmatpush.xpose.msra.mxu0 0.0
        %4305 = vmatpush.xpose.msra.mxu0 0.0
        %4306 = vmatpush.xpose.msra.mxu0 0.0
        %4307 = vmatpush.xpose.msra.mxu0 0.0
        %4308 = vmatpush.xpose.msra.mxu0 %v4291
        %4309 = vmatmul.f32.gmra.mxu0 %v4288
        %v4310 = vpop.f32.mrf.mxu0
        %v4311 = vadd.f32 0.0, %v4310
        %4312 = vdwg.mxu0
        %v4314 = vsel %vm2158, %v3990, 0
        %v4317 = vsel %vm2158, %v4112, 0
        %4319 = vmatpush.xpose.msra.mxu0 0.0
        %4320 = vmatpush.xpose.msra.mxu0 0.0
        %4321 = vmatpush.xpose.msra.mxu0 0.0
        %4322 = vmatpush.xpose.msra.mxu0 0.0
        %4323 = vmatpush.xpose.msra.mxu0 0.0
        %4324 = vmatpush.xpose.msra.mxu0 0.0
        %4325 = vmatpush.xpose.msra.mxu0 0.0
        %4326 = vmatpush.xpose.msra.mxu0 0.0
        %4327 = vmatpush.xpose.msra.mxu0 0.0
        %4328 = vmatpush.xpose.msra.mxu0 0.0
        %4329 = vmatpush.xpose.msra.mxu0 0.0
        %4330 = vmatpush.xpose.msra.mxu0 0.0
        %4331 = vmatpush.xpose.msra.mxu0 0.0
        %4332 = vmatpush.xpose.msra.mxu0 0.0
        %4333 = vmatpush.xpose.msra.mxu0 0.0
        %4334 = vmatpush.xpose.msra.mxu0 %v4317
        %4335 = vmatmul.f32.gmra.mxu0 %v4314
        %v4336 = vpop.f32.mrf.mxu0
        %v4337 = vadd.f32 0.0, %v4336
        %4338 = vdwg.mxu0
        %v4339 = vsel %vm2158, %v4259, -inf
        %4340 = vmax.xlane.f32.xlu0 %v4339
        %v4341 = vpop.xlane.xlu0 %4340
        %v4342 = vsel %vm2158, %v4285, -inf
        %4343 = vmax.xlane.f32.xlu0 %v4342
        %v4344 = vpop.xlane.xlu0 %4343
        %v4345 = vsel %vm2158, %v4311, -inf
        %4346 = vmax.xlane.f32.xlu0 %v4345
        %v4347 = vpop.xlane.xlu0 %4346
        %v4348 = vsel %vm2158, %v4337, -inf
        %4349 = vmax.xlane.f32.xlu0 %v4348
        %v4350 = vpop.xlane.xlu0 %4349
        %v4351 = vsub.f32 %v4259, %v4341
        %v4352 = vsub.f32 %v4285, %v4344
        %v4353 = vsub.f32 %v4311, %v4347
        %v4354 = vsub.f32 %v4337, %v4350
        %v4355 = vmul.f32 %v4351, 1.442695
        %v4356 = vpow.pop %v4355
        %v4357 = vmul.f32 %v4352, 1.442695
        %v4358 = vpow.pop %v4357
        %v4359 = vmul.f32 %v4353, 1.442695
        %v4360 = vpow.pop %v4359
        %v4361 = vmul.f32 %v4354, 1.442695
        %v4362 = vpow.pop %v4361
        %v4363 = vsel %vm2158, %v4356, 0.0
        %4364 = vadd.xlane.f32.xlu0 %v4363
        %v4365 = vpop.xlane.xlu0 %4364
        %v4366 = vsel %vm2158, %v4358, 0.0
        %4367 = vadd.xlane.f32.xlu0 %v4366
        %v4368 = vpop.xlane.xlu0 %4367
        %v4369 = vsel %vm2158, %v4360, 0.0
        %4370 = vadd.xlane.f32.xlu0 %v4369
        %v4371 = vpop.xlane.xlu0 %4370
        %v4372 = vsel %vm2158, %v4362, 0.0
        %4373 = vadd.xlane.f32.xlu0 %v4372
        %v4374 = vpop.xlane.xlu0 %4373
        %v4375 = vrcp.pop %v4365
        %v4376 = vrcp.pop %v4368
        %v4377 = vrcp.pop %v4371
        %v4378 = vrcp.pop %v4374
        %v4379 = vmul.f32 %v4356, %v4375
        %v4380 = vmul.f32 %v4358, %v4376
        %v4381 = vmul.f32 %v4360, %v4377
        %v4382 = vmul.f32 %v4362, %v4378
        %v4384 = vsel %vm2158, %v4379, 0
        %4386 = vmatpush.msra.mxu0 0.0
        %4387 = vmatpush.msra.mxu0 0.0
        %4388 = vmatpush.msra.mxu0 0.0
        %4389 = vmatpush.msra.mxu0 0.0
        %4390 = vmatpush.msra.mxu0 0.0
        %4391 = vmatpush.msra.mxu0 0.0
        %4392 = vmatpush.msra.mxu0 0.0
        %4393 = vmatpush.msra.mxu0 0.0
        %4394 = vmatpush.msra.mxu0 0.0
        %4395 = vmatpush.msra.mxu0 0.0
        %4396 = vmatpush.msra.mxu0 0.0
        %4397 = vmatpush.msra.mxu0 0.0
        %4398 = vmatpush.msra.mxu0 0.0
        %4399 = vmatpush.msra.mxu0 0.0
        %4400 = vmatpush.msra.mxu0 0.0
        %4401 = vmatpush.msra.mxu0 %v4228
        %4402 = vmatmul.f32.gmra.mxu0 %v4384
        %v4403 = vpop.f32.mrf.mxu0
        %v4404 = vadd.f32 0.0, %v4403
        %4405 = vdwg.mxu0
        %v4407 = vsel %vm2158, %v4380, 0
        %4409 = vmatpush.msra.mxu0 0.0
        %4410 = vmatpush.msra.mxu0 0.0
        %4411 = vmatpush.msra.mxu0 0.0
        %4412 = vmatpush.msra.mxu0 0.0
        %4413 = vmatpush.msra.mxu0 0.0
        %4414 = vmatpush.msra.mxu0 0.0
        %4415 = vmatpush.msra.mxu0 0.0
        %4416 = vmatpush.msra.mxu0 0.0
        %4417 = vmatpush.msra.mxu0 0.0
        %4418 = vmatpush.msra.mxu0 0.0
        %4419 = vmatpush.msra.mxu0 0.0
        %4420 = vmatpush.msra.mxu0 0.0
        %4421 = vmatpush.msra.mxu0 0.0
        %4422 = vmatpush.msra.mxu0 0.0
        %4423 = vmatpush.msra.mxu0 0.0
        %4424 = vmatpush.msra.mxu0 %v4230
        %4425 = vmatmul.f32.gmra.mxu0 %v4407
        %v4426 = vpop.f32.mrf.mxu0
        %v4427 = vadd.f32 0.0, %v4426
        %4428 = vdwg.mxu0
        %v4430 = vsel %vm2158, %v4381, 0
        %4432 = vmatpush.msra.mxu0 0.0
        %4433 = vmatpush.msra.mxu0 0.0
        %4434 = vmatpush.msra.mxu0 0.0
        %4435 = vmatpush.msra.mxu0 0.0
        %4436 = vmatpush.msra.mxu0 0.0
        %4437 = vmatpush.msra.mxu0 0.0
        %4438 = vmatpush.msra.mxu0 0.0
        %4439 = vmatpush.msra.mxu0 0.0
        %4440 = vmatpush.msra.mxu0 0.0
        %4441 = vmatpush.msra.mxu0 0.0
        %4442 = vmatpush.msra.mxu0 0.0
        %4443 = vmatpush.msra.mxu0 0.0
        %4444 = vmatpush.msra.mxu0 0.0
        %4445 = vmatpush.msra.mxu0 0.0
        %4446 = vmatpush.msra.mxu0 0.0
        %4447 = vmatpush.msra.mxu0 %v4232
        %4448 = vmatmul.f32.gmra.mxu0 %v4430
        %v4449 = vpop.f32.mrf.mxu0
        %v4450 = vadd.f32 0.0, %v4449
        %4451 = vdwg.mxu0
        %v4453 = vsel %vm2158, %v4382, 0
        %4455 = vmatpush.msra.mxu0 0.0
        %4456 = vmatpush.msra.mxu0 0.0
        %4457 = vmatpush.msra.mxu0 0.0
        %4458 = vmatpush.msra.mxu0 0.0
        %4459 = vmatpush.msra.mxu0 0.0
        %4460 = vmatpush.msra.mxu0 0.0
        %4461 = vmatpush.msra.mxu0 0.0
        %4462 = vmatpush.msra.mxu0 0.0
        %4463 = vmatpush.msra.mxu0 0.0
        %4464 = vmatpush.msra.mxu0 0.0
        %4465 = vmatpush.msra.mxu0 0.0
        %4466 = vmatpush.msra.mxu0 0.0
        %4467 = vmatpush.msra.mxu0 0.0
        %4468 = vmatpush.msra.mxu0 0.0
        %4469 = vmatpush.msra.mxu0 0.0
        %4470 = vmatpush.msra.mxu0 %v4234
        %4471 = vmatmul.f32.gmra.mxu0 %v4453
        %v4472 = vpop.f32.mrf.mxu0
        %v4473 = vadd.f32 0.0, %v4472
        %4474 = vdwg.mxu0
        %v4475 = vrot.slane %v4450, 4
        %v4476 = vsel %vm1804, %v4475, %v4404
        %v4477 = vrot.slane %v4404, 4
        %v4478 = vsel %vm1804, %v4450, %v4477
        %v4480 = vunpack.c.l.s4 1983009808
        %v4481 = vunpack.c.0.s8 %v4480
        %v4482 = vperm.slane %v4476, %v4481
        %v4484 = vunpack.c.l.s4 1983009808
        %v4485 = vunpack.c.0.s8 %v4484
        %v4486 = vperm.slane %v4478, %v4485
        %v4487 = vrot.slane %v4473, 4
        %v4488 = vsel %vm1804, %v4487, %v4427
        %v4489 = vrot.slane %v4427, 4
        %v4490 = vsel %vm1804, %v4473, %v4489
        %v4492 = vunpack.c.l.s4 1983009808
        %v4493 = vunpack.c.0.s8 %v4492
        %v4494 = vperm.slane %v4488, %v4493
        %v4496 = vunpack.c.l.s4 1983009808
        %v4497 = vunpack.c.0.s8 %v4496
        %v4498 = vperm.slane %v4490, %v4497
        %v4499 = vrot.slane %v4494, 4
        %v4500 = vsel %vm1804, %v4499, %v4482
        %v4501 = vrot.slane %v4482, 4
        %v4502 = vsel %vm1804, %v4494, %v4501
        %v4504 = vunpack.c.l.s4 1934713408
        %v4505 = vunpack.c.0.s8 %v4504
        %v4506 = vperm.slane %v4500, %v4505
        %v4508 = vunpack.c.l.s4 1934713408
        %v4509 = vunpack.c.0.s8 %v4508
        %v4510 = vperm.slane %v4502, %v4509
        %v4511 = vrot.slane %v4498, 4
        %v4512 = vsel %vm1804, %v4511, %v4486
        %v4513 = vrot.slane %v4486, 4
        %v4514 = vsel %vm1804, %v4498, %v4513
        %v4516 = vunpack.c.l.s4 1934713408
        %v4517 = vunpack.c.0.s8 %v4516
        %v4518 = vperm.slane %v4512, %v4517
        %v4520 = vunpack.c.l.s4 1934713408
        %v4521 = vunpack.c.0.s8 %v4520
        %v4522 = vperm.slane %v4514, %v4521
        %v4523 = vrot.slane %v4506, 4
        %v4524 = vsel %vm1804, 0.0, %v4523
        %v4525 = vrot.slane %v4510, 4
        %v4526 = vsel %vm1804, 0.0, %v4525
        %v4527 = vrot.slane %v4518, 4
        %v4528 = vsel %vm1804, 0.0, %v4527
        %v4529 = vrot.slane %v4522, 4
        %v4530 = vsel %vm1804, 0.0, %v4529
        %v4531 = vsel %vm1804, %v4525, %v4506
        %v4533 = vunpack.c.l.s4 1983009808
        %v4534 = vunpack.c.0.s8 %v4533
        %v4535 = vperm.slane %v4531, %v4534
        %v4536 = vrot.slane %v4526, 4
        %v4537 = vsel %vm1804, %v4536, %v4524
        %v4539 = vunpack.c.l.s4 1983009808
        %v4540 = vunpack.c.0.s8 %v4539
        %v4541 = vperm.slane %v4537, %v4540
        %v4542 = vsel %vm1804, %v4529, %v4518
        %v4544 = vunpack.c.l.s4 1983009808
        %v4545 = vunpack.c.0.s8 %v4544
        %v4546 = vperm.slane %v4542, %v4545
        %v4547 = vrot.slane %v4530, 4
        %v4548 = vsel %vm1804, %v4547, %v4528
        %v4550 = vunpack.c.l.s4 1983009808
        %v4551 = vunpack.c.0.s8 %v4550
        %v4552 = vperm.slane %v4548, %v4551
        %v4553 = vrot.slane %v4541, 4
        %v4554 = vsel %vm1804, %v4553, %v4535
        %v4555 = vrot.slane %v4535, 4
        %v4556 = vsel %vm1804, %v4541, %v4555
        %v4558 = vunpack.c.l.s4 1934713408
        %v4559 = vunpack.c.0.s8 %v4558
        %v4560 = vperm.slane %v4554, %v4559
        %v4562 = vunpack.c.l.s4 1934713408
        %v4563 = vunpack.c.0.s8 %v4562
        %v4564 = vperm.slane %v4556, %v4563
        %v4565 = vrot.slane %v4552, 4
        %v4566 = vsel %vm1804, %v4565, %v4546
        %v4567 = vrot.slane %v4546, 4
        %v4568 = vsel %vm1804, %v4552, %v4567
        %v4570 = vunpack.c.l.s4 1934713408
        %v4571 = vunpack.c.0.s8 %v4570
        %v4572 = vperm.slane %v4566, %v4571
        %v4574 = vunpack.c.l.s4 1934713408
        %v4575 = vunpack.c.0.s8 %v4574
        %v4576 = vperm.slane %v4568, %v4575
        %v4577 = vrot.slane %v4572, 4
        %v4578 = vsel %vm1804, %v4577, %v4560
        %v4579 = vrot.slane %v4560, 4
        %v4580 = vsel %vm1804, %v4572, %v4579
        %v4581 = vrot.slane %v4576, 4
        %v4582 = vsel %vm1804, %v4581, %v4564
        %v4583 = vrot.slane %v4564, 4
        %v4584 = vsel %vm1804, %v4576, %v4583
        %4586 = vrot.lane.b32.xlu0 %v4580, 8
        %v4587 = vpop.permute.xlu0 %4586
        %4590 = vrot.lane.b32.xlu0 %v4582, 16
        %v4591 = vpop.permute.xlu0 %4590
        %4594 = vrot.lane.b32.xlu0 %v4584, 24
        %v4595 = vpop.permute.xlu0 %4594
        %v4597 = vsel %vm2158, %v4578, %v4587
        %v4598 = vsel %vm2522, %v4597, %v4591
        %v4599 = vsel %vm2524, %v4598, %v4595
        %v4601 = vperm.slane %v3844, 0
        %v4604 = vsel %vm1769, %v4599, 0
        %4606 = vmatpush.msra.mxu0 0.0
        %4607 = vmatpush.msra.mxu0 0.0
        %4608 = vmatpush.msra.mxu0 0.0
        %4609 = vmatpush.msra.mxu0 0.0
        %4610 = vmatpush.msra.mxu0 0.0
        %4611 = vmatpush.msra.mxu0 0.0
        %4612 = vmatpush.msra.mxu0 0.0
        %4613 = vmatpush.msra.mxu0 0.0
        %4614 = vmatpush.msra.mxu0 0.0
        %4615 = vmatpush.msra.mxu0 0.0
        %4616 = vmatpush.msra.mxu0 0.0
        %4617 = vmatpush.msra.mxu0 0.0
        %4618 = vmatpush.msra.mxu0 %v3843
        %4619 = vmatpush.msra.mxu0 %v3842
        %4620 = vmatpush.msra.mxu0 %v3841
        %4621 = vmatpush.msra.mxu0 %v3840
        %4622 = vmatmul.f32.gmra.mxu0 %v4604
        %v4623 = vpop.f32.mrf.mxu0
        %v4624 = vadd.f32 %v4601, %v4623
        %4625 = vdwg.mxu0
        %v4626 = vadd.f32 %v3834, %v4624
        %v4627 = vld [vmem:[#allocation22] sm:$0x1]
        %v4628 = vld [vmem:[#allocation23] sm:$0x1]
        %v4629 = vmul.f32 %v4626, %v4626
        %4631 = vrot.lane.b32.xlu0 %v4629, 32
        %v4632 = vpop.permute.xlu0 %4631
        %v4634 = vsel %vm1769, %v4626, %v4632
        %v4636 = vsel %vm2561, %v4634, 0
        %4638 = vmatpush.msra.mxu0 0.0
        %4639 = vmatpush.msra.mxu0 0.0
        %4640 = vmatpush.msra.mxu0 0.0
        %4641 = vmatpush.msra.mxu0 0.0
        %4642 = vmatpush.msra.mxu0 0.0
        %4643 = vmatpush.msra.mxu0 0.0
        %4644 = vmatpush.msra.mxu0 0.0
        %4645 = vmatpush.msra.mxu0 0.0
        %4646 = vmatpush.msra.mxu0 %v1754
        %4647 = vmatpush.msra.mxu0 %v1753
        %4648 = vmatpush.msra.mxu0 %v1752
        %4649 = vmatpush.msra.mxu0 %v1751
        %4650 = vmatpush.msra.mxu0 %v1750
        %4651 = vmatpush.msra.mxu0 %v1749
        %4652 = vmatpush.msra.mxu0 %v1748
        %4653 = vmatpush.msra.mxu0 %v1747
        %4654 = vmatmul.f32.gmra.mxu0 %v4636
        %v4655 = vpop.f32.mrf.mxu0
        %v4656 = vadd.f32 0.0, %v4655
        %4657 = vdwg.mxu0
        %v4658 = vmul.f32 %v4656, %v4656
        %4660 = vrot.lane.b32.xlu0 %v4658, 1
        %v4661 = vpop.permute.xlu0 %4660
        %v4663 = vsub.f32 %v4656, %v4661
        %4665 = vset.pattern.permute.xlu0 0
        %4666 = vperm.xlu0 %4665, %v4656
        %v4667 = vpop.permute.xlu0 %4666
        %v4669 = vsub.f32 %v4626, %v4667
        %v4670 = vadd.f32 %v4663, 1e-05
        %v4671 = vrsqrt.pop %v4670
        %v4672 = vmul.f32 %v4671, %v4670
        %v4673 = vmul.f32 %v4672, %v4671
        %v4674 = vmul.f32 0.5, %v4673
        %v4675 = vsub.f32 1.5, %v4674
        %v4676 = vmul.f32 %v4671, %v4675
        %vm4677 = vweird.f32 %v4670
        %vm4678 = vweird.f32 %v4671
        %vm4679 = vmor %vm4677, %vm4678
        %v4680 = vsel %vm4679, %v4671, %v4676
        %4682 = vset.pattern.permute.xlu0 1
        %4683 = vperm.xlu0 %4682, %v4680
        %v4684 = vpop.permute.xlu0 %4683
        %v4686 = vmul.f32 %v4669, %v4684
        %v4688 = vperm.slane %v4627, 0
        %v4690 = vmul.f32 %v4686, %v4688
        %v4692 = vperm.slane %v4628, 0
        %v4694 = vadd.f32 %v4690, %v4692
        %v4695 = vld [vmem:[#allocation25] sm:$0xff]
        %v4696 = vld [vmem:[#allocation25 + $0x8] sm:$0xff]
        %v4697 = vld [vmem:[#allocation25 + $0x10] sm:$0xff]
        %v4698 = vld [vmem:[#allocation25 + $0x18] sm:$0xff]
        %v4699 = vld [vmem:[#allocation26] sm:$0x1]
        %v4700 = vld [vmem:[#allocation28] sm:$0xff]
        %v4701 = vld [vmem:[#allocation28 + $0x8] sm:$0xff]
        %v4702 = vld [vmem:[#allocation28 + $0x10] sm:$0xff]
        %v4703 = vld [vmem:[#allocation28 + $0x18] sm:$0xff]
        %v4704 = vld [vmem:[#allocation29] sm:$0x1]
        %v4705 = vld [vmem:[#allocation31] sm:$0xff]
        %v4706 = vld [vmem:[#allocation31 + $0x8] sm:$0xff]
        %v4707 = vld [vmem:[#allocation31 + $0x10] sm:$0xff]
        %v4708 = vld [vmem:[#allocation31 + $0x18] sm:$0xff]
        %v4709 = vld [vmem:[#allocation32] sm:$0x1]
        %v4711 = vperm.slane %v4699, 0
        %v4714 = vsel %vm1769, %v4694, 0
        %4716 = vmatpush.msra.mxu0 0.0
        %4717 = vmatpush.msra.mxu0 0.0
        %4718 = vmatpush.msra.mxu0 0.0
        %4719 = vmatpush.msra.mxu0 0.0
        %4720 = vmatpush.msra.mxu0 0.0
        %4721 = vmatpush.msra.mxu0 0.0
        %4722 = vmatpush.msra.mxu0 0.0
        %4723 = vmatpush.msra.mxu0 0.0
        %4724 = vmatpush.msra.mxu0 0.0
        %4725 = vmatpush.msra.mxu0 0.0
        %4726 = vmatpush.msra.mxu0 0.0
        %4727 = vmatpush.msra.mxu0 0.0
        %4728 = vmatpush.msra.mxu0 %v4698
        %4729 = vmatpush.msra.mxu0 %v4697
        %4730 = vmatpush.msra.mxu0 %v4696
        %4731 = vmatpush.msra.mxu0 %v4695
        %4732 = vmatmul.f32.gmra.mxu0 %v4714
        %v4733 = vpop.f32.mrf.mxu0
        %v4734 = vadd.f32 %v4711, %v4733
        %4735 = vdwg.mxu0
        %v4737 = vperm.slane %v4704, 0
        %v4740 = vsel %vm1769, %v3833, 0
        %4742 = vmatpush.msra.mxu0 0.0
        %4743 = vmatpush.msra.mxu0 0.0
        %4744 = vmatpush.msra.mxu0 0.0
        %4745 = vmatpush.msra.mxu0 0.0
        %4746 = vmatpush.msra.mxu0 0.0
        %4747 = vmatpush.msra.mxu0 0.0
        %4748 = vmatpush.msra.mxu0 0.0
        %4749 = vmatpush.msra.mxu0 0.0
        %4750 = vmatpush.msra.mxu0 0.0
        %4751 = vmatpush.msra.mxu0 0.0
        %4752 = vmatpush.msra.mxu0 0.0
        %4753 = vmatpush.msra.mxu0 0.0
        %4754 = vmatpush.msra.mxu0 %v4703
        %4755 = vmatpush.msra.mxu0 %v4702
        %4756 = vmatpush.msra.mxu0 %v4701
        %4757 = vmatpush.msra.mxu0 %v4700
        %4758 = vmatmul.f32.gmra.mxu0 %v4740
        %v4759 = vpop.f32.mrf.mxu0
        %v4760 = vadd.f32 %v4737, %v4759
        %4761 = vdwg.mxu0
        %4763 = vrot.lane.b32.xlu0 %v4734, 120
        %v4764 = vpop.permute.xlu0 %4763
        %4766 = vrot.lane.b32.xlu0 %v4734, 112
        %v4767 = vpop.permute.xlu0 %4766
        %4769 = vrot.lane.b32.xlu0 %v4734, 104
        %v4770 = vpop.permute.xlu0 %4769
        %v4772 = vrot.slane %v4767, 4
        %v4773 = vsel %vm1804, %v4772, %v4734
        %v4774 = vrot.slane %v4734, 4
        %v4775 = vsel %vm1804, %v4767, %v4774
        %v4777 = vunpack.c.l.s4 1983009808
        %v4778 = vunpack.c.0.s8 %v4777
        %v4779 = vperm.slane %v4773, %v4778
        %v4781 = vunpack.c.l.s4 1983009808
        %v4782 = vunpack.c.0.s8 %v4781
        %v4783 = vperm.slane %v4775, %v4782
        %v4784 = vrot.slane %v4770, 4
        %v4785 = vsel %vm1804, %v4784, %v4764
        %v4786 = vrot.slane %v4764, 4
        %v4787 = vsel %vm1804, %v4770, %v4786
        %v4789 = vunpack.c.l.s4 1983009808
        %v4790 = vunpack.c.0.s8 %v4789
        %v4791 = vperm.slane %v4785, %v4790
        %v4793 = vunpack.c.l.s4 1983009808
        %v4794 = vunpack.c.0.s8 %v4793
        %v4795 = vperm.slane %v4787, %v4794
        %v4796 = vrot.slane %v4791, 4
        %v4797 = vsel %vm1804, %v4796, %v4779
        %v4798 = vrot.slane %v4779, 4
        %v4799 = vsel %vm1804, %v4791, %v4798
        %v4801 = vunpack.c.l.s4 1934713408
        %v4802 = vunpack.c.0.s8 %v4801
        %v4803 = vperm.slane %v4797, %v4802
        %v4805 = vunpack.c.l.s4 1934713408
        %v4806 = vunpack.c.0.s8 %v4805
        %v4807 = vperm.slane %v4799, %v4806
        %v4808 = vrot.slane %v4795, 4
        %v4809 = vsel %vm1804, %v4808, %v4783
        %v4810 = vrot.slane %v4783, 4
        %v4811 = vsel %vm1804, %v4795, %v4810
        %v4813 = vunpack.c.l.s4 1934713408
        %v4814 = vunpack.c.0.s8 %v4813
        %v4815 = vperm.slane %v4809, %v4814
        %v4817 = vunpack.c.l.s4 1934713408
        %v4818 = vunpack.c.0.s8 %v4817
        %v4819 = vperm.slane %v4811, %v4818
        %v4820 = vrot.slane %v4803, 4
        %v4821 = vsel %vm1804, 0.0, %v4820
        %v4822 = vrot.slane %v4807, 4
        %v4823 = vsel %vm1804, 0.0, %v4822
        %v4824 = vrot.slane %v4815, 4
        %v4825 = vsel %vm1804, 0.0, %v4824
        %v4826 = vrot.slane %v4819, 4
        %v4827 = vsel %vm1804, 0.0, %v4826
        %v4828 = vsel %vm1804, %v4822, %v4803
        %v4830 = vunpack.c.l.s4 1983009808
        %v4831 = vunpack.c.0.s8 %v4830
        %v4832 = vperm.slane %v4828, %v4831
        %v4833 = vrot.slane %v4823, 4
        %v4834 = vsel %vm1804, %v4833, %v4821
        %v4836 = vunpack.c.l.s4 1983009808
        %v4837 = vunpack.c.0.s8 %v4836
        %v4838 = vperm.slane %v4834, %v4837
        %v4839 = vsel %vm1804, %v4826, %v4815
        %v4841 = vunpack.c.l.s4 1983009808
        %v4842 = vunpack.c.0.s8 %v4841
        %v4843 = vperm.slane %v4839, %v4842
        %v4844 = vrot.slane %v4827, 4
        %v4845 = vsel %vm1804, %v4844, %v4825
        %v4847 = vunpack.c.l.s4 1983009808
        %v4848 = vunpack.c.0.s8 %v4847
        %v4849 = vperm.slane %v4845, %v4848
        %v4850 = vrot.slane %v4838, 4
        %v4851 = vsel %vm1804, %v4850, %v4832
        %v4852 = vrot.slane %v4832, 4
        %v4853 = vsel %vm1804, %v4838, %v4852
        %v4855 = vunpack.c.l.s4 1934713408
        %v4856 = vunpack.c.0.s8 %v4855
        %v4857 = vperm.slane %v4851, %v4856
        %v4859 = vunpack.c.l.s4 1934713408
        %v4860 = vunpack.c.0.s8 %v4859
        %v4861 = vperm.slane %v4853, %v4860
        %v4862 = vrot.slane %v4849, 4
        %v4863 = vsel %vm1804, %v4862, %v4843
        %v4864 = vrot.slane %v4843, 4
        %v4865 = vsel %vm1804, %v4849, %v4864
        %v4867 = vunpack.c.l.s4 1934713408
        %v4868 = vunpack.c.0.s8 %v4867
        %v4869 = vperm.slane %v4863, %v4868
        %v4871 = vunpack.c.l.s4 1934713408
        %v4872 = vunpack.c.0.s8 %v4871
        %v4873 = vperm.slane %v4865, %v4872
        %v4874 = vrot.slane %v4869, 4
        %v4875 = vsel %vm1804, %v4874, %v4857
        %v4876 = vrot.slane %v4857, 4
        %v4877 = vsel %vm1804, %v4869, %v4876
        %v4878 = vrot.slane %v4873, 4
        %v4879 = vsel %vm1804, %v4878, %v4861
        %v4880 = vrot.slane %v4861, 4
        %v4881 = vsel %vm1804, %v4873, %v4880
        %4883 = vrot.lane.b32.xlu0 %v4760, 120
        %v4884 = vpop.permute.xlu0 %4883
        %4886 = vrot.lane.b32.xlu0 %v4760, 112
        %v4887 = vpop.permute.xlu0 %4886
        %4889 = vrot.lane.b32.xlu0 %v4760, 104
        %v4890 = vpop.permute.xlu0 %4889
        %v4892 = vrot.slane %v4887, 4
        %v4893 = vsel %vm1804, %v4892, %v4760
        %v4894 = vrot.slane %v4760, 4
        %v4895 = vsel %vm1804, %v4887, %v4894
        %v4897 = vunpack.c.l.s4 1983009808
        %v4898 = vunpack.c.0.s8 %v4897
        %v4899 = vperm.slane %v4893, %v4898
        %v4901 = vunpack.c.l.s4 1983009808
        %v4902 = vunpack.c.0.s8 %v4901
        %v4903 = vperm.slane %v4895, %v4902
        %v4904 = vrot.slane %v4890, 4
        %v4905 = vsel %vm1804, %v4904, %v4884
        %v4906 = vrot.slane %v4884, 4
        %v4907 = vsel %vm1804, %v4890, %v4906
        %v4909 = vunpack.c.l.s4 1983009808
        %v4910 = vunpack.c.0.s8 %v4909
        %v4911 = vperm.slane %v4905, %v4910
        %v4913 = vunpack.c.l.s4 1983009808
        %v4914 = vunpack.c.0.s8 %v4913
        %v4915 = vperm.slane %v4907, %v4914
        %v4916 = vrot.slane %v4911, 4
        %v4917 = vsel %vm1804, %v4916, %v4899
        %v4918 = vrot.slane %v4899, 4
        %v4919 = vsel %vm1804, %v4911, %v4918
        %v4921 = vunpack.c.l.s4 1934713408
        %v4922 = vunpack.c.0.s8 %v4921
        %v4923 = vperm.slane %v4917, %v4922
        %v4925 = vunpack.c.l.s4 1934713408
        %v4926 = vunpack.c.0.s8 %v4925
        %v4927 = vperm.slane %v4919, %v4926
        %v4928 = vrot.slane %v4915, 4
        %v4929 = vsel %vm1804, %v4928, %v4903
        %v4930 = vrot.slane %v4903, 4
        %v4931 = vsel %vm1804, %v4915, %v4930
        %v4933 = vunpack.c.l.s4 1934713408
        %v4934 = vunpack.c.0.s8 %v4933
        %v4935 = vperm.slane %v4929, %v4934
        %v4937 = vunpack.c.l.s4 1934713408
        %v4938 = vunpack.c.0.s8 %v4937
        %v4939 = vperm.slane %v4931, %v4938
        %v4940 = vrot.slane %v4923, 4
        %v4941 = vsel %vm1804, 0.0, %v4940
        %v4942 = vrot.slane %v4927, 4
        %v4943 = vsel %vm1804, 0.0, %v4942
        %v4944 = vrot.slane %v4935, 4
        %v4945 = vsel %vm1804, 0.0, %v4944
        %v4946 = vrot.slane %v4939, 4
        %v4947 = vsel %vm1804, 0.0, %v4946
        %v4948 = vsel %vm1804, %v4942, %v4923
        %v4950 = vunpack.c.l.s4 1983009808
        %v4951 = vunpack.c.0.s8 %v4950
        %v4952 = vperm.slane %v4948, %v4951
        %v4953 = vrot.slane %v4943, 4
        %v4954 = vsel %vm1804, %v4953, %v4941
        %v4956 = vunpack.c.l.s4 1983009808
        %v4957 = vunpack.c.0.s8 %v4956
        %v4958 = vperm.slane %v4954, %v4957
        %v4959 = vsel %vm1804, %v4946, %v4935
        %v4961 = vunpack.c.l.s4 1983009808
        %v4962 = vunpack.c.0.s8 %v4961
        %v4963 = vperm.slane %v4959, %v4962
        %v4964 = vrot.slane %v4947, 4
        %v4965 = vsel %vm1804, %v4964, %v4945
        %v4967 = vunpack.c.l.s4 1983009808
        %v4968 = vunpack.c.0.s8 %v4967
        %v4969 = vperm.slane %v4965, %v4968
        %v4970 = vrot.slane %v4958, 4
        %v4971 = vsel %vm1804, %v4970, %v4952
        %v4972 = vrot.slane %v4952, 4
        %v4973 = vsel %vm1804, %v4958, %v4972
        %v4975 = vunpack.c.l.s4 1934713408
        %v4976 = vunpack.c.0.s8 %v4975
        %v4977 = vperm.slane %v4971, %v4976
        %v4979 = vunpack.c.l.s4 1934713408
        %v4980 = vunpack.c.0.s8 %v4979
        %v4981 = vperm.slane %v4973, %v4980
        %v4982 = vrot.slane %v4969, 4
        %v4983 = vsel %vm1804, %v4982, %v4963
        %v4984 = vrot.slane %v4963, 4
        %v4985 = vsel %vm1804, %v4969, %v4984
        %v4987 = vunpack.c.l.s4 1934713408
        %v4988 = vunpack.c.0.s8 %v4987
        %v4989 = vperm.slane %v4983, %v4988
        %v4991 = vunpack.c.l.s4 1934713408
        %v4992 = vunpack.c.0.s8 %v4991
        %v4993 = vperm.slane %v4985, %v4992
        %v4994 = vrot.slane %v4989, 4
        %v4995 = vsel %vm1804, %v4994, %v4977
        %v4996 = vrot.slane %v4977, 4
        %v4997 = vsel %vm1804, %v4989, %v4996
        %v4998 = vrot.slane %v4993, 4
        %v4999 = vsel %vm1804, %v4998, %v4981
        %v5000 = vrot.slane %v4981, 4
        %v5001 = vsel %vm1804, %v4993, %v5000
        %5002 = vrot.lane.b32.xlu0 %v4760, 96
        %v5003 = vpop.permute.xlu0 %5002
        %5004 = vrot.lane.b32.xlu0 %v4884, 96
        %v5005 = vpop.permute.xlu0 %5004
        %5006 = vrot.lane.b32.xlu0 %v4887, 96
        %v5007 = vpop.permute.xlu0 %5006
        %5008 = vrot.lane.b32.xlu0 %v4890, 96
        %v5009 = vpop.permute.xlu0 %5008
        %v5014 = vrot.slane %v5007, 4
        %v5015 = vsel %vm1804, %v5014, %v5003
        %v5016 = vrot.slane %v5003, 4
        %v5017 = vsel %vm1804, %v5007, %v5016
        %v5019 = vunpack.c.l.s4 1983009808
        %v5020 = vunpack.c.0.s8 %v5019
        %v5021 = vperm.slane %v5015, %v5020
        %v5023 = vunpack.c.l.s4 1983009808
        %v5024 = vunpack.c.0.s8 %v5023
        %v5025 = vperm.slane %v5017, %v5024
        %v5026 = vrot.slane %v5009, 4
        %v5027 = vsel %vm1804, %v5026, %v5005
        %v5028 = vrot.slane %v5005, 4
        %v5029 = vsel %vm1804, %v5009, %v5028
        %v5031 = vunpack.c.l.s4 1983009808
        %v5032 = vunpack.c.0.s8 %v5031
        %v5033 = vperm.slane %v5027, %v5032
        %v5035 = vunpack.c.l.s4 1983009808
        %v5036 = vunpack.c.0.s8 %v5035
        %v5037 = vperm.slane %v5029, %v5036
        %v5038 = vrot.slane %v5033, 4
        %v5039 = vsel %vm1804, %v5038, %v5021
        %v5040 = vrot.slane %v5021, 4
        %v5041 = vsel %vm1804, %v5033, %v5040
        %v5043 = vunpack.c.l.s4 1934713408
        %v5044 = vunpack.c.0.s8 %v5043
        %v5045 = vperm.slane %v5039, %v5044
        %v5047 = vunpack.c.l.s4 1934713408
        %v5048 = vunpack.c.0.s8 %v5047
        %v5049 = vperm.slane %v5041, %v5048
        %v5050 = vrot.slane %v5037, 4
        %v5051 = vsel %vm1804, %v5050, %v5025
        %v5052 = vrot.slane %v5025, 4
        %v5053 = vsel %vm1804, %v5037, %v5052
        %v5055 = vunpack.c.l.s4 1934713408
        %v5056 = vunpack.c.0.s8 %v5055
        %v5057 = vperm.slane %v5051, %v5056
        %v5059 = vunpack.c.l.s4 1934713408
        %v5060 = vunpack.c.0.s8 %v5059
        %v5061 = vperm.slane %v5053, %v5060
        %v5062 = vrot.slane %v5045, 4
        %v5063 = vsel %vm1804, 0.0, %v5062
        %v5064 = vrot.slane %v5049, 4
        %v5065 = vsel %vm1804, 0.0, %v5064
        %v5066 = vrot.slane %v5057, 4
        %v5067 = vsel %vm1804, 0.0, %v5066
        %v5068 = vrot.slane %v5061, 4
        %v5069 = vsel %vm1804, 0.0, %v5068
        %v5070 = vsel %vm1804, %v5064, %v5045
        %v5072 = vunpack.c.l.s4 1983009808
        %v5073 = vunpack.c.0.s8 %v5072
        %v5074 = vperm.slane %v5070, %v5073
        %v5075 = vrot.slane %v5065, 4
        %v5076 = vsel %vm1804, %v5075, %v5063
        %v5078 = vunpack.c.l.s4 1983009808
        %v5079 = vunpack.c.0.s8 %v5078
        %v5080 = vperm.slane %v5076, %v5079
        %v5081 = vsel %vm1804, %v5068, %v5057
        %v5083 = vunpack.c.l.s4 1983009808
        %v5084 = vunpack.c.0.s8 %v5083
        %v5085 = vperm.slane %v5081, %v5084
        %v5086 = vrot.slane %v5069, 4
        %v5087 = vsel %vm1804, %v5086, %v5067
        %v5089 = vunpack.c.l.s4 1983009808
        %v5090 = vunpack.c.0.s8 %v5089
        %v5091 = vperm.slane %v5087, %v5090
        %v5092 = vrot.slane %v5080, 4
        %v5093 = vsel %vm1804, %v5092, %v5074
        %v5094 = vrot.slane %v5074, 4
        %v5095 = vsel %vm1804, %v5080, %v5094
        %v5097 = vunpack.c.l.s4 1934713408
        %v5098 = vunpack.c.0.s8 %v5097
        %v5099 = vperm.slane %v5093, %v5098
        %v5101 = vunpack.c.l.s4 1934713408
        %v5102 = vunpack.c.0.s8 %v5101
        %v5103 = vperm.slane %v5095, %v5102
        %v5104 = vrot.slane %v5091, 4
        %v5105 = vsel %vm1804, %v5104, %v5085
        %v5106 = vrot.slane %v5085, 4
        %v5107 = vsel %vm1804, %v5091, %v5106
        %v5109 = vunpack.c.l.s4 1934713408
        %v5110 = vunpack.c.0.s8 %v5109
        %v5111 = vperm.slane %v5105, %v5110
        %v5113 = vunpack.c.l.s4 1934713408
        %v5114 = vunpack.c.0.s8 %v5113
        %v5115 = vperm.slane %v5107, %v5114
        %v5116 = vrot.slane %v5111, 4
        %v5117 = vsel %vm1804, %v5116, %v5099
        %v5118 = vrot.slane %v5099, 4
        %v5119 = vsel %vm1804, %v5111, %v5118
        %v5120 = vrot.slane %v5115, 4
        %v5121 = vsel %vm1804, %v5120, %v5103
        %v5122 = vrot.slane %v5103, 4
        %v5123 = vsel %vm1804, %v5115, %v5122
        %v5125 = vsel %vm2158, %v4875, 0
        %v5128 = vsel %vm2158, %v4995, 0
        %5130 = vmatpush.xpose.msra.mxu0 0.0
        %5131 = vmatpush.xpose.msra.mxu0 0.0
        %5132 = vmatpush.xpose.msra.mxu0 0.0
        %5133 = vmatpush.xpose.msra.mxu0 0.0
        %5134 = vmatpush.xpose.msra.mxu0 0.0
        %5135 = vmatpush.xpose.msra.mxu0 0.0
        %5136 = vmatpush.xpose.msra.mxu0 0.0
        %5137 = vmatpush.xpose.msra.mxu0 0.0
        %5138 = vmatpush.xpose.msra.mxu0 0.0
        %5139 = vmatpush.xpose.msra.mxu0 0.0
        %5140 = vmatpush.xpose.msra.mxu0 0.0
        %5141 = vmatpush.xpose.msra.mxu0 0.0
        %5142 = vmatpush.xpose.msra.mxu0 0.0
        %5143 = vmatpush.xpose.msra.mxu0 0.0
        %5144 = vmatpush.xpose.msra.mxu0 0.0
        %5145 = vmatpush.xpose.msra.mxu0 %v5128
        %5146 = vmatmul.f32.gmra.mxu0 %v5125
        %v5147 = vpop.f32.mrf.mxu0
        %v5148 = vadd.f32 0.0, %v5147
        %5149 = vdwg.mxu0
        %v5151 = vsel %vm2158, %v4877, 0
        %v5154 = vsel %vm2158, %v4997, 0
        %5156 = vmatpush.xpose.msra.mxu0 0.0
        %5157 = vmatpush.xpose.msra.mxu0 0.0
        %5158 = vmatpush.xpose.msra.mxu0 0.0
        %5159 = vmatpush.xpose.msra.mxu0 0.0
        %5160 = vmatpush.xpose.msra.mxu0 0.0
        %5161 = vmatpush.xpose.msra.mxu0 0.0
        %5162 = vmatpush.xpose.msra.mxu0 0.0
        %5163 = vmatpush.xpose.msra.mxu0 0.0
        %5164 = vmatpush.xpose.msra.mxu0 0.0
        %5165 = vmatpush.xpose.msra.mxu0 0.0
        %5166 = vmatpush.xpose.msra.mxu0 0.0
        %5167 = vmatpush.xpose.msra.mxu0 0.0
        %5168 = vmatpush.xpose.msra.mxu0 0.0
        %5169 = vmatpush.xpose.msra.mxu0 0.0
        %5170 = vmatpush.xpose.msra.mxu0 0.0
        %5171 = vmatpush.xpose.msra.mxu0 %v5154
        %5172 = vmatmul.f32.gmra.mxu0 %v5151
        %v5173 = vpop.f32.mrf.mxu0
        %v5174 = vadd.f32 0.0, %v5173
        %5175 = vdwg.mxu0
        %v5177 = vsel %vm2158, %v4879, 0
        %v5180 = vsel %vm2158, %v4999, 0
        %5182 = vmatpush.xpose.msra.mxu0 0.0
        %5183 = vmatpush.xpose.msra.mxu0 0.0
        %5184 = vmatpush.xpose.msra.mxu0 0.0
        %5185 = vmatpush.xpose.msra.mxu0 0.0
        %5186 = vmatpush.xpose.msra.mxu0 0.0
        %5187 = vmatpush.xpose.msra.mxu0 0.0
        %5188 = vmatpush.xpose.msra.mxu0 0.0
        %5189 = vmatpush.xpose.msra.mxu0 0.0
        %5190 = vmatpush.xpose.msra.mxu0 0.0
        %5191 = vmatpush.xpose.msra.mxu0 0.0
        %5192 = vmatpush.xpose.msra.mxu0 0.0
        %5193 = vmatpush.xpose.msra.mxu0 0.0
        %5194 = vmatpush.xpose.msra.mxu0 0.0
        %5195 = vmatpush.xpose.msra.mxu0 0.0
        %5196 = vmatpush.xpose.msra.mxu0 0.0
        %5197 = vmatpush.xpose.msra.mxu0 %v5180
        %5198 = vmatmul.f32.gmra.mxu0 %v5177
        %v5199 = vpop.f32.mrf.mxu0
        %v5200 = vadd.f32 0.0, %v5199
        %5201 = vdwg.mxu0
        %v5203 = vsel %vm2158, %v4881, 0
        %v5206 = vsel %vm2158, %v5001, 0
        %5208 = vmatpush.xpose.msra.mxu0 0.0
        %5209 = vmatpush.xpose.msra.mxu0 0.0
        %5210 = vmatpush.xpose.msra.mxu0 0.0
        %5211 = vmatpush.xpose.msra.mxu0 0.0
        %5212 = vmatpush.xpose.msra.mxu0 0.0
        %5213 = vmatpush.xpose.msra.mxu0 0.0
        %5214 = vmatpush.xpose.msra.mxu0 0.0
        %5215 = vmatpush.xpose.msra.mxu0 0.0
        %5216 = vmatpush.xpose.msra.mxu0 0.0
        %5217 = vmatpush.xpose.msra.mxu0 0.0
        %5218 = vmatpush.xpose.msra.mxu0 0.0
        %5219 = vmatpush.xpose.msra.mxu0 0.0
        %5220 = vmatpush.xpose.msra.mxu0 0.0
        %5221 = vmatpush.xpose.msra.mxu0 0.0
        %5222 = vmatpush.xpose.msra.mxu0 0.0
        %5223 = vmatpush.xpose.msra.mxu0 %v5206
        %5224 = vmatmul.f32.gmra.mxu0 %v5203
        %v5225 = vpop.f32.mrf.mxu0
        %v5226 = vadd.f32 0.0, %v5225
        %5227 = vdwg.mxu0
        %v5228 = vsel %vm2158, %v5148, -inf
        %5229 = vmax.xlane.f32.xlu0 %v5228
        %v5230 = vpop.xlane.xlu0 %5229
        %v5231 = vsel %vm2158, %v5174, -inf
        %5232 = vmax.xlane.f32.xlu0 %v5231
        %v5233 = vpop.xlane.xlu0 %5232
        %v5234 = vsel %vm2158, %v5200, -inf
        %5235 = vmax.xlane.f32.xlu0 %v5234
        %v5236 = vpop.xlane.xlu0 %5235
        %v5237 = vsel %vm2158, %v5226, -inf
        %5238 = vmax.xlane.f32.xlu0 %v5237
        %v5239 = vpop.xlane.xlu0 %5238
        %v5240 = vsub.f32 %v5148, %v5230
        %v5241 = vsub.f32 %v5174, %v5233
        %v5242 = vsub.f32 %v5200, %v5236
        %v5243 = vsub.f32 %v5226, %v5239
        %v5244 = vmul.f32 %v5240, 1.442695
        %v5245 = vpow.pop %v5244
        %v5246 = vmul.f32 %v5241, 1.442695
        %v5247 = vpow.pop %v5246
        %v5248 = vmul.f32 %v5242, 1.442695
        %v5249 = vpow.pop %v5248
        %v5250 = vmul.f32 %v5243, 1.442695
        %v5251 = vpow.pop %v5250
        %v5252 = vsel %vm2158, %v5245, 0.0
        %5253 = vadd.xlane.f32.xlu0 %v5252
        %v5254 = vpop.xlane.xlu0 %5253
        %v5255 = vsel %vm2158, %v5247, 0.0
        %5256 = vadd.xlane.f32.xlu0 %v5255
        %v5257 = vpop.xlane.xlu0 %5256
        %v5258 = vsel %vm2158, %v5249, 0.0
        %5259 = vadd.xlane.f32.xlu0 %v5258
        %v5260 = vpop.xlane.xlu0 %5259
        %v5261 = vsel %vm2158, %v5251, 0.0
        %5262 = vadd.xlane.f32.xlu0 %v5261
        %v5263 = vpop.xlane.xlu0 %5262
        %v5264 = vrcp.pop %v5254
        %v5265 = vrcp.pop %v5257
        %v5266 = vrcp.pop %v5260
        %v5267 = vrcp.pop %v5263
        %v5268 = vmul.f32 %v5245, %v5264
        %v5269 = vmul.f32 %v5247, %v5265
        %v5270 = vmul.f32 %v5249, %v5266
        %v5271 = vmul.f32 %v5251, %v5267
        %v5273 = vsel %vm2158, %v5268, 0
        %5275 = vmatpush.msra.mxu0 0.0
        %5276 = vmatpush.msra.mxu0 0.0
        %5277 = vmatpush.msra.mxu0 0.0
        %5278 = vmatpush.msra.mxu0 0.0
        %5279 = vmatpush.msra.mxu0 0.0
        %5280 = vmatpush.msra.mxu0 0.0
        %5281 = vmatpush.msra.mxu0 0.0
        %5282 = vmatpush.msra.mxu0 0.0
        %5283 = vmatpush.msra.mxu0 0.0
        %5284 = vmatpush.msra.mxu0 0.0
        %5285 = vmatpush.msra.mxu0 0.0
        %5286 = vmatpush.msra.mxu0 0.0
        %5287 = vmatpush.msra.mxu0 0.0
        %5288 = vmatpush.msra.mxu0 0.0
        %5289 = vmatpush.msra.mxu0 0.0
        %5290 = vmatpush.msra.mxu0 %v5117
        %5291 = vmatmul.f32.gmra.mxu0 %v5273
        %v5292 = vpop.f32.mrf.mxu0
        %v5293 = vadd.f32 0.0, %v5292
        %5294 = vdwg.mxu0
        %v5296 = vsel %vm2158, %v5269, 0
        %5298 = vmatpush.msra.mxu0 0.0
        %5299 = vmatpush.msra.mxu0 0.0
        %5300 = vmatpush.msra.mxu0 0.0
        %5301 = vmatpush.msra.mxu0 0.0
        %5302 = vmatpush.msra.mxu0 0.0
        %5303 = vmatpush.msra.mxu0 0.0
        %5304 = vmatpush.msra.mxu0 0.0
        %5305 = vmatpush.msra.mxu0 0.0
        %5306 = vmatpush.msra.mxu0 0.0
        %5307 = vmatpush.msra.mxu0 0.0
        %5308 = vmatpush.msra.mxu0 0.0
        %5309 = vmatpush.msra.mxu0 0.0
        %5310 = vmatpush.msra.mxu0 0.0
        %5311 = vmatpush.msra.mxu0 0.0
        %5312 = vmatpush.msra.mxu0 0.0
        %5313 = vmatpush.msra.mxu0 %v5119
        %5314 = vmatmul.f32.gmra.mxu0 %v5296
        %v5315 = vpop.f32.mrf.mxu0
        %v5316 = vadd.f32 0.0, %v5315
        %5317 = vdwg.mxu0
        %v5319 = vsel %vm2158, %v5270, 0
        %5321 = vmatpush.msra.mxu0 0.0
        %5322 = vmatpush.msra.mxu0 0.0
        %5323 = vmatpush.msra.mxu0 0.0
        %5324 = vmatpush.msra.mxu0 0.0
        %5325 = vmatpush.msra.mxu0 0.0
        %5326 = vmatpush.msra.mxu0 0.0
        %5327 = vmatpush.msra.mxu0 0.0
        %5328 = vmatpush.msra.mxu0 0.0
        %5329 = vmatpush.msra.mxu0 0.0
        %5330 = vmatpush.msra.mxu0 0.0
        %5331 = vmatpush.msra.mxu0 0.0
        %5332 = vmatpush.msra.mxu0 0.0
        %5333 = vmatpush.msra.mxu0 0.0
        %5334 = vmatpush.msra.mxu0 0.0
        %5335 = vmatpush.msra.mxu0 0.0
        %5336 = vmatpush.msra.mxu0 %v5121
        %5337 = vmatmul.f32.gmra.mxu0 %v5319
        %v5338 = vpop.f32.mrf.mxu0
        %v5339 = vadd.f32 0.0, %v5338
        %5340 = vdwg.mxu0
        %v5342 = vsel %vm2158, %v5271, 0
        %5344 = vmatpush.msra.mxu0 0.0
        %5345 = vmatpush.msra.mxu0 0.0
        %5346 = vmatpush.msra.mxu0 0.0
        %5347 = vmatpush.msra.mxu0 0.0
        %5348 = vmatpush.msra.mxu0 0.0
        %5349 = vmatpush.msra.mxu0 0.0
        %5350 = vmatpush.msra.mxu0 0.0
        %5351 = vmatpush.msra.mxu0 0.0
        %5352 = vmatpush.msra.mxu0 0.0
        %5353 = vmatpush.msra.mxu0 0.0
        %5354 = vmatpush.msra.mxu0 0.0
        %5355 = vmatpush.msra.mxu0 0.0
        %5356 = vmatpush.msra.mxu0 0.0
        %5357 = vmatpush.msra.mxu0 0.0
        %5358 = vmatpush.msra.mxu0 0.0
        %5359 = vmatpush.msra.mxu0 %v5123
        %5360 = vmatmul.f32.gmra.mxu0 %v5342
        %v5361 = vpop.f32.mrf.mxu0
        %v5362 = vadd.f32 0.0, %v5361
        %5363 = vdwg.mxu0
        %v5364 = vrot.slane %v5339, 4
        %v5365 = vsel %vm1804, %v5364, %v5293
        %v5366 = vrot.slane %v5293, 4
        %v5367 = vsel %vm1804, %v5339, %v5366
        %v5369 = vunpack.c.l.s4 1983009808
        %v5370 = vunpack.c.0.s8 %v5369
        %v5371 = vperm.slane %v5365, %v5370
        %v5373 = vunpack.c.l.s4 1983009808
        %v5374 = vunpack.c.0.s8 %v5373
        %v5375 = vperm.slane %v5367, %v5374
        %v5376 = vrot.slane %v5362, 4
        %v5377 = vsel %vm1804, %v5376, %v5316
        %v5378 = vrot.slane %v5316, 4
        %v5379 = vsel %vm1804, %v5362, %v5378
        %v5381 = vunpack.c.l.s4 1983009808
        %v5382 = vunpack.c.0.s8 %v5381
        %v5383 = vperm.slane %v5377, %v5382
        %v5385 = vunpack.c.l.s4 1983009808
        %v5386 = vunpack.c.0.s8 %v5385
        %v5387 = vperm.slane %v5379, %v5386
        %v5388 = vrot.slane %v5383, 4
        %v5389 = vsel %vm1804, %v5388, %v5371
        %v5390 = vrot.slane %v5371, 4
        %v5391 = vsel %vm1804, %v5383, %v5390
        %v5393 = vunpack.c.l.s4 1934713408
        %v5394 = vunpack.c.0.s8 %v5393
        %v5395 = vperm.slane %v5389, %v5394
        %v5397 = vunpack.c.l.s4 1934713408
        %v5398 = vunpack.c.0.s8 %v5397
        %v5399 = vperm.slane %v5391, %v5398
        %v5400 = vrot.slane %v5387, 4
        %v5401 = vsel %vm1804, %v5400, %v5375
        %v5402 = vrot.slane %v5375, 4
        %v5403 = vsel %vm1804, %v5387, %v5402
        %v5405 = vunpack.c.l.s4 1934713408
        %v5406 = vunpack.c.0.s8 %v5405
        %v5407 = vperm.slane %v5401, %v5406
        %v5409 = vunpack.c.l.s4 1934713408
        %v5410 = vunpack.c.0.s8 %v5409
        %v5411 = vperm.slane %v5403, %v5410
        %v5412 = vrot.slane %v5395, 4
        %v5413 = vsel %vm1804, 0.0, %v5412
        %v5414 = vrot.slane %v5399, 4
        %v5415 = vsel %vm1804, 0.0, %v5414
        %v5416 = vrot.slane %v5407, 4
        %v5417 = vsel %vm1804, 0.0, %v5416
        %v5418 = vrot.slane %v5411, 4
        %v5419 = vsel %vm1804, 0.0, %v5418
        %v5420 = vsel %vm1804, %v5414, %v5395
        %v5422 = vunpack.c.l.s4 1983009808
        %v5423 = vunpack.c.0.s8 %v5422
        %v5424 = vperm.slane %v5420, %v5423
        %v5425 = vrot.slane %v5415, 4
        %v5426 = vsel %vm1804, %v5425, %v5413
        %v5428 = vunpack.c.l.s4 1983009808
        %v5429 = vunpack.c.0.s8 %v5428
        %v5430 = vperm.slane %v5426, %v5429
        %v5431 = vsel %vm1804, %v5418, %v5407
        %v5433 = vunpack.c.l.s4 1983009808
        %v5434 = vunpack.c.0.s8 %v5433
        %v5435 = vperm.slane %v5431, %v5434
        %v5436 = vrot.slane %v5419, 4
        %v5437 = vsel %vm1804, %v5436, %v5417
        %v5439 = vunpack.c.l.s4 1983009808
        %v5440 = vunpack.c.0.s8 %v5439
        %v5441 = vperm.slane %v5437, %v5440
        %v5442 = vrot.slane %v5430, 4
        %v5443 = vsel %vm1804, %v5442, %v5424
        %v5444 = vrot.slane %v5424, 4
        %v5445 = vsel %vm1804, %v5430, %v5444
        %v5447 = vunpack.c.l.s4 1934713408
        %v5448 = vunpack.c.0.s8 %v5447
        %v5449 = vperm.slane %v5443, %v5448
        %v5451 = vunpack.c.l.s4 1934713408
        %v5452 = vunpack.c.0.s8 %v5451
        %v5453 = vperm.slane %v5445, %v5452
        %v5454 = vrot.slane %v5441, 4
        %v5455 = vsel %vm1804, %v5454, %v5435
        %v5456 = vrot.slane %v5435, 4
        %v5457 = vsel %vm1804, %v5441, %v5456
        %v5459 = vunpack.c.l.s4 1934713408
        %v5460 = vunpack.c.0.s8 %v5459
        %v5461 = vperm.slane %v5455, %v5460
        %v5463 = vunpack.c.l.s4 1934713408
        %v5464 = vunpack.c.0.s8 %v5463
        %v5465 = vperm.slane %v5457, %v5464
        %v5466 = vrot.slane %v5461, 4
        %v5467 = vsel %vm1804, %v5466, %v5449
        %v5468 = vrot.slane %v5449, 4
        %v5469 = vsel %vm1804, %v5461, %v5468
        %v5470 = vrot.slane %v5465, 4
        %v5471 = vsel %vm1804, %v5470, %v5453
        %v5472 = vrot.slane %v5453, 4
        %v5473 = vsel %vm1804, %v5465, %v5472
        %5475 = vrot.lane.b32.xlu0 %v5469, 8
        %v5476 = vpop.permute.xlu0 %5475
        %5479 = vrot.lane.b32.xlu0 %v5471, 16
        %v5480 = vpop.permute.xlu0 %5479
        %5483 = vrot.lane.b32.xlu0 %v5473, 24
        %v5484 = vpop.permute.xlu0 %5483
        %v5486 = vsel %vm2158, %v5467, %v5476
        %v5487 = vsel %vm2522, %v5486, %v5480
        %v5488 = vsel %vm2524, %v5487, %v5484
        %v5490 = vperm.slane %v4709, 0
        %v5493 = vsel %vm1769, %v5488, 0
        %5495 = vmatpush.msra.mxu0 0.0
        %5496 = vmatpush.msra.mxu0 0.0
        %5497 = vmatpush.msra.mxu0 0.0
        %5498 = vmatpush.msra.mxu0 0.0
        %5499 = vmatpush.msra.mxu0 0.0
        %5500 = vmatpush.msra.mxu0 0.0
        %5501 = vmatpush.msra.mxu0 0.0
        %5502 = vmatpush.msra.mxu0 0.0
        %5503 = vmatpush.msra.mxu0 0.0
        %5504 = vmatpush.msra.mxu0 0.0
        %5505 = vmatpush.msra.mxu0 0.0
        %5506 = vmatpush.msra.mxu0 0.0
        %5507 = vmatpush.msra.mxu0 %v4708
        %5508 = vmatpush.msra.mxu0 %v4707
        %5509 = vmatpush.msra.mxu0 %v4706
        %5510 = vmatpush.msra.mxu0 %v4705
        %5511 = vmatmul.f32.gmra.mxu0 %v5493
        %v5512 = vpop.f32.mrf.mxu0
        %v5513 = vadd.f32 %v5490, %v5512
        %5514 = vdwg.mxu0
        %v5515 = vadd.f32 %v4694, %v5513
        %v5516 = vld [vmem:[#allocation34] sm:$0x1]
        %v5517 = vld [vmem:[#allocation35] sm:$0x1]
        %v5518 = vmul.f32 %v5515, %v5515
        %5520 = vrot.lane.b32.xlu0 %v5518, 32
        %v5521 = vpop.permute.xlu0 %5520
        %v5523 = vsel %vm1769, %v5515, %v5521
        %v5525 = vsel %vm2561, %v5523, 0
        %5527 = vmatpush.msra.mxu0 0.0
        %5528 = vmatpush.msra.mxu0 0.0
        %5529 = vmatpush.msra.mxu0 0.0
        %5530 = vmatpush.msra.mxu0 0.0
        %5531 = vmatpush.msra.mxu0 0.0
        %5532 = vmatpush.msra.mxu0 0.0
        %5533 = vmatpush.msra.mxu0 0.0
        %5534 = vmatpush.msra.mxu0 0.0
        %5535 = vmatpush.msra.mxu0 %v1754
        %5536 = vmatpush.msra.mxu0 %v1753
        %5537 = vmatpush.msra.mxu0 %v1752
        %5538 = vmatpush.msra.mxu0 %v1751
        %5539 = vmatpush.msra.mxu0 %v1750
        %5540 = vmatpush.msra.mxu0 %v1749
        %5541 = vmatpush.msra.mxu0 %v1748
        %5542 = vmatpush.msra.mxu0 %v1747
        %5543 = vmatmul.f32.gmra.mxu0 %v5525
        %v5544 = vpop.f32.mrf.mxu0
        %v5545 = vadd.f32 0.0, %v5544
        %5546 = vdwg.mxu0
        %v5547 = vmul.f32 %v5545, %v5545
        %5549 = vrot.lane.b32.xlu0 %v5547, 1
        %v5550 = vpop.permute.xlu0 %5549
        %v5552 = vsub.f32 %v5545, %v5550
        %5554 = vset.pattern.permute.xlu0 0
        %5555 = vperm.xlu0 %5554, %v5545
        %v5556 = vpop.permute.xlu0 %5555
        %v5558 = vsub.f32 %v5515, %v5556
        %v5559 = vadd.f32 %v5552, 1e-05
        %v5560 = vrsqrt.pop %v5559
        %v5561 = vmul.f32 %v5560, %v5559
        %v5562 = vmul.f32 %v5561, %v5560
        %v5563 = vmul.f32 0.5, %v5562
        %v5564 = vsub.f32 1.5, %v5563
        %v5565 = vmul.f32 %v5560, %v5564
        %vm5566 = vweird.f32 %v5559
        %vm5567 = vweird.f32 %v5560
        %vm5568 = vmor %vm5566, %vm5567
        %v5569 = vsel %vm5568, %v5560, %v5565
        %5571 = vset.pattern.permute.xlu0 1
        %5572 = vperm.xlu0 %5571, %v5569
        %v5573 = vpop.permute.xlu0 %5572
        %v5575 = vmul.f32 %v5558, %v5573
        %v5577 = vperm.slane %v5516, 0
        %v5579 = vmul.f32 %v5575, %v5577
        %v5581 = vperm.slane %v5517, 0
        %v5583 = vadd.f32 %v5579, %v5581
        %v5584 = vld [vmem:[#allocation37] sm:$0xff]
        %v5585 = vld [vmem:[#allocation37 + $0x8] sm:$0xff]
        %v5586 = vld [vmem:[#allocation37 + $0x10] sm:$0xff]
        %v5587 = vld [vmem:[#allocation37 + $0x18] sm:$0xff]
        %v5588 = vld [vmem:[#allocation38] sm:$0x1]
        %v5589 = vld [vmem:[%s67] sm:$0xff]
        %v5590 = vld [vmem:[%s67 + $0x8] sm:$0xff]
        %v5591 = vld [vmem:[%s67 + $0x10] sm:$0xff]
        %v5592 = vld [vmem:[%s67 + $0x18] sm:$0xff]
        %v5593 = vld [vmem:[%s67 + $0x20] sm:$0xff]
        %v5594 = vld [vmem:[%s67 + $0x28] sm:$0xff]
        %v5595 = vld [vmem:[%s67 + $0x30] sm:$0xff]
        %v5596 = vld [vmem:[%s67 + $0x38] sm:$0xff]
        %v5597 = vld [vmem:[#allocation40] sm:$0x1]
        %v5599 = vperm.slane %v5588, 0
        %v5602 = vsel %vm1769, %v5583, 0
        %5604 = vmatpush.msra.mxu0 0.0
        %5605 = vmatpush.msra.mxu0 0.0
        %5606 = vmatpush.msra.mxu0 0.0
        %5607 = vmatpush.msra.mxu0 0.0
        %5608 = vmatpush.msra.mxu0 0.0
        %5609 = vmatpush.msra.mxu0 0.0
        %5610 = vmatpush.msra.mxu0 0.0
        %5611 = vmatpush.msra.mxu0 0.0
        %5612 = vmatpush.msra.mxu0 0.0
        %5613 = vmatpush.msra.mxu0 0.0
        %5614 = vmatpush.msra.mxu0 0.0
        %5615 = vmatpush.msra.mxu0 0.0
        %5616 = vmatpush.msra.mxu0 %v5587
        %5617 = vmatpush.msra.mxu0 %v5586
        %5618 = vmatpush.msra.mxu0 %v5585
        %5619 = vmatpush.msra.mxu0 %v5584
        %5620 = vmatmul.f32.gmra.mxu0 %v5602
        %v5621 = vpop.f32.mrf.mxu0
        %v5622 = vadd.f32 %v5599, %v5621
        %5623 = vdwg.mxu0
        %v5624 = vmax.f32 %v5622, 0.0
        %v5626 = vperm.slane %v5597, 0
        %v5629 = vsel %vm2561, %v5624, 0
        %5631 = vmatpush.msra.mxu0 0.0
        %5632 = vmatpush.msra.mxu0 0.0
        %5633 = vmatpush.msra.mxu0 0.0
        %5634 = vmatpush.msra.mxu0 0.0
        %5635 = vmatpush.msra.mxu0 0.0
        %5636 = vmatpush.msra.mxu0 0.0
        %5637 = vmatpush.msra.mxu0 0.0
        %5638 = vmatpush.msra.mxu0 0.0
        %5639 = vmatpush.msra.mxu0 %v5596
        %5640 = vmatpush.msra.mxu0 %v5595
        %5641 = vmatpush.msra.mxu0 %v5594
        %5642 = vmatpush.msra.mxu0 %v5593
        %5643 = vmatpush.msra.mxu0 %v5592
        %5644 = vmatpush.msra.mxu0 %v5591
        %5645 = vmatpush.msra.mxu0 %v5590
        %5646 = vmatpush.msra.mxu0 %v5589
        %5647 = vmatmul.f32.gmra.mxu0 %v5629
        %v5648 = vpop.f32.mrf.mxu0
        %v5649 = vadd.f32 %v5626, %v5648
        %5650 = vdwg.mxu0
        %v5651 = vadd.f32 %v5583, %v5649
        %v5652 = vld [vmem:[#allocation41] sm:$0x1]
        %v5653 = vld [vmem:[#allocation43] sm:$0x1]
        %v5654 = vmul.f32 %v5651, %v5651
        %5656 = vrot.lane.b32.xlu0 %v5654, 32
        %v5657 = vpop.permute.xlu0 %5656
        %v5659 = vsel %vm1769, %v5651, %v5657
        %v5661 = vsel %vm2561, %v5659, 0
        %5663 = vmatpush.msra.mxu0 0.0
        %5664 = vmatpush.msra.mxu0 0.0
        %5665 = vmatpush.msra.mxu0 0.0
        %5666 = vmatpush.msra.mxu0 0.0
        %5667 = vmatpush.msra.mxu0 0.0
        %5668 = vmatpush.msra.mxu0 0.0
        %5669 = vmatpush.msra.mxu0 0.0
        %5670 = vmatpush.msra.mxu0 0.0
        %5671 = vmatpush.msra.mxu0 %v1754
        %5672 = vmatpush.msra.mxu0 %v1753
        %5673 = vmatpush.msra.mxu0 %v1752
        %5674 = vmatpush.msra.mxu0 %v1751
        %5675 = vmatpush.msra.mxu0 %v1750
        %5676 = vmatpush.msra.mxu0 %v1749
        %5677 = vmatpush.msra.mxu0 %v1748
        %5678 = vmatpush.msra.mxu0 %v1747
        %5679 = vmatmul.f32.gmra.mxu0 %v5661
        %v5680 = vpop.f32.mrf.mxu0
        %v5681 = vadd.f32 0.0, %v5680
        %5682 = vdwg.mxu0
        %v5683 = vmul.f32 %v5681, %v5681
        %5685 = vrot.lane.b32.xlu0 %v5683, 1
        %v5686 = vpop.permute.xlu0 %5685
        %v5688 = vsub.f32 %v5681, %v5686
        %5690 = vset.pattern.permute.xlu0 0
        %5691 = vperm.xlu0 %5690, %v5681
        %v5692 = vpop.permute.xlu0 %5691
        %v5694 = vsub.f32 %v5651, %v5692
        %v5695 = vadd.f32 %v5688, 1e-05
        %v5696 = vrsqrt.pop %v5695
        %v5697 = vmul.f32 %v5696, %v5695
        %v5698 = vmul.f32 %v5697, %v5696
        %v5699 = vmul.f32 0.5, %v5698
        %v5700 = vsub.f32 1.5, %v5699
        %v5701 = vmul.f32 %v5696, %v5700
        %vm5702 = vweird.f32 %v5695
        %vm5703 = vweird.f32 %v5696
        %vm5704 = vmor %vm5702, %vm5703
        %v5705 = vsel %vm5704, %v5696, %v5701
        %5707 = vset.pattern.permute.xlu0 1
        %5708 = vperm.xlu0 %5707, %v5705
        %v5709 = vpop.permute.xlu0 %5708
        %v5711 = vmul.f32 %v5694, %v5709
        %v5713 = vperm.slane %v5652, 0
        %v5715 = vmul.f32 %v5711, %v5713
        %v5717 = vperm.slane %v5653, 0
        %v5719 = vadd.f32 %v5715, %v5717
        %s5720 = scalar_lea.vmem %s35, 32
        %v5721 = vld [vmem:[%s5720] sm:$0xff]
        %v5722 = vld [vmem:[%s5720 + $0x8] sm:$0xff]
        %v5723 = vld [vmem:[%s5720 + $0x10] sm:$0xff]
        %v5724 = vld [vmem:[%s5720 + $0x18] sm:$0xff]
        %s5725 = scalar_lea.vmem [#allocation19], 1
        %v5726 = vld [vmem:[%s5725] sm:$0x1]
        %s5727 = scalar_lea.vmem %s39, 32
        %v5728 = vld [vmem:[%s5727] sm:$0xff]
        %v5729 = vld [vmem:[%s5727 + $0x8] sm:$0xff]
        %v5730 = vld [vmem:[%s5727 + $0x10] sm:$0xff]
        %v5731 = vld [vmem:[%s5727 + $0x18] sm:$0xff]
        %s5732 = scalar_lea.vmem [#allocation20], 1
        %v5733 = vld [vmem:[%s5732] sm:$0x1]
        %v5735 = vperm.slane %v5726, 0
        %v5738 = vsel %vm1769, %v5719, 0
        %5740 = vmatpush.msra.mxu0 0.0
        %5741 = vmatpush.msra.mxu0 0.0
        %5742 = vmatpush.msra.mxu0 0.0
        %5743 = vmatpush.msra.mxu0 0.0
        %5744 = vmatpush.msra.mxu0 0.0
        %5745 = vmatpush.msra.mxu0 0.0
        %5746 = vmatpush.msra.mxu0 0.0
        %5747 = vmatpush.msra.mxu0 0.0
        %5748 = vmatpush.msra.mxu0 0.0
        %5749 = vmatpush.msra.mxu0 0.0
        %5750 = vmatpush.msra.mxu0 0.0
        %5751 = vmatpush.msra.mxu0 0.0
        %5752 = vmatpush.msra.mxu0 %v5724
        %5753 = vmatpush.msra.mxu0 %v5723
        %5754 = vmatpush.msra.mxu0 %v5722
        %5755 = vmatpush.msra.mxu0 %v5721
        %5756 = vmatmul.f32.gmra.mxu0 %v5738
        %v5757 = vpop.f32.mrf.mxu0
        %v5758 = vadd.f32 %v5735, %v5757
        %5759 = vdwg.mxu0
        %5761 = vrot.lane.b32.xlu0 %v5758, 120
        %v5762 = vpop.permute.xlu0 %5761
        %5764 = vrot.lane.b32.xlu0 %v5758, 112
        %v5765 = vpop.permute.xlu0 %5764
        %5767 = vrot.lane.b32.xlu0 %v5758, 104
        %v5768 = vpop.permute.xlu0 %5767
        %v5770 = vrot.slane %v5765, 4
        %v5771 = vsel %vm1804, %v5770, %v5758
        %v5772 = vrot.slane %v5758, 4
        %v5773 = vsel %vm1804, %v5765, %v5772
        %v5775 = vunpack.c.l.s4 1983009808
        %v5776 = vunpack.c.0.s8 %v5775
        %v5777 = vperm.slane %v5771, %v5776
        %v5779 = vunpack.c.l.s4 1983009808
        %v5780 = vunpack.c.0.s8 %v5779
        %v5781 = vperm.slane %v5773, %v5780
        %v5782 = vrot.slane %v5768, 4
        %v5783 = vsel %vm1804, %v5782, %v5762
        %v5784 = vrot.slane %v5762, 4
        %v5785 = vsel %vm1804, %v5768, %v5784
        %v5787 = vunpack.c.l.s4 1983009808
        %v5788 = vunpack.c.0.s8 %v5787
        %v5789 = vperm.slane %v5783, %v5788
        %v5791 = vunpack.c.l.s4 1983009808
        %v5792 = vunpack.c.0.s8 %v5791
        %v5793 = vperm.slane %v5785, %v5792
        %v5794 = vrot.slane %v5789, 4
        %v5795 = vsel %vm1804, %v5794, %v5777
        %v5796 = vrot.slane %v5777, 4
        %v5797 = vsel %vm1804, %v5789, %v5796
        %v5799 = vunpack.c.l.s4 1934713408
        %v5800 = vunpack.c.0.s8 %v5799
        %v5801 = vperm.slane %v5795, %v5800
        %v5803 = vunpack.c.l.s4 1934713408
        %v5804 = vunpack.c.0.s8 %v5803
        %v5805 = vperm.slane %v5797, %v5804
        %v5806 = vrot.slane %v5793, 4
        %v5807 = vsel %vm1804, %v5806, %v5781
        %v5808 = vrot.slane %v5781, 4
        %v5809 = vsel %vm1804, %v5793, %v5808
        %v5811 = vunpack.c.l.s4 1934713408
        %v5812 = vunpack.c.0.s8 %v5811
        %v5813 = vperm.slane %v5807, %v5812
        %v5815 = vunpack.c.l.s4 1934713408
        %v5816 = vunpack.c.0.s8 %v5815
        %v5817 = vperm.slane %v5809, %v5816
        %v5818 = vrot.slane %v5801, 4
        %v5819 = vsel %vm1804, 0.0, %v5818
        %v5820 = vrot.slane %v5805, 4
        %v5821 = vsel %vm1804, 0.0, %v5820
        %v5822 = vrot.slane %v5813, 4
        %v5823 = vsel %vm1804, 0.0, %v5822
        %v5824 = vrot.slane %v5817, 4
        %v5825 = vsel %vm1804, 0.0, %v5824
        %v5826 = vsel %vm1804, %v5820, %v5801
        %v5828 = vunpack.c.l.s4 1983009808
        %v5829 = vunpack.c.0.s8 %v5828
        %v5830 = vperm.slane %v5826, %v5829
        %v5831 = vrot.slane %v5821, 4
        %v5832 = vsel %vm1804, %v5831, %v5819
        %v5834 = vunpack.c.l.s4 1983009808
        %v5835 = vunpack.c.0.s8 %v5834
        %v5836 = vperm.slane %v5832, %v5835
        %v5837 = vsel %vm1804, %v5824, %v5813
        %v5839 = vunpack.c.l.s4 1983009808
        %v5840 = vunpack.c.0.s8 %v5839
        %v5841 = vperm.slane %v5837, %v5840
        %v5842 = vrot.slane %v5825, 4
        %v5843 = vsel %vm1804, %v5842, %v5823
        %v5845 = vunpack.c.l.s4 1983009808
        %v5846 = vunpack.c.0.s8 %v5845
        %v5847 = vperm.slane %v5843, %v5846
        %v5848 = vrot.slane %v5836, 4
        %v5849 = vsel %vm1804, %v5848, %v5830
        %v5850 = vrot.slane %v5830, 4
        %v5851 = vsel %vm1804, %v5836, %v5850
        %v5853 = vunpack.c.l.s4 1934713408
        %v5854 = vunpack.c.0.s8 %v5853
        %v5855 = vperm.slane %v5849, %v5854
        %v5857 = vunpack.c.l.s4 1934713408
        %v5858 = vunpack.c.0.s8 %v5857
        %v5859 = vperm.slane %v5851, %v5858
        %v5860 = vrot.slane %v5847, 4
        %v5861 = vsel %vm1804, %v5860, %v5841
        %v5862 = vrot.slane %v5841, 4
        %v5863 = vsel %vm1804, %v5847, %v5862
        %v5865 = vunpack.c.l.s4 1934713408
        %v5866 = vunpack.c.0.s8 %v5865
        %v5867 = vperm.slane %v5861, %v5866
        %v5869 = vunpack.c.l.s4 1934713408
        %v5870 = vunpack.c.0.s8 %v5869
        %v5871 = vperm.slane %v5863, %v5870
        %v5872 = vrot.slane %v5867, 4
        %v5873 = vsel %vm1804, %v5872, %v5855
        %v5874 = vrot.slane %v5855, 4
        %v5875 = vsel %vm1804, %v5867, %v5874
        %v5876 = vrot.slane %v5871, 4
        %v5877 = vsel %vm1804, %v5876, %v5859
        %v5878 = vrot.slane %v5859, 4
        %v5879 = vsel %vm1804, %v5871, %v5878
        %5880 = vrot.lane.b32.xlu0 %v5758, 96
        %v5881 = vpop.permute.xlu0 %5880
        %5882 = vrot.lane.b32.xlu0 %v5762, 96
        %v5883 = vpop.permute.xlu0 %5882
        %5884 = vrot.lane.b32.xlu0 %v5765, 96
        %v5885 = vpop.permute.xlu0 %5884
        %5886 = vrot.lane.b32.xlu0 %v5768, 96
        %v5887 = vpop.permute.xlu0 %5886
        %v5892 = vrot.slane %v5885, 4
        %v5893 = vsel %vm1804, %v5892, %v5881
        %v5894 = vrot.slane %v5881, 4
        %v5895 = vsel %vm1804, %v5885, %v5894
        %v5897 = vunpack.c.l.s4 1983009808
        %v5898 = vunpack.c.0.s8 %v5897
        %v5899 = vperm.slane %v5893, %v5898
        %v5901 = vunpack.c.l.s4 1983009808
        %v5902 = vunpack.c.0.s8 %v5901
        %v5903 = vperm.slane %v5895, %v5902
        %v5904 = vrot.slane %v5887, 4
        %v5905 = vsel %vm1804, %v5904, %v5883
        %v5906 = vrot.slane %v5883, 4
        %v5907 = vsel %vm1804, %v5887, %v5906
        %v5909 = vunpack.c.l.s4 1983009808
        %v5910 = vunpack.c.0.s8 %v5909
        %v5911 = vperm.slane %v5905, %v5910
        %v5913 = vunpack.c.l.s4 1983009808
        %v5914 = vunpack.c.0.s8 %v5913
        %v5915 = vperm.slane %v5907, %v5914
        %v5916 = vrot.slane %v5911, 4
        %v5917 = vsel %vm1804, %v5916, %v5899
        %v5918 = vrot.slane %v5899, 4
        %v5919 = vsel %vm1804, %v5911, %v5918
        %v5921 = vunpack.c.l.s4 1934713408
        %v5922 = vunpack.c.0.s8 %v5921
        %v5923 = vperm.slane %v5917, %v5922
        %v5925 = vunpack.c.l.s4 1934713408
        %v5926 = vunpack.c.0.s8 %v5925
        %v5927 = vperm.slane %v5919, %v5926
        %v5928 = vrot.slane %v5915, 4
        %v5929 = vsel %vm1804, %v5928, %v5903
        %v5930 = vrot.slane %v5903, 4
        %v5931 = vsel %vm1804, %v5915, %v5930
        %v5933 = vunpack.c.l.s4 1934713408
        %v5934 = vunpack.c.0.s8 %v5933
        %v5935 = vperm.slane %v5929, %v5934
        %v5937 = vunpack.c.l.s4 1934713408
        %v5938 = vunpack.c.0.s8 %v5937
        %v5939 = vperm.slane %v5931, %v5938
        %v5940 = vrot.slane %v5923, 4
        %v5941 = vsel %vm1804, 0.0, %v5940
        %v5942 = vrot.slane %v5927, 4
        %v5943 = vsel %vm1804, 0.0, %v5942
        %v5944 = vrot.slane %v5935, 4
        %v5945 = vsel %vm1804, 0.0, %v5944
        %v5946 = vrot.slane %v5939, 4
        %v5947 = vsel %vm1804, 0.0, %v5946
        %v5948 = vsel %vm1804, %v5942, %v5923
        %v5950 = vunpack.c.l.s4 1983009808
        %v5951 = vunpack.c.0.s8 %v5950
        %v5952 = vperm.slane %v5948, %v5951
        %v5953 = vrot.slane %v5943, 4
        %v5954 = vsel %vm1804, %v5953, %v5941
        %v5956 = vunpack.c.l.s4 1983009808
        %v5957 = vunpack.c.0.s8 %v5956
        %v5958 = vperm.slane %v5954, %v5957
        %v5959 = vsel %vm1804, %v5946, %v5935
        %v5961 = vunpack.c.l.s4 1983009808
        %v5962 = vunpack.c.0.s8 %v5961
        %v5963 = vperm.slane %v5959, %v5962
        %v5964 = vrot.slane %v5947, 4
        %v5965 = vsel %vm1804, %v5964, %v5945
        %v5967 = vunpack.c.l.s4 1983009808
        %v5968 = vunpack.c.0.s8 %v5967
        %v5969 = vperm.slane %v5965, %v5968
        %v5970 = vrot.slane %v5958, 4
        %v5971 = vsel %vm1804, %v5970, %v5952
        %v5972 = vrot.slane %v5952, 4
        %v5973 = vsel %vm1804, %v5958, %v5972
        %v5975 = vunpack.c.l.s4 1934713408
        %v5976 = vunpack.c.0.s8 %v5975
        %v5977 = vperm.slane %v5971, %v5976
        %v5979 = vunpack.c.l.s4 1934713408
        %v5980 = vunpack.c.0.s8 %v5979
        %v5981 = vperm.slane %v5973, %v5980
        %v5982 = vrot.slane %v5969, 4
        %v5983 = vsel %vm1804, %v5982, %v5963
        %v5984 = vrot.slane %v5963, 4
        %v5985 = vsel %vm1804, %v5969, %v5984
        %v5987 = vunpack.c.l.s4 1934713408
        %v5988 = vunpack.c.0.s8 %v5987
        %v5989 = vperm.slane %v5983, %v5988
        %v5991 = vunpack.c.l.s4 1934713408
        %v5992 = vunpack.c.0.s8 %v5991
        %v5993 = vperm.slane %v5985, %v5992
        %v5994 = vrot.slane %v5989, 4
        %v5995 = vsel %vm1804, %v5994, %v5977
        %v5996 = vrot.slane %v5977, 4
        %v5997 = vsel %vm1804, %v5989, %v5996
        %v5998 = vrot.slane %v5993, 4
        %v5999 = vsel %vm1804, %v5998, %v5981
        %v6000 = vrot.slane %v5981, 4
        %v6001 = vsel %vm1804, %v5993, %v6000
        %6002 = vrot.lane.b32.xlu0 %v5758, 64
        %v6003 = vpop.permute.xlu0 %6002
        %6004 = vrot.lane.b32.xlu0 %v5762, 64
        %v6005 = vpop.permute.xlu0 %6004
        %6006 = vrot.lane.b32.xlu0 %v5765, 64
        %v6007 = vpop.permute.xlu0 %6006
        %6008 = vrot.lane.b32.xlu0 %v5768, 64
        %v6009 = vpop.permute.xlu0 %6008
        %v6014 = vrot.slane %v6007, 4
        %v6015 = vsel %vm1804, %v6014, %v6003
        %v6016 = vrot.slane %v6003, 4
        %v6017 = vsel %vm1804, %v6007, %v6016
        %v6019 = vunpack.c.l.s4 1983009808
        %v6020 = vunpack.c.0.s8 %v6019
        %v6021 = vperm.slane %v6015, %v6020
        %v6023 = vunpack.c.l.s4 1983009808
        %v6024 = vunpack.c.0.s8 %v6023
        %v6025 = vperm.slane %v6017, %v6024
        %v6026 = vrot.slane %v6009, 4
        %v6027 = vsel %vm1804, %v6026, %v6005
        %v6028 = vrot.slane %v6005, 4
        %v6029 = vsel %vm1804, %v6009, %v6028
        %v6031 = vunpack.c.l.s4 1983009808
        %v6032 = vunpack.c.0.s8 %v6031
        %v6033 = vperm.slane %v6027, %v6032
        %v6035 = vunpack.c.l.s4 1983009808
        %v6036 = vunpack.c.0.s8 %v6035
        %v6037 = vperm.slane %v6029, %v6036
        %v6038 = vrot.slane %v6033, 4
        %v6039 = vsel %vm1804, %v6038, %v6021
        %v6040 = vrot.slane %v6021, 4
        %v6041 = vsel %vm1804, %v6033, %v6040
        %v6043 = vunpack.c.l.s4 1934713408
        %v6044 = vunpack.c.0.s8 %v6043
        %v6045 = vperm.slane %v6039, %v6044
        %v6047 = vunpack.c.l.s4 1934713408
        %v6048 = vunpack.c.0.s8 %v6047
        %v6049 = vperm.slane %v6041, %v6048
        %v6050 = vrot.slane %v6037, 4
        %v6051 = vsel %vm1804, %v6050, %v6025
        %v6052 = vrot.slane %v6025, 4
        %v6053 = vsel %vm1804, %v6037, %v6052
        %v6055 = vunpack.c.l.s4 1934713408
        %v6056 = vunpack.c.0.s8 %v6055
        %v6057 = vperm.slane %v6051, %v6056
        %v6059 = vunpack.c.l.s4 1934713408
        %v6060 = vunpack.c.0.s8 %v6059
        %v6061 = vperm.slane %v6053, %v6060
        %v6062 = vrot.slane %v6045, 4
        %v6063 = vsel %vm1804, 0.0, %v6062
        %v6064 = vrot.slane %v6049, 4
        %v6065 = vsel %vm1804, 0.0, %v6064
        %v6066 = vrot.slane %v6057, 4
        %v6067 = vsel %vm1804, 0.0, %v6066
        %v6068 = vrot.slane %v6061, 4
        %v6069 = vsel %vm1804, 0.0, %v6068
        %v6070 = vsel %vm1804, %v6064, %v6045
        %v6072 = vunpack.c.l.s4 1983009808
        %v6073 = vunpack.c.0.s8 %v6072
        %v6074 = vperm.slane %v6070, %v6073
        %v6075 = vrot.slane %v6065, 4
        %v6076 = vsel %vm1804, %v6075, %v6063
        %v6078 = vunpack.c.l.s4 1983009808
        %v6079 = vunpack.c.0.s8 %v6078
        %v6080 = vperm.slane %v6076, %v6079
        %v6081 = vsel %vm1804, %v6068, %v6057
        %v6083 = vunpack.c.l.s4 1983009808
        %v6084 = vunpack.c.0.s8 %v6083
        %v6085 = vperm.slane %v6081, %v6084
        %v6086 = vrot.slane %v6069, 4
        %v6087 = vsel %vm1804, %v6086, %v6067
        %v6089 = vunpack.c.l.s4 1983009808
        %v6090 = vunpack.c.0.s8 %v6089
        %v6091 = vperm.slane %v6087, %v6090
        %v6092 = vrot.slane %v6080, 4
        %v6093 = vsel %vm1804, %v6092, %v6074
        %v6094 = vrot.slane %v6074, 4
        %v6095 = vsel %vm1804, %v6080, %v6094
        %v6097 = vunpack.c.l.s4 1934713408
        %v6098 = vunpack.c.0.s8 %v6097
        %v6099 = vperm.slane %v6093, %v6098
        %v6101 = vunpack.c.l.s4 1934713408
        %v6102 = vunpack.c.0.s8 %v6101
        %v6103 = vperm.slane %v6095, %v6102
        %v6104 = vrot.slane %v6091, 4
        %v6105 = vsel %vm1804, %v6104, %v6085
        %v6106 = vrot.slane %v6085, 4
        %v6107 = vsel %vm1804, %v6091, %v6106
        %v6109 = vunpack.c.l.s4 1934713408
        %v6110 = vunpack.c.0.s8 %v6109
        %v6111 = vperm.slane %v6105, %v6110
        %v6113 = vunpack.c.l.s4 1934713408
        %v6114 = vunpack.c.0.s8 %v6113
        %v6115 = vperm.slane %v6107, %v6114
        %v6116 = vrot.slane %v6111, 4
        %v6117 = vsel %vm1804, %v6116, %v6099
        %v6118 = vrot.slane %v6099, 4
        %v6119 = vsel %vm1804, %v6111, %v6118
        %v6120 = vrot.slane %v6115, 4
        %v6121 = vsel %vm1804, %v6120, %v6103
        %v6122 = vrot.slane %v6103, 4
        %v6123 = vsel %vm1804, %v6115, %v6122
        %v6125 = vsel %vm2158, %v5873, 0
        %v6128 = vsel %vm2158, %v5995, 0
        %6130 = vmatpush.xpose.msra.mxu0 0.0
        %6131 = vmatpush.xpose.msra.mxu0 0.0
        %6132 = vmatpush.xpose.msra.mxu0 0.0
        %6133 = vmatpush.xpose.msra.mxu0 0.0
        %6134 = vmatpush.xpose.msra.mxu0 0.0
        %6135 = vmatpush.xpose.msra.mxu0 0.0
        %6136 = vmatpush.xpose.msra.mxu0 0.0
        %6137 = vmatpush.xpose.msra.mxu0 0.0
        %6138 = vmatpush.xpose.msra.mxu0 0.0
        %6139 = vmatpush.xpose.msra.mxu0 0.0
        %6140 = vmatpush.xpose.msra.mxu0 0.0
        %6141 = vmatpush.xpose.msra.mxu0 0.0
        %6142 = vmatpush.xpose.msra.mxu0 0.0
        %6143 = vmatpush.xpose.msra.mxu0 0.0
        %6144 = vmatpush.xpose.msra.mxu0 0.0
        %6145 = vmatpush.xpose.msra.mxu0 %v6128
        %6146 = vmatmul.f32.gmra.mxu0 %v6125
        %v6147 = vpop.f32.mrf.mxu0
        %v6148 = vadd.f32 0.0, %v6147
        %6149 = vdwg.mxu0
        %v6151 = vsel %vm2158, %v5875, 0
        %v6154 = vsel %vm2158, %v5997, 0
        %6156 = vmatpush.xpose.msra.mxu0 0.0
        %6157 = vmatpush.xpose.msra.mxu0 0.0
        %6158 = vmatpush.xpose.msra.mxu0 0.0
        %6159 = vmatpush.xpose.msra.mxu0 0.0
        %6160 = vmatpush.xpose.msra.mxu0 0.0
        %6161 = vmatpush.xpose.msra.mxu0 0.0
        %6162 = vmatpush.xpose.msra.mxu0 0.0
        %6163 = vmatpush.xpose.msra.mxu0 0.0
        %6164 = vmatpush.xpose.msra.mxu0 0.0
        %6165 = vmatpush.xpose.msra.mxu0 0.0
        %6166 = vmatpush.xpose.msra.mxu0 0.0
        %6167 = vmatpush.xpose.msra.mxu0 0.0
        %6168 = vmatpush.xpose.msra.mxu0 0.0
        %6169 = vmatpush.xpose.msra.mxu0 0.0
        %6170 = vmatpush.xpose.msra.mxu0 0.0
        %6171 = vmatpush.xpose.msra.mxu0 %v6154
        %6172 = vmatmul.f32.gmra.mxu0 %v6151
        %v6173 = vpop.f32.mrf.mxu0
        %v6174 = vadd.f32 0.0, %v6173
        %6175 = vdwg.mxu0
        %v6177 = vsel %vm2158, %v5877, 0
        %v6180 = vsel %vm2158, %v5999, 0
        %6182 = vmatpush.xpose.msra.mxu0 0.0
        %6183 = vmatpush.xpose.msra.mxu0 0.0
        %6184 = vmatpush.xpose.msra.mxu0 0.0
        %6185 = vmatpush.xpose.msra.mxu0 0.0
        %6186 = vmatpush.xpose.msra.mxu0 0.0
        %6187 = vmatpush.xpose.msra.mxu0 0.0
        %6188 = vmatpush.xpose.msra.mxu0 0.0
        %6189 = vmatpush.xpose.msra.mxu0 0.0
        %6190 = vmatpush.xpose.msra.mxu0 0.0
        %6191 = vmatpush.xpose.msra.mxu0 0.0
        %6192 = vmatpush.xpose.msra.mxu0 0.0
        %6193 = vmatpush.xpose.msra.mxu0 0.0
        %6194 = vmatpush.xpose.msra.mxu0 0.0
        %6195 = vmatpush.xpose.msra.mxu0 0.0
        %6196 = vmatpush.xpose.msra.mxu0 0.0
        %6197 = vmatpush.xpose.msra.mxu0 %v6180
        %6198 = vmatmul.f32.gmra.mxu0 %v6177
        %v6199 = vpop.f32.mrf.mxu0
        %v6200 = vadd.f32 0.0, %v6199
        %6201 = vdwg.mxu0
        %v6203 = vsel %vm2158, %v5879, 0
        %v6206 = vsel %vm2158, %v6001, 0
        %6208 = vmatpush.xpose.msra.mxu0 0.0
        %6209 = vmatpush.xpose.msra.mxu0 0.0
        %6210 = vmatpush.xpose.msra.mxu0 0.0
        %6211 = vmatpush.xpose.msra.mxu0 0.0
        %6212 = vmatpush.xpose.msra.mxu0 0.0
        %6213 = vmatpush.xpose.msra.mxu0 0.0
        %6214 = vmatpush.xpose.msra.mxu0 0.0
        %6215 = vmatpush.xpose.msra.mxu0 0.0
        %6216 = vmatpush.xpose.msra.mxu0 0.0
        %6217 = vmatpush.xpose.msra.mxu0 0.0
        %6218 = vmatpush.xpose.msra.mxu0 0.0
        %6219 = vmatpush.xpose.msra.mxu0 0.0
        %6220 = vmatpush.xpose.msra.mxu0 0.0
        %6221 = vmatpush.xpose.msra.mxu0 0.0
        %6222 = vmatpush.xpose.msra.mxu0 0.0
        %6223 = vmatpush.xpose.msra.mxu0 %v6206
        %6224 = vmatmul.f32.gmra.mxu0 %v6203
        %v6225 = vpop.f32.mrf.mxu0
        %v6226 = vadd.f32 0.0, %v6225
        %6227 = vdwg.mxu0
        %v6228 = vsel %vm2158, %v6148, -inf
        %6229 = vmax.xlane.f32.xlu0 %v6228
        %v6230 = vpop.xlane.xlu0 %6229
        %v6231 = vsel %vm2158, %v6174, -inf
        %6232 = vmax.xlane.f32.xlu0 %v6231
        %v6233 = vpop.xlane.xlu0 %6232
        %v6234 = vsel %vm2158, %v6200, -inf
        %6235 = vmax.xlane.f32.xlu0 %v6234
        %v6236 = vpop.xlane.xlu0 %6235
        %v6237 = vsel %vm2158, %v6226, -inf
        %6238 = vmax.xlane.f32.xlu0 %v6237
        %v6239 = vpop.xlane.xlu0 %6238
        %v6240 = vsub.f32 %v6148, %v6230
        %v6241 = vsub.f32 %v6174, %v6233
        %v6242 = vsub.f32 %v6200, %v6236
        %v6243 = vsub.f32 %v6226, %v6239
        %v6244 = vmul.f32 %v6240, 1.442695
        %v6245 = vpow.pop %v6244
        %v6246 = vmul.f32 %v6241, 1.442695
        %v6247 = vpow.pop %v6246
        %v6248 = vmul.f32 %v6242, 1.442695
        %v6249 = vpow.pop %v6248
        %v6250 = vmul.f32 %v6243, 1.442695
        %v6251 = vpow.pop %v6250
        %v6252 = vsel %vm2158, %v6245, 0.0
        %6253 = vadd.xlane.f32.xlu0 %v6252
        %v6254 = vpop.xlane.xlu0 %6253
        %v6255 = vsel %vm2158, %v6247, 0.0
        %6256 = vadd.xlane.f32.xlu0 %v6255
        %v6257 = vpop.xlane.xlu0 %6256
        %v6258 = vsel %vm2158, %v6249, 0.0
        %6259 = vadd.xlane.f32.xlu0 %v6258
        %v6260 = vpop.xlane.xlu0 %6259
        %v6261 = vsel %vm2158, %v6251, 0.0
        %6262 = vadd.xlane.f32.xlu0 %v6261
        %v6263 = vpop.xlane.xlu0 %6262
        %v6264 = vrcp.pop %v6254
        %v6265 = vrcp.pop %v6257
        %v6266 = vrcp.pop %v6260
        %v6267 = vrcp.pop %v6263
        %v6268 = vmul.f32 %v6245, %v6264
        %v6269 = vmul.f32 %v6247, %v6265
        %v6270 = vmul.f32 %v6249, %v6266
        %v6271 = vmul.f32 %v6251, %v6267
        %v6273 = vsel %vm2158, %v6268, 0
        %6275 = vmatpush.msra.mxu0 0.0
        %6276 = vmatpush.msra.mxu0 0.0
        %6277 = vmatpush.msra.mxu0 0.0
        %6278 = vmatpush.msra.mxu0 0.0
        %6279 = vmatpush.msra.mxu0 0.0
        %6280 = vmatpush.msra.mxu0 0.0
        %6281 = vmatpush.msra.mxu0 0.0
        %6282 = vmatpush.msra.mxu0 0.0
        %6283 = vmatpush.msra.mxu0 0.0
        %6284 = vmatpush.msra.mxu0 0.0
        %6285 = vmatpush.msra.mxu0 0.0
        %6286 = vmatpush.msra.mxu0 0.0
        %6287 = vmatpush.msra.mxu0 0.0
        %6288 = vmatpush.msra.mxu0 0.0
        %6289 = vmatpush.msra.mxu0 0.0
        %6290 = vmatpush.msra.mxu0 %v6117
        %6291 = vmatmul.f32.gmra.mxu0 %v6273
        %v6292 = vpop.f32.mrf.mxu0
        %v6293 = vadd.f32 0.0, %v6292
        %6294 = vdwg.mxu0
        %v6296 = vsel %vm2158, %v6269, 0
        %6298 = vmatpush.msra.mxu0 0.0
        %6299 = vmatpush.msra.mxu0 0.0
        %6300 = vmatpush.msra.mxu0 0.0
        %6301 = vmatpush.msra.mxu0 0.0
        %6302 = vmatpush.msra.mxu0 0.0
        %6303 = vmatpush.msra.mxu0 0.0
        %6304 = vmatpush.msra.mxu0 0.0
        %6305 = vmatpush.msra.mxu0 0.0
        %6306 = vmatpush.msra.mxu0 0.0
        %6307 = vmatpush.msra.mxu0 0.0
        %6308 = vmatpush.msra.mxu0 0.0
        %6309 = vmatpush.msra.mxu0 0.0
        %6310 = vmatpush.msra.mxu0 0.0
        %6311 = vmatpush.msra.mxu0 0.0
        %6312 = vmatpush.msra.mxu0 0.0
        %6313 = vmatpush.msra.mxu0 %v6119
        %6314 = vmatmul.f32.gmra.mxu0 %v6296
        %v6315 = vpop.f32.mrf.mxu0
        %v6316 = vadd.f32 0.0, %v6315
        %6317 = vdwg.mxu0
        %v6319 = vsel %vm2158, %v6270, 0
        %6321 = vmatpush.msra.mxu0 0.0
        %6322 = vmatpush.msra.mxu0 0.0
        %6323 = vmatpush.msra.mxu0 0.0
        %6324 = vmatpush.msra.mxu0 0.0
        %6325 = vmatpush.msra.mxu0 0.0
        %6326 = vmatpush.msra.mxu0 0.0
        %6327 = vmatpush.msra.mxu0 0.0
        %6328 = vmatpush.msra.mxu0 0.0
        %6329 = vmatpush.msra.mxu0 0.0
        %6330 = vmatpush.msra.mxu0 0.0
        %6331 = vmatpush.msra.mxu0 0.0
        %6332 = vmatpush.msra.mxu0 0.0
        %6333 = vmatpush.msra.mxu0 0.0
        %6334 = vmatpush.msra.mxu0 0.0
        %6335 = vmatpush.msra.mxu0 0.0
        %6336 = vmatpush.msra.mxu0 %v6121
        %6337 = vmatmul.f32.gmra.mxu0 %v6319
        %v6338 = vpop.f32.mrf.mxu0
        %v6339 = vadd.f32 0.0, %v6338
        %6340 = vdwg.mxu0
        %v6342 = vsel %vm2158, %v6271, 0
        %6344 = vmatpush.msra.mxu0 0.0
        %6345 = vmatpush.msra.mxu0 0.0
        %6346 = vmatpush.msra.mxu0 0.0
        %6347 = vmatpush.msra.mxu0 0.0
        %6348 = vmatpush.msra.mxu0 0.0
        %6349 = vmatpush.msra.mxu0 0.0
        %6350 = vmatpush.msra.mxu0 0.0
        %6351 = vmatpush.msra.mxu0 0.0
        %6352 = vmatpush.msra.mxu0 0.0
        %6353 = vmatpush.msra.mxu0 0.0
        %6354 = vmatpush.msra.mxu0 0.0
        %6355 = vmatpush.msra.mxu0 0.0
        %6356 = vmatpush.msra.mxu0 0.0
        %6357 = vmatpush.msra.mxu0 0.0
        %6358 = vmatpush.msra.mxu0 0.0
        %6359 = vmatpush.msra.mxu0 %v6123
        %6360 = vmatmul.f32.gmra.mxu0 %v6342
        %v6361 = vpop.f32.mrf.mxu0
        %v6362 = vadd.f32 0.0, %v6361
        %6363 = vdwg.mxu0
        %v6364 = vrot.slane %v6339, 4
        %v6365 = vsel %vm1804, %v6364, %v6293
        %v6366 = vrot.slane %v6293, 4
        %v6367 = vsel %vm1804, %v6339, %v6366
        %v6369 = vunpack.c.l.s4 1983009808
        %v6370 = vunpack.c.0.s8 %v6369
        %v6371 = vperm.slane %v6365, %v6370
        %v6373 = vunpack.c.l.s4 1983009808
        %v6374 = vunpack.c.0.s8 %v6373
        %v6375 = vperm.slane %v6367, %v6374
        %v6376 = vrot.slane %v6362, 4
        %v6377 = vsel %vm1804, %v6376, %v6316
        %v6378 = vrot.slane %v6316, 4
        %v6379 = vsel %vm1804, %v6362, %v6378
        %v6381 = vunpack.c.l.s4 1983009808
        %v6382 = vunpack.c.0.s8 %v6381
        %v6383 = vperm.slane %v6377, %v6382
        %v6385 = vunpack.c.l.s4 1983009808
        %v6386 = vunpack.c.0.s8 %v6385
        %v6387 = vperm.slane %v6379, %v6386
        %v6388 = vrot.slane %v6383, 4
        %v6389 = vsel %vm1804, %v6388, %v6371
        %v6390 = vrot.slane %v6371, 4
        %v6391 = vsel %vm1804, %v6383, %v6390
        %v6393 = vunpack.c.l.s4 1934713408
        %v6394 = vunpack.c.0.s8 %v6393
        %v6395 = vperm.slane %v6389, %v6394
        %v6397 = vunpack.c.l.s4 1934713408
        %v6398 = vunpack.c.0.s8 %v6397
        %v6399 = vperm.slane %v6391, %v6398
        %v6400 = vrot.slane %v6387, 4
        %v6401 = vsel %vm1804, %v6400, %v6375
        %v6402 = vrot.slane %v6375, 4
        %v6403 = vsel %vm1804, %v6387, %v6402
        %v6405 = vunpack.c.l.s4 1934713408
        %v6406 = vunpack.c.0.s8 %v6405
        %v6407 = vperm.slane %v6401, %v6406
        %v6409 = vunpack.c.l.s4 1934713408
        %v6410 = vunpack.c.0.s8 %v6409
        %v6411 = vperm.slane %v6403, %v6410
        %v6412 = vrot.slane %v6395, 4
        %v6413 = vsel %vm1804, 0.0, %v6412
        %v6414 = vrot.slane %v6399, 4
        %v6415 = vsel %vm1804, 0.0, %v6414
        %v6416 = vrot.slane %v6407, 4
        %v6417 = vsel %vm1804, 0.0, %v6416
        %v6418 = vrot.slane %v6411, 4
        %v6419 = vsel %vm1804, 0.0, %v6418
        %v6420 = vsel %vm1804, %v6414, %v6395
        %v6422 = vunpack.c.l.s4 1983009808
        %v6423 = vunpack.c.0.s8 %v6422
        %v6424 = vperm.slane %v6420, %v6423
        %v6425 = vrot.slane %v6415, 4
        %v6426 = vsel %vm1804, %v6425, %v6413
        %v6428 = vunpack.c.l.s4 1983009808
        %v6429 = vunpack.c.0.s8 %v6428
        %v6430 = vperm.slane %v6426, %v6429
        %v6431 = vsel %vm1804, %v6418, %v6407
        %v6433 = vunpack.c.l.s4 1983009808
        %v6434 = vunpack.c.0.s8 %v6433
        %v6435 = vperm.slane %v6431, %v6434
        %v6436 = vrot.slane %v6419, 4
        %v6437 = vsel %vm1804, %v6436, %v6417
        %v6439 = vunpack.c.l.s4 1983009808
        %v6440 = vunpack.c.0.s8 %v6439
        %v6441 = vperm.slane %v6437, %v6440
        %v6442 = vrot.slane %v6430, 4
        %v6443 = vsel %vm1804, %v6442, %v6424
        %v6444 = vrot.slane %v6424, 4
        %v6445 = vsel %vm1804, %v6430, %v6444
        %v6447 = vunpack.c.l.s4 1934713408
        %v6448 = vunpack.c.0.s8 %v6447
        %v6449 = vperm.slane %v6443, %v6448
        %v6451 = vunpack.c.l.s4 1934713408
        %v6452 = vunpack.c.0.s8 %v6451
        %v6453 = vperm.slane %v6445, %v6452
        %v6454 = vrot.slane %v6441, 4
        %v6455 = vsel %vm1804, %v6454, %v6435
        %v6456 = vrot.slane %v6435, 4
        %v6457 = vsel %vm1804, %v6441, %v6456
        %v6459 = vunpack.c.l.s4 1934713408
        %v6460 = vunpack.c.0.s8 %v6459
        %v6461 = vperm.slane %v6455, %v6460
        %v6463 = vunpack.c.l.s4 1934713408
        %v6464 = vunpack.c.0.s8 %v6463
        %v6465 = vperm.slane %v6457, %v6464
        %v6466 = vrot.slane %v6461, 4
        %v6467 = vsel %vm1804, %v6466, %v6449
        %v6468 = vrot.slane %v6449, 4
        %v6469 = vsel %vm1804, %v6461, %v6468
        %v6470 = vrot.slane %v6465, 4
        %v6471 = vsel %vm1804, %v6470, %v6453
        %v6472 = vrot.slane %v6453, 4
        %v6473 = vsel %vm1804, %v6465, %v6472
        %6475 = vrot.lane.b32.xlu0 %v6469, 8
        %v6476 = vpop.permute.xlu0 %6475
        %6479 = vrot.lane.b32.xlu0 %v6471, 16
        %v6480 = vpop.permute.xlu0 %6479
        %6483 = vrot.lane.b32.xlu0 %v6473, 24
        %v6484 = vpop.permute.xlu0 %6483
        %v6486 = vsel %vm2158, %v6467, %v6476
        %v6487 = vsel %vm2522, %v6486, %v6480
        %v6488 = vsel %vm2524, %v6487, %v6484
        %v6490 = vperm.slane %v5733, 0
        %v6493 = vsel %vm1769, %v6488, 0
        %6495 = vmatpush.msra.mxu0 0.0
        %6496 = vmatpush.msra.mxu0 0.0
        %6497 = vmatpush.msra.mxu0 0.0
        %6498 = vmatpush.msra.mxu0 0.0
        %6499 = vmatpush.msra.mxu0 0.0
        %6500 = vmatpush.msra.mxu0 0.0
        %6501 = vmatpush.msra.mxu0 0.0
        %6502 = vmatpush.msra.mxu0 0.0
        %6503 = vmatpush.msra.mxu0 0.0
        %6504 = vmatpush.msra.mxu0 0.0
        %6505 = vmatpush.msra.mxu0 0.0
        %6506 = vmatpush.msra.mxu0 0.0
        %6507 = vmatpush.msra.mxu0 %v5731
        %6508 = vmatpush.msra.mxu0 %v5730
        %6509 = vmatpush.msra.mxu0 %v5729
        %6510 = vmatpush.msra.mxu0 %v5728
        %6511 = vmatmul.f32.gmra.mxu0 %v6493
        %v6512 = vpop.f32.mrf.mxu0
        %v6513 = vadd.f32 %v6490, %v6512
        %6514 = vdwg.mxu0
        %v6515 = vadd.f32 %v5719, %v6513
        %s6516 = scalar_lea.vmem [#allocation22], 1
        %v6517 = vld [vmem:[%s6516] sm:$0x1]
        %s6518 = scalar_lea.vmem [#allocation23], 1
        %v6519 = vld [vmem:[%s6518] sm:$0x1]
        %v6520 = vmul.f32 %v6515, %v6515
        %6522 = vrot.lane.b32.xlu0 %v6520, 32
        %v6523 = vpop.permute.xlu0 %6522
        %v6525 = vsel %vm1769, %v6515, %v6523
        %v6527 = vsel %vm2561, %v6525, 0
        %6529 = vmatpush.msra.mxu0 0.0
        %6530 = vmatpush.msra.mxu0 0.0
        %6531 = vmatpush.msra.mxu0 0.0
        %6532 = vmatpush.msra.mxu0 0.0
        %6533 = vmatpush.msra.mxu0 0.0
        %6534 = vmatpush.msra.mxu0 0.0
        %6535 = vmatpush.msra.mxu0 0.0
        %6536 = vmatpush.msra.mxu0 0.0
        %6537 = vmatpush.msra.mxu0 %v1754
        %6538 = vmatpush.msra.mxu0 %v1753
        %6539 = vmatpush.msra.mxu0 %v1752
        %6540 = vmatpush.msra.mxu0 %v1751
        %6541 = vmatpush.msra.mxu0 %v1750
        %6542 = vmatpush.msra.mxu0 %v1749
        %6543 = vmatpush.msra.mxu0 %v1748
        %6544 = vmatpush.msra.mxu0 %v1747
        %6545 = vmatmul.f32.gmra.mxu0 %v6527
        %v6546 = vpop.f32.mrf.mxu0
        %v6547 = vadd.f32 0.0, %v6546
        %6548 = vdwg.mxu0
        %v6549 = vmul.f32 %v6547, %v6547
        %6551 = vrot.lane.b32.xlu0 %v6549, 1
        %v6552 = vpop.permute.xlu0 %6551
        %v6554 = vsub.f32 %v6547, %v6552
        %6556 = vset.pattern.permute.xlu0 0
        %6557 = vperm.xlu0 %6556, %v6547
        %v6558 = vpop.permute.xlu0 %6557
        %v6560 = vsub.f32 %v6515, %v6558
        %v6561 = vadd.f32 %v6554, 1e-05
        %v6562 = vrsqrt.pop %v6561
        %v6563 = vmul.f32 %v6562, %v6561
        %v6564 = vmul.f32 %v6563, %v6562
        %v6565 = vmul.f32 0.5, %v6564
        %v6566 = vsub.f32 1.5, %v6565
        %v6567 = vmul.f32 %v6562, %v6566
        %vm6568 = vweird.f32 %v6561
        %vm6569 = vweird.f32 %v6562
        %vm6570 = vmor %vm6568, %vm6569
        %v6571 = vsel %vm6570, %v6562, %v6567
        %6573 = vset.pattern.permute.xlu0 1
        %6574 = vperm.xlu0 %6573, %v6571
        %v6575 = vpop.permute.xlu0 %6574
        %v6577 = vmul.f32 %v6560, %v6575
        %v6579 = vperm.slane %v6517, 0
        %v6581 = vmul.f32 %v6577, %v6579
        %v6583 = vperm.slane %v6519, 0
        %v6585 = vadd.f32 %v6581, %v6583
        %s6586 = scalar_lea.vmem [#allocation25], 32
        %v6587 = vld [vmem:[%s6586] sm:$0xff]
        %v6588 = vld [vmem:[%s6586 + $0x8] sm:$0xff]
        %v6589 = vld [vmem:[%s6586 + $0x10] sm:$0xff]
        %v6590 = vld [vmem:[%s6586 + $0x18] sm:$0xff]
        %s6591 = scalar_lea.vmem [#allocation26], 1
        %v6592 = vld [vmem:[%s6591] sm:$0x1]
        %s6593 = scalar_lea.vmem [#allocation28], 32
        %v6594 = vld [vmem:[%s6593] sm:$0xff]
        %v6595 = vld [vmem:[%s6593 + $0x8] sm:$0xff]
        %v6596 = vld [vmem:[%s6593 + $0x10] sm:$0xff]
        %v6597 = vld [vmem:[%s6593 + $0x18] sm:$0xff]
        %s6598 = scalar_lea.vmem [#allocation29], 1
        %v6599 = vld [vmem:[%s6598] sm:$0x1]
        %s6600 = scalar_lea.vmem [#allocation31], 32
        %v6601 = vld [vmem:[%s6600] sm:$0xff]
        %v6602 = vld [vmem:[%s6600 + $0x8] sm:$0xff]
        %v6603 = vld [vmem:[%s6600 + $0x10] sm:$0xff]
        %v6604 = vld [vmem:[%s6600 + $0x18] sm:$0xff]
        %s6605 = scalar_lea.vmem [#allocation32], 1
        %v6606 = vld [vmem:[%s6605] sm:$0x1]
        %v6608 = vperm.slane %v6592, 0
        %v6611 = vsel %vm1769, %v6585, 0
        %6613 = vmatpush.msra.mxu0 0.0
        %6614 = vmatpush.msra.mxu0 0.0
        %6615 = vmatpush.msra.mxu0 0.0
        %6616 = vmatpush.msra.mxu0 0.0
        %6617 = vmatpush.msra.mxu0 0.0
        %6618 = vmatpush.msra.mxu0 0.0
        %6619 = vmatpush.msra.mxu0 0.0
        %6620 = vmatpush.msra.mxu0 0.0
        %6621 = vmatpush.msra.mxu0 0.0
        %6622 = vmatpush.msra.mxu0 0.0
        %6623 = vmatpush.msra.mxu0 0.0
        %6624 = vmatpush.msra.mxu0 0.0
        %6625 = vmatpush.msra.mxu0 %v6590
        %6626 = vmatpush.msra.mxu0 %v6589
        %6627 = vmatpush.msra.mxu0 %v6588
        %6628 = vmatpush.msra.mxu0 %v6587
        %6629 = vmatmul.f32.gmra.mxu0 %v6611
        %v6630 = vpop.f32.mrf.mxu0
        %v6631 = vadd.f32 %v6608, %v6630
        %6632 = vdwg.mxu0
        %v6634 = vperm.slane %v6599, 0
        %6636 = vmatpush.msra.mxu0 0.0
        %6637 = vmatpush.msra.mxu0 0.0
        %6638 = vmatpush.msra.mxu0 0.0
        %6639 = vmatpush.msra.mxu0 0.0
        %6640 = vmatpush.msra.mxu0 0.0
        %6641 = vmatpush.msra.mxu0 0.0
        %6642 = vmatpush.msra.mxu0 0.0
        %6643 = vmatpush.msra.mxu0 0.0
        %6644 = vmatpush.msra.mxu0 0.0
        %6645 = vmatpush.msra.mxu0 0.0
        %6646 = vmatpush.msra.mxu0 0.0
        %6647 = vmatpush.msra.mxu0 0.0
        %6648 = vmatpush.msra.mxu0 %v6597
        %6649 = vmatpush.msra.mxu0 %v6596
        %6650 = vmatpush.msra.mxu0 %v6595
        %6651 = vmatpush.msra.mxu0 %v6594
        %6652 = vmatmul.f32.gmra.mxu0 %v4740
        %v6653 = vpop.f32.mrf.mxu0
        %v6654 = vadd.f32 %v6634, %v6653
        %6655 = vdwg.mxu0
        %6657 = vrot.lane.b32.xlu0 %v6631, 120
        %v6658 = vpop.permute.xlu0 %6657
        %6660 = vrot.lane.b32.xlu0 %v6631, 112
        %v6661 = vpop.permute.xlu0 %6660
        %6663 = vrot.lane.b32.xlu0 %v6631, 104
        %v6664 = vpop.permute.xlu0 %6663
        %v6666 = vrot.slane %v6661, 4
        %v6667 = vsel %vm1804, %v6666, %v6631
        %v6668 = vrot.slane %v6631, 4
        %v6669 = vsel %vm1804, %v6661, %v6668
        %v6671 = vunpack.c.l.s4 1983009808
        %v6672 = vunpack.c.0.s8 %v6671
        %v6673 = vperm.slane %v6667, %v6672
        %v6675 = vunpack.c.l.s4 1983009808
        %v6676 = vunpack.c.0.s8 %v6675
        %v6677 = vperm.slane %v6669, %v6676
        %v6678 = vrot.slane %v6664, 4
        %v6679 = vsel %vm1804, %v6678, %v6658
        %v6680 = vrot.slane %v6658, 4
        %v6681 = vsel %vm1804, %v6664, %v6680
        %v6683 = vunpack.c.l.s4 1983009808
        %v6684 = vunpack.c.0.s8 %v6683
        %v6685 = vperm.slane %v6679, %v6684
        %v6687 = vunpack.c.l.s4 1983009808
        %v6688 = vunpack.c.0.s8 %v6687
        %v6689 = vperm.slane %v6681, %v6688
        %v6690 = vrot.slane %v6685, 4
        %v6691 = vsel %vm1804, %v6690, %v6673
        %v6692 = vrot.slane %v6673, 4
        %v6693 = vsel %vm1804, %v6685, %v6692
        %v6695 = vunpack.c.l.s4 1934713408
        %v6696 = vunpack.c.0.s8 %v6695
        %v6697 = vperm.slane %v6691, %v6696
        %v6699 = vunpack.c.l.s4 1934713408
        %v6700 = vunpack.c.0.s8 %v6699
        %v6701 = vperm.slane %v6693, %v6700
        %v6702 = vrot.slane %v6689, 4
        %v6703 = vsel %vm1804, %v6702, %v6677
        %v6704 = vrot.slane %v6677, 4
        %v6705 = vsel %vm1804, %v6689, %v6704
        %v6707 = vunpack.c.l.s4 1934713408
        %v6708 = vunpack.c.0.s8 %v6707
        %v6709 = vperm.slane %v6703, %v6708
        %v6711 = vunpack.c.l.s4 1934713408
        %v6712 = vunpack.c.0.s8 %v6711
        %v6713 = vperm.slane %v6705, %v6712
        %v6714 = vrot.slane %v6697, 4
        %v6715 = vsel %vm1804, 0.0, %v6714
        %v6716 = vrot.slane %v6701, 4
        %v6717 = vsel %vm1804, 0.0, %v6716
        %v6718 = vrot.slane %v6709, 4
        %v6719 = vsel %vm1804, 0.0, %v6718
        %v6720 = vrot.slane %v6713, 4
        %v6721 = vsel %vm1804, 0.0, %v6720
        %v6722 = vsel %vm1804, %v6716, %v6697
        %v6724 = vunpack.c.l.s4 1983009808
        %v6725 = vunpack.c.0.s8 %v6724
        %v6726 = vperm.slane %v6722, %v6725
        %v6727 = vrot.slane %v6717, 4
        %v6728 = vsel %vm1804, %v6727, %v6715
        %v6730 = vunpack.c.l.s4 1983009808
        %v6731 = vunpack.c.0.s8 %v6730
        %v6732 = vperm.slane %v6728, %v6731
        %v6733 = vsel %vm1804, %v6720, %v6709
        %v6735 = vunpack.c.l.s4 1983009808
        %v6736 = vunpack.c.0.s8 %v6735
        %v6737 = vperm.slane %v6733, %v6736
        %v6738 = vrot.slane %v6721, 4
        %v6739 = vsel %vm1804, %v6738, %v6719
        %v6741 = vunpack.c.l.s4 1983009808
        %v6742 = vunpack.c.0.s8 %v6741
        %v6743 = vperm.slane %v6739, %v6742
        %v6744 = vrot.slane %v6732, 4
        %v6745 = vsel %vm1804, %v6744, %v6726
        %v6746 = vrot.slane %v6726, 4
        %v6747 = vsel %vm1804, %v6732, %v6746
        %v6749 = vunpack.c.l.s4 1934713408
        %v6750 = vunpack.c.0.s8 %v6749
        %v6751 = vperm.slane %v6745, %v6750
        %v6753 = vunpack.c.l.s4 1934713408
        %v6754 = vunpack.c.0.s8 %v6753
        %v6755 = vperm.slane %v6747, %v6754
        %v6756 = vrot.slane %v6743, 4
        %v6757 = vsel %vm1804, %v6756, %v6737
        %v6758 = vrot.slane %v6737, 4
        %v6759 = vsel %vm1804, %v6743, %v6758
        %v6761 = vunpack.c.l.s4 1934713408
        %v6762 = vunpack.c.0.s8 %v6761
        %v6763 = vperm.slane %v6757, %v6762
        %v6765 = vunpack.c.l.s4 1934713408
        %v6766 = vunpack.c.0.s8 %v6765
        %v6767 = vperm.slane %v6759, %v6766
        %v6768 = vrot.slane %v6763, 4
        %v6769 = vsel %vm1804, %v6768, %v6751
        %v6770 = vrot.slane %v6751, 4
        %v6771 = vsel %vm1804, %v6763, %v6770
        %v6772 = vrot.slane %v6767, 4
        %v6773 = vsel %vm1804, %v6772, %v6755
        %v6774 = vrot.slane %v6755, 4
        %v6775 = vsel %vm1804, %v6767, %v6774
        %6777 = vrot.lane.b32.xlu0 %v6654, 120
        %v6778 = vpop.permute.xlu0 %6777
        %6780 = vrot.lane.b32.xlu0 %v6654, 112
        %v6781 = vpop.permute.xlu0 %6780
        %6783 = vrot.lane.b32.xlu0 %v6654, 104
        %v6784 = vpop.permute.xlu0 %6783
        %v6786 = vrot.slane %v6781, 4
        %v6787 = vsel %vm1804, %v6786, %v6654
        %v6788 = vrot.slane %v6654, 4
        %v6789 = vsel %vm1804, %v6781, %v6788
        %v6791 = vunpack.c.l.s4 1983009808
        %v6792 = vunpack.c.0.s8 %v6791
        %v6793 = vperm.slane %v6787, %v6792
        %v6795 = vunpack.c.l.s4 1983009808
        %v6796 = vunpack.c.0.s8 %v6795
        %v6797 = vperm.slane %v6789, %v6796
        %v6798 = vrot.slane %v6784, 4
        %v6799 = vsel %vm1804, %v6798, %v6778
        %v6800 = vrot.slane %v6778, 4
        %v6801 = vsel %vm1804, %v6784, %v6800
        %v6803 = vunpack.c.l.s4 1983009808
        %v6804 = vunpack.c.0.s8 %v6803
        %v6805 = vperm.slane %v6799, %v6804
        %v6807 = vunpack.c.l.s4 1983009808
        %v6808 = vunpack.c.0.s8 %v6807
        %v6809 = vperm.slane %v6801, %v6808
        %v6810 = vrot.slane %v6805, 4
        %v6811 = vsel %vm1804, %v6810, %v6793
        %v6812 = vrot.slane %v6793, 4
        %v6813 = vsel %vm1804, %v6805, %v6812
        %v6815 = vunpack.c.l.s4 1934713408
        %v6816 = vunpack.c.0.s8 %v6815
        %v6817 = vperm.slane %v6811, %v6816
        %v6819 = vunpack.c.l.s4 1934713408
        %v6820 = vunpack.c.0.s8 %v6819
        %v6821 = vperm.slane %v6813, %v6820
        %v6822 = vrot.slane %v6809, 4
        %v6823 = vsel %vm1804, %v6822, %v6797
        %v6824 = vrot.slane %v6797, 4
        %v6825 = vsel %vm1804, %v6809, %v6824
        %v6827 = vunpack.c.l.s4 1934713408
        %v6828 = vunpack.c.0.s8 %v6827
        %v6829 = vperm.slane %v6823, %v6828
        %v6831 = vunpack.c.l.s4 1934713408
        %v6832 = vunpack.c.0.s8 %v6831
        %v6833 = vperm.slane %v6825, %v6832
        %v6834 = vrot.slane %v6817, 4
        %v6835 = vsel %vm1804, 0.0, %v6834
        %v6836 = vrot.slane %v6821, 4
        %v6837 = vsel %vm1804, 0.0, %v6836
        %v6838 = vrot.slane %v6829, 4
        %v6839 = vsel %vm1804, 0.0, %v6838
        %v6840 = vrot.slane %v6833, 4
        %v6841 = vsel %vm1804, 0.0, %v6840
        %v6842 = vsel %vm1804, %v6836, %v6817
        %v6844 = vunpack.c.l.s4 1983009808
        %v6845 = vunpack.c.0.s8 %v6844
        %v6846 = vperm.slane %v6842, %v6845
        %v6847 = vrot.slane %v6837, 4
        %v6848 = vsel %vm1804, %v6847, %v6835
        %v6850 = vunpack.c.l.s4 1983009808
        %v6851 = vunpack.c.0.s8 %v6850
        %v6852 = vperm.slane %v6848, %v6851
        %v6853 = vsel %vm1804, %v6840, %v6829
        %v6855 = vunpack.c.l.s4 1983009808
        %v6856 = vunpack.c.0.s8 %v6855
        %v6857 = vperm.slane %v6853, %v6856
        %v6858 = vrot.slane %v6841, 4
        %v6859 = vsel %vm1804, %v6858, %v6839
        %v6861 = vunpack.c.l.s4 1983009808
        %v6862 = vunpack.c.0.s8 %v6861
        %v6863 = vperm.slane %v6859, %v6862
        %v6864 = vrot.slane %v6852, 4
        %v6865 = vsel %vm1804, %v6864, %v6846
        %v6866 = vrot.slane %v6846, 4
        %v6867 = vsel %vm1804, %v6852, %v6866
        %v6869 = vunpack.c.l.s4 1934713408
        %v6870 = vunpack.c.0.s8 %v6869
        %v6871 = vperm.slane %v6865, %v6870
        %v6873 = vunpack.c.l.s4 1934713408
        %v6874 = vunpack.c.0.s8 %v6873
        %v6875 = vperm.slane %v6867, %v6874
        %v6876 = vrot.slane %v6863, 4
        %v6877 = vsel %vm1804, %v6876, %v6857
        %v6878 = vrot.slane %v6857, 4
        %v6879 = vsel %vm1804, %v6863, %v6878
        %v6881 = vunpack.c.l.s4 1934713408
        %v6882 = vunpack.c.0.s8 %v6881
        %v6883 = vperm.slane %v6877, %v6882
        %v6885 = vunpack.c.l.s4 1934713408
        %v6886 = vunpack.c.0.s8 %v6885
        %v6887 = vperm.slane %v6879, %v6886
        %v6888 = vrot.slane %v6883, 4
        %v6889 = vsel %vm1804, %v6888, %v6871
        %v6890 = vrot.slane %v6871, 4
        %v6891 = vsel %vm1804, %v6883, %v6890
        %v6892 = vrot.slane %v6887, 4
        %v6893 = vsel %vm1804, %v6892, %v6875
        %v6894 = vrot.slane %v6875, 4
        %v6895 = vsel %vm1804, %v6887, %v6894
        %6896 = vrot.lane.b32.xlu0 %v6654, 96
        %v6897 = vpop.permute.xlu0 %6896
        %6898 = vrot.lane.b32.xlu0 %v6778, 96
        %v6899 = vpop.permute.xlu0 %6898
        %6900 = vrot.lane.b32.xlu0 %v6781, 96
        %v6901 = vpop.permute.xlu0 %6900
        %6902 = vrot.lane.b32.xlu0 %v6784, 96
        %v6903 = vpop.permute.xlu0 %6902
        %v6908 = vrot.slane %v6901, 4
        %v6909 = vsel %vm1804, %v6908, %v6897
        %v6910 = vrot.slane %v6897, 4
        %v6911 = vsel %vm1804, %v6901, %v6910
        %v6913 = vunpack.c.l.s4 1983009808
        %v6914 = vunpack.c.0.s8 %v6913
        %v6915 = vperm.slane %v6909, %v6914
        %v6917 = vunpack.c.l.s4 1983009808
        %v6918 = vunpack.c.0.s8 %v6917
        %v6919 = vperm.slane %v6911, %v6918
        %v6920 = vrot.slane %v6903, 4
        %v6921 = vsel %vm1804, %v6920, %v6899
        %v6922 = vrot.slane %v6899, 4
        %v6923 = vsel %vm1804, %v6903, %v6922
        %v6925 = vunpack.c.l.s4 1983009808
        %v6926 = vunpack.c.0.s8 %v6925
        %v6927 = vperm.slane %v6921, %v6926
        %v6929 = vunpack.c.l.s4 1983009808
        %v6930 = vunpack.c.0.s8 %v6929
        %v6931 = vperm.slane %v6923, %v6930
        %v6932 = vrot.slane %v6927, 4
        %v6933 = vsel %vm1804, %v6932, %v6915
        %v6934 = vrot.slane %v6915, 4
        %v6935 = vsel %vm1804, %v6927, %v6934
        %v6937 = vunpack.c.l.s4 1934713408
        %v6938 = vunpack.c.0.s8 %v6937
        %v6939 = vperm.slane %v6933, %v6938
        %v6941 = vunpack.c.l.s4 1934713408
        %v6942 = vunpack.c.0.s8 %v6941
        %v6943 = vperm.slane %v6935, %v6942
        %v6944 = vrot.slane %v6931, 4
        %v6945 = vsel %vm1804, %v6944, %v6919
        %v6946 = vrot.slane %v6919, 4
        %v6947 = vsel %vm1804, %v6931, %v6946
        %v6949 = vunpack.c.l.s4 1934713408
        %v6950 = vunpack.c.0.s8 %v6949
        %v6951 = vperm.slane %v6945, %v6950
        %v6953 = vunpack.c.l.s4 1934713408
        %v6954 = vunpack.c.0.s8 %v6953
        %v6955 = vperm.slane %v6947, %v6954
        %v6956 = vrot.slane %v6939, 4
        %v6957 = vsel %vm1804, 0.0, %v6956
        %v6958 = vrot.slane %v6943, 4
        %v6959 = vsel %vm1804, 0.0, %v6958
        %v6960 = vrot.slane %v6951, 4
        %v6961 = vsel %vm1804, 0.0, %v6960
        %v6962 = vrot.slane %v6955, 4
        %v6963 = vsel %vm1804, 0.0, %v6962
        %v6964 = vsel %vm1804, %v6958, %v6939
        %v6966 = vunpack.c.l.s4 1983009808
        %v6967 = vunpack.c.0.s8 %v6966
        %v6968 = vperm.slane %v6964, %v6967
        %v6969 = vrot.slane %v6959, 4
        %v6970 = vsel %vm1804, %v6969, %v6957
        %v6972 = vunpack.c.l.s4 1983009808
        %v6973 = vunpack.c.0.s8 %v6972
        %v6974 = vperm.slane %v6970, %v6973
        %v6975 = vsel %vm1804, %v6962, %v6951
        %v6977 = vunpack.c.l.s4 1983009808
        %v6978 = vunpack.c.0.s8 %v6977
        %v6979 = vperm.slane %v6975, %v6978
        %v6980 = vrot.slane %v6963, 4
        %v6981 = vsel %vm1804, %v6980, %v6961
        %v6983 = vunpack.c.l.s4 1983009808
        %v6984 = vunpack.c.0.s8 %v6983
        %v6985 = vperm.slane %v6981, %v6984
        %v6986 = vrot.slane %v6974, 4
        %v6987 = vsel %vm1804, %v6986, %v6968
        %v6988 = vrot.slane %v6968, 4
        %v6989 = vsel %vm1804, %v6974, %v6988
        %v6991 = vunpack.c.l.s4 1934713408
        %v6992 = vunpack.c.0.s8 %v6991
        %v6993 = vperm.slane %v6987, %v6992
        %v6995 = vunpack.c.l.s4 1934713408
        %v6996 = vunpack.c.0.s8 %v6995
        %v6997 = vperm.slane %v6989, %v6996
        %v6998 = vrot.slane %v6985, 4
        %v6999 = vsel %vm1804, %v6998, %v6979
        %v7000 = vrot.slane %v6979, 4
        %v7001 = vsel %vm1804, %v6985, %v7000
        %v7003 = vunpack.c.l.s4 1934713408
        %v7004 = vunpack.c.0.s8 %v7003
        %v7005 = vperm.slane %v6999, %v7004
        %v7007 = vunpack.c.l.s4 1934713408
        %v7008 = vunpack.c.0.s8 %v7007
        %v7009 = vperm.slane %v7001, %v7008
        %v7010 = vrot.slane %v7005, 4
        %v7011 = vsel %vm1804, %v7010, %v6993
        %v7012 = vrot.slane %v6993, 4
        %v7013 = vsel %vm1804, %v7005, %v7012
        %v7014 = vrot.slane %v7009, 4
        %v7015 = vsel %vm1804, %v7014, %v6997
        %v7016 = vrot.slane %v6997, 4
        %v7017 = vsel %vm1804, %v7009, %v7016
        %v7019 = vsel %vm2158, %v6769, 0
        %v7022 = vsel %vm2158, %v6889, 0
        %7024 = vmatpush.xpose.msra.mxu0 0.0
        %7025 = vmatpush.xpose.msra.mxu0 0.0
        %7026 = vmatpush.xpose.msra.mxu0 0.0
        %7027 = vmatpush.xpose.msra.mxu0 0.0
        %7028 = vmatpush.xpose.msra.mxu0 0.0
        %7029 = vmatpush.xpose.msra.mxu0 0.0
        %7030 = vmatpush.xpose.msra.mxu0 0.0
        %7031 = vmatpush.xpose.msra.mxu0 0.0
        %7032 = vmatpush.xpose.msra.mxu0 0.0
        %7033 = vmatpush.xpose.msra.mxu0 0.0
        %7034 = vmatpush.xpose.msra.mxu0 0.0
        %7035 = vmatpush.xpose.msra.mxu0 0.0
        %7036 = vmatpush.xpose.msra.mxu0 0.0
        %7037 = vmatpush.xpose.msra.mxu0 0.0
        %7038 = vmatpush.xpose.msra.mxu0 0.0
        %7039 = vmatpush.xpose.msra.mxu0 %v7022
        %7040 = vmatmul.f32.gmra.mxu0 %v7019
        %v7041 = vpop.f32.mrf.mxu0
        %v7042 = vadd.f32 0.0, %v7041
        %7043 = vdwg.mxu0
        %v7045 = vsel %vm2158, %v6771, 0
        %v7048 = vsel %vm2158, %v6891, 0
        %7050 = vmatpush.xpose.msra.mxu0 0.0
        %7051 = vmatpush.xpose.msra.mxu0 0.0
        %7052 = vmatpush.xpose.msra.mxu0 0.0
        %7053 = vmatpush.xpose.msra.mxu0 0.0
        %7054 = vmatpush.xpose.msra.mxu0 0.0
        %7055 = vmatpush.xpose.msra.mxu0 0.0
        %7056 = vmatpush.xpose.msra.mxu0 0.0
        %7057 = vmatpush.xpose.msra.mxu0 0.0
        %7058 = vmatpush.xpose.msra.mxu0 0.0
        %7059 = vmatpush.xpose.msra.mxu0 0.0
        %7060 = vmatpush.xpose.msra.mxu0 0.0
        %7061 = vmatpush.xpose.msra.mxu0 0.0
        %7062 = vmatpush.xpose.msra.mxu0 0.0
        %7063 = vmatpush.xpose.msra.mxu0 0.0
        %7064 = vmatpush.xpose.msra.mxu0 0.0
        %7065 = vmatpush.xpose.msra.mxu0 %v7048
        %7066 = vmatmul.f32.gmra.mxu0 %v7045
        %v7067 = vpop.f32.mrf.mxu0
        %v7068 = vadd.f32 0.0, %v7067
        %7069 = vdwg.mxu0
        %v7071 = vsel %vm2158, %v6773, 0
        %v7074 = vsel %vm2158, %v6893, 0
        %7076 = vmatpush.xpose.msra.mxu0 0.0
        %7077 = vmatpush.xpose.msra.mxu0 0.0
        %7078 = vmatpush.xpose.msra.mxu0 0.0
        %7079 = vmatpush.xpose.msra.mxu0 0.0
        %7080 = vmatpush.xpose.msra.mxu0 0.0
        %7081 = vmatpush.xpose.msra.mxu0 0.0
        %7082 = vmatpush.xpose.msra.mxu0 0.0
        %7083 = vmatpush.xpose.msra.mxu0 0.0
        %7084 = vmatpush.xpose.msra.mxu0 0.0
        %7085 = vmatpush.xpose.msra.mxu0 0.0
        %7086 = vmatpush.xpose.msra.mxu0 0.0
        %7087 = vmatpush.xpose.msra.mxu0 0.0
        %7088 = vmatpush.xpose.msra.mxu0 0.0
        %7089 = vmatpush.xpose.msra.mxu0 0.0
        %7090 = vmatpush.xpose.msra.mxu0 0.0
        %7091 = vmatpush.xpose.msra.mxu0 %v7074
        %7092 = vmatmul.f32.gmra.mxu0 %v7071
        %v7093 = vpop.f32.mrf.mxu0
        %v7094 = vadd.f32 0.0, %v7093
        %7095 = vdwg.mxu0
        %v7097 = vsel %vm2158, %v6775, 0
        %v7100 = vsel %vm2158, %v6895, 0
        %7102 = vmatpush.xpose.msra.mxu0 0.0
        %7103 = vmatpush.xpose.msra.mxu0 0.0
        %7104 = vmatpush.xpose.msra.mxu0 0.0
        %7105 = vmatpush.xpose.msra.mxu0 0.0
        %7106 = vmatpush.xpose.msra.mxu0 0.0
        %7107 = vmatpush.xpose.msra.mxu0 0.0
        %7108 = vmatpush.xpose.msra.mxu0 0.0
        %7109 = vmatpush.xpose.msra.mxu0 0.0
        %7110 = vmatpush.xpose.msra.mxu0 0.0
        %7111 = vmatpush.xpose.msra.mxu0 0.0
        %7112 = vmatpush.xpose.msra.mxu0 0.0
        %7113 = vmatpush.xpose.msra.mxu0 0.0
        %7114 = vmatpush.xpose.msra.mxu0 0.0
        %7115 = vmatpush.xpose.msra.mxu0 0.0
        %7116 = vmatpush.xpose.msra.mxu0 0.0
        %7117 = vmatpush.xpose.msra.mxu0 %v7100
        %7118 = vmatmul.f32.gmra.mxu0 %v7097
        %v7119 = vpop.f32.mrf.mxu0
        %v7120 = vadd.f32 0.0, %v7119
        %7121 = vdwg.mxu0
        %v7122 = vsel %vm2158, %v7042, -inf
        %7123 = vmax.xlane.f32.xlu0 %v7122
        %v7124 = vpop.xlane.xlu0 %7123
        %v7125 = vsel %vm2158, %v7068, -inf
        %7126 = vmax.xlane.f32.xlu0 %v7125
        %v7127 = vpop.xlane.xlu0 %7126
        %v7128 = vsel %vm2158, %v7094, -inf
        %7129 = vmax.xlane.f32.xlu0 %v7128
        %v7130 = vpop.xlane.xlu0 %7129
        %v7131 = vsel %vm2158, %v7120, -inf
        %7132 = vmax.xlane.f32.xlu0 %v7131
        %v7133 = vpop.xlane.xlu0 %7132
        %v7134 = vsub.f32 %v7042, %v7124
        %v7135 = vsub.f32 %v7068, %v7127
        %v7136 = vsub.f32 %v7094, %v7130
        %v7137 = vsub.f32 %v7120, %v7133
        %v7138 = vmul.f32 %v7134, 1.442695
        %v7139 = vpow.pop %v7138
        %v7140 = vmul.f32 %v7135, 1.442695
        %v7141 = vpow.pop %v7140
        %v7142 = vmul.f32 %v7136, 1.442695
        %v7143 = vpow.pop %v7142
        %v7144 = vmul.f32 %v7137, 1.442695
        %v7145 = vpow.pop %v7144
        %v7146 = vsel %vm2158, %v7139, 0.0
        %7147 = vadd.xlane.f32.xlu0 %v7146
        %v7148 = vpop.xlane.xlu0 %7147
        %v7149 = vsel %vm2158, %v7141, 0.0
        %7150 = vadd.xlane.f32.xlu0 %v7149
        %v7151 = vpop.xlane.xlu0 %7150
        %v7152 = vsel %vm2158, %v7143, 0.0
        %7153 = vadd.xlane.f32.xlu0 %v7152
        %v7154 = vpop.xlane.xlu0 %7153
        %v7155 = vsel %vm2158, %v7145, 0.0
        %7156 = vadd.xlane.f32.xlu0 %v7155
        %v7157 = vpop.xlane.xlu0 %7156
        %v7158 = vrcp.pop %v7148
        %v7159 = vrcp.pop %v7151
        %v7160 = vrcp.pop %v7154
        %v7161 = vrcp.pop %v7157
        %v7162 = vmul.f32 %v7139, %v7158
        %v7163 = vmul.f32 %v7141, %v7159
        %v7164 = vmul.f32 %v7143, %v7160
        %v7165 = vmul.f32 %v7145, %v7161
        %v7167 = vsel %vm2158, %v7162, 0
        %7169 = vmatpush.msra.mxu0 0.0
        %7170 = vmatpush.msra.mxu0 0.0
        %7171 = vmatpush.msra.mxu0 0.0
        %7172 = vmatpush.msra.mxu0 0.0
        %7173 = vmatpush.msra.mxu0 0.0
        %7174 = vmatpush.msra.mxu0 0.0
        %7175 = vmatpush.msra.mxu0 0.0
        %7176 = vmatpush.msra.mxu0 0.0
        %7177 = vmatpush.msra.mxu0 0.0
        %7178 = vmatpush.msra.mxu0 0.0
        %7179 = vmatpush.msra.mxu0 0.0
        %7180 = vmatpush.msra.mxu0 0.0
        %7181 = vmatpush.msra.mxu0 0.0
        %7182 = vmatpush.msra.mxu0 0.0
        %7183 = vmatpush.msra.mxu0 0.0
        %7184 = vmatpush.msra.mxu0 %v7011
        %7185 = vmatmul.f32.gmra.mxu0 %v7167
        %v7186 = vpop.f32.mrf.mxu0
        %v7187 = vadd.f32 0.0, %v7186
        %7188 = vdwg.mxu0
        %v7190 = vsel %vm2158, %v7163, 0
        %7192 = vmatpush.msra.mxu0 0.0
        %7193 = vmatpush.msra.mxu0 0.0
        %7194 = vmatpush.msra.mxu0 0.0
        %7195 = vmatpush.msra.mxu0 0.0
        %7196 = vmatpush.msra.mxu0 0.0
        %7197 = vmatpush.msra.mxu0 0.0
        %7198 = vmatpush.msra.mxu0 0.0
        %7199 = vmatpush.msra.mxu0 0.0
        %7200 = vmatpush.msra.mxu0 0.0
        %7201 = vmatpush.msra.mxu0 0.0
        %7202 = vmatpush.msra.mxu0 0.0
        %7203 = vmatpush.msra.mxu0 0.0
        %7204 = vmatpush.msra.mxu0 0.0
        %7205 = vmatpush.msra.mxu0 0.0
        %7206 = vmatpush.msra.mxu0 0.0
        %7207 = vmatpush.msra.mxu0 %v7013
        %7208 = vmatmul.f32.gmra.mxu0 %v7190
        %v7209 = vpop.f32.mrf.mxu0
        %v7210 = vadd.f32 0.0, %v7209
        %7211 = vdwg.mxu0
        %v7213 = vsel %vm2158, %v7164, 0
        %7215 = vmatpush.msra.mxu0 0.0
        %7216 = vmatpush.msra.mxu0 0.0
        %7217 = vmatpush.msra.mxu0 0.0
        %7218 = vmatpush.msra.mxu0 0.0
        %7219 = vmatpush.msra.mxu0 0.0
        %7220 = vmatpush.msra.mxu0 0.0
        %7221 = vmatpush.msra.mxu0 0.0
        %7222 = vmatpush.msra.mxu0 0.0
        %7223 = vmatpush.msra.mxu0 0.0
        %7224 = vmatpush.msra.mxu0 0.0
        %7225 = vmatpush.msra.mxu0 0.0
        %7226 = vmatpush.msra.mxu0 0.0
        %7227 = vmatpush.msra.mxu0 0.0
        %7228 = vmatpush.msra.mxu0 0.0
        %7229 = vmatpush.msra.mxu0 0.0
        %7230 = vmatpush.msra.mxu0 %v7015
        %7231 = vmatmul.f32.gmra.mxu0 %v7213
        %v7232 = vpop.f32.mrf.mxu0
        %v7233 = vadd.f32 0.0, %v7232
        %7234 = vdwg.mxu0
        %v7236 = vsel %vm2158, %v7165, 0
        %7238 = vmatpush.msra.mxu0 0.0
        %7239 = vmatpush.msra.mxu0 0.0
        %7240 = vmatpush.msra.mxu0 0.0
        %7241 = vmatpush.msra.mxu0 0.0
        %7242 = vmatpush.msra.mxu0 0.0
        %7243 = vmatpush.msra.mxu0 0.0
        %7244 = vmatpush.msra.mxu0 0.0
        %7245 = vmatpush.msra.mxu0 0.0
        %7246 = vmatpush.msra.mxu0 0.0
        %7247 = vmatpush.msra.mxu0 0.0
        %7248 = vmatpush.msra.mxu0 0.0
        %7249 = vmatpush.msra.mxu0 0.0
        %7250 = vmatpush.msra.mxu0 0.0
        %7251 = vmatpush.msra.mxu0 0.0
        %7252 = vmatpush.msra.mxu0 0.0
        %7253 = vmatpush.msra.mxu0 %v7017
        %7254 = vmatmul.f32.gmra.mxu0 %v7236
        %v7255 = vpop.f32.mrf.mxu0
        %v7256 = vadd.f32 0.0, %v7255
        %7257 = vdwg.mxu0
        %v7258 = vrot.slane %v7233, 4
        %v7259 = vsel %vm1804, %v7258, %v7187
        %v7260 = vrot.slane %v7187, 4
        %v7261 = vsel %vm1804, %v7233, %v7260
        %v7263 = vunpack.c.l.s4 1983009808
        %v7264 = vunpack.c.0.s8 %v7263
        %v7265 = vperm.slane %v7259, %v7264
        %v7267 = vunpack.c.l.s4 1983009808
        %v7268 = vunpack.c.0.s8 %v7267
        %v7269 = vperm.slane %v7261, %v7268
        %v7270 = vrot.slane %v7256, 4
        %v7271 = vsel %vm1804, %v7270, %v7210
        %v7272 = vrot.slane %v7210, 4
        %v7273 = vsel %vm1804, %v7256, %v7272
        %v7275 = vunpack.c.l.s4 1983009808
        %v7276 = vunpack.c.0.s8 %v7275
        %v7277 = vperm.slane %v7271, %v7276
        %v7279 = vunpack.c.l.s4 1983009808
        %v7280 = vunpack.c.0.s8 %v7279
        %v7281 = vperm.slane %v7273, %v7280
        %v7282 = vrot.slane %v7277, 4
        %v7283 = vsel %vm1804, %v7282, %v7265
        %v7284 = vrot.slane %v7265, 4
        %v7285 = vsel %vm1804, %v7277, %v7284
        %v7287 = vunpack.c.l.s4 1934713408
        %v7288 = vunpack.c.0.s8 %v7287
        %v7289 = vperm.slane %v7283, %v7288
        %v7291 = vunpack.c.l.s4 1934713408
        %v7292 = vunpack.c.0.s8 %v7291
        %v7293 = vperm.slane %v7285, %v7292
        %v7294 = vrot.slane %v7281, 4
        %v7295 = vsel %vm1804, %v7294, %v7269
        %v7296 = vrot.slane %v7269, 4
        %v7297 = vsel %vm1804, %v7281, %v7296
        %v7299 = vunpack.c.l.s4 1934713408
        %v7300 = vunpack.c.0.s8 %v7299
        %v7301 = vperm.slane %v7295, %v7300
        %v7303 = vunpack.c.l.s4 1934713408
        %v7304 = vunpack.c.0.s8 %v7303
        %v7305 = vperm.slane %v7297, %v7304
        %v7306 = vrot.slane %v7289, 4
        %v7307 = vsel %vm1804, 0.0, %v7306
        %v7308 = vrot.slane %v7293, 4
        %v7309 = vsel %vm1804, 0.0, %v7308
        %v7310 = vrot.slane %v7301, 4
        %v7311 = vsel %vm1804, 0.0, %v7310
        %v7312 = vrot.slane %v7305, 4
        %v7313 = vsel %vm1804, 0.0, %v7312
        %v7314 = vsel %vm1804, %v7308, %v7289
        %v7316 = vunpack.c.l.s4 1983009808
        %v7317 = vunpack.c.0.s8 %v7316
        %v7318 = vperm.slane %v7314, %v7317
        %v7319 = vrot.slane %v7309, 4
        %v7320 = vsel %vm1804, %v7319, %v7307
        %v7322 = vunpack.c.l.s4 1983009808
        %v7323 = vunpack.c.0.s8 %v7322
        %v7324 = vperm.slane %v7320, %v7323
        %v7325 = vsel %vm1804, %v7312, %v7301
        %v7327 = vunpack.c.l.s4 1983009808
        %v7328 = vunpack.c.0.s8 %v7327
        %v7329 = vperm.slane %v7325, %v7328
        %v7330 = vrot.slane %v7313, 4
        %v7331 = vsel %vm1804, %v7330, %v7311
        %v7333 = vunpack.c.l.s4 1983009808
        %v7334 = vunpack.c.0.s8 %v7333
        %v7335 = vperm.slane %v7331, %v7334
        %v7336 = vrot.slane %v7324, 4
        %v7337 = vsel %vm1804, %v7336, %v7318
        %v7338 = vrot.slane %v7318, 4
        %v7339 = vsel %vm1804, %v7324, %v7338
        %v7341 = vunpack.c.l.s4 1934713408
        %v7342 = vunpack.c.0.s8 %v7341
        %v7343 = vperm.slane %v7337, %v7342
        %v7345 = vunpack.c.l.s4 1934713408
        %v7346 = vunpack.c.0.s8 %v7345
        %v7347 = vperm.slane %v7339, %v7346
        %v7348 = vrot.slane %v7335, 4
        %v7349 = vsel %vm1804, %v7348, %v7329
        %v7350 = vrot.slane %v7329, 4
        %v7351 = vsel %vm1804, %v7335, %v7350
        %v7353 = vunpack.c.l.s4 1934713408
        %v7354 = vunpack.c.0.s8 %v7353
        %v7355 = vperm.slane %v7349, %v7354
        %v7357 = vunpack.c.l.s4 1934713408
        %v7358 = vunpack.c.0.s8 %v7357
        %v7359 = vperm.slane %v7351, %v7358
        %v7360 = vrot.slane %v7355, 4
        %v7361 = vsel %vm1804, %v7360, %v7343
        %v7362 = vrot.slane %v7343, 4
        %v7363 = vsel %vm1804, %v7355, %v7362
        %v7364 = vrot.slane %v7359, 4
        %v7365 = vsel %vm1804, %v7364, %v7347
        %v7366 = vrot.slane %v7347, 4
        %v7367 = vsel %vm1804, %v7359, %v7366
        %7369 = vrot.lane.b32.xlu0 %v7363, 8
        %v7370 = vpop.permute.xlu0 %7369
        %7373 = vrot.lane.b32.xlu0 %v7365, 16
        %v7374 = vpop.permute.xlu0 %7373
        %7377 = vrot.lane.b32.xlu0 %v7367, 24
        %v7378 = vpop.permute.xlu0 %7377
        %v7380 = vsel %vm2158, %v7361, %v7370
        %v7381 = vsel %vm2522, %v7380, %v7374
        %v7382 = vsel %vm2524, %v7381, %v7378
        %v7384 = vperm.slane %v6606, 0
        %v7387 = vsel %vm1769, %v7382, 0
        %7389 = vmatpush.msra.mxu0 0.0
        %7390 = vmatpush.msra.mxu0 0.0
        %7391 = vmatpush.msra.mxu0 0.0
        %7392 = vmatpush.msra.mxu0 0.0
        %7393 = vmatpush.msra.mxu0 0.0
        %7394 = vmatpush.msra.mxu0 0.0
        %7395 = vmatpush.msra.mxu0 0.0
        %7396 = vmatpush.msra.mxu0 0.0
        %7397 = vmatpush.msra.mxu0 0.0
        %7398 = vmatpush.msra.mxu0 0.0
        %7399 = vmatpush.msra.mxu0 0.0
        %7400 = vmatpush.msra.mxu0 0.0
        %7401 = vmatpush.msra.mxu0 %v6604
        %7402 = vmatpush.msra.mxu0 %v6603
        %7403 = vmatpush.msra.mxu0 %v6602
        %7404 = vmatpush.msra.mxu0 %v6601
        %7405 = vmatmul.f32.gmra.mxu0 %v7387
        %v7406 = vpop.f32.mrf.mxu0
        %v7407 = vadd.f32 %v7384, %v7406
        %7408 = vdwg.mxu0
        %v7409 = vadd.f32 %v6585, %v7407
        %s7410 = scalar_lea.vmem [#allocation34], 1
        %v7411 = vld [vmem:[%s7410] sm:$0x1]
        %s7412 = scalar_lea.vmem [#allocation35], 1
        %v7413 = vld [vmem:[%s7412] sm:$0x1]
        %v7414 = vmul.f32 %v7409, %v7409
        %7416 = vrot.lane.b32.xlu0 %v7414, 32
        %v7417 = vpop.permute.xlu0 %7416
        %v7419 = vsel %vm1769, %v7409, %v7417
        %v7421 = vsel %vm2561, %v7419, 0
        %7423 = vmatpush.msra.mxu0 0.0
        %7424 = vmatpush.msra.mxu0 0.0
        %7425 = vmatpush.msra.mxu0 0.0
        %7426 = vmatpush.msra.mxu0 0.0
        %7427 = vmatpush.msra.mxu0 0.0
        %7428 = vmatpush.msra.mxu0 0.0
        %7429 = vmatpush.msra.mxu0 0.0
        %7430 = vmatpush.msra.mxu0 0.0
        %7431 = vmatpush.msra.mxu0 %v1754
        %7432 = vmatpush.msra.mxu0 %v1753
        %7433 = vmatpush.msra.mxu0 %v1752
        %7434 = vmatpush.msra.mxu0 %v1751
        %7435 = vmatpush.msra.mxu0 %v1750
        %7436 = vmatpush.msra.mxu0 %v1749
        %7437 = vmatpush.msra.mxu0 %v1748
        %7438 = vmatpush.msra.mxu0 %v1747
        %7439 = vmatmul.f32.gmra.mxu0 %v7421
        %v7440 = vpop.f32.mrf.mxu0
        %v7441 = vadd.f32 0.0, %v7440
        %7442 = vdwg.mxu0
        %v7443 = vmul.f32 %v7441, %v7441
        %7445 = vrot.lane.b32.xlu0 %v7443, 1
        %v7446 = vpop.permute.xlu0 %7445
        %v7448 = vsub.f32 %v7441, %v7446
        %7450 = vset.pattern.permute.xlu0 0
        %7451 = vperm.xlu0 %7450, %v7441
        %v7452 = vpop.permute.xlu0 %7451
        %v7454 = vsub.f32 %v7409, %v7452
        %v7455 = vadd.f32 %v7448, 1e-05
        %v7456 = vrsqrt.pop %v7455
        %v7457 = vmul.f32 %v7456, %v7455
        %v7458 = vmul.f32 %v7457, %v7456
        %v7459 = vmul.f32 0.5, %v7458
        %v7460 = vsub.f32 1.5, %v7459
        %v7461 = vmul.f32 %v7456, %v7460
        %vm7462 = vweird.f32 %v7455
        %vm7463 = vweird.f32 %v7456
        %vm7464 = vmor %vm7462, %vm7463
        %v7465 = vsel %vm7464, %v7456, %v7461
        %7467 = vset.pattern.permute.xlu0 1
        %7468 = vperm.xlu0 %7467, %v7465
        %v7469 = vpop.permute.xlu0 %7468
        %v7471 = vmul.f32 %v7454, %v7469
        %v7473 = vperm.slane %v7411, 0
        %v7475 = vmul.f32 %v7471, %v7473
        %v7477 = vperm.slane %v7413, 0
        %v7479 = vadd.f32 %v7475, %v7477
        %s7480 = scalar_lea.vmem [#allocation37], 32
        %v7481 = vld [vmem:[%s7480] sm:$0xff]
        %v7482 = vld [vmem:[%s7480 + $0x8] sm:$0xff]
        %v7483 = vld [vmem:[%s7480 + $0x10] sm:$0xff]
        %v7484 = vld [vmem:[%s7480 + $0x18] sm:$0xff]
        %s7485 = scalar_lea.vmem [#allocation38], 1
        %v7486 = vld [vmem:[%s7485] sm:$0x1]
        %s7487 = scalar_lea.vmem %s67, 64
        %v7488 = vld [vmem:[%s7487] sm:$0xff]
        %v7489 = vld [vmem:[%s7487 + $0x8] sm:$0xff]
        %v7490 = vld [vmem:[%s7487 + $0x10] sm:$0xff]
        %v7491 = vld [vmem:[%s7487 + $0x18] sm:$0xff]
        %v7492 = vld [vmem:[%s7487 + $0x20] sm:$0xff]
        %v7493 = vld [vmem:[%s7487 + $0x28] sm:$0xff]
        %v7494 = vld [vmem:[%s7487 + $0x30] sm:$0xff]
        %v7495 = vld [vmem:[%s7487 + $0x38] sm:$0xff]
        %s7496 = scalar_lea.vmem [#allocation40], 1
        %v7497 = vld [vmem:[%s7496] sm:$0x1]
        %v7499 = vperm.slane %v7486, 0
        %v7502 = vsel %vm1769, %v7479, 0
        %7504 = vmatpush.msra.mxu0 0.0
        %7505 = vmatpush.msra.mxu0 0.0
        %7506 = vmatpush.msra.mxu0 0.0
        %7507 = vmatpush.msra.mxu0 0.0
        %7508 = vmatpush.msra.mxu0 0.0
        %7509 = vmatpush.msra.mxu0 0.0
        %7510 = vmatpush.msra.mxu0 0.0
        %7511 = vmatpush.msra.mxu0 0.0
        %7512 = vmatpush.msra.mxu0 0.0
        %7513 = vmatpush.msra.mxu0 0.0
        %7514 = vmatpush.msra.mxu0 0.0
        %7515 = vmatpush.msra.mxu0 0.0
        %7516 = vmatpush.msra.mxu0 %v7484
        %7517 = vmatpush.msra.mxu0 %v7483
        %7518 = vmatpush.msra.mxu0 %v7482
        %7519 = vmatpush.msra.mxu0 %v7481
        %7520 = vmatmul.f32.gmra.mxu0 %v7502
        %v7521 = vpop.f32.mrf.mxu0
        %v7522 = vadd.f32 %v7499, %v7521
        %7523 = vdwg.mxu0
        %v7524 = vmax.f32 %v7522, 0.0
        %v7526 = vperm.slane %v7497, 0
        %v7529 = vsel %vm2561, %v7524, 0
        %7531 = vmatpush.msra.mxu0 0.0
        %7532 = vmatpush.msra.mxu0 0.0
        %7533 = vmatpush.msra.mxu0 0.0
        %7534 = vmatpush.msra.mxu0 0.0
        %7535 = vmatpush.msra.mxu0 0.0
        %7536 = vmatpush.msra.mxu0 0.0
        %7537 = vmatpush.msra.mxu0 0.0
        %7538 = vmatpush.msra.mxu0 0.0
        %7539 = vmatpush.msra.mxu0 %v7495
        %7540 = vmatpush.msra.mxu0 %v7494
        %7541 = vmatpush.msra.mxu0 %v7493
        %7542 = vmatpush.msra.mxu0 %v7492
        %7543 = vmatpush.msra.mxu0 %v7491
        %7544 = vmatpush.msra.mxu0 %v7490
        %7545 = vmatpush.msra.mxu0 %v7489
        %7546 = vmatpush.msra.mxu0 %v7488
        %7547 = vmatmul.f32.gmra.mxu0 %v7529
        %v7548 = vpop.f32.mrf.mxu0
        %v7549 = vadd.f32 %v7526, %v7548
        %7550 = vdwg.mxu0
        %v7551 = vadd.f32 %v7479, %v7549
        %s7552 = scalar_lea.vmem [#allocation41], 1
        %v7553 = vld [vmem:[%s7552] sm:$0x1]
        %s7554 = scalar_lea.vmem [#allocation43], 1
        %v7555 = vld [vmem:[%s7554] sm:$0x1]
        %v7556 = vmul.f32 %v7551, %v7551
        %7558 = vrot.lane.b32.xlu0 %v7556, 32
        %v7559 = vpop.permute.xlu0 %7558
        %v7561 = vsel %vm1769, %v7551, %v7559
        %v7563 = vsel %vm2561, %v7561, 0
        %7565 = vmatpush.msra.mxu0 0.0
        %7566 = vmatpush.msra.mxu0 0.0
        %7567 = vmatpush.msra.mxu0 0.0
        %7568 = vmatpush.msra.mxu0 0.0
        %7569 = vmatpush.msra.mxu0 0.0
        %7570 = vmatpush.msra.mxu0 0.0
        %7571 = vmatpush.msra.mxu0 0.0
        %7572 = vmatpush.msra.mxu0 0.0
        %7573 = vmatpush.msra.mxu0 %v1754
        %7574 = vmatpush.msra.mxu0 %v1753
        %7575 = vmatpush.msra.mxu0 %v1752
        %7576 = vmatpush.msra.mxu0 %v1751
        %7577 = vmatpush.msra.mxu0 %v1750
        %7578 = vmatpush.msra.mxu0 %v1749
        %7579 = vmatpush.msra.mxu0 %v1748
        %7580 = vmatpush.msra.mxu0 %v1747
        %7581 = vmatmul.f32.gmra.mxu0 %v7563
        %v7582 = vpop.f32.mrf.mxu0
        %v7583 = vadd.f32 0.0, %v7582
        %7584 = vdwg.mxu0
        %v7585 = vmul.f32 %v7583, %v7583
        %7587 = vrot.lane.b32.xlu0 %v7585, 1
        %v7588 = vpop.permute.xlu0 %7587
        %v7590 = vsub.f32 %v7583, %v7588
        %7592 = vset.pattern.permute.xlu0 0
        %7593 = vperm.xlu0 %7592, %v7583
        %v7594 = vpop.permute.xlu0 %7593
        %v7596 = vsub.f32 %v7551, %v7594
        %v7597 = vadd.f32 %v7590, 1e-05
        %v7598 = vrsqrt.pop %v7597
        %v7599 = vmul.f32 %v7598, %v7597
        %v7600 = vmul.f32 %v7599, %v7598
        %v7601 = vmul.f32 0.5, %v7600
        %v7602 = vsub.f32 1.5, %v7601
        %v7603 = vmul.f32 %v7598, %v7602
        %vm7604 = vweird.f32 %v7597
        %vm7605 = vweird.f32 %v7598
        %vm7606 = vmor %vm7604, %vm7605
        %v7607 = vsel %vm7606, %v7598, %v7603
        %7609 = vset.pattern.permute.xlu0 1
        %7610 = vperm.xlu0 %7609, %v7607
        %v7611 = vpop.permute.xlu0 %7610
        %v7613 = vmul.f32 %v7596, %v7611
        %v7615 = vperm.slane %v7553, 0
        %v7617 = vmul.f32 %v7613, %v7615
        %v7619 = vperm.slane %v7555, 0
        %v7621 = vadd.f32 %v7617, %v7619
        %v7622 = vld [vmem:[#allocation44] sm:$0x1]
        %v7623 = vld [vmem:[#allocation46] sm:$0x1]
        %v7624 = vmul.f32 %v7621, %v7621
        %7626 = vrot.lane.b32.xlu0 %v7624, 32
        %v7627 = vpop.permute.xlu0 %7626
        %v7629 = vsel %vm1769, %v7621, %v7627
        %v7631 = vsel %vm2561, %v7629, 0
        %7633 = vmatpush.msra.mxu0 0.0
        %7634 = vmatpush.msra.mxu0 0.0
        %7635 = vmatpush.msra.mxu0 0.0
        %7636 = vmatpush.msra.mxu0 0.0
        %7637 = vmatpush.msra.mxu0 0.0
        %7638 = vmatpush.msra.mxu0 0.0
        %7639 = vmatpush.msra.mxu0 0.0
        %7640 = vmatpush.msra.mxu0 0.0
        %7641 = vmatpush.msra.mxu0 %v1754
        %7642 = vmatpush.msra.mxu0 %v1753
        %7643 = vmatpush.msra.mxu0 %v1752
        %7644 = vmatpush.msra.mxu0 %v1751
        %7645 = vmatpush.msra.mxu0 %v1750
        %7646 = vmatpush.msra.mxu0 %v1749
        %7647 = vmatpush.msra.mxu0 %v1748
        %7648 = vmatpush.msra.mxu0 %v1747
        %7649 = vmatmul.f32.gmra.mxu0 %v7631
        %v7650 = vpop.f32.mrf.mxu0
        %v7651 = vadd.f32 0.0, %v7650
        %7652 = vdwg.mxu0
        %v7653 = vmul.f32 %v7651, %v7651
        %7655 = vrot.lane.b32.xlu0 %v7653, 1
        %v7656 = vpop.permute.xlu0 %7655
        %v7658 = vsub.f32 %v7651, %v7656
        %7660 = vset.pattern.permute.xlu0 0
        %7661 = vperm.xlu0 %7660, %v7651
        %v7662 = vpop.permute.xlu0 %7661
        %v7664 = vsub.f32 %v7621, %v7662
        %v7665 = vadd.f32 %v7658, 1e-05
        %v7666 = vrsqrt.pop %v7665
        %v7667 = vmul.f32 %v7666, %v7665
        %v7668 = vmul.f32 %v7667, %v7666
        %v7669 = vmul.f32 0.5, %v7668
        %v7670 = vsub.f32 1.5, %v7669
        %v7671 = vmul.f32 %v7666, %v7670
        %vm7672 = vweird.f32 %v7665
        %vm7673 = vweird.f32 %v7666
        %vm7674 = vmor %vm7672, %vm7673
        %v7675 = vsel %vm7674, %v7666, %v7671
        %7677 = vset.pattern.permute.xlu0 1
        %7678 = vperm.xlu0 %7677, %v7675
        %v7679 = vpop.permute.xlu0 %7678
        %v7681 = vmul.f32 %v7664, %v7679
        %v7683 = vperm.slane %v7622, 0
        %v7685 = vmul.f32 %v7681, %v7683
        %v7687 = vperm.slane %v7623, 0
        %v7689 = vadd.f32 %v7685, %v7687
        %v7690 = vld [vmem:[%s79] sm:$0xff]
        %v7691 = vld [vmem:[%s79 + $0x8] sm:$0xff]
        %v7692 = vld [vmem:[%s79 + $0x10] sm:$0xff]
        %v7693 = vld [vmem:[%s79 + $0x18] sm:$0xff]
        %v7694 = vld [vmem:[#allocation47] sm:$0x1]
        %v7696 = vperm.slane %v7694, 0
        %v7699 = vsel %vm1769, %v7689, 0
        %7701 = vmatpush.msra.mxu0 0.0
        %7702 = vmatpush.msra.mxu0 0.0
        %7703 = vmatpush.msra.mxu0 0.0
        %7704 = vmatpush.msra.mxu0 0.0
        %7705 = vmatpush.msra.mxu0 0.0
        %7706 = vmatpush.msra.mxu0 0.0
        %7707 = vmatpush.msra.mxu0 0.0
        %7708 = vmatpush.msra.mxu0 0.0
        %7709 = vmatpush.msra.mxu0 0.0
        %7710 = vmatpush.msra.mxu0 0.0
        %7711 = vmatpush.msra.mxu0 0.0
        %7712 = vmatpush.msra.mxu0 0.0
        %7713 = vmatpush.msra.mxu0 %v7693
        %7714 = vmatpush.msra.mxu0 %v7692
        %7715 = vmatpush.msra.mxu0 %v7691
        %7716 = vmatpush.msra.mxu0 %v7690
        %7717 = vmatmul.f32.gmra.mxu0 %v7699
        %v7718 = vpop.f32.mrf.mxu0
        %v7719 = vadd.f32 %v7696, %v7718
        %7720 = vdwg.mxu0
        %7721 = vst [vmem:[%s1746] sm:$0xff] %v7719
        %s7722 = sand.u32 %s996, 1
        %s7723 = scalar_lea.sflag [#allocation4], %s7722
        %s7724 = sand.u32 %s996, 1
        %s7725 = smul.addr %s7724, 8
        %s7726 = scalar_lea.vmem [#allocation49], %s7725
        // Predicated region
        $region305: #{transformer_forward.1} parent=183 // pred_check
          %p7727 = pneg %p1006
        $region306: #{transformer_forward.1} parent=183 // pred_check_branch
          %7729 = sbr.rel (%p7727) target = $region308
        $region307: #{transformer_forward.1} parent=183 // pred_region
          %7731 = vsyncadd %s7723, 0
          %s7732 = smul.addr %s117, 8
          %s7733 = scalar_lea.hbm %s83, %s7732
          %s7735 = sshll.u32 %s7726, 4
          %s7736 = int_to_ptr.vmem [resolvable:$true] %s7735
          %s7737 = sshll.u32 %s7733, 4
          %s7738 = int_to_ptr.hbm [resolvable:$true] %s7737
          %7740 = dma.vmem_to_hbm [thread:$0]  %s7736, 128, %s7738, %s7723
        $region308: #{transformer_forward.1} parent=183 // pred_fallthru
          _
      $region184: #{transformer_forward.1} parent=5 // pred_fallthru
        _
      %p7741 = scmp.le.s32.totalorder 2, %s112
      // Predicated region
      $region309: #{transformer_forward.1} parent=5 // pred_check
        %p7742 = pneg %p7741
      $region310: #{transformer_forward.1} parent=5 // pred_check_branch
        %7744 = sbr.rel (%p7742) target = $region312
      $region311: #{transformer_forward.1} parent=5 // pred_region
        %s7745 = ssub.s32 %s112, 2
        // Predicated region
        $region313: #{transformer_forward.1} parent=311 // pred_check
          %p7746 = pneg %p1012
        $region314: #{transformer_forward.1} parent=311 // pred_check_branch
          %7748 = sbr.rel (%p7746) target = $region316
        $region315: #{transformer_forward.1} parent=311 // pred_region
          %s7749 = sand.u32 %s997, 1
          %s7750 = scalar_lea.sflag [#allocation4], %s7749
          %s7751 = sand.u32 %s997, 1
          %s7752 = smul.addr %s7751, 8
          %s7753 = scalar_lea.vmem [#allocation49], %s7752
          %7755 = dma.done %s7750, 128
        $region316: #{transformer_forward.1} parent=311 // pred_fallthru
          _
      $region312: #{transformer_forward.1} parent=5 // pred_fallthru
        _
    $region6: #{transformer_forward.1} parent=1 // loop_footer
      %s116 = sadd.s32 1, %s112
    $region7: #{transformer_forward.1} parent=1 // loop_footer_branch
      %111 = sbr.rel target = $region3
    $region8: #{transformer_forward.1} parent=1 // loop_exit
      _
    %7756 = vsyncpa [#allocation3], 1
    %s7757 = scalar_lea.sflag [#allocation3], 1
    %7758 = vsyncpa %s7757, 1
    %7759 = vsyncpa [#allocation6], 1
    %s7760 = scalar_lea.sflag [#allocation6], 1
    %7761 = vsyncpa %s7760, 1
    %7762 = vsyncpa [#allocation9], 1
    %7763 = vsyncpa [#allocation12], 1
    %7764 = vsyncpa [#allocation15], 1
    %7765 = vsyncpa [#allocation18], 1
    %7766 = vsyncpa [#allocation21], 1
    %7767 = vsyncpa [#allocation24], 1
    %7768 = vsyncpa [#allocation27], 1
    %7769 = vsyncpa [#allocation30], 1
    %7770 = vsyncpa [#allocation33], 1
    %7771 = vsyncpa [#allocation36], 1
    %7772 = vsyncpa [#allocation39], 1
    %7773 = vsyncpa [#allocation42], 1
    %7774 = vsyncpa [#allocation45], 1
    %7775 = vsyncpa [#allocation48], 1
    %7776 = vsyncpa [#allocation4], 1
    %s7777 = scalar_lea.sflag [#allocation4], 1
    %7778 = vsyncpa %s7777, 1

</llo_original>
